<compile_context>
chip_gen: v7x
topology: tpu7x:2x2x1
jax: 0.10.0
libtpu: 0.0.40
codegen_flags: <defaults>
</compile_context>

<pallas_src>
import functools

import jax
import jax.numpy as jnp
from jax import lax
from jax.experimental import pallas as pl
from jax.experimental.pallas import tpu as pltpu

_BN_EPS = 1e-5
_VMEM_LIMIT = 32 * 1024 * 1024


def _sigmoid(x):
    # tanh form: one EUP op instead of exp + add + divide.
    return 0.5 * jnp.tanh(0.5 * x) + 0.5


def _full_spec(shape):
    """Whole-array-resident BlockSpec (used by the grid-less kernels)."""
    return pl.BlockSpec(shape, lambda *_: (0,) * len(shape))


# --------------------------------- kernels ---------------------------------- #

def _embed_kernel(ids_ref, emb_hbm, out_ref, ebuf, sem, *, batch, seqlen):
    """Row-gather embedding lookup written time-major.

    grid=(S,). Token ids live in SMEM (scalar prefetch); the table stays in HBM and
    only the B rows needed for this time step are DMA'd, so the table never has to be
    VMEM resident (matters at production vocab on v7x's 64 MiB VMEM)."""
    t = pl.program_id(0)
    for b in range(batch):                              # issue all row DMAs
        tok = ids_ref[b * seqlen + t]
        pltpu.make_async_copy(emb_hbm.at[tok], ebuf.at[b], sem.at[b]).start()
    for b in range(batch):                              # then wait on them
        pltpu.make_async_copy(emb_hbm.at[0], ebuf.at[b], sem.at[b]).wait()
    out_ref[...] = ebuf[...]


def _bilstm_layer_kernel(x_ref, wih_ref, whhf_ref, whhb_ref, b_ref, y_ref,
                         gpre_ref, hf_ref, *, seqlen, batch, hidden):
    """One bidirectional LSTM layer in a single kernel invocation.

    * Input-to-hidden projections for both directions / all time steps are hoisted out
      of the recurrence into one (S*B, D) x (D, 8H) matmul (lane-dense N = 8H).
    * The time recurrence runs in-kernel (lax.fori_loop, unroll=True); h/c state never
      leaves VMEM/vregs and there is no per-grid-step overhead.
    * Gate columns were permuted offline to [i|f|o|g]: one sigmoid on a contiguous
      (B, 3H) slab, one tanh on (B, H).
    * Output is a single lane-dense (S, B, 2H) tensor (2H = 128): no concatenate in the
      wrapper and no 64-lane masked stores."""
    s_len, bsz, h = seqlen, batch, hidden
    d = x_ref.shape[-1]

    # Hoisted input projection for the whole sequence, both directions.
    x_flat = x_ref[...].reshape(s_len * bsz, d)
    gpre = (jnp.dot(x_flat, wih_ref[...], preferred_element_type=jnp.float32)
            + b_ref[...])
    gpre_ref[...] = gpre.reshape(s_len, bsz, 8 * h)

    whh_f = whhf_ref[...]
    whh_b = whhb_ref[...]

    def cell(pre, h_prev, c_prev, whh):
        g = pre + jnp.dot(h_prev, whh, preferred_element_type=jnp.float32)
        ifo = _sigmoid(g[:, :3 * h])                    # [i | f | o] contiguous slab
        gg = jnp.tanh(g[:, 3 * h:])
        c = ifo[:, h:2 * h] * c_prev + ifo[:, :h] * gg
        return ifo[:, 2 * h:] * jnp.tanh(c), c

    def fwd_body(t, carry):
        hp, cp = carry
        hn, cn = cell(gpre_ref[t][:, :4 * h], hp, cp, whh_f)
        hf_ref[t] = hn                                  # stage fwd outputs in VMEM
        return hn, cn

    def bwd_body(t, carry):
        s = s_len - 1 - t
        hp, cp = carry
        hn, cn = cell(gpre_ref[s][:, 4 * h:], hp, cp, whh_b)
        # One lane-dense (B, 2H) store per step: [fwd | bwd].
        y_ref[s] = jnp.concatenate([hf_ref[s], hn], axis=-1)
        return hn, cn

    z = jnp.zeros((bsz, h), jnp.float32)
    lax.fori_loop(0, s_len, fwd_body, (z, z), unroll=True)
    lax.fori_loop(0, s_len, bwd_body, (z, z), unroll=True)


def _head_kernel(*refs, seqlen, n_labels, n_fc):
    """Fused head: max-pool over the sequence -> FC_Classifier (fin-BN / per-layer BN
    and biases folded into the weights offline) -> final softmax.

    The attentioner + Softmax(dim=2) of the reference act on a singleton dim, so the
    attention weights are identically 1.0 and the weighted pool degenerates to an
    elementwise max over the sequence; the dead attention math is removed (identical
    output, the pure-JAX reference below still computes it as proof)."""
    x_ref = refs[0]
    fc_refs = refs[1:1 + 2 * n_fc]
    wo_ref, bo_ref, o_ref = refs[1 + 2 * n_fc:]

    pooled = x_ref[0]
    for s in range(1, seqlen):                          # torch.max(x_attened, dim=1)
        pooled = jnp.maximum(pooled, x_ref[s])

    h = pooled
    for i in range(n_fc):                               # Linear+BN+Dropout+ReLU (folded)
        w_ref, b_ref = fc_refs[2 * i], fc_refs[2 * i + 1]
        h = jnp.maximum(
            jnp.dot(h, w_ref[...], preferred_element_type=jnp.float32) + b_ref[...],
            0.0)
    logits = jnp.dot(h, wo_ref[...], preferred_element_type=jnp.float32) + bo_ref[...]

    # Mask the zero-padded label lanes, then the final softmax (F.softmax, dim=1).
    lane = lax.broadcasted_iota(jnp.int32, logits.shape, 1)
    logits = jnp.where(lane < n_labels, logits, -1e30)
    mx = jnp.max(logits, axis=-1, keepdims=True)
    ex = jnp.exp(logits - mx)
    o_ref[...] = ex / jnp.sum(ex, axis=-1, keepdims=True)


# --------------------------------- wrappers --------------------------------- #

def embed_lookup_tm(ids_flat, emb, *, seqlen, batch):
    v, e = emb.shape
    return pl.pallas_call(
        functools.partial(_embed_kernel, batch=batch, seqlen=seqlen),
        out_shape=jax.ShapeDtypeStruct((seqlen, batch, e), jnp.float32),
        grid_spec=pltpu.PrefetchScalarGridSpec(
            num_scalar_prefetch=1,
            grid=(seqlen,),
            in_specs=[pl.BlockSpec(memory_space=pl.ANY)],       # table stays in HBM
            out_specs=pl.BlockSpec((None, batch, e), lambda t, ids: (t, 0, 0)),
            scratch_shapes=[pltpu.VMEM((batch, e), jnp.float32),
                            pltpu.SemaphoreType.DMA((batch,))]),
        compiler_params=pltpu.CompilerParams(
            dimension_semantics=("arbitrary",),
            vmem_limit_bytes=_VMEM_LIMIT),
    )(ids_flat, emb)


def bilstm_layer(x_tm, layer):
    """x_tm: (S, B, D) time-major. Returns (S, B, 2H) with [fwd | bwd] lanes."""
    s_len, b, d = x_tm.shape
    h = layer["whh_f"].shape[0]
    return pl.pallas_call(
        functools.partial(_bilstm_layer_kernel, seqlen=s_len, batch=b, hidden=h),
        out_shape=jax.ShapeDtypeStruct((s_len, b, 2 * h), jnp.float32),
        in_specs=[_full_spec((s_len, b, d)),
                  _full_spec((d, 8 * h)),
                  _full_spec((h, 4 * h)),
                  _full_spec((h, 4 * h)),
                  _full_spec((1, 8 * h))],
        out_specs=_full_spec((s_len, b, 2 * h)),
        scratch_shapes=[pltpu.VMEM((s_len, b, 8 * h), jnp.float32),   # hoisted g_pre
                        pltpu.VMEM((s_len, b, h), jnp.float32)],      # staged fwd h's
        compiler_params=pltpu.CompilerParams(vmem_limit_bytes=_VMEM_LIMIT),
    )(x_tm, layer["wih"], layer["whh_f"], layer["whh_b"], layer["b"])


def head_classifier(x_tm, fcs, out_layer, *, n_labels):
    s_len, b, _ = x_tm.shape
    l_pad = out_layer["w"].shape[1]
    args = [x_tm]
    for fc in fcs:
        args += [fc["w"], fc["b"]]
    args += [out_layer["w"], out_layer["b"]]
    return pl.pallas_call(
        functools.partial(_head_kernel, seqlen=s_len, n_labels=n_labels,
                          n_fc=len(fcs)),
        out_shape=jax.ShapeDtypeStruct((b, l_pad), jnp.float32),
        in_specs=[_full_spec(a.shape) for a in args],
        out_specs=_full_spec((b, l_pad)),
        compiler_params=pltpu.CompilerParams(vmem_limit_bytes=_VMEM_LIMIT),
    )(*args)


def attention_birnn_forward(kparams, tokens, *, n_labels):
    b, s_len = tokens.shape
    b_pad = max(8, ((b + 7) // 8) * 8)           # full sublanes (8); slice back below
    if b_pad != b:
        tokens = jnp.pad(tokens, ((0, b_pad - b), (0, 0)))    # pad with token id 0
    ids_flat = tokens.reshape(-1).astype(jnp.int32)           # batch-major (B_pad*S,)

    # WordEmbedding (dropouts identity at inference); time-major (S, B, E) directly.
    x = embed_lookup_tm(ids_flat, kparams["emb"], seqlen=s_len, batch=b_pad)
    # Stacked bidirectional LSTM, h0 = c0 = 0; inter-layer dropout identity (eval).
    for layer in kparams["lstm"]:
        x = bilstm_layer(x, layer)                            # (S, B_pad, 2H), no concat
    probs = head_classifier(x, kparams["clf_fcs"], kparams["clf_out"],
                            n_labels=n_labels)
    return probs[:b, :n_labels]


# ------------------------ parameters: init + folding ------------------------- #

def _bn_fold(gamma, beta, mean, var, eps=_BN_EPS):
    scale = gamma / jnp.sqrt(var + eps)
    shift = beta - mean * scale
    return scale, shift


def _permute_gates(w):
    """Reorder LSTM gate columns [i, f, g, o] -> [i, f, o, g] (done offline) so the
    kernel applies one sigmoid to a contiguous 3H slab and one tanh to the last H."""
    h = w.shape[-1] // 4
    return jnp.concatenate([w[..., :2 * h], w[..., 3 * h:], w[..., 2 * h:3 * h]],
                           axis=-1)


def init_raw_params(key, *, vocab, emb_dim, hidden, n_layers, n_labels, clf_hidden):
    keys = iter(jax.random.split(key, 64))
    nxt = lambda: next(keys)

    def bn(f):
        return dict(
            gamma=1.0 + 0.1 * jax.random.normal(nxt(), (f,), jnp.float32),
            beta=0.1 * jax.random.normal(nxt(), (f,), jnp.float32),
            mean=0.1 * jax.random.normal(nxt(), (f,), jnp.float32),
            var=jax.random.uniform(nxt(), (f,), jnp.float32, 0.5, 1.5))

    def linear(fin, fout):
        bound = 1.0 / (fin ** 0.5)
        w = jax.random.uniform(nxt(), (fin, fout), jnp.float32, -bound, bound)
        bb = jax.random.uniform(nxt(), (fout,), jnp.float32, -bound, bound)
        return w, bb

    def lstm_dir(din, h):
        bound = 1.0 / (h ** 0.5)
        return dict(
            wih=jax.random.uniform(nxt(), (din, 4 * h), jnp.float32, -bound, bound),
            whh=jax.random.uniform(nxt(), (h, 4 * h), jnp.float32, -bound, bound),
            b=jax.random.uniform(nxt(), (4 * h,), jnp.float32, -bound, bound))

    p = {"emb": 0.1 * jax.random.normal(nxt(), (vocab, emb_dim), jnp.float32)}
    layers, d_in = [], emb_dim
    for _ in range(n_layers):
        layers.append(dict(fwd=lstm_dir(d_in, hidden), bwd=lstm_dir(d_in, hidden)))
        d_in = 2 * hidden
    p["lstm"] = layers
    p["att_bn"] = bn(2 * hidden)                 # used only by the reference (dead math)
    p["att_w"], p["att_b"] = linear(2 * hidden, 1)
    p["fin_bn"] = bn(2 * hidden)
    szs = [2 * hidden] + list(clf_hidden)
    p["fcs"] = []
    for i in range(len(szs) - 1):
        w, bb = linear(szs[i], szs[i + 1])
        p["fcs"].append(dict(w=w, b=bb, bn=bn(szs[i + 1])))
    p["fout_w"], p["fout_b"] = linear(szs[-1], n_labels)
    return p


def fold_for_kernels(raw, *, n_labels, label_pad):
    """All eval-mode BN folding, gate permutation and fwd/bwd weight concatenation is
    done here, offline, so the kernels see only fused lane-dense weights."""
    k = {"emb": raw["emb"]}
    lstm = []
    for layer in raw["lstm"]:
        wf, wb = layer["fwd"], layer["bwd"]
        lstm.append(dict(
            wih=jnp.concatenate([_permute_gates(wf["wih"]),
                                 _permute_gates(wb["wih"])], axis=-1),     # (D, 8H)
            whh_f=_permute_gates(wf["whh"]),                               # (H, 4H)
            whh_b=_permute_gates(wb["whh"]),
            b=jnp.concatenate([_permute_gates(wf["b"]),
                               _permute_gates(wb["b"])], axis=-1)[None, :]))  # (1, 8H)
    k["lstm"] = lstm

    # Attentioner params are mathematically dead (Softmax over a singleton dim == 1.0);
    # they are not shipped to the kernels.
    s0, t0 = _bn_fold(**raw["fin_bn"])           # FC_Classifier.fin (Dropout identity)
    fcs = []
    for i, layer in enumerate(raw["fcs"]):
        w, bb = layer["w"], layer["b"]
        if i == 0:                               # fold fin BN into the first Linear
            bb = t0 @ w + bb
            w = s0[:, None] * w
        s, t = _bn_fold(**layer["bn"])           # fold the layer's own output BN
        fcs.append(dict(w=w * s[None, :], b=((bb * s) + t)[None, :]))
    k["clf_fcs"] = fcs

    w_out = jnp.zeros((raw["fout_w"].shape[0], label_pad), jnp.float32)
    w_out = w_out.at[:, :n_labels].set(raw["fout_w"])
    b_out = jnp.zeros((1, label_pad), jnp.float32).at[0, :n_labels].set(raw["fout_b"])
    k["clf_out"] = dict(w=w_out, b=b_out)
    return k


# ------------------------------ pure-JAX reference --------------------------- #

def _bn_apply(x, p, eps=_BN_EPS):
    return (x - p["mean"]) / jnp.sqrt(p["var"] + eps) * p["gamma"] + p["beta"]


def _lstm_dir_ref(x, p):
    b, s_len, _ = x.shape
    hd = p["whh"].shape[0]
    hp = jax.lax.Precision.HIGHEST
    h = jnp.zeros((b, hd), jnp.float32)
    c = jnp.zeros((b, hd), jnp.float32)
    outs = []
    for t in range(s_len):
        g = (jnp.dot(x[:, t, :], p["wih"], precision=hp)
             + jnp.dot(h, p["whh"], precision=hp) + p["b"])
        i = jax.nn.sigmoid(g[:, :hd])
        f = jax.nn.sigmoid(g[:, hd:2 * hd])
        gg = jnp.tanh(g[:, 2 * hd:3 * hd])
        o = jax.nn.sigmoid(g[:, 3 * hd:])
        c = f * c + i * gg
        h = o * jnp.tanh(c)
        outs.append(h)
    return jnp.stack(outs, axis=1)


def reference_forward(raw, tokens):
    hp = jax.lax.Precision.HIGHEST
    b, s_len = tokens.shape
    x = raw["emb"][tokens]                                      # WordEmbedding
    for layer in raw["lstm"]:
        xf = _lstm_dir_ref(x, layer["fwd"])
        xb = _lstm_dir_ref(x[:, ::-1, :], layer["bwd"])[:, ::-1, :]
        x = jnp.concatenate([xf, xb], axis=-1)                  # (B, S, 2H)
    flat = x.reshape(b * s_len, -1)
    a = jnp.maximum(_bn_apply(flat, raw["att_bn"]), 0.0)        # attentioner
    wgt = jnp.dot(a, raw["att_w"], precision=hp) + raw["att_b"]
    wgt = jax.nn.softmax(wgt.reshape(b, s_len, 1), axis=2)      # Softmax(dim=2) == 1.0
    pooled = jnp.max(wgt * x, axis=1)                           # torch.max(dim=1)
    h = _bn_apply(pooled, raw["fin_bn"])                        # FC_Classifier
    for layer in raw["fcs"]:
        h = jnp.dot(h, layer["w"], precision=hp) + layer["b"]
        h = jnp.maximum(_bn_apply(h, layer["bn"]), 0.0)
    logits = jnp.dot(h, raw["fout_w"], precision=hp) + raw["fout_b"]
    return jax.nn.softmax(logits, axis=1)                       # F.softmax


# ------------------------------------ main ----------------------------------- #

if __name__ == "__main__":
    VOCAB, EMB_DIM, SEQLEN, BATCH = 32, 64, 8, 4
    HIDDEN, N_LAYERS, N_LABELS = 64, 2, 10      # 2*HIDDEN = 128 (lane-dense)
    CLF_HIDDEN = [256, 128]                     # scaled-down stand-in for [2000, 1000]
    LABEL_PAD = 128                             # lane-dense output, sliced to N_LABELS

    key = jax.random.PRNGKey(0)
    k_param, k_tok = jax.random.split(key)
    raw = init_raw_params(k_param, vocab=VOCAB, emb_dim=EMB_DIM, hidden=HIDDEN,
                          n_layers=N_LAYERS, n_labels=N_LABELS, clf_hidden=CLF_HIDDEN)
    kparams = fold_for_kernels(raw, n_labels=N_LABELS, label_pad=LABEL_PAD)
    tokens = jax.random.randint(k_tok, (BATCH, SEQLEN), 0, VOCAB, dtype=jnp.int32)

    fwd = jax.jit(functools.partial(attention_birnn_forward, n_labels=N_LABELS))
    out = jax.block_until_ready(fwd(kparams, tokens))

    ref = reference_forward(raw, tokens)
    assert out.shape == (BATCH, N_LABELS), out.shape
    max_err = float(jnp.max(jnp.abs(out - ref)))
    assert jnp.allclose(out, ref, atol=2e-3, rtol=2e-2), f"max |err| = {max_err}"
    print("KERNEL_OK")
</pallas_src>

<mosaic_0001>
module attributes {stable_mosaic.version = 11 : i64} {
  func.func @_embed_kernel(%arg0: i32, %arg1: memref<64xi32, #tpu.memory_space<smem>>, %arg2: memref<32x64xf32, #tpu.memory_space<any>>, %arg3: memref<1x8x64xf32, #tpu.memory_space<vmem>>, %arg4: memref<8x64xf32, #tpu.memory_space<vmem>>, %arg5: memref<8x!tpu.dma_semaphore, #tpu.memory_space<semaphore_mem>>) attributes {dimension_semantics = [#tpu.dimension_semantics<arbitrary>], iteration_bounds = array<i64: 8>, scalar_prefetch = 1 : i64, scratch_operands = 2 : i64, tpu.core_type = #tpu.core_type<tc>, window_params = [{}, {transform_indices = @transform_1, window_bounds = array<i64: 1, 8, 64>}]} {
    %c0_i32 = arith.constant 0 : i32
    %0 = arith.addi %c0_i32, %arg0 : i32
    %1 = arith.index_cast %0 : i32 to index
    %2 = memref.load %arg1[%1] : memref<64xi32, #tpu.memory_space<smem>>
    %c0_i32_0 = arith.constant 0 : i32
    %c0_i32_1 = arith.constant 0 : i32
    %c0_i32_2 = arith.constant 0 : i32
    %3 = tpu.memref_slice %arg2[%2, %c0_i32_2] : memref<32x64xf32, #tpu.memory_space<any>> -> memref<1x64xf32, #tpu.memory_space<any>>
    %4 = tpu.memref_squeeze %3 : memref<1x64xf32, #tpu.memory_space<any>> -> memref<64xf32, #tpu.memory_space<any>>
    %c0_i32_3 = arith.constant 0 : i32
    %5 = tpu.memref_slice %arg4[%c0_i32_0, %c0_i32_3] : memref<8x64xf32, #tpu.memory_space<vmem>> -> memref<1x64xf32, #tpu.memory_space<vmem>>
    %6 = tpu.memref_squeeze %5 : memref<1x64xf32, #tpu.memory_space<vmem>> -> memref<64xf32, #tpu.memory_space<vmem>>
    %7 = tpu.memref_slice %arg5[%c0_i32_1] : memref<8x!tpu.dma_semaphore, #tpu.memory_space<semaphore_mem>> -> memref<1x!tpu.dma_semaphore, #tpu.memory_space<semaphore_mem>>
    %8 = tpu.memref_squeeze %7 : memref<1x!tpu.dma_semaphore, #tpu.memory_space<semaphore_mem>> -> memref<!tpu.dma_semaphore, #tpu.memory_space<semaphore_mem>>
    tpu.enqueue_dma source(%4 : memref<64xf32, #tpu.memory_space<any>>) target(%6 : memref<64xf32, #tpu.memory_space<vmem>>) target_semaphore(%8 : memref<!tpu.dma_semaphore, #tpu.memory_space<semaphore_mem>>)
    %c8_i32 = arith.constant 8 : i32
    %9 = arith.addi %c8_i32, %arg0 : i32
    %10 = arith.index_cast %9 : i32 to index
    %11 = memref.load %arg1[%10] : memref<64xi32, #tpu.memory_space<smem>>
    %c1_i32 = arith.constant 1 : i32
    %c1_i32_4 = arith.constant 1 : i32
    %c0_i32_5 = arith.constant 0 : i32
    %12 = tpu.memref_slice %arg2[%11, %c0_i32_5] : memref<32x64xf32, #tpu.memory_space<any>> -> memref<1x64xf32, #tpu.memory_space<any>>
    %13 = tpu.memref_squeeze %12 : memref<1x64xf32, #tpu.memory_space<any>> -> memref<64xf32, #tpu.memory_space<any>>
    %c0_i32_6 = arith.constant 0 : i32
    %14 = tpu.memref_slice %arg4[%c1_i32, %c0_i32_6] : memref<8x64xf32, #tpu.memory_space<vmem>> -> memref<1x64xf32, #tpu.memory_space<vmem>>
    %15 = tpu.memref_squeeze %14 : memref<1x64xf32, #tpu.memory_space<vmem>> -> memref<64xf32, #tpu.memory_space<vmem>>
    %16 = tpu.memref_slice %arg5[%c1_i32_4] : memref<8x!tpu.dma_semaphore, #tpu.memory_space<semaphore_mem>> -> memref<1x!tpu.dma_semaphore, #tpu.memory_space<semaphore_mem>>
    %17 = tpu.memref_squeeze %16 : memref<1x!tpu.dma_semaphore, #tpu.memory_space<semaphore_mem>> -> memref<!tpu.dma_semaphore, #tpu.memory_space<semaphore_mem>>
    tpu.enqueue_dma source(%13 : memref<64xf32, #tpu.memory_space<any>>) target(%15 : memref<64xf32, #tpu.memory_space<vmem>>) target_semaphore(%17 : memref<!tpu.dma_semaphore, #tpu.memory_space<semaphore_mem>>)
    %c16_i32 = arith.constant 16 : i32
    %18 = arith.addi %c16_i32, %arg0 : i32
    %19 = arith.index_cast %18 : i32 to index
    %20 = memref.load %arg1[%19] : memref<64xi32, #tpu.memory_space<smem>>
    %c2_i32 = arith.constant 2 : i32
    %c2_i32_7 = arith.constant 2 : i32
    %c0_i32_8 = arith.constant 0 : i32
    %21 = tpu.memref_slice %arg2[%20, %c0_i32_8] : memref<32x64xf32, #tpu.memory_space<any>> -> memref<1x64xf32, #tpu.memory_space<any>>
    %22 = tpu.memref_squeeze %21 : memref<1x64xf32, #tpu.memory_space<any>> -> memref<64xf32, #tpu.memory_space<any>>
    %c0_i32_9 = arith.constant 0 : i32
    %23 = tpu.memref_slice %arg4[%c2_i32, %c0_i32_9] : memref<8x64xf32, #tpu.memory_space<vmem>> -> memref<1x64xf32, #tpu.memory_space<vmem>>
    %24 = tpu.memref_squeeze %23 : memref<1x64xf32, #tpu.memory_space<vmem>> -> memref<64xf32, #tpu.memory_space<vmem>>
    %25 = tpu.memref_slice %arg5[%c2_i32_7] : memref<8x!tpu.dma_semaphore, #tpu.memory_space<semaphore_mem>> -> memref<1x!tpu.dma_semaphore, #tpu.memory_space<semaphore_mem>>
    %26 = tpu.memref_squeeze %25 : memref<1x!tpu.dma_semaphore, #tpu.memory_space<semaphore_mem>> -> memref<!tpu.dma_semaphore, #tpu.memory_space<semaphore_mem>>
    tpu.enqueue_dma source(%22 : memref<64xf32, #tpu.memory_space<any>>) target(%24 : memref<64xf32, #tpu.memory_space<vmem>>) target_semaphore(%26 : memref<!tpu.dma_semaphore, #tpu.memory_space<semaphore_mem>>)
    %c24_i32 = arith.constant 24 : i32
    %27 = arith.addi %c24_i32, %arg0 : i32
    %28 = arith.index_cast %27 : i32 to index
    %29 = memref.load %arg1[%28] : memref<64xi32, #tpu.memory_space<smem>>
    %c3_i32 = arith.constant 3 : i32
    %c3_i32_10 = arith.constant 3 : i32
    %c0_i32_11 = arith.constant 0 : i32
    %30 = tpu.memref_slice %arg2[%29, %c0_i32_11] : memref<32x64xf32, #tpu.memory_space<any>> -> memref<1x64xf32, #tpu.memory_space<any>>
    %31 = tpu.memref_squeeze %30 : memref<1x64xf32, #tpu.memory_space<any>> -> memref<64xf32, #tpu.memory_space<any>>
    %c0_i32_12 = arith.constant 0 : i32
    %32 = tpu.memref_slice %arg4[%c3_i32, %c0_i32_12] : memref<8x64xf32, #tpu.memory_space<vmem>> -> memref<1x64xf32, #tpu.memory_space<vmem>>
    %33 = tpu.memref_squeeze %32 : memref<1x64xf32, #tpu.memory_space<vmem>> -> memref<64xf32, #tpu.memory_space<vmem>>
    %34 = tpu.memref_slice %arg5[%c3_i32_10] : memref<8x!tpu.dma_semaphore, #tpu.memory_space<semaphore_mem>> -> memref<1x!tpu.dma_semaphore, #tpu.memory_space<semaphore_mem>>
    %35 = tpu.memref_squeeze %34 : memref<1x!tpu.dma_semaphore, #tpu.memory_space<semaphore_mem>> -> memref<!tpu.dma_semaphore, #tpu.memory_space<semaphore_mem>>
    tpu.enqueue_dma source(%31 : memref<64xf32, #tpu.memory_space<any>>) target(%33 : memref<64xf32, #tpu.memory_space<vmem>>) target_semaphore(%35 : memref<!tpu.dma_semaphore, #tpu.memory_space<semaphore_mem>>)
    %c32_i32 = arith.constant 32 : i32
    %36 = arith.addi %c32_i32, %arg0 : i32
    %37 = arith.index_cast %36 : i32 to index
    %38 = memref.load %arg1[%37] : memref<64xi32, #tpu.memory_space<smem>>
    %c4_i32 = arith.constant 4 : i32
    %c4_i32_13 = arith.constant 4 : i32
    %c0_i32_14 = arith.constant 0 : i32
    %39 = tpu.memref_slice %arg2[%38, %c0_i32_14] : memref<32x64xf32, #tpu.memory_space<any>> -> memref<1x64xf32, #tpu.memory_space<any>>
    %40 = tpu.memref_squeeze %39 : memref<1x64xf32, #tpu.memory_space<any>> -> memref<64xf32, #tpu.memory_space<any>>
    %c0_i32_15 = arith.constant 0 : i32
    %41 = tpu.memref_slice %arg4[%c4_i32, %c0_i32_15] : memref<8x64xf32, #tpu.memory_space<vmem>> -> memref<1x64xf32, #tpu.memory_space<vmem>>
    %42 = tpu.memref_squeeze %41 : memref<1x64xf32, #tpu.memory_space<vmem>> -> memref<64xf32, #tpu.memory_space<vmem>>
    %43 = tpu.memref_slice %arg5[%c4_i32_13] : memref<8x!tpu.dma_semaphore, #tpu.memory_space<semaphore_mem>> -> memref<1x!tpu.dma_semaphore, #tpu.memory_space<semaphore_mem>>
    %44 = tpu.memref_squeeze %43 : memref<1x!tpu.dma_semaphore, #tpu.memory_space<semaphore_mem>> -> memref<!tpu.dma_semaphore, #tpu.memory_space<semaphore_mem>>
    tpu.enqueue_dma source(%40 : memref<64xf32, #tpu.memory_space<any>>) target(%42 : memref<64xf32, #tpu.memory_space<vmem>>) target_semaphore(%44 : memref<!tpu.dma_semaphore, #tpu.memory_space<semaphore_mem>>)
    %c40_i32 = arith.constant 40 : i32
    %45 = arith.addi %c40_i32, %arg0 : i32
    %46 = arith.index_cast %45 : i32 to index
    %47 = memref.load %arg1[%46] : memref<64xi32, #tpu.memory_space<smem>>
    %c5_i32 = arith.constant 5 : i32
    %c5_i32_16 = arith.constant 5 : i32
    %c0_i32_17 = arith.constant 0 : i32
    %48 = tpu.memref_slice %arg2[%47, %c0_i32_17] : memref<32x64xf32, #tpu.memory_space<any>> -> memref<1x64xf32, #tpu.memory_space<any>>
    %49 = tpu.memref_squeeze %48 : memref<1x64xf32, #tpu.memory_space<any>> -> memref<64xf32, #tpu.memory_space<any>>
    %c0_i32_18 = arith.constant 0 : i32
    %50 = tpu.memref_slice %arg4[%c5_i32, %c0_i32_18] : memref<8x64xf32, #tpu.memory_space<vmem>> -> memref<1x64xf32, #tpu.memory_space<vmem>>
    %51 = tpu.memref_squeeze %50 : memref<1x64xf32, #tpu.memory_space<vmem>> -> memref<64xf32, #tpu.memory_space<vmem>>
    %52 = tpu.memref_slice %arg5[%c5_i32_16] : memref<8x!tpu.dma_semaphore, #tpu.memory_space<semaphore_mem>> -> memref<1x!tpu.dma_semaphore, #tpu.memory_space<semaphore_mem>>
    %53 = tpu.memref_squeeze %52 : memref<1x!tpu.dma_semaphore, #tpu.memory_space<semaphore_mem>> -> memref<!tpu.dma_semaphore, #tpu.memory_space<semaphore_mem>>
    tpu.enqueue_dma source(%49 : memref<64xf32, #tpu.memory_space<any>>) target(%51 : memref<64xf32, #tpu.memory_space<vmem>>) target_semaphore(%53 : memref<!tpu.dma_semaphore, #tpu.memory_space<semaphore_mem>>)
    %c48_i32 = arith.constant 48 : i32
    %54 = arith.addi %c48_i32, %arg0 : i32
    %55 = arith.index_cast %54 : i32 to index
    %56 = memref.load %arg1[%55] : memref<64xi32, #tpu.memory_space<smem>>
    %c6_i32 = arith.constant 6 : i32
    %c6_i32_19 = arith.constant 6 : i32
    %c0_i32_20 = arith.constant 0 : i32
    %57 = tpu.memref_slice %arg2[%56, %c0_i32_20] : memref<32x64xf32, #tpu.memory_space<any>> -> memref<1x64xf32, #tpu.memory_space<any>>
    %58 = tpu.memref_squeeze %57 : memref<1x64xf32, #tpu.memory_space<any>> -> memref<64xf32, #tpu.memory_space<any>>
    %c0_i32_21 = arith.constant 0 : i32
    %59 = tpu.memref_slice %arg4[%c6_i32, %c0_i32_21] : memref<8x64xf32, #tpu.memory_space<vmem>> -> memref<1x64xf32, #tpu.memory_space<vmem>>
    %60 = tpu.memref_squeeze %59 : memref<1x64xf32, #tpu.memory_space<vmem>> -> memref<64xf32, #tpu.memory_space<vmem>>
    %61 = tpu.memref_slice %arg5[%c6_i32_19] : memref<8x!tpu.dma_semaphore, #tpu.memory_space<semaphore_mem>> -> memref<1x!tpu.dma_semaphore, #tpu.memory_space<semaphore_mem>>
    %62 = tpu.memref_squeeze %61 : memref<1x!tpu.dma_semaphore, #tpu.memory_space<semaphore_mem>> -> memref<!tpu.dma_semaphore, #tpu.memory_space<semaphore_mem>>
    tpu.enqueue_dma source(%58 : memref<64xf32, #tpu.memory_space<any>>) target(%60 : memref<64xf32, #tpu.memory_space<vmem>>) target_semaphore(%62 : memref<!tpu.dma_semaphore, #tpu.memory_space<semaphore_mem>>)
    %c56_i32 = arith.constant 56 : i32
    %63 = arith.addi %c56_i32, %arg0 : i32
    %64 = arith.index_cast %63 : i32 to index
    %65 = memref.load %arg1[%64] : memref<64xi32, #tpu.memory_space<smem>>
    %c7_i32 = arith.constant 7 : i32
    %c7_i32_22 = arith.constant 7 : i32
    %c0_i32_23 = arith.constant 0 : i32
    %66 = tpu.memref_slice %arg2[%65, %c0_i32_23] : memref<32x64xf32, #tpu.memory_space<any>> -> memref<1x64xf32, #tpu.memory_space<any>>
    %67 = tpu.memref_squeeze %66 : memref<1x64xf32, #tpu.memory_space<any>> -> memref<64xf32, #tpu.memory_space<any>>
    %c0_i32_24 = arith.constant 0 : i32
    %68 = tpu.memref_slice %arg4[%c7_i32, %c0_i32_24] : memref<8x64xf32, #tpu.memory_space<vmem>> -> memref<1x64xf32, #tpu.memory_space<vmem>>
    %69 = tpu.memref_squeeze %68 : memref<1x64xf32, #tpu.memory_space<vmem>> -> memref<64xf32, #tpu.memory_space<vmem>>
    %70 = tpu.memref_slice %arg5[%c7_i32_22] : memref<8x!tpu.dma_semaphore, #tpu.memory_space<semaphore_mem>> -> memref<1x!tpu.dma_semaphore, #tpu.memory_space<semaphore_mem>>
    %71 = tpu.memref_squeeze %70 : memref<1x!tpu.dma_semaphore, #tpu.memory_space<semaphore_mem>> -> memref<!tpu.dma_semaphore, #tpu.memory_space<semaphore_mem>>
    tpu.enqueue_dma source(%67 : memref<64xf32, #tpu.memory_space<any>>) target(%69 : memref<64xf32, #tpu.memory_space<vmem>>) target_semaphore(%71 : memref<!tpu.dma_semaphore, #tpu.memory_space<semaphore_mem>>)
    %c0_i32_25 = arith.constant 0 : i32
    %c0_i32_26 = arith.constant 0 : i32
    %c0_i32_27 = arith.constant 0 : i32
    %c0_i32_28 = arith.constant 0 : i32
    %72 = tpu.memref_slice %arg2[%c0_i32_25, %c0_i32_28] : memref<32x64xf32, #tpu.memory_space<any>> -> memref<1x64xf32, #tpu.memory_space<any>>
    %73 = tpu.memref_squeeze %72 : memref<1x64xf32, #tpu.memory_space<any>> -> memref<64xf32, #tpu.memory_space<any>>
    %c0_i32_29 = arith.constant 0 : i32
    %74 = tpu.memref_slice %arg4[%c0_i32_26, %c0_i32_29] : memref<8x64xf32, #tpu.memory_space<vmem>> -> memref<1x64xf32, #tpu.memory_space<vmem>>
    %75 = tpu.memref_squeeze %74 : memref<1x64xf32, #tpu.memory_space<vmem>> -> memref<64xf32, #tpu.memory_space<vmem>>
    %76 = tpu.memref_slice %arg5[%c0_i32_27] : memref<8x!tpu.dma_semaphore, #tpu.memory_space<semaphore_mem>> -> memref<1x!tpu.dma_semaphore, #tpu.memory_space<semaphore_mem>>
    %77 = tpu.memref_squeeze %76 : memref<1x!tpu.dma_semaphore, #tpu.memory_space<semaphore_mem>> -> memref<!tpu.dma_semaphore, #tpu.memory_space<semaphore_mem>>
    tpu.wait_dma2 semaphore(%77 : memref<!tpu.dma_semaphore, #tpu.memory_space<semaphore_mem>>) src(%73 : memref<64xf32, #tpu.memory_space<any>>) dst(%75 : memref<64xf32, #tpu.memory_space<vmem>>)
    %c0_i32_30 = arith.constant 0 : i32
    %c1_i32_31 = arith.constant 1 : i32
    %c1_i32_32 = arith.constant 1 : i32
    %c0_i32_33 = arith.constant 0 : i32
    %78 = tpu.memref_slice %arg2[%c0_i32_30, %c0_i32_33] : memref<32x64xf32, #tpu.memory_space<any>> -> memref<1x64xf32, #tpu.memory_space<any>>
    %79 = tpu.memref_squeeze %78 : memref<1x64xf32, #tpu.memory_space<any>> -> memref<64xf32, #tpu.memory_space<any>>
    %c0_i32_34 = arith.constant 0 : i32
    %80 = tpu.memref_slice %arg4[%c1_i32_31, %c0_i32_34] : memref<8x64xf32, #tpu.memory_space<vmem>> -> memref<1x64xf32, #tpu.memory_space<vmem>>
    %81 = tpu.memref_squeeze %80 : memref<1x64xf32, #tpu.memory_space<vmem>> -> memref<64xf32, #tpu.memory_space<vmem>>
    %82 = tpu.memref_slice %arg5[%c1_i32_32] : memref<8x!tpu.dma_semaphore, #tpu.memory_space<semaphore_mem>> -> memref<1x!tpu.dma_semaphore, #tpu.memory_space<semaphore_mem>>
    %83 = tpu.memref_squeeze %82 : memref<1x!tpu.dma_semaphore, #tpu.memory_space<semaphore_mem>> -> memref<!tpu.dma_semaphore, #tpu.memory_space<semaphore_mem>>
    tpu.wait_dma2 semaphore(%83 : memref<!tpu.dma_semaphore, #tpu.memory_space<semaphore_mem>>) src(%79 : memref<64xf32, #tpu.memory_space<any>>) dst(%81 : memref<64xf32, #tpu.memory_space<vmem>>)
    %c0_i32_35 = arith.constant 0 : i32
    %c2_i32_36 = arith.constant 2 : i32
    %c2_i32_37 = arith.constant 2 : i32
    %c0_i32_38 = arith.constant 0 : i32
    %84 = tpu.memref_slice %arg2[%c0_i32_35, %c0_i32_38] : memref<32x64xf32, #tpu.memory_space<any>> -> memref<1x64xf32, #tpu.memory_space<any>>
    %85 = tpu.memref_squeeze %84 : memref<1x64xf32, #tpu.memory_space<any>> -> memref<64xf32, #tpu.memory_space<any>>
    %c0_i32_39 = arith.constant 0 : i32
    %86 = tpu.memref_slice %arg4[%c2_i32_36, %c0_i32_39] : memref<8x64xf32, #tpu.memory_space<vmem>> -> memref<1x64xf32, #tpu.memory_space<vmem>>
    %87 = tpu.memref_squeeze %86 : memref<1x64xf32, #tpu.memory_space<vmem>> -> memref<64xf32, #tpu.memory_space<vmem>>
    %88 = tpu.memref_slice %arg5[%c2_i32_37] : memref<8x!tpu.dma_semaphore, #tpu.memory_space<semaphore_mem>> -> memref<1x!tpu.dma_semaphore, #tpu.memory_space<semaphore_mem>>
    %89 = tpu.memref_squeeze %88 : memref<1x!tpu.dma_semaphore, #tpu.memory_space<semaphore_mem>> -> memref<!tpu.dma_semaphore, #tpu.memory_space<semaphore_mem>>
    tpu.wait_dma2 semaphore(%89 : memref<!tpu.dma_semaphore, #tpu.memory_space<semaphore_mem>>) src(%85 : memref<64xf32, #tpu.memory_space<any>>) dst(%87 : memref<64xf32, #tpu.memory_space<vmem>>)
    %c0_i32_40 = arith.constant 0 : i32
    %c3_i32_41 = arith.constant 3 : i32
    %c3_i32_42 = arith.constant 3 : i32
    %c0_i32_43 = arith.constant 0 : i32
    %90 = tpu.memref_slice %arg2[%c0_i32_40, %c0_i32_43] : memref<32x64xf32, #tpu.memory_space<any>> -> memref<1x64xf32, #tpu.memory_space<any>>
    %91 = tpu.memref_squeeze %90 : memref<1x64xf32, #tpu.memory_space<any>> -> memref<64xf32, #tpu.memory_space<any>>
    %c0_i32_44 = arith.constant 0 : i32
    %92 = tpu.memref_slice %arg4[%c3_i32_41, %c0_i32_44] : memref<8x64xf32, #tpu.memory_space<vmem>> -> memref<1x64xf32, #tpu.memory_space<vmem>>
    %93 = tpu.memref_squeeze %92 : memref<1x64xf32, #tpu.memory_space<vmem>> -> memref<64xf32, #tpu.memory_space<vmem>>
    %94 = tpu.memref_slice %arg5[%c3_i32_42] : memref<8x!tpu.dma_semaphore, #tpu.memory_space<semaphore_mem>> -> memref<1x!tpu.dma_semaphore, #tpu.memory_space<semaphore_mem>>
    %95 = tpu.memref_squeeze %94 : memref<1x!tpu.dma_semaphore, #tpu.memory_space<semaphore_mem>> -> memref<!tpu.dma_semaphore, #tpu.memory_space<semaphore_mem>>
    tpu.wait_dma2 semaphore(%95 : memref<!tpu.dma_semaphore, #tpu.memory_space<semaphore_mem>>) src(%91 : memref<64xf32, #tpu.memory_space<any>>) dst(%93 : memref<64xf32, #tpu.memory_space<vmem>>)
    %c0_i32_45 = arith.constant 0 : i32
    %c4_i32_46 = arith.constant 4 : i32
    %c4_i32_47 = arith.constant 4 : i32
    %c0_i32_48 = arith.constant 0 : i32
    %96 = tpu.memref_slice %arg2[%c0_i32_45, %c0_i32_48] : memref<32x64xf32, #tpu.memory_space<any>> -> memref<1x64xf32, #tpu.memory_space<any>>
    %97 = tpu.memref_squeeze %96 : memref<1x64xf32, #tpu.memory_space<any>> -> memref<64xf32, #tpu.memory_space<any>>
    %c0_i32_49 = arith.constant 0 : i32
    %98 = tpu.memref_slice %arg4[%c4_i32_46, %c0_i32_49] : memref<8x64xf32, #tpu.memory_space<vmem>> -> memref<1x64xf32, #tpu.memory_space<vmem>>
    %99 = tpu.memref_squeeze %98 : memref<1x64xf32, #tpu.memory_space<vmem>> -> memref<64xf32, #tpu.memory_space<vmem>>
    %100 = tpu.memref_slice %arg5[%c4_i32_47] : memref<8x!tpu.dma_semaphore, #tpu.memory_space<semaphore_mem>> -> memref<1x!tpu.dma_semaphore, #tpu.memory_space<semaphore_mem>>
    %101 = tpu.memref_squeeze %100 : memref<1x!tpu.dma_semaphore, #tpu.memory_space<semaphore_mem>> -> memref<!tpu.dma_semaphore, #tpu.memory_space<semaphore_mem>>
    tpu.wait_dma2 semaphore(%101 : memref<!tpu.dma_semaphore, #tpu.memory_space<semaphore_mem>>) src(%97 : memref<64xf32, #tpu.memory_space<any>>) dst(%99 : memref<64xf32, #tpu.memory_space<vmem>>)
    %c0_i32_50 = arith.constant 0 : i32
    %c5_i32_51 = arith.constant 5 : i32
    %c5_i32_52 = arith.constant 5 : i32
    %c0_i32_53 = arith.constant 0 : i32
    %102 = tpu.memref_slice %arg2[%c0_i32_50, %c0_i32_53] : memref<32x64xf32, #tpu.memory_space<any>> -> memref<1x64xf32, #tpu.memory_space<any>>
    %103 = tpu.memref_squeeze %102 : memref<1x64xf32, #tpu.memory_space<any>> -> memref<64xf32, #tpu.memory_space<any>>
    %c0_i32_54 = arith.constant 0 : i32
    %104 = tpu.memref_slice %arg4[%c5_i32_51, %c0_i32_54] : memref<8x64xf32, #tpu.memory_space<vmem>> -> memref<1x64xf32, #tpu.memory_space<vmem>>
    %105 = tpu.memref_squeeze %104 : memref<1x64xf32, #tpu.memory_space<vmem>> -> memref<64xf32, #tpu.memory_space<vmem>>
    %106 = tpu.memref_slice %arg5[%c5_i32_52] : memref<8x!tpu.dma_semaphore, #tpu.memory_space<semaphore_mem>> -> memref<1x!tpu.dma_semaphore, #tpu.memory_space<semaphore_mem>>
    %107 = tpu.memref_squeeze %106 : memref<1x!tpu.dma_semaphore, #tpu.memory_space<semaphore_mem>> -> memref<!tpu.dma_semaphore, #tpu.memory_space<semaphore_mem>>
    tpu.wait_dma2 semaphore(%107 : memref<!tpu.dma_semaphore, #tpu.memory_space<semaphore_mem>>) src(%103 : memref<64xf32, #tpu.memory_space<any>>) dst(%105 : memref<64xf32, #tpu.memory_space<vmem>>)
    %c0_i32_55 = arith.constant 0 : i32
    %c6_i32_56 = arith.constant 6 : i32
    %c6_i32_57 = arith.constant 6 : i32
    %c0_i32_58 = arith.constant 0 : i32
    %108 = tpu.memref_slice %arg2[%c0_i32_55, %c0_i32_58] : memref<32x64xf32, #tpu.memory_space<any>> -> memref<1x64xf32, #tpu.memory_space<any>>
    %109 = tpu.memref_squeeze %108 : memref<1x64xf32, #tpu.memory_space<any>> -> memref<64xf32, #tpu.memory_space<any>>
    %c0_i32_59 = arith.constant 0 : i32
    %110 = tpu.memref_slice %arg4[%c6_i32_56, %c0_i32_59] : memref<8x64xf32, #tpu.memory_space<vmem>> -> memref<1x64xf32, #tpu.memory_space<vmem>>
    %111 = tpu.memref_squeeze %110 : memref<1x64xf32, #tpu.memory_space<vmem>> -> memref<64xf32, #tpu.memory_space<vmem>>
    %112 = tpu.memref_slice %arg5[%c6_i32_57] : memref<8x!tpu.dma_semaphore, #tpu.memory_space<semaphore_mem>> -> memref<1x!tpu.dma_semaphore, #tpu.memory_space<semaphore_mem>>
    %113 = tpu.memref_squeeze %112 : memref<1x!tpu.dma_semaphore, #tpu.memory_space<semaphore_mem>> -> memref<!tpu.dma_semaphore, #tpu.memory_space<semaphore_mem>>
    tpu.wait_dma2 semaphore(%113 : memref<!tpu.dma_semaphore, #tpu.memory_space<semaphore_mem>>) src(%109 : memref<64xf32, #tpu.memory_space<any>>) dst(%111 : memref<64xf32, #tpu.memory_space<vmem>>)
    %c0_i32_60 = arith.constant 0 : i32
    %c7_i32_61 = arith.constant 7 : i32
    %c7_i32_62 = arith.constant 7 : i32
    %c0_i32_63 = arith.constant 0 : i32
    %114 = tpu.memref_slice %arg2[%c0_i32_60, %c0_i32_63] : memref<32x64xf32, #tpu.memory_space<any>> -> memref<1x64xf32, #tpu.memory_space<any>>
    %115 = tpu.memref_squeeze %114 : memref<1x64xf32, #tpu.memory_space<any>> -> memref<64xf32, #tpu.memory_space<any>>
    %c0_i32_64 = arith.constant 0 : i32
    %116 = tpu.memref_slice %arg4[%c7_i32_61, %c0_i32_64] : memref<8x64xf32, #tpu.memory_space<vmem>> -> memref<1x64xf32, #tpu.memory_space<vmem>>
    %117 = tpu.memref_squeeze %116 : memref<1x64xf32, #tpu.memory_space<vmem>> -> memref<64xf32, #tpu.memory_space<vmem>>
    %118 = tpu.memref_slice %arg5[%c7_i32_62] : memref<8x!tpu.dma_semaphore, #tpu.memory_space<semaphore_mem>> -> memref<1x!tpu.dma_semaphore, #tpu.memory_space<semaphore_mem>>
    %119 = tpu.memref_squeeze %118 : memref<1x!tpu.dma_semaphore, #tpu.memory_space<semaphore_mem>> -> memref<!tpu.dma_semaphore, #tpu.memory_space<semaphore_mem>>
    tpu.wait_dma2 semaphore(%119 : memref<!tpu.dma_semaphore, #tpu.memory_space<semaphore_mem>>) src(%115 : memref<64xf32, #tpu.memory_space<any>>) dst(%117 : memref<64xf32, #tpu.memory_space<vmem>>)
    %c0 = arith.constant 0 : index
    %c0_65 = arith.constant 0 : index
    %120 = vector.load %arg4[%c0, %c0_65] : memref<8x64xf32, #tpu.memory_space<vmem>>, vector<8x64xf32>
    %c0_66 = arith.constant 0 : index
    %c0_67 = arith.constant 0 : index
    %c0_68 = arith.constant 0 : index
    %121 = vector.load %arg3[%c0_66, %c0_67, %c0_68] : memref<1x8x64xf32, #tpu.memory_space<vmem>>, vector<1x8x64xf32>
    %122 = vector.shape_cast %121 : vector<1x8x64xf32> to vector<8x64xf32>
    %123 = vector.shape_cast %120 : vector<8x64xf32> to vector<1x8x64xf32>
    tpu.vector_store %arg3[%c0_66, %c0_67, %c0_68], %123 {strides = array<i32>} : memref<1x8x64xf32, #tpu.memory_space<vmem>>, vector<1x8x64xf32>,
    return
  }
  func.func @transform_1(%arg0: i32, %arg1: memref<64xi32, #tpu.memory_space<smem>>) -> (i32, i32, i32) {
    %c0_i32 = arith.constant 0 : i32
    %c0_i32_0 = arith.constant 0 : i32
    %c0_i32_1 = arith.constant 0 : i32
    return %arg0, %c0_i32, %c0_i32_0 : i32, i32, i32
  }
}

module attributes {stable_mosaic.version = 11 : i64} {
  func.func @_bilstm_layer_kernel(%arg0: memref<8x8x64xf32, #tpu.memory_space<vmem>>, %arg1: memref<64x512xf32, #tpu.memory_space<vmem>>, %arg2: memref<64x256xf32, #tpu.memory_space<vmem>>, %arg3: memref<64x256xf32, #tpu.memory_space<vmem>>, %arg4: memref<1x512xf32, #tpu.memory_space<vmem>>, %arg5: memref<8x8x128xf32, #tpu.memory_space<vmem>>, %arg6: memref<8x8x512xf32, #tpu.memory_space<vmem>>, %arg7: memref<8x8x64xf32, #tpu.memory_space<vmem>>) attributes {dimension_semantics = [], scalar_prefetch = 0 : i64, scratch_operands = 2 : i64, tpu.core_type = #tpu.core_type<tc>} {
    %c0 = arith.constant 0 : index
    %c0_0 = arith.constant 0 : index
    %c0_1 = arith.constant 0 : index
    %0 = vector.load %arg0[%c0, %c0_0, %c0_1] : memref<8x8x64xf32, #tpu.memory_space<vmem>>, vector<8x8x64xf32>
    %1 = vector.shape_cast %0 : vector<8x8x64xf32> to vector<64x64xf32>
    %c0_2 = arith.constant 0 : index
    %c0_3 = arith.constant 0 : index
    %2 = vector.load %arg1[%c0_2, %c0_3] : memref<64x512xf32, #tpu.memory_space<vmem>>, vector<64x512xf32>
    %cst = arith.constant dense<0.000000e+00> : vector<64x512xf32>
    %3 = tpu.matmul %1, %2, %cst {dimension_numbers = #tpu.dot_dimension_numbers<[1], [0], [0], [1], [0, 0, 1, 1], [], []>} : vector<64x64xf32>, vector<64x512xf32>, vector<64x512xf32> -> vector<64x512xf32>
    %c0_4 = arith.constant 0 : index
    %c0_5 = arith.constant 0 : index
    %4 = vector.load %arg4[%c0_4, %c0_5] : memref<1x512xf32, #tpu.memory_space<vmem>>, vector<1x512xf32>
    %5 = vector.broadcast %4 : vector<1x512xf32> to vector<64x512xf32>
    %6 = arith.addf %3, %5 : vector<64x512xf32>
    %7 = vector.shape_cast %6 : vector<64x512xf32> to vector<8x8x512xf32>
    %c0_6 = arith.constant 0 : index
    %c0_7 = arith.constant 0 : index
    %c0_8 = arith.constant 0 : index
    %8 = vector.load %arg6[%c0_6, %c0_7, %c0_8] : memref<8x8x512xf32, #tpu.memory_space<vmem>>, vector<8x8x512xf32>
    tpu.vector_store %arg6[%c0_6, %c0_7, %c0_8], %7 {strides = array<i32>} : memref<8x8x512xf32, #tpu.memory_space<vmem>>, vector<8x8x512xf32>,
    %c0_9 = arith.constant 0 : index
    %c0_10 = arith.constant 0 : index
    %9 = vector.load %arg2[%c0_9, %c0_10] : memref<64x256xf32, #tpu.memory_space<vmem>>, vector<64x256xf32>
    %c0_11 = arith.constant 0 : index
    %c0_12 = arith.constant 0 : index
    %10 = vector.load %arg3[%c0_11, %c0_12] : memref<64x256xf32, #tpu.memory_space<vmem>>, vector<64x256xf32>
    %cst_13 = arith.constant 0.000000e+00 : f32
    %11 = vector.broadcast %cst_13 : f32 to vector<8x64xf32>
    %c0_i32 = arith.constant 0 : i32
    %12 = arith.index_cast %c0_i32 : i32 to index
    %c0_14 = arith.constant 0 : index
    %c0_15 = arith.constant 0 : index
    %13 = vector.load %arg6[%12, %c0_14, %c0_15] : memref<8x8x512xf32, #tpu.memory_space<vmem>>, vector<1x8x512xf32>
    %14 = vector.shape_cast %13 : vector<1x8x512xf32> to vector<8x512xf32>
    %15 = vector.extract_strided_slice %14 {offsets = [0, 0], sizes = [8, 256], strides = [1, 1]} : vector<8x512xf32> to vector<8x256xf32>
    %cst_16 = arith.constant dense<0.000000e+00> : vector<8x256xf32>
    %16 = tpu.matmul %11, %9, %cst_16 {dimension_numbers = #tpu.dot_dimension_numbers<[1], [0], [0], [1], [0, 0, 1, 1], [], []>} : vector<8x64xf32>, vector<64x256xf32>, vector<8x256xf32> -> vector<8x256xf32>
    %17 = arith.addf %15, %16 : vector<8x256xf32>
    %18 = vector.extract_strided_slice %17 {offsets = [0, 0], sizes = [8, 192], strides = [1, 1]} : vector<8x256xf32> to vector<8x192xf32>
    %cst_17 = arith.constant 5.000000e-01 : f32
    %19 = vector.broadcast %cst_17 : f32 to vector<8x192xf32>
    %20 = arith.mulf %19, %18 : vector<8x192xf32>
    %21 = math.tanh %20 : vector<8x192xf32>
    %cst_18 = arith.constant 5.000000e-01 : f32
    %22 = vector.broadcast %cst_18 : f32 to vector<8x192xf32>
    %23 = arith.mulf %22, %21 : vector<8x192xf32>
    %cst_19 = arith.constant 5.000000e-01 : f32
    %24 = vector.broadcast %cst_19 : f32 to vector<8x192xf32>
    %25 = arith.addf %23, %24 : vector<8x192xf32>
    %26 = vector.extract_strided_slice %17 {offsets = [0, 192], sizes = [8, 64], strides = [1, 1]} : vector<8x256xf32> to vector<8x64xf32>
    %27 = math.tanh %26 : vector<8x64xf32>
    %28 = vector.extract_strided_slice %25 {offsets = [0, 64], sizes = [8, 64], strides = [1, 1]} : vector<8x192xf32> to vector<8x64xf32>
    %29 = arith.mulf %28, %11 : vector<8x64xf32>
    %30 = vector.extract_strided_slice %25 {offsets = [0, 0], sizes = [8, 64], strides = [1, 1]} : vector<8x192xf32> to vector<8x64xf32>
    %31 = arith.mulf %30, %27 : vector<8x64xf32>
    %32 = arith.addf %29, %31 : vector<8x64xf32>
    %33 = vector.extract_strided_slice %25 {offsets = [0, 128], sizes = [8, 64], strides = [1, 1]} : vector<8x192xf32> to vector<8x64xf32>
    %34 = math.tanh %32 : vector<8x64xf32>
    %35 = arith.mulf %33, %34 : vector<8x64xf32>
    %36 = arith.index_cast %c0_i32 : i32 to index
    %c0_20 = arith.constant 0 : index
    %c0_21 = arith.constant 0 : index
    %37 = vector.load %arg7[%36, %c0_20, %c0_21] : memref<8x8x64xf32, #tpu.memory_space<vmem>>, vector<1x8x64xf32>
    %38 = vector.shape_cast %37 : vector<1x8x64xf32> to vector<8x64xf32>
    %39 = vector.shape_cast %35 : vector<8x64xf32> to vector<1x8x64xf32>
    tpu.vector_store %arg7[%36, %c0_20, %c0_21], %39 {strides = array<i32>} : memref<8x8x64xf32, #tpu.memory_space<vmem>>, vector<1x8x64xf32>,
    %c1_i32 = arith.constant 1 : i32
    %40 = arith.index_cast %c1_i32 : i32 to index
    %c0_22 = arith.constant 0 : index
    %c0_23 = arith.constant 0 : index
    %41 = vector.load %arg6[%40, %c0_22, %c0_23] : memref<8x8x512xf32, #tpu.memory_space<vmem>>, vector<1x8x512xf32>
    %42 = vector.shape_cast %41 : vector<1x8x512xf32> to vector<8x512xf32>
    %43 = vector.extract_strided_slice %42 {offsets = [0, 0], sizes = [8, 256], strides = [1, 1]} : vector<8x512xf32> to vector<8x256xf32>
    %cst_24 = arith.constant dense<0.000000e+00> : vector<8x256xf32>
    %44 = tpu.matmul %35, %9, %cst_24 {dimension_numbers = #tpu.dot_dimension_numbers<[1], [0], [0], [1], [0, 0, 1, 1], [], []>} : vector<8x64xf32>, vector<64x256xf32>, vector<8x256xf32> -> vector<8x256xf32>
    %45 = arith.addf %43, %44 : vector<8x256xf32>
    %46 = vector.extract_strided_slice %45 {offsets = [0, 0], sizes = [8, 192], strides = [1, 1]} : vector<8x256xf32> to vector<8x192xf32>
    %cst_25 = arith.constant 5.000000e-01 : f32
    %47 = vector.broadcast %cst_25 : f32 to vector<8x192xf32>
    %48 = arith.mulf %47, %46 : vector<8x192xf32>
    %49 = math.tanh %48 : vector<8x192xf32>
    %cst_26 = arith.constant 5.000000e-01 : f32
    %50 = vector.broadcast %cst_26 : f32 to vector<8x192xf32>
    %51 = arith.mulf %50, %49 : vector<8x192xf32>
    %cst_27 = arith.constant 5.000000e-01 : f32
    %52 = vector.broadcast %cst_27 : f32 to vector<8x192xf32>
    %53 = arith.addf %51, %52 : vector<8x192xf32>
    %54 = vector.extract_strided_slice %45 {offsets = [0, 192], sizes = [8, 64], strides = [1, 1]} : vector<8x256xf32> to vector<8x64xf32>
    %55 = math.tanh %54 : vector<8x64xf32>
    %56 = vector.extract_strided_slice %53 {offsets = [0, 64], sizes = [8, 64], strides = [1, 1]} : vector<8x192xf32> to vector<8x64xf32>
    %57 = arith.mulf %56, %32 : vector<8x64xf32>
    %58 = vector.extract_strided_slice %53 {offsets = [0, 0], sizes = [8, 64], strides = [1, 1]} : vector<8x192xf32> to vector<8x64xf32>
    %59 = arith.mulf %58, %55 : vector<8x64xf32>
    %60 = arith.addf %57, %59 : vector<8x64xf32>
    %61 = vector.extract_strided_slice %53 {offsets = [0, 128], sizes = [8, 64], strides = [1, 1]} : vector<8x192xf32> to vector<8x64xf32>
    %62 = math.tanh %60 : vector<8x64xf32>
    %63 = arith.mulf %61, %62 : vector<8x64xf32>
    %64 = arith.index_cast %c1_i32 : i32 to index
    %c0_28 = arith.constant 0 : index
    %c0_29 = arith.constant 0 : index
    %65 = vector.load %arg7[%64, %c0_28, %c0_29] : memref<8x8x64xf32, #tpu.memory_space<vmem>>, vector<1x8x64xf32>
    %66 = vector.shape_cast %65 : vector<1x8x64xf32> to vector<8x64xf32>
    %67 = vector.shape_cast %63 : vector<8x64xf32> to vector<1x8x64xf32>
    tpu.vector_store %arg7[%64, %c0_28, %c0_29], %67 {strides = array<i32>} : memref<8x8x64xf32, #tpu.memory_space<vmem>>, vector<1x8x64xf32>,
    %c2_i32 = arith.constant 2 : i32
    %68 = arith.index_cast %c2_i32 : i32 to index
    %c0_30 = arith.constant 0 : index
    %c0_31 = arith.constant 0 : index
    %69 = vector.load %arg6[%68, %c0_30, %c0_31] : memref<8x8x512xf32, #tpu.memory_space<vmem>>, vector<1x8x512xf32>
    %70 = vector.shape_cast %69 : vector<1x8x512xf32> to vector<8x512xf32>
    %71 = vector.extract_strided_slice %70 {offsets = [0, 0], sizes = [8, 256], strides = [1, 1]} : vector<8x512xf32> to vector<8x256xf32>
    %cst_32 = arith.constant dense<0.000000e+00> : vector<8x256xf32>
    %72 = tpu.matmul %63, %9, %cst_32 {dimension_numbers = #tpu.dot_dimension_numbers<[1], [0], [0], [1], [0, 0, 1, 1], [], []>} : vector<8x64xf32>, vector<64x256xf32>, vector<8x256xf32> -> vector<8x256xf32>
    %73 = arith.addf %71, %72 : vector<8x256xf32>
    %74 = vector.extract_strided_slice %73 {offsets = [0, 0], sizes = [8, 192], strides = [1, 1]} : vector<8x256xf32> to vector<8x192xf32>
    %cst_33 = arith.constant 5.000000e-01 : f32
    %75 = vector.broadcast %cst_33 : f32 to vector<8x192xf32>
    %76 = arith.mulf %75, %74 : vector<8x192xf32>
    %77 = math.tanh %76 : vector<8x192xf32>
    %cst_34 = arith.constant 5.000000e-01 : f32
    %78 = vector.broadcast %cst_34 : f32 to vector<8x192xf32>
    %79 = arith.mulf %78, %77 : vector<8x192xf32>
    %cst_35 = arith.constant 5.000000e-01 : f32
    %80 = vector.broadcast %cst_35 : f32 to vector<8x192xf32>
    %81 = arith.addf %79, %80 : vector<8x192xf32>
    %82 = vector.extract_strided_slice %73 {offsets = [0, 192], sizes = [8, 64], strides = [1, 1]} : vector<8x256xf32> to vector<8x64xf32>
    %83 = math.tanh %82 : vector<8x64xf32>
    %84 = vector.extract_strided_slice %81 {offsets = [0, 64], sizes = [8, 64], strides = [1, 1]} : vector<8x192xf32> to vector<8x64xf32>
    %85 = arith.mulf %84, %60 : vector<8x64xf32>
    %86 = vector.extract_strided_slice %81 {offsets = [0, 0], sizes = [8, 64], strides = [1, 1]} : vector<8x192xf32> to vector<8x64xf32>
    %87 = arith.mulf %86, %83 : vector<8x64xf32>
    %88 = arith.addf %85, %87 : vector<8x64xf32>
    %89 = vector.extract_strided_slice %81 {offsets = [0, 128], sizes = [8, 64], strides = [1, 1]} : vector<8x192xf32> to vector<8x64xf32>
    %90 = math.tanh %88 : vector<8x64xf32>
    %91 = arith.mulf %89, %90 : vector<8x64xf32>
    %92 = arith.index_cast %c2_i32 : i32 to index
    %c0_36 = arith.constant 0 : index
    %c0_37 = arith.constant 0 : index
    %93 = vector.load %arg7[%92, %c0_36, %c0_37] : memref<8x8x64xf32, #tpu.memory_space<vmem>>, vector<1x8x64xf32>
    %94 = vector.shape_cast %93 : vector<1x8x64xf32> to vector<8x64xf32>
    %95 = vector.shape_cast %91 : vector<8x64xf32> to vector<1x8x64xf32>
    tpu.vector_store %arg7[%92, %c0_36, %c0_37], %95 {strides = array<i32>} : memref<8x8x64xf32, #tpu.memory_space<vmem>>, vector<1x8x64xf32>,
    %c3_i32 = arith.constant 3 : i32
    %96 = arith.index_cast %c3_i32 : i32 to index
    %c0_38 = arith.constant 0 : index
    %c0_39 = arith.constant 0 : index
    %97 = vector.load %arg6[%96, %c0_38, %c0_39] : memref<8x8x512xf32, #tpu.memory_space<vmem>>, vector<1x8x512xf32>
    %98 = vector.shape_cast %97 : vector<1x8x512xf32> to vector<8x512xf32>
    %99 = vector.extract_strided_slice %98 {offsets = [0, 0], sizes = [8, 256], strides = [1, 1]} : vector<8x512xf32> to vector<8x256xf32>
    %cst_40 = arith.constant dense<0.000000e+00> : vector<8x256xf32>
    %100 = tpu.matmul %91, %9, %cst_40 {dimension_numbers = #tpu.dot_dimension_numbers<[1], [0], [0], [1], [0, 0, 1, 1], [], []>} : vector<8x64xf32>, vector<64x256xf32>, vector<8x256xf32> -> vector<8x256xf32>
    %101 = arith.addf %99, %100 : vector<8x256xf32>
    %102 = vector.extract_strided_slice %101 {offsets = [0, 0], sizes = [8, 192], strides = [1, 1]} : vector<8x256xf32> to vector<8x192xf32>
    %cst_41 = arith.constant 5.000000e-01 : f32
    %103 = vector.broadcast %cst_41 : f32 to vector<8x192xf32>
    %104 = arith.mulf %103, %102 : vector<8x192xf32>
    %105 = math.tanh %104 : vector<8x192xf32>
    %cst_42 = arith.constant 5.000000e-01 : f32
    %106 = vector.broadcast %cst_42 : f32 to vector<8x192xf32>
    %107 = arith.mulf %106, %105 : vector<8x192xf32>
    %cst_43 = arith.constant 5.000000e-01 : f32
    %108 = vector.broadcast %cst_43 : f32 to vector<8x192xf32>
    %109 = arith.addf %107, %108 : vector<8x192xf32>
    %110 = vector.extract_strided_slice %101 {offsets = [0, 192], sizes = [8, 64], strides = [1, 1]} : vector<8x256xf32> to vector<8x64xf32>
    %111 = math.tanh %110 : vector<8x64xf32>
    %112 = vector.extract_strided_slice %109 {offsets = [0, 64], sizes = [8, 64], strides = [1, 1]} : vector<8x192xf32> to vector<8x64xf32>
    %113 = arith.mulf %112, %88 : vector<8x64xf32>
    %114 = vector.extract_strided_slice %109 {offsets = [0, 0], sizes = [8, 64], strides = [1, 1]} : vector<8x192xf32> to vector<8x64xf32>
    %115 = arith.mulf %114, %111 : vector<8x64xf32>
    %116 = arith.addf %113, %115 : vector<8x64xf32>
    %117 = vector.extract_strided_slice %109 {offsets = [0, 128], sizes = [8, 64], strides = [1, 1]} : vector<8x192xf32> to vector<8x64xf32>
    %118 = math.tanh %116 : vector<8x64xf32>
    %119 = arith.mulf %117, %118 : vector<8x64xf32>
    %120 = arith.index_cast %c3_i32 : i32 to index
    %c0_44 = arith.constant 0 : index
    %c0_45 = arith.constant 0 : index
    %121 = vector.load %arg7[%120, %c0_44, %c0_45] : memref<8x8x64xf32, #tpu.memory_space<vmem>>, vector<1x8x64xf32>
    %122 = vector.shape_cast %121 : vector<1x8x64xf32> to vector<8x64xf32>
    %123 = vector.shape_cast %119 : vector<8x64xf32> to vector<1x8x64xf32>
    tpu.vector_store %arg7[%120, %c0_44, %c0_45], %123 {strides = array<i32>} : memref<8x8x64xf32, #tpu.memory_space<vmem>>, vector<1x8x64xf32>,
    %c4_i32 = arith.constant 4 : i32
    %124 = arith.index_cast %c4_i32 : i32 to index
    %c0_46 = arith.constant 0 : index
    %c0_47 = arith.constant 0 : index
    %125 = vector.load %arg6[%124, %c0_46, %c0_47] : memref<8x8x512xf32, #tpu.memory_space<vmem>>, vector<1x8x512xf32>
    %126 = vector.shape_cast %125 : vector<1x8x512xf32> to vector<8x512xf32>
    %127 = vector.extract_strided_slice %126 {offsets = [0, 0], sizes = [8, 256], strides = [1, 1]} : vector<8x512xf32> to vector<8x256xf32>
    %cst_48 = arith.constant dense<0.000000e+00> : vector<8x256xf32>
    %128 = tpu.matmul %119, %9, %cst_48 {dimension_numbers = #tpu.dot_dimension_numbers<[1], [0], [0], [1], [0, 0, 1, 1], [], []>} : vector<8x64xf32>, vector<64x256xf32>, vector<8x256xf32> -> vector<8x256xf32>
    %129 = arith.addf %127, %128 : vector<8x256xf32>
    %130 = vector.extract_strided_slice %129 {offsets = [0, 0], sizes = [8, 192], strides = [1, 1]} : vector<8x256xf32> to vector<8x192xf32>
    %cst_49 = arith.constant 5.000000e-01 : f32
    %131 = vector.broadcast %cst_49 : f32 to vector<8x192xf32>
    %132 = arith.mulf %131, %130 : vector<8x192xf32>
    %133 = math.tanh %132 : vector<8x192xf32>
    %cst_50 = arith.constant 5.000000e-01 : f32
    %134 = vector.broadcast %cst_50 : f32 to vector<8x192xf32>
    %135 = arith.mulf %134, %133 : vector<8x192xf32>
    %cst_51 = arith.constant 5.000000e-01 : f32
    %136 = vector.broadcast %cst_51 : f32 to vector<8x192xf32>
    %137 = arith.addf %135, %136 : vector<8x192xf32>
    %138 = vector.extract_strided_slice %129 {offsets = [0, 192], sizes = [8, 64], strides = [1, 1]} : vector<8x256xf32> to vector<8x64xf32>
    %139 = math.tanh %138 : vector<8x64xf32>
    %140 = vector.extract_strided_slice %137 {offsets = [0, 64], sizes = [8, 64], strides = [1, 1]} : vector<8x192xf32> to vector<8x64xf32>
    %141 = arith.mulf %140, %116 : vector<8x64xf32>
    %142 = vector.extract_strided_slice %137 {offsets = [0, 0], sizes = [8, 64], strides = [1, 1]} : vector<8x192xf32> to vector<8x64xf32>
    %143 = arith.mulf %142, %139 : vector<8x64xf32>
    %144 = arith.addf %141, %143 : vector<8x64xf32>
    %145 = vector.extract_strided_slice %137 {offsets = [0, 128], sizes = [8, 64], strides = [1, 1]} : vector<8x192xf32> to vector<8x64xf32>
    %146 = math.tanh %144 : vector<8x64xf32>
    %147 = arith.mulf %145, %146 : vector<8x64xf32>
    %148 = arith.index_cast %c4_i32 : i32 to index
    %c0_52 = arith.constant 0 : index
    %c0_53 = arith.constant 0 : index
    %149 = vector.load %arg7[%148, %c0_52, %c0_53] : memref<8x8x64xf32, #tpu.memory_space<vmem>>, vector<1x8x64xf32>
    %150 = vector.shape_cast %149 : vector<1x8x64xf32> to vector<8x64xf32>
    %151 = vector.shape_cast %147 : vector<8x64xf32> to vector<1x8x64xf32>
    tpu.vector_store %arg7[%148, %c0_52, %c0_53], %151 {strides = array<i32>} : memref<8x8x64xf32, #tpu.memory_space<vmem>>, vector<1x8x64xf32>,
    %c5_i32 = arith.constant 5 : i32
    %152 = arith.index_cast %c5_i32 : i32 to index
    %c0_54 = arith.constant 0 : index
    %c0_55 = arith.constant 0 : index
    %153 = vector.load %arg6[%152, %c0_54, %c0_55] : memref<8x8x512xf32, #tpu.memory_space<vmem>>, vector<1x8x512xf32>
    %154 = vector.shape_cast %153 : vector<1x8x512xf32> to vector<8x512xf32>
    %155 = vector.extract_strided_slice %154 {offsets = [0, 0], sizes = [8, 256], strides = [1, 1]} : vector<8x512xf32> to vector<8x256xf32>
    %cst_56 = arith.constant dense<0.000000e+00> : vector<8x256xf32>
    %156 = tpu.matmul %147, %9, %cst_56 {dimension_numbers = #tpu.dot_dimension_numbers<[1], [0], [0], [1], [0, 0, 1, 1], [], []>} : vector<8x64xf32>, vector<64x256xf32>, vector<8x256xf32> -> vector<8x256xf32>
    %157 = arith.addf %155, %156 : vector<8x256xf32>
    %158 = vector.extract_strided_slice %157 {offsets = [0, 0], sizes = [8, 192], strides = [1, 1]} : vector<8x256xf32> to vector<8x192xf32>
    %cst_57 = arith.constant 5.000000e-01 : f32
    %159 = vector.broadcast %cst_57 : f32 to vector<8x192xf32>
    %160 = arith.mulf %159, %158 : vector<8x192xf32>
    %161 = math.tanh %160 : vector<8x192xf32>
    %cst_58 = arith.constant 5.000000e-01 : f32
    %162 = vector.broadcast %cst_58 : f32 to vector<8x192xf32>
    %163 = arith.mulf %162, %161 : vector<8x192xf32>
    %cst_59 = arith.constant 5.000000e-01 : f32
    %164 = vector.broadcast %cst_59 : f32 to vector<8x192xf32>
    %165 = arith.addf %163, %164 : vector<8x192xf32>
    %166 = vector.extract_strided_slice %157 {offsets = [0, 192], sizes = [8, 64], strides = [1, 1]} : vector<8x256xf32> to vector<8x64xf32>
    %167 = math.tanh %166 : vector<8x64xf32>
    %168 = vector.extract_strided_slice %165 {offsets = [0, 64], sizes = [8, 64], strides = [1, 1]} : vector<8x192xf32> to vector<8x64xf32>
    %169 = arith.mulf %168, %144 : vector<8x64xf32>
    %170 = vector.extract_strided_slice %165 {offsets = [0, 0], sizes = [8, 64], strides = [1, 1]} : vector<8x192xf32> to vector<8x64xf32>
    %171 = arith.mulf %170, %167 : vector<8x64xf32>
    %172 = arith.addf %169, %171 : vector<8x64xf32>
    %173 = vector.extract_strided_slice %165 {offsets = [0, 128], sizes = [8, 64], strides = [1, 1]} : vector<8x192xf32> to vector<8x64xf32>
    %174 = math.tanh %172 : vector<8x64xf32>
    %175 = arith.mulf %173, %174 : vector<8x64xf32>
    %176 = arith.index_cast %c5_i32 : i32 to index
    %c0_60 = arith.constant 0 : index
    %c0_61 = arith.constant 0 : index
    %177 = vector.load %arg7[%176, %c0_60, %c0_61] : memref<8x8x64xf32, #tpu.memory_space<vmem>>, vector<1x8x64xf32>
    %178 = vector.shape_cast %177 : vector<1x8x64xf32> to vector<8x64xf32>
    %179 = vector.shape_cast %175 : vector<8x64xf32> to vector<1x8x64xf32>
    tpu.vector_store %arg7[%176, %c0_60, %c0_61], %179 {strides = array<i32>} : memref<8x8x64xf32, #tpu.memory_space<vmem>>, vector<1x8x64xf32>,
    %c6_i32 = arith.constant 6 : i32
    %180 = arith.index_cast %c6_i32 : i32 to index
    %c0_62 = arith.constant 0 : index
    %c0_63 = arith.constant 0 : index
    %181 = vector.load %arg6[%180, %c0_62, %c0_63] : memref<8x8x512xf32, #tpu.memory_space<vmem>>, vector<1x8x512xf32>
    %182 = vector.shape_cast %181 : vector<1x8x512xf32> to vector<8x512xf32>
    %183 = vector.extract_strided_slice %182 {offsets = [0, 0], sizes = [8, 256], strides = [1, 1]} : vector<8x512xf32> to vector<8x256xf32>
    %cst_64 = arith.constant dense<0.000000e+00> : vector<8x256xf32>
    %184 = tpu.matmul %175, %9, %cst_64 {dimension_numbers = #tpu.dot_dimension_numbers<[1], [0], [0], [1], [0, 0, 1, 1], [], []>} : vector<8x64xf32>, vector<64x256xf32>, vector<8x256xf32> -> vector<8x256xf32>
    %185 = arith.addf %183, %184 : vector<8x256xf32>
    %186 = vector.extract_strided_slice %185 {offsets = [0, 0], sizes = [8, 192], strides = [1, 1]} : vector<8x256xf32> to vector<8x192xf32>
    %cst_65 = arith.constant 5.000000e-01 : f32
    %187 = vector.broadcast %cst_65 : f32 to vector<8x192xf32>
    %188 = arith.mulf %187, %186 : vector<8x192xf32>
    %189 = math.tanh %188 : vector<8x192xf32>
    %cst_66 = arith.constant 5.000000e-01 : f32
    %190 = vector.broadcast %cst_66 : f32 to vector<8x192xf32>
    %191 = arith.mulf %190, %189 : vector<8x192xf32>
    %cst_67 = arith.constant 5.000000e-01 : f32
    %192 = vector.broadcast %cst_67 : f32 to vector<8x192xf32>
    %193 = arith.addf %191, %192 : vector<8x192xf32>
    %194 = vector.extract_strided_slice %185 {offsets = [0, 192], sizes = [8, 64], strides = [1, 1]} : vector<8x256xf32> to vector<8x64xf32>
    %195 = math.tanh %194 : vector<8x64xf32>
    %196 = vector.extract_strided_slice %193 {offsets = [0, 64], sizes = [8, 64], strides = [1, 1]} : vector<8x192xf32> to vector<8x64xf32>
    %197 = arith.mulf %196, %172 : vector<8x64xf32>
    %198 = vector.extract_strided_slice %193 {offsets = [0, 0], sizes = [8, 64], strides = [1, 1]} : vector<8x192xf32> to vector<8x64xf32>
    %199 = arith.mulf %198, %195 : vector<8x64xf32>
    %200 = arith.addf %197, %199 : vector<8x64xf32>
    %201 = vector.extract_strided_slice %193 {offsets = [0, 128], sizes = [8, 64], strides = [1, 1]} : vector<8x192xf32> to vector<8x64xf32>
    %202 = math.tanh %200 : vector<8x64xf32>
    %203 = arith.mulf %201, %202 : vector<8x64xf32>
    %204 = arith.index_cast %c6_i32 : i32 to index
    %c0_68 = arith.constant 0 : index
    %c0_69 = arith.constant 0 : index
    %205 = vector.load %arg7[%204, %c0_68, %c0_69] : memref<8x8x64xf32, #tpu.memory_space<vmem>>, vector<1x8x64xf32>
    %206 = vector.shape_cast %205 : vector<1x8x64xf32> to vector<8x64xf32>
    %207 = vector.shape_cast %203 : vector<8x64xf32> to vector<1x8x64xf32>
    tpu.vector_store %arg7[%204, %c0_68, %c0_69], %207 {strides = array<i32>} : memref<8x8x64xf32, #tpu.memory_space<vmem>>, vector<1x8x64xf32>,
    %c7_i32 = arith.constant 7 : i32
    %208 = arith.index_cast %c7_i32 : i32 to index
    %c0_70 = arith.constant 0 : index
    %c0_71 = arith.constant 0 : index
    %209 = vector.load %arg6[%208, %c0_70, %c0_71] : memref<8x8x512xf32, #tpu.memory_space<vmem>>, vector<1x8x512xf32>
    %210 = vector.shape_cast %209 : vector<1x8x512xf32> to vector<8x512xf32>
    %211 = vector.extract_strided_slice %210 {offsets = [0, 0], sizes = [8, 256], strides = [1, 1]} : vector<8x512xf32> to vector<8x256xf32>
    %cst_72 = arith.constant dense<0.000000e+00> : vector<8x256xf32>
    %212 = tpu.matmul %203, %9, %cst_72 {dimension_numbers = #tpu.dot_dimension_numbers<[1], [0], [0], [1], [0, 0, 1, 1], [], []>} : vector<8x64xf32>, vector<64x256xf32>, vector<8x256xf32> -> vector<8x256xf32>
    %213 = arith.addf %211, %212 : vector<8x256xf32>
    %214 = vector.extract_strided_slice %213 {offsets = [0, 0], sizes = [8, 192], strides = [1, 1]} : vector<8x256xf32> to vector<8x192xf32>
    %cst_73 = arith.constant 5.000000e-01 : f32
    %215 = vector.broadcast %cst_73 : f32 to vector<8x192xf32>
    %216 = arith.mulf %215, %214 : vector<8x192xf32>
    %217 = math.tanh %216 : vector<8x192xf32>
    %cst_74 = arith.constant 5.000000e-01 : f32
    %218 = vector.broadcast %cst_74 : f32 to vector<8x192xf32>
    %219 = arith.mulf %218, %217 : vector<8x192xf32>
    %cst_75 = arith.constant 5.000000e-01 : f32
    %220 = vector.broadcast %cst_75 : f32 to vector<8x192xf32>
    %221 = arith.addf %219, %220 : vector<8x192xf32>
    %222 = vector.extract_strided_slice %213 {offsets = [0, 192], sizes = [8, 64], strides = [1, 1]} : vector<8x256xf32> to vector<8x64xf32>
    %223 = math.tanh %222 : vector<8x64xf32>
    %224 = vector.extract_strided_slice %221 {offsets = [0, 64], sizes = [8, 64], strides = [1, 1]} : vector<8x192xf32> to vector<8x64xf32>
    %225 = arith.mulf %224, %200 : vector<8x64xf32>
    %226 = vector.extract_strided_slice %221 {offsets = [0, 0], sizes = [8, 64], strides = [1, 1]} : vector<8x192xf32> to vector<8x64xf32>
    %227 = arith.mulf %226, %223 : vector<8x64xf32>
    %228 = arith.addf %225, %227 : vector<8x64xf32>
    %229 = vector.extract_strided_slice %221 {offsets = [0, 128], sizes = [8, 64], strides = [1, 1]} : vector<8x192xf32> to vector<8x64xf32>
    %230 = math.tanh %228 : vector<8x64xf32>
    %231 = arith.mulf %229, %230 : vector<8x64xf32>
    %232 = arith.index_cast %c7_i32 : i32 to index
    %c0_76 = arith.constant 0 : index
    %c0_77 = arith.constant 0 : index
    %233 = vector.load %arg7[%232, %c0_76, %c0_77] : memref<8x8x64xf32, #tpu.memory_space<vmem>>, vector<1x8x64xf32>
    %234 = vector.shape_cast %233 : vector<1x8x64xf32> to vector<8x64xf32>
    %235 = vector.shape_cast %231 : vector<8x64xf32> to vector<1x8x64xf32>
    tpu.vector_store %arg7[%232, %c0_76, %c0_77], %235 {strides = array<i32>} : memref<8x8x64xf32, #tpu.memory_space<vmem>>, vector<1x8x64xf32>,
    %c8_i32 = arith.constant 8 : i32
    %c0_i32_78 = arith.constant 0 : i32
    %c7_i32_79 = arith.constant 7 : i32
    %236 = arith.subi %c7_i32_79, %c0_i32_78 : i32
    %237 = arith.index_cast %236 : i32 to index
    %c0_80 = arith.constant 0 : index
    %c0_81 = arith.constant 0 : index
    %238 = vector.load %arg6[%237, %c0_80, %c0_81] : memref<8x8x512xf32, #tpu.memory_space<vmem>>, vector<1x8x512xf32>
    %239 = vector.shape_cast %238 : vector<1x8x512xf32> to vector<8x512xf32>
    %240 = vector.extract_strided_slice %239 {offsets = [0, 256], sizes = [8, 256], strides = [1, 1]} : vector<8x512xf32> to vector<8x256xf32>
    %cst_82 = arith.constant dense<0.000000e+00> : vector<8x256xf32>
    %241 = tpu.matmul %11, %10, %cst_82 {dimension_numbers = #tpu.dot_dimension_numbers<[1], [0], [0], [1], [0, 0, 1, 1], [], []>} : vector<8x64xf32>, vector<64x256xf32>, vector<8x256xf32> -> vector<8x256xf32>
    %242 = arith.addf %240, %241 : vector<8x256xf32>
    %243 = vector.extract_strided_slice %242 {offsets = [0, 0], sizes = [8, 192], strides = [1, 1]} : vector<8x256xf32> to vector<8x192xf32>
    %cst_83 = arith.constant 5.000000e-01 : f32
    %244 = vector.broadcast %cst_83 : f32 to vector<8x192xf32>
    %245 = arith.mulf %244, %243 : vector<8x192xf32>
    %246 = math.tanh %245 : vector<8x192xf32>
    %cst_84 = arith.constant 5.000000e-01 : f32
    %247 = vector.broadcast %cst_84 : f32 to vector<8x192xf32>
    %248 = arith.mulf %247, %246 : vector<8x192xf32>
    %cst_85 = arith.constant 5.000000e-01 : f32
    %249 = vector.broadcast %cst_85 : f32 to vector<8x192xf32>
    %250 = arith.addf %248, %249 : vector<8x192xf32>
    %251 = vector.extract_strided_slice %242 {offsets = [0, 192], sizes = [8, 64], strides = [1, 1]} : vector<8x256xf32> to vector<8x64xf32>
    %252 = math.tanh %251 : vector<8x64xf32>
    %253 = vector.extract_strided_slice %250 {offsets = [0, 64], sizes = [8, 64], strides = [1, 1]} : vector<8x192xf32> to vector<8x64xf32>
    %254 = arith.mulf %253, %11 : vector<8x64xf32>
    %255 = vector.extract_strided_slice %250 {offsets = [0, 0], sizes = [8, 64], strides = [1, 1]} : vector<8x192xf32> to vector<8x64xf32>
    %256 = arith.mulf %255, %252 : vector<8x64xf32>
    %257 = arith.addf %254, %256 : vector<8x64xf32>
    %258 = vector.extract_strided_slice %250 {offsets = [0, 128], sizes = [8, 64], strides = [1, 1]} : vector<8x192xf32> to vector<8x64xf32>
    %259 = math.tanh %257 : vector<8x64xf32>
    %260 = arith.mulf %258, %259 : vector<8x64xf32>
    %261 = arith.index_cast %236 : i32 to index
    %c0_86 = arith.constant 0 : index
    %c0_87 = arith.constant 0 : index
    %262 = vector.load %arg7[%261, %c0_86, %c0_87] : memref<8x8x64xf32, #tpu.memory_space<vmem>>, vector<1x8x64xf32>
    %263 = vector.shape_cast %262 : vector<1x8x64xf32> to vector<8x64xf32>
    %264 = tpu.concatenate %263, %260 in 1 : vector<8x64xf32>, vector<8x64xf32> -> vector<8x128xf32>
    %265 = arith.index_cast %236 : i32 to index
    %c0_88 = arith.constant 0 : index
    %c0_89 = arith.constant 0 : index
    %266 = vector.load %arg5[%265, %c0_88, %c0_89] : memref<8x8x128xf32, #tpu.memory_space<vmem>>, vector<1x8x128xf32>
    %267 = vector.shape_cast %266 : vector<1x8x128xf32> to vector<8x128xf32>
    %268 = vector.shape_cast %264 : vector<8x128xf32> to vector<1x8x128xf32>
    tpu.vector_store %arg5[%265, %c0_88, %c0_89], %268 {strides = array<i32>} : memref<8x8x128xf32, #tpu.memory_space<vmem>>, vector<1x8x128xf32>,
    %c1_i32_90 = arith.constant 1 : i32
    %c7_i32_91 = arith.constant 7 : i32
    %269 = arith.subi %c7_i32_91, %c1_i32_90 : i32
    %270 = arith.index_cast %269 : i32 to index
    %c0_92 = arith.constant 0 : index
    %c0_93 = arith.constant 0 : index
    %271 = vector.load %arg6[%270, %c0_92, %c0_93] : memref<8x8x512xf32, #tpu.memory_space<vmem>>, vector<1x8x512xf32>
    %272 = vector.shape_cast %271 : vector<1x8x512xf32> to vector<8x512xf32>
    %273 = vector.extract_strided_slice %272 {offsets = [0, 256], sizes = [8, 256], strides = [1, 1]} : vector<8x512xf32> to vector<8x256xf32>
    %cst_94 = arith.constant dense<0.000000e+00> : vector<8x256xf32>
    %274 = tpu.matmul %260, %10, %cst_94 {dimension_numbers = #tpu.dot_dimension_numbers<[1], [0], [0], [1], [0, 0, 1, 1], [], []>} : vector<8x64xf32>, vector<64x256xf32>, vector<8x256xf32> -> vector<8x256xf32>
    %275 = arith.addf %273, %274 : vector<8x256xf32>
    %276 = vector.extract_strided_slice %275 {offsets = [0, 0], sizes = [8, 192], strides = [1, 1]} : vector<8x256xf32> to vector<8x192xf32>
    %cst_95 = arith.constant 5.000000e-01 : f32
    %277 = vector.broadcast %cst_95 : f32 to vector<8x192xf32>
    %278 = arith.mulf %277, %276 : vector<8x192xf32>
    %279 = math.tanh %278 : vector<8x192xf32>
    %cst_96 = arith.constant 5.000000e-01 : f32
    %280 = vector.broadcast %cst_96 : f32 to vector<8x192xf32>
    %281 = arith.mulf %280, %279 : vector<8x192xf32>
    %cst_97 = arith.constant 5.000000e-01 : f32
    %282 = vector.broadcast %cst_97 : f32 to vector<8x192xf32>
    %283 = arith.addf %281, %282 : vector<8x192xf32>
    %284 = vector.extract_strided_slice %275 {offsets = [0, 192], sizes = [8, 64], strides = [1, 1]} : vector<8x256xf32> to vector<8x64xf32>
    %285 = math.tanh %284 : vector<8x64xf32>
    %286 = vector.extract_strided_slice %283 {offsets = [0, 64], sizes = [8, 64], strides = [1, 1]} : vector<8x192xf32> to vector<8x64xf32>
    %287 = arith.mulf %286, %257 : vector<8x64xf32>
    %288 = vector.extract_strided_slice %283 {offsets = [0, 0], sizes = [8, 64], strides = [1, 1]} : vector<8x192xf32> to vector<8x64xf32>
    %289 = arith.mulf %288, %285 : vector<8x64xf32>
    %290 = arith.addf %287, %289 : vector<8x64xf32>
    %291 = vector.extract_strided_slice %283 {offsets = [0, 128], sizes = [8, 64], strides = [1, 1]} : vector<8x192xf32> to vector<8x64xf32>
    %292 = math.tanh %290 : vector<8x64xf32>
    %293 = arith.mulf %291, %292 : vector<8x64xf32>
    %294 = arith.index_cast %269 : i32 to index
    %c0_98 = arith.constant 0 : index
    %c0_99 = arith.constant 0 : index
    %295 = vector.load %arg7[%294, %c0_98, %c0_99] : memref<8x8x64xf32, #tpu.memory_space<vmem>>, vector<1x8x64xf32>
    %296 = vector.shape_cast %295 : vector<1x8x64xf32> to vector<8x64xf32>
    %297 = tpu.concatenate %296, %293 in 1 : vector<8x64xf32>, vector<8x64xf32> -> vector<8x128xf32>
    %298 = arith.index_cast %269 : i32 to index
    %c0_100 = arith.constant 0 : index
    %c0_101 = arith.constant 0 : index
    %299 = vector.load %arg5[%298, %c0_100, %c0_101] : memref<8x8x128xf32, #tpu.memory_space<vmem>>, vector<1x8x128xf32>
    %300 = vector.shape_cast %299 : vector<1x8x128xf32> to vector<8x128xf32>
    %301 = vector.shape_cast %297 : vector<8x128xf32> to vector<1x8x128xf32>
    tpu.vector_store %arg5[%298, %c0_100, %c0_101], %301 {strides = array<i32>} : memref<8x8x128xf32, #tpu.memory_space<vmem>>, vector<1x8x128xf32>,
    %c2_i32_102 = arith.constant 2 : i32
    %c7_i32_103 = arith.constant 7 : i32
    %302 = arith.subi %c7_i32_103, %c2_i32_102 : i32
    %303 = arith.index_cast %302 : i32 to index
    %c0_104 = arith.constant 0 : index
    %c0_105 = arith.constant 0 : index
    %304 = vector.load %arg6[%303, %c0_104, %c0_105] : memref<8x8x512xf32, #tpu.memory_space<vmem>>, vector<1x8x512xf32>
    %305 = vector.shape_cast %304 : vector<1x8x512xf32> to vector<8x512xf32>
    %306 = vector.extract_strided_slice %305 {offsets = [0, 256], sizes = [8, 256], strides = [1, 1]} : vector<8x512xf32> to vector<8x256xf32>
    %cst_106 = arith.constant dense<0.000000e+00> : vector<8x256xf32>
    %307 = tpu.matmul %293, %10, %cst_106 {dimension_numbers = #tpu.dot_dimension_numbers<[1], [0], [0], [1], [0, 0, 1, 1], [], []>} : vector<8x64xf32>, vector<64x256xf32>, vector<8x256xf32> -> vector<8x256xf32>
    %308 = arith.addf %306, %307 : vector<8x256xf32>
    %309 = vector.extract_strided_slice %308 {offsets = [0, 0], sizes = [8, 192], strides = [1, 1]} : vector<8x256xf32> to vector<8x192xf32>
    %cst_107 = arith.constant 5.000000e-01 : f32
    %310 = vector.broadcast %cst_107 : f32 to vector<8x192xf32>
    %311 = arith.mulf %310, %309 : vector<8x192xf32>
    %312 = math.tanh %311 : vector<8x192xf32>
    %cst_108 = arith.constant 5.000000e-01 : f32
    %313 = vector.broadcast %cst_108 : f32 to vector<8x192xf32>
    %314 = arith.mulf %313, %312 : vector<8x192xf32>
    %cst_109 = arith.constant 5.000000e-01 : f32
    %315 = vector.broadcast %cst_109 : f32 to vector<8x192xf32>
    %316 = arith.addf %314, %315 : vector<8x192xf32>
    %317 = vector.extract_strided_slice %308 {offsets = [0, 192], sizes = [8, 64], strides = [1, 1]} : vector<8x256xf32> to vector<8x64xf32>
    %318 = math.tanh %317 : vector<8x64xf32>
    %319 = vector.extract_strided_slice %316 {offsets = [0, 64], sizes = [8, 64], strides = [1, 1]} : vector<8x192xf32> to vector<8x64xf32>
    %320 = arith.mulf %319, %290 : vector<8x64xf32>
    %321 = vector.extract_strided_slice %316 {offsets = [0, 0], sizes = [8, 64], strides = [1, 1]} : vector<8x192xf32> to vector<8x64xf32>
    %322 = arith.mulf %321, %318 : vector<8x64xf32>
    %323 = arith.addf %320, %322 : vector<8x64xf32>
    %324 = vector.extract_strided_slice %316 {offsets = [0, 128], sizes = [8, 64], strides = [1, 1]} : vector<8x192xf32> to vector<8x64xf32>
    %325 = math.tanh %323 : vector<8x64xf32>
    %326 = arith.mulf %324, %325 : vector<8x64xf32>
    %327 = arith.index_cast %302 : i32 to index
    %c0_110 = arith.constant 0 : index
    %c0_111 = arith.constant 0 : index
    %328 = vector.load %arg7[%327, %c0_110, %c0_111] : memref<8x8x64xf32, #tpu.memory_space<vmem>>, vector<1x8x64xf32>
    %329 = vector.shape_cast %328 : vector<1x8x64xf32> to vector<8x64xf32>
    %330 = tpu.concatenate %329, %326 in 1 : vector<8x64xf32>, vector<8x64xf32> -> vector<8x128xf32>
    %331 = arith.index_cast %302 : i32 to index
    %c0_112 = arith.constant 0 : index
    %c0_113 = arith.constant 0 : index
    %332 = vector.load %arg5[%331, %c0_112, %c0_113] : memref<8x8x128xf32, #tpu.memory_space<vmem>>, vector<1x8x128xf32>
    %333 = vector.shape_cast %332 : vector<1x8x128xf32> to vector<8x128xf32>
    %334 = vector.shape_cast %330 : vector<8x128xf32> to vector<1x8x128xf32>
    tpu.vector_store %arg5[%331, %c0_112, %c0_113], %334 {strides = array<i32>} : memref<8x8x128xf32, #tpu.memory_space<vmem>>, vector<1x8x128xf32>,
    %c3_i32_114 = arith.constant 3 : i32
    %c7_i32_115 = arith.constant 7 : i32
    %335 = arith.subi %c7_i32_115, %c3_i32_114 : i32
    %336 = arith.index_cast %335 : i32 to index
    %c0_116 = arith.constant 0 : index
    %c0_117 = arith.constant 0 : index
    %337 = vector.load %arg6[%336, %c0_116, %c0_117] : memref<8x8x512xf32, #tpu.memory_space<vmem>>, vector<1x8x512xf32>
    %338 = vector.shape_cast %337 : vector<1x8x512xf32> to vector<8x512xf32>
    %339 = vector.extract_strided_slice %338 {offsets = [0, 256], sizes = [8, 256], strides = [1, 1]} : vector<8x512xf32> to vector<8x256xf32>
    %cst_118 = arith.constant dense<0.000000e+00> : vector<8x256xf32>
    %340 = tpu.matmul %326, %10, %cst_118 {dimension_numbers = #tpu.dot_dimension_numbers<[1], [0], [0], [1], [0, 0, 1, 1], [], []>} : vector<8x64xf32>, vector<64x256xf32>, vector<8x256xf32> -> vector<8x256xf32>
    %341 = arith.addf %339, %340 : vector<8x256xf32>
    %342 = vector.extract_strided_slice %341 {offsets = [0, 0], sizes = [8, 192], strides = [1, 1]} : vector<8x256xf32> to vector<8x192xf32>
    %cst_119 = arith.constant 5.000000e-01 : f32
    %343 = vector.broadcast %cst_119 : f32 to vector<8x192xf32>
    %344 = arith.mulf %343, %342 : vector<8x192xf32>
    %345 = math.tanh %344 : vector<8x192xf32>
    %cst_120 = arith.constant 5.000000e-01 : f32
    %346 = vector.broadcast %cst_120 : f32 to vector<8x192xf32>
    %347 = arith.mulf %346, %345 : vector<8x192xf32>
    %cst_121 = arith.constant 5.000000e-01 : f32
    %348 = vector.broadcast %cst_121 : f32 to vector<8x192xf32>
    %349 = arith.addf %347, %348 : vector<8x192xf32>
    %350 = vector.extract_strided_slice %341 {offsets = [0, 192], sizes = [8, 64], strides = [1, 1]} : vector<8x256xf32> to vector<8x64xf32>
    %351 = math.tanh %350 : vector<8x64xf32>
    %352 = vector.extract_strided_slice %349 {offsets = [0, 64], sizes = [8, 64], strides = [1, 1]} : vector<8x192xf32> to vector<8x64xf32>
    %353 = arith.mulf %352, %323 : vector<8x64xf32>
    %354 = vector.extract_strided_slice %349 {offsets = [0, 0], sizes = [8, 64], strides = [1, 1]} : vector<8x192xf32> to vector<8x64xf32>
    %355 = arith.mulf %354, %351 : vector<8x64xf32>
    %356 = arith.addf %353, %355 : vector<8x64xf32>
    %357 = vector.extract_strided_slice %349 {offsets = [0, 128], sizes = [8, 64], strides = [1, 1]} : vector<8x192xf32> to vector<8x64xf32>
    %358 = math.tanh %356 : vector<8x64xf32>
    %359 = arith.mulf %357, %358 : vector<8x64xf32>
    %360 = arith.index_cast %335 : i32 to index
    %c0_122 = arith.constant 0 : index
    %c0_123 = arith.constant 0 : index
    %361 = vector.load %arg7[%360, %c0_122, %c0_123] : memref<8x8x64xf32, #tpu.memory_space<vmem>>, vector<1x8x64xf32>
    %362 = vector.shape_cast %361 : vector<1x8x64xf32> to vector<8x64xf32>
    %363 = tpu.concatenate %362, %359 in 1 : vector<8x64xf32>, vector<8x64xf32> -> vector<8x128xf32>
    %364 = arith.index_cast %335 : i32 to index
    %c0_124 = arith.constant 0 : index
    %c0_125 = arith.constant 0 : index
    %365 = vector.load %arg5[%364, %c0_124, %c0_125] : memref<8x8x128xf32, #tpu.memory_space<vmem>>, vector<1x8x128xf32>
    %366 = vector.shape_cast %365 : vector<1x8x128xf32> to vector<8x128xf32>
    %367 = vector.shape_cast %363 : vector<8x128xf32> to vector<1x8x128xf32>
    tpu.vector_store %arg5[%364, %c0_124, %c0_125], %367 {strides = array<i32>} : memref<8x8x128xf32, #tpu.memory_space<vmem>>, vector<1x8x128xf32>,
    %c4_i32_126 = arith.constant 4 : i32
    %c7_i32_127 = arith.constant 7 : i32
    %368 = arith.subi %c7_i32_127, %c4_i32_126 : i32
    %369 = arith.index_cast %368 : i32 to index
    %c0_128 = arith.constant 0 : index
    %c0_129 = arith.constant 0 : index
    %370 = vector.load %arg6[%369, %c0_128, %c0_129] : memref<8x8x512xf32, #tpu.memory_space<vmem>>, vector<1x8x512xf32>
    %371 = vector.shape_cast %370 : vector<1x8x512xf32> to vector<8x512xf32>
    %372 = vector.extract_strided_slice %371 {offsets = [0, 256], sizes = [8, 256], strides = [1, 1]} : vector<8x512xf32> to vector<8x256xf32>
    %cst_130 = arith.constant dense<0.000000e+00> : vector<8x256xf32>
    %373 = tpu.matmul %359, %10, %cst_130 {dimension_numbers = #tpu.dot_dimension_numbers<[1], [0], [0], [1], [0, 0, 1, 1], [], []>} : vector<8x64xf32>, vector<64x256xf32>, vector<8x256xf32> -> vector<8x256xf32>
    %374 = arith.addf %372, %373 : vector<8x256xf32>
    %375 = vector.extract_strided_slice %374 {offsets = [0, 0], sizes = [8, 192], strides = [1, 1]} : vector<8x256xf32> to vector<8x192xf32>
    %cst_131 = arith.constant 5.000000e-01 : f32
    %376 = vector.broadcast %cst_131 : f32 to vector<8x192xf32>
    %377 = arith.mulf %376, %375 : vector<8x192xf32>
    %378 = math.tanh %377 : vector<8x192xf32>
    %cst_132 = arith.constant 5.000000e-01 : f32
    %379 = vector.broadcast %cst_132 : f32 to vector<8x192xf32>
    %380 = arith.mulf %379, %378 : vector<8x192xf32>
    %cst_133 = arith.constant 5.000000e-01 : f32
    %381 = vector.broadcast %cst_133 : f32 to vector<8x192xf32>
    %382 = arith.addf %380, %381 : vector<8x192xf32>
    %383 = vector.extract_strided_slice %374 {offsets = [0, 192], sizes = [8, 64], strides = [1, 1]} : vector<8x256xf32> to vector<8x64xf32>
    %384 = math.tanh %383 : vector<8x64xf32>
    %385 = vector.extract_strided_slice %382 {offsets = [0, 64], sizes = [8, 64], strides = [1, 1]} : vector<8x192xf32> to vector<8x64xf32>
    %386 = arith.mulf %385, %356 : vector<8x64xf32>
    %387 = vector.extract_strided_slice %382 {offsets = [0, 0], sizes = [8, 64], strides = [1, 1]} : vector<8x192xf32> to vector<8x64xf32>
    %388 = arith.mulf %387, %384 : vector<8x64xf32>
    %389 = arith.addf %386, %388 : vector<8x64xf32>
    %390 = vector.extract_strided_slice %382 {offsets = [0, 128], sizes = [8, 64], strides = [1, 1]} : vector<8x192xf32> to vector<8x64xf32>
    %391 = math.tanh %389 : vector<8x64xf32>
    %392 = arith.mulf %390, %391 : vector<8x64xf32>
    %393 = arith.index_cast %368 : i32 to index
    %c0_134 = arith.constant 0 : index
    %c0_135 = arith.constant 0 : index
    %394 = vector.load %arg7[%393, %c0_134, %c0_135] : memref<8x8x64xf32, #tpu.memory_space<vmem>>, vector<1x8x64xf32>
    %395 = vector.shape_cast %394 : vector<1x8x64xf32> to vector<8x64xf32>
    %396 = tpu.concatenate %395, %392 in 1 : vector<8x64xf32>, vector<8x64xf32> -> vector<8x128xf32>
    %397 = arith.index_cast %368 : i32 to index
    %c0_136 = arith.constant 0 : index
    %c0_137 = arith.constant 0 : index
    %398 = vector.load %arg5[%397, %c0_136, %c0_137] : memref<8x8x128xf32, #tpu.memory_space<vmem>>, vector<1x8x128xf32>
    %399 = vector.shape_cast %398 : vector<1x8x128xf32> to vector<8x128xf32>
    %400 = vector.shape_cast %396 : vector<8x128xf32> to vector<1x8x128xf32>
    tpu.vector_store %arg5[%397, %c0_136, %c0_137], %400 {strides = array<i32>} : memref<8x8x128xf32, #tpu.memory_space<vmem>>, vector<1x8x128xf32>,
    %c5_i32_138 = arith.constant 5 : i32
    %c7_i32_139 = arith.constant 7 : i32
    %401 = arith.subi %c7_i32_139, %c5_i32_138 : i32
    %402 = arith.index_cast %401 : i32 to index
    %c0_140 = arith.constant 0 : index
    %c0_141 = arith.constant 0 : index
    %403 = vector.load %arg6[%402, %c0_140, %c0_141] : memref<8x8x512xf32, #tpu.memory_space<vmem>>, vector<1x8x512xf32>
    %404 = vector.shape_cast %403 : vector<1x8x512xf32> to vector<8x512xf32>
    %405 = vector.extract_strided_slice %404 {offsets = [0, 256], sizes = [8, 256], strides = [1, 1]} : vector<8x512xf32> to vector<8x256xf32>
    %cst_142 = arith.constant dense<0.000000e+00> : vector<8x256xf32>
    %406 = tpu.matmul %392, %10, %cst_142 {dimension_numbers = #tpu.dot_dimension_numbers<[1], [0], [0], [1], [0, 0, 1, 1], [], []>} : vector<8x64xf32>, vector<64x256xf32>, vector<8x256xf32> -> vector<8x256xf32>
    %407 = arith.addf %405, %406 : vector<8x256xf32>
    %408 = vector.extract_strided_slice %407 {offsets = [0, 0], sizes = [8, 192], strides = [1, 1]} : vector<8x256xf32> to vector<8x192xf32>
    %cst_143 = arith.constant 5.000000e-01 : f32
    %409 = vector.broadcast %cst_143 : f32 to vector<8x192xf32>
    %410 = arith.mulf %409, %408 : vector<8x192xf32>
    %411 = math.tanh %410 : vector<8x192xf32>
    %cst_144 = arith.constant 5.000000e-01 : f32
    %412 = vector.broadcast %cst_144 : f32 to vector<8x192xf32>
    %413 = arith.mulf %412, %411 : vector<8x192xf32>
    %cst_145 = arith.constant 5.000000e-01 : f32
    %414 = vector.broadcast %cst_145 : f32 to vector<8x192xf32>
    %415 = arith.addf %413, %414 : vector<8x192xf32>
    %416 = vector.extract_strided_slice %407 {offsets = [0, 192], sizes = [8, 64], strides = [1, 1]} : vector<8x256xf32> to vector<8x64xf32>
    %417 = math.tanh %416 : vector<8x64xf32>
    %418 = vector.extract_strided_slice %415 {offsets = [0, 64], sizes = [8, 64], strides = [1, 1]} : vector<8x192xf32> to vector<8x64xf32>
    %419 = arith.mulf %418, %389 : vector<8x64xf32>
    %420 = vector.extract_strided_slice %415 {offsets = [0, 0], sizes = [8, 64], strides = [1, 1]} : vector<8x192xf32> to vector<8x64xf32>
    %421 = arith.mulf %420, %417 : vector<8x64xf32>
    %422 = arith.addf %419, %421 : vector<8x64xf32>
    %423 = vector.extract_strided_slice %415 {offsets = [0, 128], sizes = [8, 64], strides = [1, 1]} : vector<8x192xf32> to vector<8x64xf32>
    %424 = math.tanh %422 : vector<8x64xf32>
    %425 = arith.mulf %423, %424 : vector<8x64xf32>
    %426 = arith.index_cast %401 : i32 to index
    %c0_146 = arith.constant 0 : index
    %c0_147 = arith.constant 0 : index
    %427 = vector.load %arg7[%426, %c0_146, %c0_147] : memref<8x8x64xf32, #tpu.memory_space<vmem>>, vector<1x8x64xf32>
    %428 = vector.shape_cast %427 : vector<1x8x64xf32> to vector<8x64xf32>
    %429 = tpu.concatenate %428, %425 in 1 : vector<8x64xf32>, vector<8x64xf32> -> vector<8x128xf32>
    %430 = arith.index_cast %401 : i32 to index
    %c0_148 = arith.constant 0 : index
    %c0_149 = arith.constant 0 : index
    %431 = vector.load %arg5[%430, %c0_148, %c0_149] : memref<8x8x128xf32, #tpu.memory_space<vmem>>, vector<1x8x128xf32>
    %432 = vector.shape_cast %431 : vector<1x8x128xf32> to vector<8x128xf32>
    %433 = vector.shape_cast %429 : vector<8x128xf32> to vector<1x8x128xf32>
    tpu.vector_store %arg5[%430, %c0_148, %c0_149], %433 {strides = array<i32>} : memref<8x8x128xf32, #tpu.memory_space<vmem>>, vector<1x8x128xf32>,
    %c6_i32_150 = arith.constant 6 : i32
    %c7_i32_151 = arith.constant 7 : i32
    %434 = arith.subi %c7_i32_151, %c6_i32_150 : i32
    %435 = arith.index_cast %434 : i32 to index
    %c0_152 = arith.constant 0 : index
    %c0_153 = arith.constant 0 : index
    %436 = vector.load %arg6[%435, %c0_152, %c0_153] : memref<8x8x512xf32, #tpu.memory_space<vmem>>, vector<1x8x512xf32>
    %437 = vector.shape_cast %436 : vector<1x8x512xf32> to vector<8x512xf32>
    %438 = vector.extract_strided_slice %437 {offsets = [0, 256], sizes = [8, 256], strides = [1, 1]} : vector<8x512xf32> to vector<8x256xf32>
    %cst_154 = arith.constant dense<0.000000e+00> : vector<8x256xf32>
    %439 = tpu.matmul %425, %10, %cst_154 {dimension_numbers = #tpu.dot_dimension_numbers<[1], [0], [0], [1], [0, 0, 1, 1], [], []>} : vector<8x64xf32>, vector<64x256xf32>, vector<8x256xf32> -> vector<8x256xf32>
    %440 = arith.addf %438, %439 : vector<8x256xf32>
    %441 = vector.extract_strided_slice %440 {offsets = [0, 0], sizes = [8, 192], strides = [1, 1]} : vector<8x256xf32> to vector<8x192xf32>
    %cst_155 = arith.constant 5.000000e-01 : f32
    %442 = vector.broadcast %cst_155 : f32 to vector<8x192xf32>
    %443 = arith.mulf %442, %441 : vector<8x192xf32>
    %444 = math.tanh %443 : vector<8x192xf32>
    %cst_156 = arith.constant 5.000000e-01 : f32
    %445 = vector.broadcast %cst_156 : f32 to vector<8x192xf32>
    %446 = arith.mulf %445, %444 : vector<8x192xf32>
    %cst_157 = arith.constant 5.000000e-01 : f32
    %447 = vector.broadcast %cst_157 : f32 to vector<8x192xf32>
    %448 = arith.addf %446, %447 : vector<8x192xf32>
    %449 = vector.extract_strided_slice %440 {offsets = [0, 192], sizes = [8, 64], strides = [1, 1]} : vector<8x256xf32> to vector<8x64xf32>
    %450 = math.tanh %449 : vector<8x64xf32>
    %451 = vector.extract_strided_slice %448 {offsets = [0, 64], sizes = [8, 64], strides = [1, 1]} : vector<8x192xf32> to vector<8x64xf32>
    %452 = arith.mulf %451, %422 : vector<8x64xf32>
    %453 = vector.extract_strided_slice %448 {offsets = [0, 0], sizes = [8, 64], strides = [1, 1]} : vector<8x192xf32> to vector<8x64xf32>
    %454 = arith.mulf %453, %450 : vector<8x64xf32>
    %455 = arith.addf %452, %454 : vector<8x64xf32>
    %456 = vector.extract_strided_slice %448 {offsets = [0, 128], sizes = [8, 64], strides = [1, 1]} : vector<8x192xf32> to vector<8x64xf32>
    %457 = math.tanh %455 : vector<8x64xf32>
    %458 = arith.mulf %456, %457 : vector<8x64xf32>
    %459 = arith.index_cast %434 : i32 to index
    %c0_158 = arith.constant 0 : index
    %c0_159 = arith.constant 0 : index
    %460 = vector.load %arg7[%459, %c0_158, %c0_159] : memref<8x8x64xf32, #tpu.memory_space<vmem>>, vector<1x8x64xf32>
    %461 = vector.shape_cast %460 : vector<1x8x64xf32> to vector<8x64xf32>
    %462 = tpu.concatenate %461, %458 in 1 : vector<8x64xf32>, vector<8x64xf32> -> vector<8x128xf32>
    %463 = arith.index_cast %434 : i32 to index
    %c0_160 = arith.constant 0 : index
    %c0_161 = arith.constant 0 : index
    %464 = vector.load %arg5[%463, %c0_160, %c0_161] : memref<8x8x128xf32, #tpu.memory_space<vmem>>, vector<1x8x128xf32>
    %465 = vector.shape_cast %464 : vector<1x8x128xf32> to vector<8x128xf32>
    %466 = vector.shape_cast %462 : vector<8x128xf32> to vector<1x8x128xf32>
    tpu.vector_store %arg5[%463, %c0_160, %c0_161], %466 {strides = array<i32>} : memref<8x8x128xf32, #tpu.memory_space<vmem>>, vector<1x8x128xf32>,
    %c7_i32_162 = arith.constant 7 : i32
    %c7_i32_163 = arith.constant 7 : i32
    %467 = arith.subi %c7_i32_163, %c7_i32_162 : i32
    %468 = arith.index_cast %467 : i32 to index
    %c0_164 = arith.constant 0 : index
    %c0_165 = arith.constant 0 : index
    %469 = vector.load %arg6[%468, %c0_164, %c0_165] : memref<8x8x512xf32, #tpu.memory_space<vmem>>, vector<1x8x512xf32>
    %470 = vector.shape_cast %469 : vector<1x8x512xf32> to vector<8x512xf32>
    %471 = vector.extract_strided_slice %470 {offsets = [0, 256], sizes = [8, 256], strides = [1, 1]} : vector<8x512xf32> to vector<8x256xf32>
    %cst_166 = arith.constant dense<0.000000e+00> : vector<8x256xf32>
    %472 = tpu.matmul %458, %10, %cst_166 {dimension_numbers = #tpu.dot_dimension_numbers<[1], [0], [0], [1], [0, 0, 1, 1], [], []>} : vector<8x64xf32>, vector<64x256xf32>, vector<8x256xf32> -> vector<8x256xf32>
    %473 = arith.addf %471, %472 : vector<8x256xf32>
    %474 = vector.extract_strided_slice %473 {offsets = [0, 0], sizes = [8, 192], strides = [1, 1]} : vector<8x256xf32> to vector<8x192xf32>
    %cst_167 = arith.constant 5.000000e-01 : f32
    %475 = vector.broadcast %cst_167 : f32 to vector<8x192xf32>
    %476 = arith.mulf %475, %474 : vector<8x192xf32>
    %477 = math.tanh %476 : vector<8x192xf32>
    %cst_168 = arith.constant 5.000000e-01 : f32
    %478 = vector.broadcast %cst_168 : f32 to vector<8x192xf32>
    %479 = arith.mulf %478, %477 : vector<8x192xf32>
    %cst_169 = arith.constant 5.000000e-01 : f32
    %480 = vector.broadcast %cst_169 : f32 to vector<8x192xf32>
    %481 = arith.addf %479, %480 : vector<8x192xf32>
    %482 = vector.extract_strided_slice %473 {offsets = [0, 192], sizes = [8, 64], strides = [1, 1]} : vector<8x256xf32> to vector<8x64xf32>
    %483 = math.tanh %482 : vector<8x64xf32>
    %484 = vector.extract_strided_slice %481 {offsets = [0, 64], sizes = [8, 64], strides = [1, 1]} : vector<8x192xf32> to vector<8x64xf32>
    %485 = arith.mulf %484, %455 : vector<8x64xf32>
    %486 = vector.extract_strided_slice %481 {offsets = [0, 0], sizes = [8, 64], strides = [1, 1]} : vector<8x192xf32> to vector<8x64xf32>
    %487 = arith.mulf %486, %483 : vector<8x64xf32>
    %488 = arith.addf %485, %487 : vector<8x64xf32>
    %489 = vector.extract_strided_slice %481 {offsets = [0, 128], sizes = [8, 64], strides = [1, 1]} : vector<8x192xf32> to vector<8x64xf32>
    %490 = math.tanh %488 : vector<8x64xf32>
    %491 = arith.mulf %489, %490 : vector<8x64xf32>
    %492 = arith.index_cast %467 : i32 to index
    %c0_170 = arith.constant 0 : index
    %c0_171 = arith.constant 0 : index
    %493 = vector.load %arg7[%492, %c0_170, %c0_171] : memref<8x8x64xf32, #tpu.memory_space<vmem>>, vector<1x8x64xf32>
    %494 = vector.shape_cast %493 : vector<1x8x64xf32> to vector<8x64xf32>
    %495 = tpu.concatenate %494, %491 in 1 : vector<8x64xf32>, vector<8x64xf32> -> vector<8x128xf32>
    %496 = arith.index_cast %467 : i32 to index
    %c0_172 = arith.constant 0 : index
    %c0_173 = arith.constant 0 : index
    %497 = vector.load %arg5[%496, %c0_172, %c0_173] : memref<8x8x128xf32, #tpu.memory_space<vmem>>, vector<1x8x128xf32>
    %498 = vector.shape_cast %497 : vector<1x8x128xf32> to vector<8x128xf32>
    %499 = vector.shape_cast %495 : vector<8x128xf32> to vector<1x8x128xf32>
    tpu.vector_store %arg5[%496, %c0_172, %c0_173], %499 {strides = array<i32>} : memref<8x8x128xf32, #tpu.memory_space<vmem>>, vector<1x8x128xf32>,
    %c8_i32_174 = arith.constant 8 : i32
    return
  }
}

module attributes {stable_mosaic.version = 11 : i64} {
  func.func @_head_kernel(%arg0: memref<8x8x128xf32, #tpu.memory_space<vmem>>, %arg1: memref<128x256xf32, #tpu.memory_space<vmem>>, %arg2: memref<1x256xf32, #tpu.memory_space<vmem>>, %arg3: memref<256x128xf32, #tpu.memory_space<vmem>>, %arg4: memref<1x128xf32, #tpu.memory_space<vmem>>, %arg5: memref<128x128xf32, #tpu.memory_space<vmem>>, %arg6: memref<1x128xf32, #tpu.memory_space<vmem>>, %arg7: memref<8x128xf32, #tpu.memory_space<vmem>>) attributes {dimension_semantics = [], scalar_prefetch = 0 : i64, scratch_operands = 0 : i64, tpu.core_type = #tpu.core_type<tc>} {
    %c0 = arith.constant 0 : index
    %c0_0 = arith.constant 0 : index
    %c0_1 = arith.constant 0 : index
    %0 = vector.load %arg0[%c0, %c0_0, %c0_1] : memref<8x8x128xf32, #tpu.memory_space<vmem>>, vector<1x8x128xf32>
    %1 = vector.shape_cast %0 : vector<1x8x128xf32> to vector<8x128xf32>
    %c1 = arith.constant 1 : index
    %c0_2 = arith.constant 0 : index
    %c0_3 = arith.constant 0 : index
    %2 = vector.load %arg0[%c1, %c0_2, %c0_3] : memref<8x8x128xf32, #tpu.memory_space<vmem>>, vector<1x8x128xf32>
    %3 = vector.shape_cast %2 : vector<1x8x128xf32> to vector<8x128xf32>
    %4 = arith.maximumf %1, %3 : vector<8x128xf32>
    %c2 = arith.constant 2 : index
    %c0_4 = arith.constant 0 : index
    %c0_5 = arith.constant 0 : index
    %5 = vector.load %arg0[%c2, %c0_4, %c0_5] : memref<8x8x128xf32, #tpu.memory_space<vmem>>, vector<1x8x128xf32>
    %6 = vector.shape_cast %5 : vector<1x8x128xf32> to vector<8x128xf32>
    %7 = arith.maximumf %4, %6 : vector<8x128xf32>
    %c3 = arith.constant 3 : index
    %c0_6 = arith.constant 0 : index
    %c0_7 = arith.constant 0 : index
    %8 = vector.load %arg0[%c3, %c0_6, %c0_7] : memref<8x8x128xf32, #tpu.memory_space<vmem>>, vector<1x8x128xf32>
    %9 = vector.shape_cast %8 : vector<1x8x128xf32> to vector<8x128xf32>
    %10 = arith.maximumf %7, %9 : vector<8x128xf32>
    %c4 = arith.constant 4 : index
    %c0_8 = arith.constant 0 : index
    %c0_9 = arith.constant 0 : index
    %11 = vector.load %arg0[%c4, %c0_8, %c0_9] : memref<8x8x128xf32, #tpu.memory_space<vmem>>, vector<1x8x128xf32>
    %12 = vector.shape_cast %11 : vector<1x8x128xf32> to vector<8x128xf32>
    %13 = arith.maximumf %10, %12 : vector<8x128xf32>
    %c5 = arith.constant 5 : index
    %c0_10 = arith.constant 0 : index
    %c0_11 = arith.constant 0 : index
    %14 = vector.load %arg0[%c5, %c0_10, %c0_11] : memref<8x8x128xf32, #tpu.memory_space<vmem>>, vector<1x8x128xf32>
    %15 = vector.shape_cast %14 : vector<1x8x128xf32> to vector<8x128xf32>
    %16 = arith.maximumf %13, %15 : vector<8x128xf32>
    %c6 = arith.constant 6 : index
    %c0_12 = arith.constant 0 : index
    %c0_13 = arith.constant 0 : index
    %17 = vector.load %arg0[%c6, %c0_12, %c0_13] : memref<8x8x128xf32, #tpu.memory_space<vmem>>, vector<1x8x128xf32>
    %18 = vector.shape_cast %17 : vector<1x8x128xf32> to vector<8x128xf32>
    %19 = arith.maximumf %16, %18 : vector<8x128xf32>
    %c7 = arith.constant 7 : index
    %c0_14 = arith.constant 0 : index
    %c0_15 = arith.constant 0 : index
    %20 = vector.load %arg0[%c7, %c0_14, %c0_15] : memref<8x8x128xf32, #tpu.memory_space<vmem>>, vector<1x8x128xf32>
    %21 = vector.shape_cast %20 : vector<1x8x128xf32> to vector<8x128xf32>
    %22 = arith.maximumf %19, %21 : vector<8x128xf32>
    %c0_16 = arith.constant 0 : index
    %c0_17 = arith.constant 0 : index
    %23 = vector.load %arg1[%c0_16, %c0_17] : memref<128x256xf32, #tpu.memory_space<vmem>>, vector<128x256xf32>
    %cst = arith.constant dense<0.000000e+00> : vector<8x256xf32>
    %24 = tpu.matmul %22, %23, %cst {dimension_numbers = #tpu.dot_dimension_numbers<[1], [0], [0], [1], [0, 0, 1, 1], [], []>} : vector<8x128xf32>, vector<128x256xf32>, vector<8x256xf32> -> vector<8x256xf32>
    %c0_18 = arith.constant 0 : index
    %c0_19 = arith.constant 0 : index
    %25 = vector.load %arg2[%c0_18, %c0_19] : memref<1x256xf32, #tpu.memory_space<vmem>>, vector<1x256xf32>
    %26 = vector.broadcast %25 : vector<1x256xf32> to vector<8x256xf32>
    %27 = arith.addf %24, %26 : vector<8x256xf32>
    %cst_20 = arith.constant 0.000000e+00 : f32
    %28 = vector.broadcast %cst_20 : f32 to vector<8x256xf32>
    %29 = arith.maximumf %27, %28 : vector<8x256xf32>
    %c0_21 = arith.constant 0 : index
    %c0_22 = arith.constant 0 : index
    %30 = vector.load %arg3[%c0_21, %c0_22] : memref<256x128xf32, #tpu.memory_space<vmem>>, vector<256x128xf32>
    %cst_23 = arith.constant dense<0.000000e+00> : vector<8x128xf32>
    %31 = tpu.matmul %29, %30, %cst_23 {dimension_numbers = #tpu.dot_dimension_numbers<[1], [0], [0], [1], [0, 0, 1, 1], [], []>} : vector<8x256xf32>, vector<256x128xf32>, vector<8x128xf32> -> vector<8x128xf32>
    %c0_24 = arith.constant 0 : index
    %c0_25 = arith.constant 0 : index
    %32 = vector.load %arg4[%c0_24, %c0_25] : memref<1x128xf32, #tpu.memory_space<vmem>>, vector<1x128xf32>
    %33 = vector.broadcast %32 : vector<1x128xf32> to vector<8x128xf32>
    %34 = arith.addf %31, %33 : vector<8x128xf32>
    %cst_26 = arith.constant 0.000000e+00 : f32
    %35 = vector.broadcast %cst_26 : f32 to vector<8x128xf32>
    %36 = arith.maximumf %34, %35 : vector<8x128xf32>
    %c0_27 = arith.constant 0 : index
    %c0_28 = arith.constant 0 : index
    %37 = vector.load %arg5[%c0_27, %c0_28] : memref<128x128xf32, #tpu.memory_space<vmem>>, vector<128x128xf32>
    %cst_29 = arith.constant dense<0.000000e+00> : vector<8x128xf32>
    %38 = tpu.matmul %36, %37, %cst_29 {dimension_numbers = #tpu.dot_dimension_numbers<[1], [0], [0], [1], [0, 0, 1, 1], [], []>} : vector<8x128xf32>, vector<128x128xf32>, vector<8x128xf32> -> vector<8x128xf32>
    %c0_30 = arith.constant 0 : index
    %c0_31 = arith.constant 0 : index
    %39 = vector.load %arg6[%c0_30, %c0_31] : memref<1x128xf32, #tpu.memory_space<vmem>>, vector<1x128xf32>
    %40 = vector.broadcast %39 : vector<1x128xf32> to vector<8x128xf32>
    %41 = arith.addf %38, %40 : vector<8x128xf32>
    %42 = tpu.iota {dimensions = array<i32: 1>} : vector<8x128xi32>
    %c10_i32 = arith.constant 10 : i32
    %43 = vector.broadcast %c10_i32 : i32 to vector<8x128xi32>
    %44 = arith.cmpi slt, %42, %43 : vector<8x128xi32>
    %cst_32 = arith.constant -1.000000e+30 : f32
    %45 = vector.broadcast %cst_32 : f32 to vector<8x128xf32>
    %46 = arith.select %44, %41, %45 : vector<8x128xi1>, vector<8x128xf32>
    %cst_33 = arith.constant dense<0xFF800000> : vector<8xf32>
    %47 = vector.multi_reduction <maximumf>, %46, %cst_33 [1] : vector<8x128xf32> to vector<8xf32>
    %48 = vector.shape_cast %47 : vector<8xf32> to vector<8x1xf32>
    %49 = vector.broadcast %48 : vector<8x1xf32> to vector<8x128xf32>
    %50 = arith.subf %46, %49 : vector<8x128xf32>
    %51 = math.exp %50 : vector<8x128xf32>
    %cst_34 = arith.constant dense<0.000000e+00> : vector<8xf32>
    %52 = vector.multi_reduction <add>, %51, %cst_34 [1] : vector<8x128xf32> to vector<8xf32>
    %53 = vector.shape_cast %52 : vector<8xf32> to vector<8x1xf32>
    %54 = vector.broadcast %53 : vector<8x1xf32> to vector<8x128xf32>
    %55 = arith.divf %51, %54 : vector<8x128xf32>
    %c0_35 = arith.constant 0 : index
    %c0_36 = arith.constant 0 : index
    %56 = vector.load %arg7[%c0_35, %c0_36] : memref<8x128xf32, #tpu.memory_space<vmem>>, vector<8x128xf32>
    tpu.vector_store %arg7[%c0_35, %c0_36], %55 {strides = array<i32>} : memref<8x128xf32, #tpu.memory_space<vmem>>, vector<8x128xf32>,
    return
  }
}

module attributes {stable_mosaic.version = 11 : i64} {
  func.func @_bilstm_layer_kernel(%arg0: memref<8x8x128xf32, #tpu.memory_space<vmem>>, %arg1: memref<128x512xf32, #tpu.memory_space<vmem>>, %arg2: memref<64x256xf32, #tpu.memory_space<vmem>>, %arg3: memref<64x256xf32, #tpu.memory_space<vmem>>, %arg4: memref<1x512xf32, #tpu.memory_space<vmem>>, %arg5: memref<8x8x128xf32, #tpu.memory_space<vmem>>, %arg6: memref<8x8x512xf32, #tpu.memory_space<vmem>>, %arg7: memref<8x8x64xf32, #tpu.memory_space<vmem>>) attributes {dimension_semantics = [], scalar_prefetch = 0 : i64, scratch_operands = 2 : i64, tpu.core_type = #tpu.core_type<tc>} {
    %c0 = arith.constant 0 : index
    %c0_0 = arith.constant 0 : index
    %c0_1 = arith.constant 0 : index
    %0 = vector.load %arg0[%c0, %c0_0, %c0_1] : memref<8x8x128xf32, #tpu.memory_space<vmem>>, vector<8x8x128xf32>
    %1 = vector.shape_cast %0 : vector<8x8x128xf32> to vector<64x128xf32>
    %c0_2 = arith.constant 0 : index
    %c0_3 = arith.constant 0 : index
    %2 = vector.load %arg1[%c0_2, %c0_3] : memref<128x512xf32, #tpu.memory_space<vmem>>, vector<128x512xf32>
    %cst = arith.constant dense<0.000000e+00> : vector<64x512xf32>
    %3 = tpu.matmul %1, %2, %cst {dimension_numbers = #tpu.dot_dimension_numbers<[1], [0], [0], [1], [0, 0, 1, 1], [], []>} : vector<64x128xf32>, vector<128x512xf32>, vector<64x512xf32> -> vector<64x512xf32>
    %c0_4 = arith.constant 0 : index
    %c0_5 = arith.constant 0 : index
    %4 = vector.load %arg4[%c0_4, %c0_5] : memref<1x512xf32, #tpu.memory_space<vmem>>, vector<1x512xf32>
    %5 = vector.broadcast %4 : vector<1x512xf32> to vector<64x512xf32>
    %6 = arith.addf %3, %5 : vector<64x512xf32>
    %7 = vector.shape_cast %6 : vector<64x512xf32> to vector<8x8x512xf32>
    %c0_6 = arith.constant 0 : index
    %c0_7 = arith.constant 0 : index
    %c0_8 = arith.constant 0 : index
    %8 = vector.load %arg6[%c0_6, %c0_7, %c0_8] : memref<8x8x512xf32, #tpu.memory_space<vmem>>, vector<8x8x512xf32>
    tpu.vector_store %arg6[%c0_6, %c0_7, %c0_8], %7 {strides = array<i32>} : memref<8x8x512xf32, #tpu.memory_space<vmem>>, vector<8x8x512xf32>,
    %c0_9 = arith.constant 0 : index
    %c0_10 = arith.constant 0 : index
    %9 = vector.load %arg2[%c0_9, %c0_10] : memref<64x256xf32, #tpu.memory_space<vmem>>, vector<64x256xf32>
    %c0_11 = arith.constant 0 : index
    %c0_12 = arith.constant 0 : index
    %10 = vector.load %arg3[%c0_11, %c0_12] : memref<64x256xf32, #tpu.memory_space<vmem>>, vector<64x256xf32>
    %cst_13 = arith.constant 0.000000e+00 : f32
    %11 = vector.broadcast %cst_13 : f32 to vector<8x64xf32>
    %c0_i32 = arith.constant 0 : i32
    %12 = arith.index_cast %c0_i32 : i32 to index
    %c0_14 = arith.constant 0 : index
    %c0_15 = arith.constant 0 : index
    %13 = vector.load %arg6[%12, %c0_14, %c0_15] : memref<8x8x512xf32, #tpu.memory_space<vmem>>, vector<1x8x512xf32>
    %14 = vector.shape_cast %13 : vector<1x8x512xf32> to vector<8x512xf32>
    %15 = vector.extract_strided_slice %14 {offsets = [0, 0], sizes = [8, 256], strides = [1, 1]} : vector<8x512xf32> to vector<8x256xf32>
    %cst_16 = arith.constant dense<0.000000e+00> : vector<8x256xf32>
    %16 = tpu.matmul %11, %9, %cst_16 {dimension_numbers = #tpu.dot_dimension_numbers<[1], [0], [0], [1], [0, 0, 1, 1], [], []>} : vector<8x64xf32>, vector<64x256xf32>, vector<8x256xf32> -> vector<8x256xf32>
    %17 = arith.addf %15, %16 : vector<8x256xf32>
    %18 = vector.extract_strided_slice %17 {offsets = [0, 0], sizes = [8, 192], strides = [1, 1]} : vector<8x256xf32> to vector<8x192xf32>
    %cst_17 = arith.constant 5.000000e-01 : f32
    %19 = vector.broadcast %cst_17 : f32 to vector<8x192xf32>
    %20 = arith.mulf %19, %18 : vector<8x192xf32>
    %21 = math.tanh %20 : vector<8x192xf32>
    %cst_18 = arith.constant 5.000000e-01 : f32
    %22 = vector.broadcast %cst_18 : f32 to vector<8x192xf32>
    %23 = arith.mulf %22, %21 : vector<8x192xf32>
    %cst_19 = arith.constant 5.000000e-01 : f32
    %24 = vector.broadcast %cst_19 : f32 to vector<8x192xf32>
    %25 = arith.addf %23, %24 : vector<8x192xf32>
    %26 = vector.extract_strided_slice %17 {offsets = [0, 192], sizes = [8, 64], strides = [1, 1]} : vector<8x256xf32> to vector<8x64xf32>
    %27 = math.tanh %26 : vector<8x64xf32>
    %28 = vector.extract_strided_slice %25 {offsets = [0, 64], sizes = [8, 64], strides = [1, 1]} : vector<8x192xf32> to vector<8x64xf32>
    %29 = arith.mulf %28, %11 : vector<8x64xf32>
    %30 = vector.extract_strided_slice %25 {offsets = [0, 0], sizes = [8, 64], strides = [1, 1]} : vector<8x192xf32> to vector<8x64xf32>
    %31 = arith.mulf %30, %27 : vector<8x64xf32>
    %32 = arith.addf %29, %31 : vector<8x64xf32>
    %33 = vector.extract_strided_slice %25 {offsets = [0, 128], sizes = [8, 64], strides = [1, 1]} : vector<8x192xf32> to vector<8x64xf32>
    %34 = math.tanh %32 : vector<8x64xf32>
    %35 = arith.mulf %33, %34 : vector<8x64xf32>
    %36 = arith.index_cast %c0_i32 : i32 to index
    %c0_20 = arith.constant 0 : index
    %c0_21 = arith.constant 0 : index
    %37 = vector.load %arg7[%36, %c0_20, %c0_21] : memref<8x8x64xf32, #tpu.memory_space<vmem>>, vector<1x8x64xf32>
    %38 = vector.shape_cast %37 : vector<1x8x64xf32> to vector<8x64xf32>
    %39 = vector.shape_cast %35 : vector<8x64xf32> to vector<1x8x64xf32>
    tpu.vector_store %arg7[%36, %c0_20, %c0_21], %39 {strides = array<i32>} : memref<8x8x64xf32, #tpu.memory_space<vmem>>, vector<1x8x64xf32>,
    %c1_i32 = arith.constant 1 : i32
    %40 = arith.index_cast %c1_i32 : i32 to index
    %c0_22 = arith.constant 0 : index
    %c0_23 = arith.constant 0 : index
    %41 = vector.load %arg6[%40, %c0_22, %c0_23] : memref<8x8x512xf32, #tpu.memory_space<vmem>>, vector<1x8x512xf32>
    %42 = vector.shape_cast %41 : vector<1x8x512xf32> to vector<8x512xf32>
    %43 = vector.extract_strided_slice %42 {offsets = [0, 0], sizes = [8, 256], strides = [1, 1]} : vector<8x512xf32> to vector<8x256xf32>
    %cst_24 = arith.constant dense<0.000000e+00> : vector<8x256xf32>
    %44 = tpu.matmul %35, %9, %cst_24 {dimension_numbers = #tpu.dot_dimension_numbers<[1], [0], [0], [1], [0, 0, 1, 1], [], []>} : vector<8x64xf32>, vector<64x256xf32>, vector<8x256xf32> -> vector<8x256xf32>
    %45 = arith.addf %43, %44 : vector<8x256xf32>
    %46 = vector.extract_strided_slice %45 {offsets = [0, 0], sizes = [8, 192], strides = [1, 1]} : vector<8x256xf32> to vector<8x192xf32>
    %cst_25 = arith.constant 5.000000e-01 : f32
    %47 = vector.broadcast %cst_25 : f32 to vector<8x192xf32>
    %48 = arith.mulf %47, %46 : vector<8x192xf32>
    %49 = math.tanh %48 : vector<8x192xf32>
    %cst_26 = arith.constant 5.000000e-01 : f32
    %50 = vector.broadcast %cst_26 : f32 to vector<8x192xf32>
    %51 = arith.mulf %50, %49 : vector<8x192xf32>
    %cst_27 = arith.constant 5.000000e-01 : f32
    %52 = vector.broadcast %cst_27 : f32 to vector<8x192xf32>
    %53 = arith.addf %51, %52 : vector<8x192xf32>
    %54 = vector.extract_strided_slice %45 {offsets = [0, 192], sizes = [8, 64], strides = [1, 1]} : vector<8x256xf32> to vector<8x64xf32>
    %55 = math.tanh %54 : vector<8x64xf32>
    %56 = vector.extract_strided_slice %53 {offsets = [0, 64], sizes = [8, 64], strides = [1, 1]} : vector<8x192xf32> to vector<8x64xf32>
    %57 = arith.mulf %56, %32 : vector<8x64xf32>
    %58 = vector.extract_strided_slice %53 {offsets = [0, 0], sizes = [8, 64], strides = [1, 1]} : vector<8x192xf32> to vector<8x64xf32>
    %59 = arith.mulf %58, %55 : vector<8x64xf32>
    %60 = arith.addf %57, %59 : vector<8x64xf32>
    %61 = vector.extract_strided_slice %53 {offsets = [0, 128], sizes = [8, 64], strides = [1, 1]} : vector<8x192xf32> to vector<8x64xf32>
    %62 = math.tanh %60 : vector<8x64xf32>
    %63 = arith.mulf %61, %62 : vector<8x64xf32>
    %64 = arith.index_cast %c1_i32 : i32 to index
    %c0_28 = arith.constant 0 : index
    %c0_29 = arith.constant 0 : index
    %65 = vector.load %arg7[%64, %c0_28, %c0_29] : memref<8x8x64xf32, #tpu.memory_space<vmem>>, vector<1x8x64xf32>
    %66 = vector.shape_cast %65 : vector<1x8x64xf32> to vector<8x64xf32>
    %67 = vector.shape_cast %63 : vector<8x64xf32> to vector<1x8x64xf32>
    tpu.vector_store %arg7[%64, %c0_28, %c0_29], %67 {strides = array<i32>} : memref<8x8x64xf32, #tpu.memory_space<vmem>>, vector<1x8x64xf32>,
    %c2_i32 = arith.constant 2 : i32
    %68 = arith.index_cast %c2_i32 : i32 to index
    %c0_30 = arith.constant 0 : index
    %c0_31 = arith.constant 0 : index
    %69 = vector.load %arg6[%68, %c0_30, %c0_31] : memref<8x8x512xf32, #tpu.memory_space<vmem>>, vector<1x8x512xf32>
    %70 = vector.shape_cast %69 : vector<1x8x512xf32> to vector<8x512xf32>
    %71 = vector.extract_strided_slice %70 {offsets = [0, 0], sizes = [8, 256], strides = [1, 1]} : vector<8x512xf32> to vector<8x256xf32>
    %cst_32 = arith.constant dense<0.000000e+00> : vector<8x256xf32>
    %72 = tpu.matmul %63, %9, %cst_32 {dimension_numbers = #tpu.dot_dimension_numbers<[1], [0], [0], [1], [0, 0, 1, 1], [], []>} : vector<8x64xf32>, vector<64x256xf32>, vector<8x256xf32> -> vector<8x256xf32>
    %73 = arith.addf %71, %72 : vector<8x256xf32>
    %74 = vector.extract_strided_slice %73 {offsets = [0, 0], sizes = [8, 192], strides = [1, 1]} : vector<8x256xf32> to vector<8x192xf32>
    %cst_33 = arith.constant 5.000000e-01 : f32
    %75 = vector.broadcast %cst_33 : f32 to vector<8x192xf32>
    %76 = arith.mulf %75, %74 : vector<8x192xf32>
    %77 = math.tanh %76 : vector<8x192xf32>
    %cst_34 = arith.constant 5.000000e-01 : f32
    %78 = vector.broadcast %cst_34 : f32 to vector<8x192xf32>
    %79 = arith.mulf %78, %77 : vector<8x192xf32>
    %cst_35 = arith.constant 5.000000e-01 : f32
    %80 = vector.broadcast %cst_35 : f32 to vector<8x192xf32>
    %81 = arith.addf %79, %80 : vector<8x192xf32>
    %82 = vector.extract_strided_slice %73 {offsets = [0, 192], sizes = [8, 64], strides = [1, 1]} : vector<8x256xf32> to vector<8x64xf32>
    %83 = math.tanh %82 : vector<8x64xf32>
    %84 = vector.extract_strided_slice %81 {offsets = [0, 64], sizes = [8, 64], strides = [1, 1]} : vector<8x192xf32> to vector<8x64xf32>
    %85 = arith.mulf %84, %60 : vector<8x64xf32>
    %86 = vector.extract_strided_slice %81 {offsets = [0, 0], sizes = [8, 64], strides = [1, 1]} : vector<8x192xf32> to vector<8x64xf32>
    %87 = arith.mulf %86, %83 : vector<8x64xf32>
    %88 = arith.addf %85, %87 : vector<8x64xf32>
    %89 = vector.extract_strided_slice %81 {offsets = [0, 128], sizes = [8, 64], strides = [1, 1]} : vector<8x192xf32> to vector<8x64xf32>
    %90 = math.tanh %88 : vector<8x64xf32>
    %91 = arith.mulf %89, %90 : vector<8x64xf32>
    %92 = arith.index_cast %c2_i32 : i32 to index
    %c0_36 = arith.constant 0 : index
    %c0_37 = arith.constant 0 : index
    %93 = vector.load %arg7[%92, %c0_36, %c0_37] : memref<8x8x64xf32, #tpu.memory_space<vmem>>, vector<1x8x64xf32>
    %94 = vector.shape_cast %93 : vector<1x8x64xf32> to vector<8x64xf32>
    %95 = vector.shape_cast %91 : vector<8x64xf32> to vector<1x8x64xf32>
    tpu.vector_store %arg7[%92, %c0_36, %c0_37], %95 {strides = array<i32>} : memref<8x8x64xf32, #tpu.memory_space<vmem>>, vector<1x8x64xf32>,
    %c3_i32 = arith.constant 3 : i32
    %96 = arith.index_cast %c3_i32 : i32 to index
    %c0_38 = arith.constant 0 : index
    %c0_39 = arith.constant 0 : index
    %97 = vector.load %arg6[%96, %c0_38, %c0_39] : memref<8x8x512xf32, #tpu.memory_space<vmem>>, vector<1x8x512xf32>
    %98 = vector.shape_cast %97 : vector<1x8x512xf32> to vector<8x512xf32>
    %99 = vector.extract_strided_slice %98 {offsets = [0, 0], sizes = [8, 256], strides = [1, 1]} : vector<8x512xf32> to vector<8x256xf32>
    %cst_40 = arith.constant dense<0.000000e+00> : vector<8x256xf32>
    %100 = tpu.matmul %91, %9, %cst_40 {dimension_numbers = #tpu.dot_dimension_numbers<[1], [0], [0], [1], [0, 0, 1, 1], [], []>} : vector<8x64xf32>, vector<64x256xf32>, vector<8x256xf32> -> vector<8x256xf32>
    %101 = arith.addf %99, %100 : vector<8x256xf32>
    %102 = vector.extract_strided_slice %101 {offsets = [0, 0], sizes = [8, 192], strides = [1, 1]} : vector<8x256xf32> to vector<8x192xf32>
    %cst_41 = arith.constant 5.000000e-01 : f32
    %103 = vector.broadcast %cst_41 : f32 to vector<8x192xf32>
    %104 = arith.mulf %103, %102 : vector<8x192xf32>
    %105 = math.tanh %104 : vector<8x192xf32>
    %cst_42 = arith.constant 5.000000e-01 : f32
    %106 = vector.broadcast %cst_42 : f32 to vector<8x192xf32>
    %107 = arith.mulf %106, %105 : vector<8x192xf32>
    %cst_43 = arith.constant 5.000000e-01 : f32
    %108 = vector.broadcast %cst_43 : f32 to vector<8x192xf32>
    %109 = arith.addf %107, %108 : vector<8x192xf32>
    %110 = vector.extract_strided_slice %101 {offsets = [0, 192], sizes = [8, 64], strides = [1, 1]} : vector<8x256xf32> to vector<8x64xf32>
    %111 = math.tanh %110 : vector<8x64xf32>
    %112 = vector.extract_strided_slice %109 {offsets = [0, 64], sizes = [8, 64], strides = [1, 1]} : vector<8x192xf32> to vector<8x64xf32>
    %113 = arith.mulf %112, %88 : vector<8x64xf32>
    %114 = vector.extract_strided_slice %109 {offsets = [0, 0], sizes = [8, 64], strides = [1, 1]} : vector<8x192xf32> to vector<8x64xf32>
    %115 = arith.mulf %114, %111 : vector<8x64xf32>
    %116 = arith.addf %113, %115 : vector<8x64xf32>
    %117 = vector.extract_strided_slice %109 {offsets = [0, 128], sizes = [8, 64], strides = [1, 1]} : vector<8x192xf32> to vector<8x64xf32>
    %118 = math.tanh %116 : vector<8x64xf32>
    %119 = arith.mulf %117, %118 : vector<8x64xf32>
    %120 = arith.index_cast %c3_i32 : i32 to index
    %c0_44 = arith.constant 0 : index
    %c0_45 = arith.constant 0 : index
    %121 = vector.load %arg7[%120, %c0_44, %c0_45] : memref<8x8x64xf32, #tpu.memory_space<vmem>>, vector<1x8x64xf32>
    %122 = vector.shape_cast %121 : vector<1x8x64xf32> to vector<8x64xf32>
    %123 = vector.shape_cast %119 : vector<8x64xf32> to vector<1x8x64xf32>
    tpu.vector_store %arg7[%120, %c0_44, %c0_45], %123 {strides = array<i32>} : memref<8x8x64xf32, #tpu.memory_space<vmem>>, vector<1x8x64xf32>,
    %c4_i32 = arith.constant 4 : i32
    %124 = arith.index_cast %c4_i32 : i32 to index
    %c0_46 = arith.constant 0 : index
    %c0_47 = arith.constant 0 : index
    %125 = vector.load %arg6[%124, %c0_46, %c0_47] : memref<8x8x512xf32, #tpu.memory_space<vmem>>, vector<1x8x512xf32>
    %126 = vector.shape_cast %125 : vector<1x8x512xf32> to vector<8x512xf32>
    %127 = vector.extract_strided_slice %126 {offsets = [0, 0], sizes = [8, 256], strides = [1, 1]} : vector<8x512xf32> to vector<8x256xf32>
    %cst_48 = arith.constant dense<0.000000e+00> : vector<8x256xf32>
    %128 = tpu.matmul %119, %9, %cst_48 {dimension_numbers = #tpu.dot_dimension_numbers<[1], [0], [0], [1], [0, 0, 1, 1], [], []>} : vector<8x64xf32>, vector<64x256xf32>, vector<8x256xf32> -> vector<8x256xf32>
    %129 = arith.addf %127, %128 : vector<8x256xf32>
    %130 = vector.extract_strided_slice %129 {offsets = [0, 0], sizes = [8, 192], strides = [1, 1]} : vector<8x256xf32> to vector<8x192xf32>
    %cst_49 = arith.constant 5.000000e-01 : f32
    %131 = vector.broadcast %cst_49 : f32 to vector<8x192xf32>
    %132 = arith.mulf %131, %130 : vector<8x192xf32>
    %133 = math.tanh %132 : vector<8x192xf32>
    %cst_50 = arith.constant 5.000000e-01 : f32
    %134 = vector.broadcast %cst_50 : f32 to vector<8x192xf32>
    %135 = arith.mulf %134, %133 : vector<8x192xf32>
    %cst_51 = arith.constant 5.000000e-01 : f32
    %136 = vector.broadcast %cst_51 : f32 to vector<8x192xf32>
    %137 = arith.addf %135, %136 : vector<8x192xf32>
    %138 = vector.extract_strided_slice %129 {offsets = [0, 192], sizes = [8, 64], strides = [1, 1]} : vector<8x256xf32> to vector<8x64xf32>
    %139 = math.tanh %138 : vector<8x64xf32>
    %140 = vector.extract_strided_slice %137 {offsets = [0, 64], sizes = [8, 64], strides = [1, 1]} : vector<8x192xf32> to vector<8x64xf32>
    %141 = arith.mulf %140, %116 : vector<8x64xf32>
    %142 = vector.extract_strided_slice %137 {offsets = [0, 0], sizes = [8, 64], strides = [1, 1]} : vector<8x192xf32> to vector<8x64xf32>
    %143 = arith.mulf %142, %139 : vector<8x64xf32>
    %144 = arith.addf %141, %143 : vector<8x64xf32>
    %145 = vector.extract_strided_slice %137 {offsets = [0, 128], sizes = [8, 64], strides = [1, 1]} : vector<8x192xf32> to vector<8x64xf32>
    %146 = math.tanh %144 : vector<8x64xf32>
    %147 = arith.mulf %145, %146 : vector<8x64xf32>
    %148 = arith.index_cast %c4_i32 : i32 to index
    %c0_52 = arith.constant 0 : index
    %c0_53 = arith.constant 0 : index
    %149 = vector.load %arg7[%148, %c0_52, %c0_53] : memref<8x8x64xf32, #tpu.memory_space<vmem>>, vector<1x8x64xf32>
    %150 = vector.shape_cast %149 : vector<1x8x64xf32> to vector<8x64xf32>
    %151 = vector.shape_cast %147 : vector<8x64xf32> to vector<1x8x64xf32>
    tpu.vector_store %arg7[%148, %c0_52, %c0_53], %151 {strides = array<i32>} : memref<8x8x64xf32, #tpu.memory_space<vmem>>, vector<1x8x64xf32>,
    %c5_i32 = arith.constant 5 : i32
    %152 = arith.index_cast %c5_i32 : i32 to index
    %c0_54 = arith.constant 0 : index
    %c0_55 = arith.constant 0 : index
    %153 = vector.load %arg6[%152, %c0_54, %c0_55] : memref<8x8x512xf32, #tpu.memory_space<vmem>>, vector<1x8x512xf32>
    %154 = vector.shape_cast %153 : vector<1x8x512xf32> to vector<8x512xf32>
    %155 = vector.extract_strided_slice %154 {offsets = [0, 0], sizes = [8, 256], strides = [1, 1]} : vector<8x512xf32> to vector<8x256xf32>
    %cst_56 = arith.constant dense<0.000000e+00> : vector<8x256xf32>
    %156 = tpu.matmul %147, %9, %cst_56 {dimension_numbers = #tpu.dot_dimension_numbers<[1], [0], [0], [1], [0, 0, 1, 1], [], []>} : vector<8x64xf32>, vector<64x256xf32>, vector<8x256xf32> -> vector<8x256xf32>
    %157 = arith.addf %155, %156 : vector<8x256xf32>
    %158 = vector.extract_strided_slice %157 {offsets = [0, 0], sizes = [8, 192], strides = [1, 1]} : vector<8x256xf32> to vector<8x192xf32>
    %cst_57 = arith.constant 5.000000e-01 : f32
    %159 = vector.broadcast %cst_57 : f32 to vector<8x192xf32>
    %160 = arith.mulf %159, %158 : vector<8x192xf32>
    %161 = math.tanh %160 : vector<8x192xf32>
    %cst_58 = arith.constant 5.000000e-01 : f32
    %162 = vector.broadcast %cst_58 : f32 to vector<8x192xf32>
    %163 = arith.mulf %162, %161 : vector<8x192xf32>
    %cst_59 = arith.constant 5.000000e-01 : f32
    %164 = vector.broadcast %cst_59 : f32 to vector<8x192xf32>
    %165 = arith.addf %163, %164 : vector<8x192xf32>
    %166 = vector.extract_strided_slice %157 {offsets = [0, 192], sizes = [8, 64], strides = [1, 1]} : vector<8x256xf32> to vector<8x64xf32>
    %167 = math.tanh %166 : vector<8x64xf32>
    %168 = vector.extract_strided_slice %165 {offsets = [0, 64], sizes = [8, 64], strides = [1, 1]} : vector<8x192xf32> to vector<8x64xf32>
    %169 = arith.mulf %168, %144 : vector<8x64xf32>
    %170 = vector.extract_strided_slice %165 {offsets = [0, 0], sizes = [8, 64], strides = [1, 1]} : vector<8x192xf32> to vector<8x64xf32>
    %171 = arith.mulf %170, %167 : vector<8x64xf32>
    %172 = arith.addf %169, %171 : vector<8x64xf32>
    %173 = vector.extract_strided_slice %165 {offsets = [0, 128], sizes = [8, 64], strides = [1, 1]} : vector<8x192xf32> to vector<8x64xf32>
    %174 = math.tanh %172 : vector<8x64xf32>
    %175 = arith.mulf %173, %174 : vector<8x64xf32>
    %176 = arith.index_cast %c5_i32 : i32 to index
    %c0_60 = arith.constant 0 : index
    %c0_61 = arith.constant 0 : index
    %177 = vector.load %arg7[%176, %c0_60, %c0_61] : memref<8x8x64xf32, #tpu.memory_space<vmem>>, vector<1x8x64xf32>
    %178 = vector.shape_cast %177 : vector<1x8x64xf32> to vector<8x64xf32>
    %179 = vector.shape_cast %175 : vector<8x64xf32> to vector<1x8x64xf32>
    tpu.vector_store %arg7[%176, %c0_60, %c0_61], %179 {strides = array<i32>} : memref<8x8x64xf32, #tpu.memory_space<vmem>>, vector<1x8x64xf32>,
    %c6_i32 = arith.constant 6 : i32
    %180 = arith.index_cast %c6_i32 : i32 to index
    %c0_62 = arith.constant 0 : index
    %c0_63 = arith.constant 0 : index
    %181 = vector.load %arg6[%180, %c0_62, %c0_63] : memref<8x8x512xf32, #tpu.memory_space<vmem>>, vector<1x8x512xf32>
    %182 = vector.shape_cast %181 : vector<1x8x512xf32> to vector<8x512xf32>
    %183 = vector.extract_strided_slice %182 {offsets = [0, 0], sizes = [8, 256], strides = [1, 1]} : vector<8x512xf32> to vector<8x256xf32>
    %cst_64 = arith.constant dense<0.000000e+00> : vector<8x256xf32>
    %184 = tpu.matmul %175, %9, %cst_64 {dimension_numbers = #tpu.dot_dimension_numbers<[1], [0], [0], [1], [0, 0, 1, 1], [], []>} : vector<8x64xf32>, vector<64x256xf32>, vector<8x256xf32> -> vector<8x256xf32>
    %185 = arith.addf %183, %184 : vector<8x256xf32>
    %186 = vector.extract_strided_slice %185 {offsets = [0, 0], sizes = [8, 192], strides = [1, 1]} : vector<8x256xf32> to vector<8x192xf32>
    %cst_65 = arith.constant 5.000000e-01 : f32
    %187 = vector.broadcast %cst_65 : f32 to vector<8x192xf32>
    %188 = arith.mulf %187, %186 : vector<8x192xf32>
    %189 = math.tanh %188 : vector<8x192xf32>
    %cst_66 = arith.constant 5.000000e-01 : f32
    %190 = vector.broadcast %cst_66 : f32 to vector<8x192xf32>
    %191 = arith.mulf %190, %189 : vector<8x192xf32>
    %cst_67 = arith.constant 5.000000e-01 : f32
    %192 = vector.broadcast %cst_67 : f32 to vector<8x192xf32>
    %193 = arith.addf %191, %192 : vector<8x192xf32>
    %194 = vector.extract_strided_slice %185 {offsets = [0, 192], sizes = [8, 64], strides = [1, 1]} : vector<8x256xf32> to vector<8x64xf32>
    %195 = math.tanh %194 : vector<8x64xf32>
    %196 = vector.extract_strided_slice %193 {offsets = [0, 64], sizes = [8, 64], strides = [1, 1]} : vector<8x192xf32> to vector<8x64xf32>
    %197 = arith.mulf %196, %172 : vector<8x64xf32>
    %198 = vector.extract_strided_slice %193 {offsets = [0, 0], sizes = [8, 64], strides = [1, 1]} : vector<8x192xf32> to vector<8x64xf32>
    %199 = arith.mulf %198, %195 : vector<8x64xf32>
    %200 = arith.addf %197, %199 : vector<8x64xf32>
    %201 = vector.extract_strided_slice %193 {offsets = [0, 128], sizes = [8, 64], strides = [1, 1]} : vector<8x192xf32> to vector<8x64xf32>
    %202 = math.tanh %200 : vector<8x64xf32>
    %203 = arith.mulf %201, %202 : vector<8x64xf32>
    %204 = arith.index_cast %c6_i32 : i32 to index
    %c0_68 = arith.constant 0 : index
    %c0_69 = arith.constant 0 : index
    %205 = vector.load %arg7[%204, %c0_68, %c0_69] : memref<8x8x64xf32, #tpu.memory_space<vmem>>, vector<1x8x64xf32>
    %206 = vector.shape_cast %205 : vector<1x8x64xf32> to vector<8x64xf32>
    %207 = vector.shape_cast %203 : vector<8x64xf32> to vector<1x8x64xf32>
    tpu.vector_store %arg7[%204, %c0_68, %c0_69], %207 {strides = array<i32>} : memref<8x8x64xf32, #tpu.memory_space<vmem>>, vector<1x8x64xf32>,
    %c7_i32 = arith.constant 7 : i32
    %208 = arith.index_cast %c7_i32 : i32 to index
    %c0_70 = arith.constant 0 : index
    %c0_71 = arith.constant 0 : index
    %209 = vector.load %arg6[%208, %c0_70, %c0_71] : memref<8x8x512xf32, #tpu.memory_space<vmem>>, vector<1x8x512xf32>
    %210 = vector.shape_cast %209 : vector<1x8x512xf32> to vector<8x512xf32>
    %211 = vector.extract_strided_slice %210 {offsets = [0, 0], sizes = [8, 256], strides = [1, 1]} : vector<8x512xf32> to vector<8x256xf32>
    %cst_72 = arith.constant dense<0.000000e+00> : vector<8x256xf32>
    %212 = tpu.matmul %203, %9, %cst_72 {dimension_numbers = #tpu.dot_dimension_numbers<[1], [0], [0], [1], [0, 0, 1, 1], [], []>} : vector<8x64xf32>, vector<64x256xf32>, vector<8x256xf32> -> vector<8x256xf32>
    %213 = arith.addf %211, %212 : vector<8x256xf32>
    %214 = vector.extract_strided_slice %213 {offsets = [0, 0], sizes = [8, 192], strides = [1, 1]} : vector<8x256xf32> to vector<8x192xf32>
    %cst_73 = arith.constant 5.000000e-01 : f32
    %215 = vector.broadcast %cst_73 : f32 to vector<8x192xf32>
    %216 = arith.mulf %215, %214 : vector<8x192xf32>
    %217 = math.tanh %216 : vector<8x192xf32>
    %cst_74 = arith.constant 5.000000e-01 : f32
    %218 = vector.broadcast %cst_74 : f32 to vector<8x192xf32>
    %219 = arith.mulf %218, %217 : vector<8x192xf32>
    %cst_75 = arith.constant 5.000000e-01 : f32
    %220 = vector.broadcast %cst_75 : f32 to vector<8x192xf32>
    %221 = arith.addf %219, %220 : vector<8x192xf32>
    %222 = vector.extract_strided_slice %213 {offsets = [0, 192], sizes = [8, 64], strides = [1, 1]} : vector<8x256xf32> to vector<8x64xf32>
    %223 = math.tanh %222 : vector<8x64xf32>
    %224 = vector.extract_strided_slice %221 {offsets = [0, 64], sizes = [8, 64], strides = [1, 1]} : vector<8x192xf32> to vector<8x64xf32>
    %225 = arith.mulf %224, %200 : vector<8x64xf32>
    %226 = vector.extract_strided_slice %221 {offsets = [0, 0], sizes = [8, 64], strides = [1, 1]} : vector<8x192xf32> to vector<8x64xf32>
    %227 = arith.mulf %226, %223 : vector<8x64xf32>
    %228 = arith.addf %225, %227 : vector<8x64xf32>
    %229 = vector.extract_strided_slice %221 {offsets = [0, 128], sizes = [8, 64], strides = [1, 1]} : vector<8x192xf32> to vector<8x64xf32>
    %230 = math.tanh %228 : vector<8x64xf32>
    %231 = arith.mulf %229, %230 : vector<8x64xf32>
    %232 = arith.index_cast %c7_i32 : i32 to index
    %c0_76 = arith.constant 0 : index
    %c0_77 = arith.constant 0 : index
    %233 = vector.load %arg7[%232, %c0_76, %c0_77] : memref<8x8x64xf32, #tpu.memory_space<vmem>>, vector<1x8x64xf32>
    %234 = vector.shape_cast %233 : vector<1x8x64xf32> to vector<8x64xf32>
    %235 = vector.shape_cast %231 : vector<8x64xf32> to vector<1x8x64xf32>
    tpu.vector_store %arg7[%232, %c0_76, %c0_77], %235 {strides = array<i32>} : memref<8x8x64xf32, #tpu.memory_space<vmem>>, vector<1x8x64xf32>,
    %c8_i32 = arith.constant 8 : i32
    %c0_i32_78 = arith.constant 0 : i32
    %c7_i32_79 = arith.constant 7 : i32
    %236 = arith.subi %c7_i32_79, %c0_i32_78 : i32
    %237 = arith.index_cast %236 : i32 to index
    %c0_80 = arith.constant 0 : index
    %c0_81 = arith.constant 0 : index
    %238 = vector.load %arg6[%237, %c0_80, %c0_81] : memref<8x8x512xf32, #tpu.memory_space<vmem>>, vector<1x8x512xf32>
    %239 = vector.shape_cast %238 : vector<1x8x512xf32> to vector<8x512xf32>
    %240 = vector.extract_strided_slice %239 {offsets = [0, 256], sizes = [8, 256], strides = [1, 1]} : vector<8x512xf32> to vector<8x256xf32>
    %cst_82 = arith.constant dense<0.000000e+00> : vector<8x256xf32>
    %241 = tpu.matmul %11, %10, %cst_82 {dimension_numbers = #tpu.dot_dimension_numbers<[1], [0], [0], [1], [0, 0, 1, 1], [], []>} : vector<8x64xf32>, vector<64x256xf32>, vector<8x256xf32> -> vector<8x256xf32>
    %242 = arith.addf %240, %241 : vector<8x256xf32>
    %243 = vector.extract_strided_slice %242 {offsets = [0, 0], sizes = [8, 192], strides = [1, 1]} : vector<8x256xf32> to vector<8x192xf32>
    %cst_83 = arith.constant 5.000000e-01 : f32
    %244 = vector.broadcast %cst_83 : f32 to vector<8x192xf32>
    %245 = arith.mulf %244, %243 : vector<8x192xf32>
    %246 = math.tanh %245 : vector<8x192xf32>
    %cst_84 = arith.constant 5.000000e-01 : f32
    %247 = vector.broadcast %cst_84 : f32 to vector<8x192xf32>
    %248 = arith.mulf %247, %246 : vector<8x192xf32>
    %cst_85 = arith.constant 5.000000e-01 : f32
    %249 = vector.broadcast %cst_85 : f32 to vector<8x192xf32>
    %250 = arith.addf %248, %249 : vector<8x192xf32>
    %251 = vector.extract_strided_slice %242 {offsets = [0, 192], sizes = [8, 64], strides = [1, 1]} : vector<8x256xf32> to vector<8x64xf32>
    %252 = math.tanh %251 : vector<8x64xf32>
    %253 = vector.extract_strided_slice %250 {offsets = [0, 64], sizes = [8, 64], strides = [1, 1]} : vector<8x192xf32> to vector<8x64xf32>
    %254 = arith.mulf %253, %11 : vector<8x64xf32>
    %255 = vector.extract_strided_slice %250 {offsets = [0, 0], sizes = [8, 64], strides = [1, 1]} : vector<8x192xf32> to vector<8x64xf32>
    %256 = arith.mulf %255, %252 : vector<8x64xf32>
    %257 = arith.addf %254, %256 : vector<8x64xf32>
    %258 = vector.extract_strided_slice %250 {offsets = [0, 128], sizes = [8, 64], strides = [1, 1]} : vector<8x192xf32> to vector<8x64xf32>
    %259 = math.tanh %257 : vector<8x64xf32>
    %260 = arith.mulf %258, %259 : vector<8x64xf32>
    %261 = arith.index_cast %236 : i32 to index
    %c0_86 = arith.constant 0 : index
    %c0_87 = arith.constant 0 : index
    %262 = vector.load %arg7[%261, %c0_86, %c0_87] : memref<8x8x64xf32, #tpu.memory_space<vmem>>, vector<1x8x64xf32>
    %263 = vector.shape_cast %262 : vector<1x8x64xf32> to vector<8x64xf32>
    %264 = tpu.concatenate %263, %260 in 1 : vector<8x64xf32>, vector<8x64xf32> -> vector<8x128xf32>
    %265 = arith.index_cast %236 : i32 to index
    %c0_88 = arith.constant 0 : index
    %c0_89 = arith.constant 0 : index
    %266 = vector.load %arg5[%265, %c0_88, %c0_89] : memref<8x8x128xf32, #tpu.memory_space<vmem>>, vector<1x8x128xf32>
    %267 = vector.shape_cast %266 : vector<1x8x128xf32> to vector<8x128xf32>
    %268 = vector.shape_cast %264 : vector<8x128xf32> to vector<1x8x128xf32>
    tpu.vector_store %arg5[%265, %c0_88, %c0_89], %268 {strides = array<i32>} : memref<8x8x128xf32, #tpu.memory_space<vmem>>, vector<1x8x128xf32>,
    %c1_i32_90 = arith.constant 1 : i32
    %c7_i32_91 = arith.constant 7 : i32
    %269 = arith.subi %c7_i32_91, %c1_i32_90 : i32
    %270 = arith.index_cast %269 : i32 to index
    %c0_92 = arith.constant 0 : index
    %c0_93 = arith.constant 0 : index
    %271 = vector.load %arg6[%270, %c0_92, %c0_93] : memref<8x8x512xf32, #tpu.memory_space<vmem>>, vector<1x8x512xf32>
    %272 = vector.shape_cast %271 : vector<1x8x512xf32> to vector<8x512xf32>
    %273 = vector.extract_strided_slice %272 {offsets = [0, 256], sizes = [8, 256], strides = [1, 1]} : vector<8x512xf32> to vector<8x256xf32>
    %cst_94 = arith.constant dense<0.000000e+00> : vector<8x256xf32>
    %274 = tpu.matmul %260, %10, %cst_94 {dimension_numbers = #tpu.dot_dimension_numbers<[1], [0], [0], [1], [0, 0, 1, 1], [], []>} : vector<8x64xf32>, vector<64x256xf32>, vector<8x256xf32> -> vector<8x256xf32>
    %275 = arith.addf %273, %274 : vector<8x256xf32>
    %276 = vector.extract_strided_slice %275 {offsets = [0, 0], sizes = [8, 192], strides = [1, 1]} : vector<8x256xf32> to vector<8x192xf32>
    %cst_95 = arith.constant 5.000000e-01 : f32
    %277 = vector.broadcast %cst_95 : f32 to vector<8x192xf32>
    %278 = arith.mulf %277, %276 : vector<8x192xf32>
    %279 = math.tanh %278 : vector<8x192xf32>
    %cst_96 = arith.constant 5.000000e-01 : f32
    %280 = vector.broadcast %cst_96 : f32 to vector<8x192xf32>
    %281 = arith.mulf %280, %279 : vector<8x192xf32>
    %cst_97 = arith.constant 5.000000e-01 : f32
    %282 = vector.broadcast %cst_97 : f32 to vector<8x192xf32>
    %283 = arith.addf %281, %282 : vector<8x192xf32>
    %284 = vector.extract_strided_slice %275 {offsets = [0, 192], sizes = [8, 64], strides = [1, 1]} : vector<8x256xf32> to vector<8x64xf32>
    %285 = math.tanh %284 : vector<8x64xf32>
    %286 = vector.extract_strided_slice %283 {offsets = [0, 64], sizes = [8, 64], strides = [1, 1]} : vector<8x192xf32> to vector<8x64xf32>
    %287 = arith.mulf %286, %257 : vector<8x64xf32>
    %288 = vector.extract_strided_slice %283 {offsets = [0, 0], sizes = [8, 64], strides = [1, 1]} : vector<8x192xf32> to vector<8x64xf32>
    %289 = arith.mulf %288, %285 : vector<8x64xf32>
    %290 = arith.addf %287, %289 : vector<8x64xf32>
    %291 = vector.extract_strided_slice %283 {offsets = [0, 128], sizes = [8, 64], strides = [1, 1]} : vector<8x192xf32> to vector<8x64xf32>
    %292 = math.tanh %290 : vector<8x64xf32>
    %293 = arith.mulf %291, %292 : vector<8x64xf32>
    %294 = arith.index_cast %269 : i32 to index
    %c0_98 = arith.constant 0 : index
    %c0_99 = arith.constant 0 : index
    %295 = vector.load %arg7[%294, %c0_98, %c0_99] : memref<8x8x64xf32, #tpu.memory_space<vmem>>, vector<1x8x64xf32>
    %296 = vector.shape_cast %295 : vector<1x8x64xf32> to vector<8x64xf32>
    %297 = tpu.concatenate %296, %293 in 1 : vector<8x64xf32>, vector<8x64xf32> -> vector<8x128xf32>
    %298 = arith.index_cast %269 : i32 to index
    %c0_100 = arith.constant 0 : index
    %c0_101 = arith.constant 0 : index
    %299 = vector.load %arg5[%298, %c0_100, %c0_101] : memref<8x8x128xf32, #tpu.memory_space<vmem>>, vector<1x8x128xf32>
    %300 = vector.shape_cast %299 : vector<1x8x128xf32> to vector<8x128xf32>
    %301 = vector.shape_cast %297 : vector<8x128xf32> to vector<1x8x128xf32>
    tpu.vector_store %arg5[%298, %c0_100, %c0_101], %301 {strides = array<i32>} : memref<8x8x128xf32, #tpu.memory_space<vmem>>, vector<1x8x128xf32>,
    %c2_i32_102 = arith.constant 2 : i32
    %c7_i32_103 = arith.constant 7 : i32
    %302 = arith.subi %c7_i32_103, %c2_i32_102 : i32
    %303 = arith.index_cast %302 : i32 to index
    %c0_104 = arith.constant 0 : index
    %c0_105 = arith.constant 0 : index
    %304 = vector.load %arg6[%303, %c0_104, %c0_105] : memref<8x8x512xf32, #tpu.memory_space<vmem>>, vector<1x8x512xf32>
    %305 = vector.shape_cast %304 : vector<1x8x512xf32> to vector<8x512xf32>
    %306 = vector.extract_strided_slice %305 {offsets = [0, 256], sizes = [8, 256], strides = [1, 1]} : vector<8x512xf32> to vector<8x256xf32>
    %cst_106 = arith.constant dense<0.000000e+00> : vector<8x256xf32>
    %307 = tpu.matmul %293, %10, %cst_106 {dimension_numbers = #tpu.dot_dimension_numbers<[1], [0], [0], [1], [0, 0, 1, 1], [], []>} : vector<8x64xf32>, vector<64x256xf32>, vector<8x256xf32> -> vector<8x256xf32>
    %308 = arith.addf %306, %307 : vector<8x256xf32>
    %309 = vector.extract_strided_slice %308 {offsets = [0, 0], sizes = [8, 192], strides = [1, 1]} : vector<8x256xf32> to vector<8x192xf32>
    %cst_107 = arith.constant 5.000000e-01 : f32
    %310 = vector.broadcast %cst_107 : f32 to vector<8x192xf32>
    %311 = arith.mulf %310, %309 : vector<8x192xf32>
    %312 = math.tanh %311 : vector<8x192xf32>
    %cst_108 = arith.constant 5.000000e-01 : f32
    %313 = vector.broadcast %cst_108 : f32 to vector<8x192xf32>
    %314 = arith.mulf %313, %312 : vector<8x192xf32>
    %cst_109 = arith.constant 5.000000e-01 : f32
    %315 = vector.broadcast %cst_109 : f32 to vector<8x192xf32>
    %316 = arith.addf %314, %315 : vector<8x192xf32>
    %317 = vector.extract_strided_slice %308 {offsets = [0, 192], sizes = [8, 64], strides = [1, 1]} : vector<8x256xf32> to vector<8x64xf32>
    %318 = math.tanh %317 : vector<8x64xf32>
    %319 = vector.extract_strided_slice %316 {offsets = [0, 64], sizes = [8, 64], strides = [1, 1]} : vector<8x192xf32> to vector<8x64xf32>
    %320 = arith.mulf %319, %290 : vector<8x64xf32>
    %321 = vector.extract_strided_slice %316 {offsets = [0, 0], sizes = [8, 64], strides = [1, 1]} : vector<8x192xf32> to vector<8x64xf32>
    %322 = arith.mulf %321, %318 : vector<8x64xf32>
    %323 = arith.addf %320, %322 : vector<8x64xf32>
    %324 = vector.extract_strided_slice %316 {offsets = [0, 128], sizes = [8, 64], strides = [1, 1]} : vector<8x192xf32> to vector<8x64xf32>
    %325 = math.tanh %323 : vector<8x64xf32>
    %326 = arith.mulf %324, %325 : vector<8x64xf32>
    %327 = arith.index_cast %302 : i32 to index
    %c0_110 = arith.constant 0 : index
    %c0_111 = arith.constant 0 : index
    %328 = vector.load %arg7[%327, %c0_110, %c0_111] : memref<8x8x64xf32, #tpu.memory_space<vmem>>, vector<1x8x64xf32>
    %329 = vector.shape_cast %328 : vector<1x8x64xf32> to vector<8x64xf32>
    %330 = tpu.concatenate %329, %326 in 1 : vector<8x64xf32>, vector<8x64xf32> -> vector<8x128xf32>
    %331 = arith.index_cast %302 : i32 to index
    %c0_112 = arith.constant 0 : index
    %c0_113 = arith.constant 0 : index
    %332 = vector.load %arg5[%331, %c0_112, %c0_113] : memref<8x8x128xf32, #tpu.memory_space<vmem>>, vector<1x8x128xf32>
    %333 = vector.shape_cast %332 : vector<1x8x128xf32> to vector<8x128xf32>
    %334 = vector.shape_cast %330 : vector<8x128xf32> to vector<1x8x128xf32>
    tpu.vector_store %arg5[%331, %c0_112, %c0_113], %334 {strides = array<i32>} : memref<8x8x128xf32, #tpu.memory_space<vmem>>, vector<1x8x128xf32>,
    %c3_i32_114 = arith.constant 3 : i32
    %c7_i32_115 = arith.constant 7 : i32
    %335 = arith.subi %c7_i32_115, %c3_i32_114 : i32
    %336 = arith.index_cast %335 : i32 to index
    %c0_116 = arith.constant 0 : index
    %c0_117 = arith.constant 0 : index
    %337 = vector.load %arg6[%336, %c0_116, %c0_117] : memref<8x8x512xf32, #tpu.memory_space<vmem>>, vector<1x8x512xf32>
    %338 = vector.shape_cast %337 : vector<1x8x512xf32> to vector<8x512xf32>
    %339 = vector.extract_strided_slice %338 {offsets = [0, 256], sizes = [8, 256], strides = [1, 1]} : vector<8x512xf32> to vector<8x256xf32>
    %cst_118 = arith.constant dense<0.000000e+00> : vector<8x256xf32>
    %340 = tpu.matmul %326, %10, %cst_118 {dimension_numbers = #tpu.dot_dimension_numbers<[1], [0], [0], [1], [0, 0, 1, 1], [], []>} : vector<8x64xf32>, vector<64x256xf32>, vector<8x256xf32> -> vector<8x256xf32>
    %341 = arith.addf %339, %340 : vector<8x256xf32>
    %342 = vector.extract_strided_slice %341 {offsets = [0, 0], sizes = [8, 192], strides = [1, 1]} : vector<8x256xf32> to vector<8x192xf32>
    %cst_119 = arith.constant 5.000000e-01 : f32
    %343 = vector.broadcast %cst_119 : f32 to vector<8x192xf32>
    %344 = arith.mulf %343, %342 : vector<8x192xf32>
    %345 = math.tanh %344 : vector<8x192xf32>
    %cst_120 = arith.constant 5.000000e-01 : f32
    %346 = vector.broadcast %cst_120 : f32 to vector<8x192xf32>
    %347 = arith.mulf %346, %345 : vector<8x192xf32>
    %cst_121 = arith.constant 5.000000e-01 : f32
    %348 = vector.broadcast %cst_121 : f32 to vector<8x192xf32>
    %349 = arith.addf %347, %348 : vector<8x192xf32>
    %350 = vector.extract_strided_slice %341 {offsets = [0, 192], sizes = [8, 64], strides = [1, 1]} : vector<8x256xf32> to vector<8x64xf32>
    %351 = math.tanh %350 : vector<8x64xf32>
    %352 = vector.extract_strided_slice %349 {offsets = [0, 64], sizes = [8, 64], strides = [1, 1]} : vector<8x192xf32> to vector<8x64xf32>
    %353 = arith.mulf %352, %323 : vector<8x64xf32>
    %354 = vector.extract_strided_slice %349 {offsets = [0, 0], sizes = [8, 64], strides = [1, 1]} : vector<8x192xf32> to vector<8x64xf32>
    %355 = arith.mulf %354, %351 : vector<8x64xf32>
    %356 = arith.addf %353, %355 : vector<8x64xf32>
    %357 = vector.extract_strided_slice %349 {offsets = [0, 128], sizes = [8, 64], strides = [1, 1]} : vector<8x192xf32> to vector<8x64xf32>
    %358 = math.tanh %356 : vector<8x64xf32>
    %359 = arith.mulf %357, %358 : vector<8x64xf32>
    %360 = arith.index_cast %335 : i32 to index
    %c0_122 = arith.constant 0 : index
    %c0_123 = arith.constant 0 : index
    %361 = vector.load %arg7[%360, %c0_122, %c0_123] : memref<8x8x64xf32, #tpu.memory_space<vmem>>, vector<1x8x64xf32>
    %362 = vector.shape_cast %361 : vector<1x8x64xf32> to vector<8x64xf32>
    %363 = tpu.concatenate %362, %359 in 1 : vector<8x64xf32>, vector<8x64xf32> -> vector<8x128xf32>
    %364 = arith.index_cast %335 : i32 to index
    %c0_124 = arith.constant 0 : index
    %c0_125 = arith.constant 0 : index
    %365 = vector.load %arg5[%364, %c0_124, %c0_125] : memref<8x8x128xf32, #tpu.memory_space<vmem>>, vector<1x8x128xf32>
    %366 = vector.shape_cast %365 : vector<1x8x128xf32> to vector<8x128xf32>
    %367 = vector.shape_cast %363 : vector<8x128xf32> to vector<1x8x128xf32>
    tpu.vector_store %arg5[%364, %c0_124, %c0_125], %367 {strides = array<i32>} : memref<8x8x128xf32, #tpu.memory_space<vmem>>, vector<1x8x128xf32>,
    %c4_i32_126 = arith.constant 4 : i32
    %c7_i32_127 = arith.constant 7 : i32
    %368 = arith.subi %c7_i32_127, %c4_i32_126 : i32
    %369 = arith.index_cast %368 : i32 to index
    %c0_128 = arith.constant 0 : index
    %c0_129 = arith.constant 0 : index
    %370 = vector.load %arg6[%369, %c0_128, %c0_129] : memref<8x8x512xf32, #tpu.memory_space<vmem>>, vector<1x8x512xf32>
    %371 = vector.shape_cast %370 : vector<1x8x512xf32> to vector<8x512xf32>
    %372 = vector.extract_strided_slice %371 {offsets = [0, 256], sizes = [8, 256], strides = [1, 1]} : vector<8x512xf32> to vector<8x256xf32>
    %cst_130 = arith.constant dense<0.000000e+00> : vector<8x256xf32>
    %373 = tpu.matmul %359, %10, %cst_130 {dimension_numbers = #tpu.dot_dimension_numbers<[1], [0], [0], [1], [0, 0, 1, 1], [], []>} : vector<8x64xf32>, vector<64x256xf32>, vector<8x256xf32> -> vector<8x256xf32>
    %374 = arith.addf %372, %373 : vector<8x256xf32>
    %375 = vector.extract_strided_slice %374 {offsets = [0, 0], sizes = [8, 192], strides = [1, 1]} : vector<8x256xf32> to vector<8x192xf32>
    %cst_131 = arith.constant 5.000000e-01 : f32
    %376 = vector.broadcast %cst_131 : f32 to vector<8x192xf32>
    %377 = arith.mulf %376, %375 : vector<8x192xf32>
    %378 = math.tanh %377 : vector<8x192xf32>
    %cst_132 = arith.constant 5.000000e-01 : f32
    %379 = vector.broadcast %cst_132 : f32 to vector<8x192xf32>
    %380 = arith.mulf %379, %378 : vector<8x192xf32>
    %cst_133 = arith.constant 5.000000e-01 : f32
    %381 = vector.broadcast %cst_133 : f32 to vector<8x192xf32>
    %382 = arith.addf %380, %381 : vector<8x192xf32>
    %383 = vector.extract_strided_slice %374 {offsets = [0, 192], sizes = [8, 64], strides = [1, 1]} : vector<8x256xf32> to vector<8x64xf32>
    %384 = math.tanh %383 : vector<8x64xf32>
    %385 = vector.extract_strided_slice %382 {offsets = [0, 64], sizes = [8, 64], strides = [1, 1]} : vector<8x192xf32> to vector<8x64xf32>
    %386 = arith.mulf %385, %356 : vector<8x64xf32>
    %387 = vector.extract_strided_slice %382 {offsets = [0, 0], sizes = [8, 64], strides = [1, 1]} : vector<8x192xf32> to vector<8x64xf32>
    %388 = arith.mulf %387, %384 : vector<8x64xf32>
    %389 = arith.addf %386, %388 : vector<8x64xf32>
    %390 = vector.extract_strided_slice %382 {offsets = [0, 128], sizes = [8, 64], strides = [1, 1]} : vector<8x192xf32> to vector<8x64xf32>
    %391 = math.tanh %389 : vector<8x64xf32>
    %392 = arith.mulf %390, %391 : vector<8x64xf32>
    %393 = arith.index_cast %368 : i32 to index
    %c0_134 = arith.constant 0 : index
    %c0_135 = arith.constant 0 : index
    %394 = vector.load %arg7[%393, %c0_134, %c0_135] : memref<8x8x64xf32, #tpu.memory_space<vmem>>, vector<1x8x64xf32>
    %395 = vector.shape_cast %394 : vector<1x8x64xf32> to vector<8x64xf32>
    %396 = tpu.concatenate %395, %392 in 1 : vector<8x64xf32>, vector<8x64xf32> -> vector<8x128xf32>
    %397 = arith.index_cast %368 : i32 to index
    %c0_136 = arith.constant 0 : index
    %c0_137 = arith.constant 0 : index
    %398 = vector.load %arg5[%397, %c0_136, %c0_137] : memref<8x8x128xf32, #tpu.memory_space<vmem>>, vector<1x8x128xf32>
    %399 = vector.shape_cast %398 : vector<1x8x128xf32> to vector<8x128xf32>
    %400 = vector.shape_cast %396 : vector<8x128xf32> to vector<1x8x128xf32>
    tpu.vector_store %arg5[%397, %c0_136, %c0_137], %400 {strides = array<i32>} : memref<8x8x128xf32, #tpu.memory_space<vmem>>, vector<1x8x128xf32>,
    %c5_i32_138 = arith.constant 5 : i32
    %c7_i32_139 = arith.constant 7 : i32
    %401 = arith.subi %c7_i32_139, %c5_i32_138 : i32
    %402 = arith.index_cast %401 : i32 to index
    %c0_140 = arith.constant 0 : index
    %c0_141 = arith.constant 0 : index
    %403 = vector.load %arg6[%402, %c0_140, %c0_141] : memref<8x8x512xf32, #tpu.memory_space<vmem>>, vector<1x8x512xf32>
    %404 = vector.shape_cast %403 : vector<1x8x512xf32> to vector<8x512xf32>
    %405 = vector.extract_strided_slice %404 {offsets = [0, 256], sizes = [8, 256], strides = [1, 1]} : vector<8x512xf32> to vector<8x256xf32>
    %cst_142 = arith.constant dense<0.000000e+00> : vector<8x256xf32>
    %406 = tpu.matmul %392, %10, %cst_142 {dimension_numbers = #tpu.dot_dimension_numbers<[1], [0], [0], [1], [0, 0, 1, 1], [], []>} : vector<8x64xf32>, vector<64x256xf32>, vector<8x256xf32> -> vector<8x256xf32>
    %407 = arith.addf %405, %406 : vector<8x256xf32>
    %408 = vector.extract_strided_slice %407 {offsets = [0, 0], sizes = [8, 192], strides = [1, 1]} : vector<8x256xf32> to vector<8x192xf32>
    %cst_143 = arith.constant 5.000000e-01 : f32
    %409 = vector.broadcast %cst_143 : f32 to vector<8x192xf32>
    %410 = arith.mulf %409, %408 : vector<8x192xf32>
    %411 = math.tanh %410 : vector<8x192xf32>
    %cst_144 = arith.constant 5.000000e-01 : f32
    %412 = vector.broadcast %cst_144 : f32 to vector<8x192xf32>
    %413 = arith.mulf %412, %411 : vector<8x192xf32>
    %cst_145 = arith.constant 5.000000e-01 : f32
    %414 = vector.broadcast %cst_145 : f32 to vector<8x192xf32>
    %415 = arith.addf %413, %414 : vector<8x192xf32>
    %416 = vector.extract_strided_slice %407 {offsets = [0, 192], sizes = [8, 64], strides = [1, 1]} : vector<8x256xf32> to vector<8x64xf32>
    %417 = math.tanh %416 : vector<8x64xf32>
    %418 = vector.extract_strided_slice %415 {offsets = [0, 64], sizes = [8, 64], strides = [1, 1]} : vector<8x192xf32> to vector<8x64xf32>
    %419 = arith.mulf %418, %389 : vector<8x64xf32>
    %420 = vector.extract_strided_slice %415 {offsets = [0, 0], sizes = [8, 64], strides = [1, 1]} : vector<8x192xf32> to vector<8x64xf32>
    %421 = arith.mulf %420, %417 : vector<8x64xf32>
    %422 = arith.addf %419, %421 : vector<8x64xf32>
    %423 = vector.extract_strided_slice %415 {offsets = [0, 128], sizes = [8, 64], strides = [1, 1]} : vector<8x192xf32> to vector<8x64xf32>
    %424 = math.tanh %422 : vector<8x64xf32>
    %425 = arith.mulf %423, %424 : vector<8x64xf32>
    %426 = arith.index_cast %401 : i32 to index
    %c0_146 = arith.constant 0 : index
    %c0_147 = arith.constant 0 : index
    %427 = vector.load %arg7[%426, %c0_146, %c0_147] : memref<8x8x64xf32, #tpu.memory_space<vmem>>, vector<1x8x64xf32>
    %428 = vector.shape_cast %427 : vector<1x8x64xf32> to vector<8x64xf32>
    %429 = tpu.concatenate %428, %425 in 1 : vector<8x64xf32>, vector<8x64xf32> -> vector<8x128xf32>
    %430 = arith.index_cast %401 : i32 to index
    %c0_148 = arith.constant 0 : index
    %c0_149 = arith.constant 0 : index
    %431 = vector.load %arg5[%430, %c0_148, %c0_149] : memref<8x8x128xf32, #tpu.memory_space<vmem>>, vector<1x8x128xf32>
    %432 = vector.shape_cast %431 : vector<1x8x128xf32> to vector<8x128xf32>
    %433 = vector.shape_cast %429 : vector<8x128xf32> to vector<1x8x128xf32>
    tpu.vector_store %arg5[%430, %c0_148, %c0_149], %433 {strides = array<i32>} : memref<8x8x128xf32, #tpu.memory_space<vmem>>, vector<1x8x128xf32>,
    %c6_i32_150 = arith.constant 6 : i32
    %c7_i32_151 = arith.constant 7 : i32
    %434 = arith.subi %c7_i32_151, %c6_i32_150 : i32
    %435 = arith.index_cast %434 : i32 to index
    %c0_152 = arith.constant 0 : index
    %c0_153 = arith.constant 0 : index
    %436 = vector.load %arg6[%435, %c0_152, %c0_153] : memref<8x8x512xf32, #tpu.memory_space<vmem>>, vector<1x8x512xf32>
    %437 = vector.shape_cast %436 : vector<1x8x512xf32> to vector<8x512xf32>
    %438 = vector.extract_strided_slice %437 {offsets = [0, 256], sizes = [8, 256], strides = [1, 1]} : vector<8x512xf32> to vector<8x256xf32>
    %cst_154 = arith.constant dense<0.000000e+00> : vector<8x256xf32>
    %439 = tpu.matmul %425, %10, %cst_154 {dimension_numbers = #tpu.dot_dimension_numbers<[1], [0], [0], [1], [0, 0, 1, 1], [], []>} : vector<8x64xf32>, vector<64x256xf32>, vector<8x256xf32> -> vector<8x256xf32>
    %440 = arith.addf %438, %439 : vector<8x256xf32>
    %441 = vector.extract_strided_slice %440 {offsets = [0, 0], sizes = [8, 192], strides = [1, 1]} : vector<8x256xf32> to vector<8x192xf32>
    %cst_155 = arith.constant 5.000000e-01 : f32
    %442 = vector.broadcast %cst_155 : f32 to vector<8x192xf32>
    %443 = arith.mulf %442, %441 : vector<8x192xf32>
    %444 = math.tanh %443 : vector<8x192xf32>
    %cst_156 = arith.constant 5.000000e-01 : f32
    %445 = vector.broadcast %cst_156 : f32 to vector<8x192xf32>
    %446 = arith.mulf %445, %444 : vector<8x192xf32>
    %cst_157 = arith.constant 5.000000e-01 : f32
    %447 = vector.broadcast %cst_157 : f32 to vector<8x192xf32>
    %448 = arith.addf %446, %447 : vector<8x192xf32>
    %449 = vector.extract_strided_slice %440 {offsets = [0, 192], sizes = [8, 64], strides = [1, 1]} : vector<8x256xf32> to vector<8x64xf32>
    %450 = math.tanh %449 : vector<8x64xf32>
    %451 = vector.extract_strided_slice %448 {offsets = [0, 64], sizes = [8, 64], strides = [1, 1]} : vector<8x192xf32> to vector<8x64xf32>
    %452 = arith.mulf %451, %422 : vector<8x64xf32>
    %453 = vector.extract_strided_slice %448 {offsets = [0, 0], sizes = [8, 64], strides = [1, 1]} : vector<8x192xf32> to vector<8x64xf32>
    %454 = arith.mulf %453, %450 : vector<8x64xf32>
    %455 = arith.addf %452, %454 : vector<8x64xf32>
    %456 = vector.extract_strided_slice %448 {offsets = [0, 128], sizes = [8, 64], strides = [1, 1]} : vector<8x192xf32> to vector<8x64xf32>
    %457 = math.tanh %455 : vector<8x64xf32>
    %458 = arith.mulf %456, %457 : vector<8x64xf32>
    %459 = arith.index_cast %434 : i32 to index
    %c0_158 = arith.constant 0 : index
    %c0_159 = arith.constant 0 : index
    %460 = vector.load %arg7[%459, %c0_158, %c0_159] : memref<8x8x64xf32, #tpu.memory_space<vmem>>, vector<1x8x64xf32>
    %461 = vector.shape_cast %460 : vector<1x8x64xf32> to vector<8x64xf32>
    %462 = tpu.concatenate %461, %458 in 1 : vector<8x64xf32>, vector<8x64xf32> -> vector<8x128xf32>
    %463 = arith.index_cast %434 : i32 to index
    %c0_160 = arith.constant 0 : index
    %c0_161 = arith.constant 0 : index
    %464 = vector.load %arg5[%463, %c0_160, %c0_161] : memref<8x8x128xf32, #tpu.memory_space<vmem>>, vector<1x8x128xf32>
    %465 = vector.shape_cast %464 : vector<1x8x128xf32> to vector<8x128xf32>
    %466 = vector.shape_cast %462 : vector<8x128xf32> to vector<1x8x128xf32>
    tpu.vector_store %arg5[%463, %c0_160, %c0_161], %466 {strides = array<i32>} : memref<8x8x128xf32, #tpu.memory_space<vmem>>, vector<1x8x128xf32>,
    %c7_i32_162 = arith.constant 7 : i32
    %c7_i32_163 = arith.constant 7 : i32
    %467 = arith.subi %c7_i32_163, %c7_i32_162 : i32
    %468 = arith.index_cast %467 : i32 to index
    %c0_164 = arith.constant 0 : index
    %c0_165 = arith.constant 0 : index
    %469 = vector.load %arg6[%468, %c0_164, %c0_165] : memref<8x8x512xf32, #tpu.memory_space<vmem>>, vector<1x8x512xf32>
    %470 = vector.shape_cast %469 : vector<1x8x512xf32> to vector<8x512xf32>
    %471 = vector.extract_strided_slice %470 {offsets = [0, 256], sizes = [8, 256], strides = [1, 1]} : vector<8x512xf32> to vector<8x256xf32>
    %cst_166 = arith.constant dense<0.000000e+00> : vector<8x256xf32>
    %472 = tpu.matmul %458, %10, %cst_166 {dimension_numbers = #tpu.dot_dimension_numbers<[1], [0], [0], [1], [0, 0, 1, 1], [], []>} : vector<8x64xf32>, vector<64x256xf32>, vector<8x256xf32> -> vector<8x256xf32>
    %473 = arith.addf %471, %472 : vector<8x256xf32>
    %474 = vector.extract_strided_slice %473 {offsets = [0, 0], sizes = [8, 192], strides = [1, 1]} : vector<8x256xf32> to vector<8x192xf32>
    %cst_167 = arith.constant 5.000000e-01 : f32
    %475 = vector.broadcast %cst_167 : f32 to vector<8x192xf32>
    %476 = arith.mulf %475, %474 : vector<8x192xf32>
    %477 = math.tanh %476 : vector<8x192xf32>
    %cst_168 = arith.constant 5.000000e-01 : f32
    %478 = vector.broadcast %cst_168 : f32 to vector<8x192xf32>
    %479 = arith.mulf %478, %477 : vector<8x192xf32>
    %cst_169 = arith.constant 5.000000e-01 : f32
    %480 = vector.broadcast %cst_169 : f32 to vector<8x192xf32>
    %481 = arith.addf %479, %480 : vector<8x192xf32>
    %482 = vector.extract_strided_slice %473 {offsets = [0, 192], sizes = [8, 64], strides = [1, 1]} : vector<8x256xf32> to vector<8x64xf32>
    %483 = math.tanh %482 : vector<8x64xf32>
    %484 = vector.extract_strided_slice %481 {offsets = [0, 64], sizes = [8, 64], strides = [1, 1]} : vector<8x192xf32> to vector<8x64xf32>
    %485 = arith.mulf %484, %455 : vector<8x64xf32>
    %486 = vector.extract_strided_slice %481 {offsets = [0, 0], sizes = [8, 64], strides = [1, 1]} : vector<8x192xf32> to vector<8x64xf32>
    %487 = arith.mulf %486, %483 : vector<8x64xf32>
    %488 = arith.addf %485, %487 : vector<8x64xf32>
    %489 = vector.extract_strided_slice %481 {offsets = [0, 128], sizes = [8, 64], strides = [1, 1]} : vector<8x192xf32> to vector<8x64xf32>
    %490 = math.tanh %488 : vector<8x64xf32>
    %491 = arith.mulf %489, %490 : vector<8x64xf32>
    %492 = arith.index_cast %467 : i32 to index
    %c0_170 = arith.constant 0 : index
    %c0_171 = arith.constant 0 : index
    %493 = vector.load %arg7[%492, %c0_170, %c0_171] : memref<8x8x64xf32, #tpu.memory_space<vmem>>, vector<1x8x64xf32>
    %494 = vector.shape_cast %493 : vector<1x8x64xf32> to vector<8x64xf32>
    %495 = tpu.concatenate %494, %491 in 1 : vector<8x64xf32>, vector<8x64xf32> -> vector<8x128xf32>
    %496 = arith.index_cast %467 : i32 to index
    %c0_172 = arith.constant 0 : index
    %c0_173 = arith.constant 0 : index
    %497 = vector.load %arg5[%496, %c0_172, %c0_173] : memref<8x8x128xf32, #tpu.memory_space<vmem>>, vector<1x8x128xf32>
    %498 = vector.shape_cast %497 : vector<1x8x128xf32> to vector<8x128xf32>
    %499 = vector.shape_cast %495 : vector<8x128xf32> to vector<1x8x128xf32>
    tpu.vector_store %arg5[%496, %c0_172, %c0_173], %499 {strides = array<i32>} : memref<8x8x128xf32, #tpu.memory_space<vmem>>, vector<1x8x128xf32>,
    %c8_i32_174 = arith.constant 8 : i32
    return
  }
}

</mosaic_0001>

<llo_original>
// kernel: attention_birnn_forward.4
$region0: #{attention_birnn_forward.4}
  #allocation0 [shape = 'u32[]', space=smem, size = 0x4, offset = 0x4, fixed_abs, tag = 'smem constant byte address 0x4 - core index']
  #allocation1 [shape = 'u32[144,128]{1,0:T(1,128)}', space=vmem, size = 0x12000, scoped, tag = 'internal scratch']
  #allocation2 [shape = 'f32[8,64]{1,0:T(8,128)}', space=vmem, size = 0x1000, scoped, tag = 'scratch operand']
  #allocation3 [shape = 's32[8]{0}', space=sflag, size = 0x20, scoped, tag = 'scratch operand']
  #allocation4 [shape = 's32[1]{0}', space=sflag, size = 0x4, scoped, tag = 'scoped memory for attention_birnn_forward.4']
  #allocation5 [shape = 'u8[512]{0}', space=smem, size = 0x200, scoped, tag = 'prefetched SMEM operand 0']
  #allocation6 [shape = 's32[]', space=sflag, size = 0x4, offset = 0, fixed_abs, tag = 'sflag constant byte address 0x0 - dummy sync flag']
  #allocation7 [shape = 's32[]', space=sflag, size = 0x4, offset = 0, fixed_abs, tag = 'sflag constant byte address 0x0 - dummy sync flag']
  #allocation8 [shape = 'u32[]', space=smem, size = 0x4, offset = 0x44, fixed_abs, tag = 'smem constant byte address 0x44 - assertion arg 0']
  #allocation9 [shape = 'u32[]', space=smem, size = 0x4, offset = 0x48, fixed_abs, tag = 'smem constant byte address 0x48 - assertion arg 1']
  #allocation10 [shape = 's32[]', space=sflag, size = 0x4, offset = 0, fixed_abs, tag = 'sflag constant byte address 0x0 - dummy sync flag']
  #allocation11 [shape = 's32[]', space=sflag, size = 0x4, offset = 0, fixed_abs, tag = 'sflag constant byte address 0x0 - dummy sync flag']
  #allocation12 [shape = 's32[]', space=sflag, size = 0x4, offset = 0, fixed_abs, tag = 'sflag constant byte address 0x0 - dummy sync flag']
  #allocation13 [shape = 's32[]', space=sflag, size = 0x4, offset = 0, fixed_abs, tag = 'sflag constant byte address 0x0 - dummy sync flag']
  #allocation14 [shape = 's32[]', space=sflag, size = 0x4, offset = 0, fixed_abs, tag = 'sflag constant byte address 0x0 - dummy sync flag']
  #allocation15 [shape = 's32[]', space=sflag, size = 0x4, offset = 0, fixed_abs, tag = 'sflag constant byte address 0x0 - dummy sync flag']
  #allocation16 [shape = 's32[]', space=sflag, size = 0x4, offset = 0, fixed_abs, tag = 'sflag constant byte address 0x0 - dummy sync flag']
  #allocation17 [shape = 's32[]', space=sflag, size = 0x4, offset = 0, fixed_abs, tag = 'sflag constant byte address 0x0 - dummy sync flag']
  #allocation18 [shape = 's32[]', space=sflag, size = 0x4, offset = 0, fixed_abs, tag = 'sflag constant byte address 0x0 - dummy sync flag']
  #allocation19 [shape = 's32[]', space=sflag, size = 0x4, offset = 0, fixed_abs, tag = 'sflag constant byte address 0x0 - dummy sync flag']
  #allocation20 [shape = 's32[]', space=sflag, size = 0x4, offset = 0, fixed_abs, tag = 'sflag constant byte address 0x0 - dummy sync flag']
  #allocation21 [shape = 's32[]', space=sflag, size = 0x4, offset = 0, fixed_abs, tag = 'sflag constant byte address 0x0 - dummy sync flag']
  #allocation22 [shape = 's32[]', space=sflag, size = 0x4, offset = 0, fixed_abs, tag = 'sflag constant byte address 0x0 - dummy sync flag']
  #allocation23 [shape = 's32[]', space=sflag, size = 0x4, offset = 0, fixed_abs, tag = 'sflag constant byte address 0x0 - dummy sync flag']
  %s0 = inlined_call_operand.vmem [shape: s32[64], index: 0, kind: input, shape index: {}]
  %s1 = inlined_call_operand.hbm [shape: f32[32,64], index: 1, kind: input, shape index: {}]
  %s2 = inlined_call_operand.vmem [shape: f32[8,8,64], index: 2, kind: output, shape index: {}]
  %s3 = sld [smem:[#allocation0]]
  $region57: #{attention_birnn_forward.4} parent=0
    _
  %s5 = ssub.s32 1, %s3
  %s6 = scalar_select 0, %s5, %s3
  %s7 = sshll.u32 %s0, 4
  %s8 = int_to_ptr.vmem [resolvable:$true] %s7
  %10 = dma.vmem_to_smem %s8, 16, [#allocation5], [#allocation4]
  %11 = dma.done [#allocation4], 16
  %12 = sfence
  loop: start=0, step=1, limit=9
  $region2: #{attention_birnn_forward.4} parent=0 // loop_pre_header
    _
  $region3: #{attention_birnn_forward.4} parent=0 // loop_header
    %s14 = sphi 0, %s18
    %p15 = scmp.ge.s32.totalorder %s14, 9
    %s23 = sphi 0, %s25
    %s26 = sphi 0, %s23
    %s36 = sphi 0, %s26
  $region4: #{attention_birnn_forward.4} parent=0 // loop_header_branch
    %17 = sbr.rel (%p15) target = $region8
  $region5: #{attention_birnn_forward.4} parent=0 // loop_body
    %s19 = ssub.s32 %s14, 1
    %s20 = sadd.s32 %s14, 1
    %s21 = ssub.s32 %s14, %s20
    %p22 = scmp.eq.s32.totalorder %s21, 0
    %s24 = sadd.s32 %s23, 1
    %s25 = scalar_select %p22, %s23, %s24
    %p27 = pneg %p22
    %p28 = scmp.eq.s32.totalorder %s14, 7
    %p29 = por %p27, %p28
    %p30 = scmp.ne.s32.totalorder %s23, %s26
    %p31 = scmp.eq.s32.totalorder %s14, 0
    %p32 = por %p30, %p31
    %p33 = scmp.ne.s32.totalorder %s23, %s26
    %p34 = scmp.eq.s32.totalorder %s19, 7
    %p35 = por %p33, %p34
    %p37 = scmp.ne.s32.totalorder %s26, %s36
    %p38 = scmp.eq.s32.totalorder %s19, 0
    %p39 = por %p37, %p38
    %p40 = scmp.lt.s32.totalorder %s14, 8
    // Predicated region
    $region9: #{attention_birnn_forward.4} parent=5 // pred_check
      %p41 = pneg %p40
    $region10: #{attention_birnn_forward.4} parent=5 // pred_check_branch
      %43 = sbr.rel (%p41) target = $region12
    $region11: #{attention_birnn_forward.4} parent=5 // pred_region
      %p44 = pneg %p32
      %p45 = pneg %p29
      %p46 = scmp.lt.s32.totalorder %s14, 7
      %s47 = scalar_select %p46, %s14, 7
      %s48 = smul.addr %s47, 8
      %s49 = scalar_lea.vmem %s2, %s48
      %p50 = scmp.lt.s32.totalorder %s14, 7
      %s51 = scalar_select %p50, %s14, 7
      %s52 = smul.addr %s51, 8
      %s53 = scalar_lea.vmem %s2, %s52
      %s54 = sld [smem:[#allocation5 + %s14]]
      %s55 = smul.addr %s54, 16
      %s56 = scalar_lea.hbm %s1, %s55
      // Predicated region
      $region13: #{attention_birnn_forward.4} parent=11 // pred_check
        _
      $region14: #{attention_birnn_forward.4} parent=11 // pred_check_branch
        %58 = sbr.rel target = $region16
      $region15: #{attention_birnn_forward.4} parent=11 // pred_region
        %59 = sst [smem:[#allocation8]] [#allocation7]
        %60 = sst [smem:[#allocation9]] [#allocation6]
      $region16: #{attention_birnn_forward.4} parent=11 // pred_fallthru
        _
      %62 = shalt.err (0)
      %s64 = sshll.u32 [#allocation2], 4
      %s65 = int_to_ptr.vmem [resolvable:$true] %s64
      %67 = dma.hbm_to_vmem [thread:$0]  %s56, 16, %s65, [#allocation3]
      %s68 = sadd.s32 %s14, 8
      %s69 = sld [smem:[#allocation5 + %s68]]
      %s70 = smul.addr %s69, 16
      %s71 = scalar_lea.hbm %s1, %s70
      %s72 = scalar_lea.vmem [#allocation2], 1
      %s73 = scalar_lea.sflag [#allocation3], 1
      // Predicated region
      $region17: #{attention_birnn_forward.4} parent=11 // pred_check
        _
      $region18: #{attention_birnn_forward.4} parent=11 // pred_check_branch
        %75 = sbr.rel target = $region20
      $region19: #{attention_birnn_forward.4} parent=11 // pred_region
        %76 = sst [smem:[#allocation8]] [#allocation11]
        %77 = sst [smem:[#allocation9]] [#allocation10]
      $region20: #{attention_birnn_forward.4} parent=11 // pred_fallthru
        _
      %79 = shalt.err (0)
      %s81 = sshll.u32 %s72, 4
      %s82 = int_to_ptr.vmem [resolvable:$true] %s81
      %84 = dma.hbm_to_vmem [thread:$0]  %s71, 16, %s82, %s73
      %s85 = sadd.s32 %s14, 16
      %s86 = sld [smem:[#allocation5 + %s85]]
      %s87 = smul.addr %s86, 16
      %s88 = scalar_lea.hbm %s1, %s87
      %s89 = scalar_lea.vmem [#allocation2], 2
      %s90 = scalar_lea.sflag [#allocation3], 2
      // Predicated region
      $region21: #{attention_birnn_forward.4} parent=11 // pred_check
        _
      $region22: #{attention_birnn_forward.4} parent=11 // pred_check_branch
        %92 = sbr.rel target = $region24
      $region23: #{attention_birnn_forward.4} parent=11 // pred_region
        %93 = sst [smem:[#allocation8]] [#allocation13]
        %94 = sst [smem:[#allocation9]] [#allocation12]
      $region24: #{attention_birnn_forward.4} parent=11 // pred_fallthru
        _
      %96 = shalt.err (0)
      %s98 = sshll.u32 %s89, 4
      %s99 = int_to_ptr.vmem [resolvable:$true] %s98
      %101 = dma.hbm_to_vmem [thread:$0]  %s88, 16, %s99, %s90
      %s102 = sadd.s32 %s14, 24
      %s103 = sld [smem:[#allocation5 + %s102]]
      %s104 = smul.addr %s103, 16
      %s105 = scalar_lea.hbm %s1, %s104
      %s106 = scalar_lea.vmem [#allocation2], 3
      %s107 = scalar_lea.sflag [#allocation3], 3
      // Predicated region
      $region25: #{attention_birnn_forward.4} parent=11 // pred_check
        _
      $region26: #{attention_birnn_forward.4} parent=11 // pred_check_branch
        %109 = sbr.rel target = $region28
      $region27: #{attention_birnn_forward.4} parent=11 // pred_region
        %110 = sst [smem:[#allocation8]] [#allocation15]
        %111 = sst [smem:[#allocation9]] [#allocation14]
      $region28: #{attention_birnn_forward.4} parent=11 // pred_fallthru
        _
      %113 = shalt.err (0)
      %s115 = sshll.u32 %s106, 4
      %s116 = int_to_ptr.vmem [resolvable:$true] %s115
      %118 = dma.hbm_to_vmem [thread:$0]  %s105, 16, %s116, %s107
      %s119 = sadd.s32 %s14, 32
      %s120 = sld [smem:[#allocation5 + %s119]]
      %s121 = smul.addr %s120, 16
      %s122 = scalar_lea.hbm %s1, %s121
      %s123 = scalar_lea.vmem [#allocation2], 4
      %s124 = scalar_lea.sflag [#allocation3], 4
      // Predicated region
      $region29: #{attention_birnn_forward.4} parent=11 // pred_check
        _
      $region30: #{attention_birnn_forward.4} parent=11 // pred_check_branch
        %126 = sbr.rel target = $region32
      $region31: #{attention_birnn_forward.4} parent=11 // pred_region
        %127 = sst [smem:[#allocation8]] [#allocation17]
        %128 = sst [smem:[#allocation9]] [#allocation16]
      $region32: #{attention_birnn_forward.4} parent=11 // pred_fallthru
        _
      %130 = shalt.err (0)
      %s132 = sshll.u32 %s123, 4
      %s133 = int_to_ptr.vmem [resolvable:$true] %s132
      %135 = dma.hbm_to_vmem [thread:$0]  %s122, 16, %s133, %s124
      %s136 = sadd.s32 %s14, 40
      %s137 = sld [smem:[#allocation5 + %s136]]
      %s138 = smul.addr %s137, 16
      %s139 = scalar_lea.hbm %s1, %s138
      %s140 = scalar_lea.vmem [#allocation2], 5
      %s141 = scalar_lea.sflag [#allocation3], 5
      // Predicated region
      $region33: #{attention_birnn_forward.4} parent=11 // pred_check
        _
      $region34: #{attention_birnn_forward.4} parent=11 // pred_check_branch
        %143 = sbr.rel target = $region36
      $region35: #{attention_birnn_forward.4} parent=11 // pred_region
        %144 = sst [smem:[#allocation8]] [#allocation19]
        %145 = sst [smem:[#allocation9]] [#allocation18]
      $region36: #{attention_birnn_forward.4} parent=11 // pred_fallthru
        _
      %147 = shalt.err (0)
      %s149 = sshll.u32 %s140, 4
      %s150 = int_to_ptr.vmem [resolvable:$true] %s149
      %152 = dma.hbm_to_vmem [thread:$0]  %s139, 16, %s150, %s141
      %s153 = sadd.s32 %s14, 48
      %s154 = sld [smem:[#allocation5 + %s153]]
      %s155 = smul.addr %s154, 16
      %s156 = scalar_lea.hbm %s1, %s155
      %s157 = scalar_lea.vmem [#allocation2], 6
      %s158 = scalar_lea.sflag [#allocation3], 6
      // Predicated region
      $region37: #{attention_birnn_forward.4} parent=11 // pred_check
        _
      $region38: #{attention_birnn_forward.4} parent=11 // pred_check_branch
        %160 = sbr.rel target = $region40
      $region39: #{attention_birnn_forward.4} parent=11 // pred_region
        %161 = sst [smem:[#allocation8]] [#allocation21]
        %162 = sst [smem:[#allocation9]] [#allocation20]
      $region40: #{attention_birnn_forward.4} parent=11 // pred_fallthru
        _
      %164 = shalt.err (0)
      %s166 = sshll.u32 %s157, 4
      %s167 = int_to_ptr.vmem [resolvable:$true] %s166
      %169 = dma.hbm_to_vmem [thread:$0]  %s156, 16, %s167, %s158
      %s170 = sadd.s32 %s14, 56
      %s171 = sld [smem:[#allocation5 + %s170]]
      %s172 = smul.addr %s171, 16
      %s173 = scalar_lea.hbm %s1, %s172
      %s174 = scalar_lea.vmem [#allocation2], 7
      %s175 = scalar_lea.sflag [#allocation3], 7
      // Predicated region
      $region41: #{attention_birnn_forward.4} parent=11 // pred_check
        _
      $region42: #{attention_birnn_forward.4} parent=11 // pred_check_branch
        %177 = sbr.rel target = $region44
      $region43: #{attention_birnn_forward.4} parent=11 // pred_region
        %178 = sst [smem:[#allocation8]] [#allocation23]
        %179 = sst [smem:[#allocation9]] [#allocation22]
      $region44: #{attention_birnn_forward.4} parent=11 // pred_fallthru
        _
      %181 = shalt.err (0)
      %s183 = sshll.u32 %s174, 4
      %s184 = int_to_ptr.vmem [resolvable:$true] %s183
      %186 = dma.hbm_to_vmem [thread:$0]  %s173, 16, %s184, %s175
      %188 = dma.done [#allocation3], 16
      %190 = dma.done %s73, 16
      %192 = dma.done %s90, 16
      %194 = dma.done %s107, 16
      %196 = dma.done %s124, 16
      %198 = dma.done %s141, 16
      %200 = dma.done %s158, 16
      %202 = dma.done %s175, 16
      %v203 = vld [vmem:[#allocation2] sm:$0xff]
      %vm204 = vcmask 523264
      %205 = vst.msk [vmem:[%s53] sm:$0xff] %vm204, %v203
      %p206 = scmp.lt.s32.totalorder %s14, 7
      %s207 = scalar_select %p206, %s14, 7
      %s208 = smul.addr %s207, 8
      %s209 = scalar_lea.vmem %s2, %s208
      // Predicated region
      $region45: #{attention_birnn_forward.4} parent=11 // pred_check
        %p210 = pneg %p29
      $region46: #{attention_birnn_forward.4} parent=11 // pred_check_branch
        %212 = sbr.rel (%p210) target = $region48
      $region47: #{attention_birnn_forward.4} parent=11 // pred_region
        _
      $region48: #{attention_birnn_forward.4} parent=11 // pred_fallthru
        _
    $region12: #{attention_birnn_forward.4} parent=5 // pred_fallthru
      _
    %p213 = scmp.le.s32.totalorder 1, %s14
    // Predicated region
    $region49: #{attention_birnn_forward.4} parent=5 // pred_check
      %p214 = pneg %p213
    $region50: #{attention_birnn_forward.4} parent=5 // pred_check_branch
      %216 = sbr.rel (%p214) target = $region52
    $region51: #{attention_birnn_forward.4} parent=5 // pred_region
      %s217 = ssub.s32 %s14, 1
      // Predicated region
      $region53: #{attention_birnn_forward.4} parent=51 // pred_check
        %p218 = pneg %p35
      $region54: #{attention_birnn_forward.4} parent=51 // pred_check_branch
        %220 = sbr.rel (%p218) target = $region56
      $region55: #{attention_birnn_forward.4} parent=51 // pred_region
        %p221 = scmp.lt.s32.totalorder %s19, 7
        %s222 = scalar_select %p221, %s19, 7
        %s223 = smul.addr %s222, 8
        %s224 = scalar_lea.vmem %s2, %s223
      $region56: #{attention_birnn_forward.4} parent=51 // pred_fallthru
        _
    $region52: #{attention_birnn_forward.4} parent=5 // pred_fallthru
      _
  $region6: #{attention_birnn_forward.4} parent=0 // loop_footer
    %s18 = sadd.s32 1, %s14
  $region7: #{attention_birnn_forward.4} parent=0 // loop_footer_branch
    %13 = sbr.rel target = $region3
  $region8: #{attention_birnn_forward.4} parent=0 // loop_exit
    _
  %225 = vsyncmov [#allocation3]
  %s226 = vpop.sfrf %225
  %p227 = scmp.eq.s32.totalorder %s226, 0
  %p228 = pneg %p227
  %230 = shalt.err (%p228)
  %s231 = scalar_lea.sflag [#allocation3], 1
  %232 = vsyncmov %s231
  %s233 = vpop.sfrf %232
  %p234 = scmp.eq.s32.totalorder %s233, 0
  %p235 = pneg %p234
  %237 = shalt.err (%p235)
  %s238 = scalar_lea.sflag [#allocation3], 2
  %239 = vsyncmov %s238
  %s240 = vpop.sfrf %239
  %p241 = scmp.eq.s32.totalorder %s240, 0
  %p242 = pneg %p241
  %244 = shalt.err (%p242)
  %s245 = scalar_lea.sflag [#allocation3], 3
  %246 = vsyncmov %s245
  %s247 = vpop.sfrf %246
  %p248 = scmp.eq.s32.totalorder %s247, 0
  %p249 = pneg %p248
  %251 = shalt.err (%p249)
  %s252 = scalar_lea.sflag [#allocation3], 4
  %253 = vsyncmov %s252
  %s254 = vpop.sfrf %253
  %p255 = scmp.eq.s32.totalorder %s254, 0
  %p256 = pneg %p255
  %258 = shalt.err (%p256)
  %s259 = scalar_lea.sflag [#allocation3], 5
  %260 = vsyncmov %s259
  %s261 = vpop.sfrf %260
  %p262 = scmp.eq.s32.totalorder %s261, 0
  %p263 = pneg %p262
  %265 = shalt.err (%p263)
  %s266 = scalar_lea.sflag [#allocation3], 6
  %267 = vsyncmov %s266
  %s268 = vpop.sfrf %267
  %p269 = scmp.eq.s32.totalorder %s268, 0
  %p270 = pneg %p269
  %272 = shalt.err (%p270)
  %s273 = scalar_lea.sflag [#allocation3], 7
  %274 = vsyncmov %s273
  %s275 = vpop.sfrf %274
  %p276 = scmp.eq.s32.totalorder %s275, 0
  %p277 = pneg %p276
  %279 = shalt.err (%p277)

// kernel: attention_birnn_forward.7
$region0: #{attention_birnn_forward.7}
  #allocation0 [shape = 'u32[]', space=smem, size = 0x4, offset = 0x4, fixed_abs, tag = 'smem constant byte address 0x4 - core index']
  #allocation1 [shape = 'u32[144,128]{1,0:T(1,128)}', space=vmem, size = 0x12000, scoped, tag = 'internal scratch']
  %s0 = inlined_call_operand.vmem [shape: f32[8,8,128], index: 0, kind: input, shape index: {}]
  %s1 = inlined_call_operand.vmem [shape: f32[128,256], index: 1, kind: input, shape index: {}]
  %s2 = inlined_call_operand.vmem [shape: f32[1,256], index: 2, kind: input, shape index: {}]
  %s3 = inlined_call_operand.vmem [shape: f32[256,128], index: 3, kind: input, shape index: {}]
  %s4 = inlined_call_operand.vmem [shape: f32[1,128], index: 4, kind: input, shape index: {}]
  %s5 = inlined_call_operand.vmem [shape: f32[128,128], index: 5, kind: input, shape index: {}]
  %s6 = inlined_call_operand.vmem [shape: f32[1,128], index: 6, kind: input, shape index: {}]
  %s7 = inlined_call_operand.vmem [shape: f32[8,128], index: 7, kind: output, shape index: {}]
  %s8 = sld [smem:[#allocation0]]
  $region38: #{attention_birnn_forward.7} parent=0
    _
  %s10 = ssub.s32 1, %s8
  %s11 = scalar_select 0, %s10, %s8
  // Predicated region
  $region2: #{attention_birnn_forward.7} parent=0 // pred_check
    _
  $region3: #{attention_birnn_forward.7} parent=0 // pred_check_branch
    %13 = sbr.rel (0) target = $region5
  $region4: #{attention_birnn_forward.7} parent=0 // pred_region
    _
  $region5: #{attention_birnn_forward.7} parent=0 // pred_fallthru
    _
  // Predicated region
  $region6: #{attention_birnn_forward.7} parent=0 // pred_check
    _
  $region7: #{attention_birnn_forward.7} parent=0 // pred_check_branch
    %15 = sbr.rel (0) target = $region9
  $region8: #{attention_birnn_forward.7} parent=0 // pred_region
    _
  $region9: #{attention_birnn_forward.7} parent=0 // pred_fallthru
    _
  // Predicated region
  $region10: #{attention_birnn_forward.7} parent=0 // pred_check
    _
  $region11: #{attention_birnn_forward.7} parent=0 // pred_check_branch
    %17 = sbr.rel (0) target = $region13
  $region12: #{attention_birnn_forward.7} parent=0 // pred_region
    _
  $region13: #{attention_birnn_forward.7} parent=0 // pred_fallthru
    _
  // Predicated region
  $region14: #{attention_birnn_forward.7} parent=0 // pred_check
    _
  $region15: #{attention_birnn_forward.7} parent=0 // pred_check_branch
    %19 = sbr.rel (0) target = $region17
  $region16: #{attention_birnn_forward.7} parent=0 // pred_region
    _
  $region17: #{attention_birnn_forward.7} parent=0 // pred_fallthru
    _
  // Predicated region
  $region18: #{attention_birnn_forward.7} parent=0 // pred_check
    _
  $region19: #{attention_birnn_forward.7} parent=0 // pred_check_branch
    %21 = sbr.rel (0) target = $region21
  $region20: #{attention_birnn_forward.7} parent=0 // pred_region
    _
  $region21: #{attention_birnn_forward.7} parent=0 // pred_fallthru
    _
  // Predicated region
  $region22: #{attention_birnn_forward.7} parent=0 // pred_check
    _
  $region23: #{attention_birnn_forward.7} parent=0 // pred_check_branch
    %23 = sbr.rel (0) target = $region25
  $region24: #{attention_birnn_forward.7} parent=0 // pred_region
    _
  $region25: #{attention_birnn_forward.7} parent=0 // pred_fallthru
    _
  // Predicated region
  $region26: #{attention_birnn_forward.7} parent=0 // pred_check
    _
  $region27: #{attention_birnn_forward.7} parent=0 // pred_check_branch
    %25 = sbr.rel (0) target = $region29
  $region28: #{attention_birnn_forward.7} parent=0 // pred_region
    _
  $region29: #{attention_birnn_forward.7} parent=0 // pred_fallthru
    _
  %v26 = vld [vmem:[%s0] sm:$0xff]
  %s27 = scalar_lea.vmem %s0, 8
  %v28 = vld [vmem:[%s27] sm:$0xff]
  %v29 = vmax.f32 %v26, %v28
  %s30 = scalar_lea.vmem %s0, 16
  %v31 = vld [vmem:[%s30] sm:$0xff]
  %v32 = vmax.f32 %v29, %v31
  %s33 = scalar_lea.vmem %s0, 24
  %v34 = vld [vmem:[%s33] sm:$0xff]
  %v35 = vmax.f32 %v32, %v34
  %s36 = scalar_lea.vmem %s0, 32
  %v37 = vld [vmem:[%s36] sm:$0xff]
  %v38 = vmax.f32 %v35, %v37
  %s39 = scalar_lea.vmem %s0, 40
  %v40 = vld [vmem:[%s39] sm:$0xff]
  %v41 = vmax.f32 %v38, %v40
  %s42 = scalar_lea.vmem %s0, 48
  %v43 = vld [vmem:[%s42] sm:$0xff]
  %v44 = vmax.f32 %v41, %v43
  %s45 = scalar_lea.vmem %s0, 56
  %v46 = vld [vmem:[%s45] sm:$0xff]
  %v47 = vmax.f32 %v44, %v46
  %v48 = vld [vmem:[%s1] sm:$0xff]
  %v49 = vld [vmem:[%s1 + $0x8] sm:$0xff]
  %v50 = vld [vmem:[%s1 + $0x10] sm:$0xff]
  %v51 = vld [vmem:[%s1 + $0x18] sm:$0xff]
  %v52 = vld [vmem:[%s1 + $0x20] sm:$0xff]
  %v53 = vld [vmem:[%s1 + $0x28] sm:$0xff]
  %v54 = vld [vmem:[%s1 + $0x30] sm:$0xff]
  %v55 = vld [vmem:[%s1 + $0x38] sm:$0xff]
  %v56 = vld [vmem:[%s1 + $0x40] sm:$0xff]
  %v57 = vld [vmem:[%s1 + $0x48] sm:$0xff]
  %v58 = vld [vmem:[%s1 + $0x50] sm:$0xff]
  %v59 = vld [vmem:[%s1 + $0x58] sm:$0xff]
  %v60 = vld [vmem:[%s1 + $0x60] sm:$0xff]
  %v61 = vld [vmem:[%s1 + $0x68] sm:$0xff]
  %v62 = vld [vmem:[%s1 + $0x70] sm:$0xff]
  %v63 = vld [vmem:[%s1 + $0x78] sm:$0xff]
  %v64 = vld [vmem:[%s1 + $0x80] sm:$0xff]
  %v65 = vld [vmem:[%s1 + $0x88] sm:$0xff]
  %v66 = vld [vmem:[%s1 + $0x90] sm:$0xff]
  %v67 = vld [vmem:[%s1 + $0x98] sm:$0xff]
  %v68 = vld [vmem:[%s1 + $0xa0] sm:$0xff]
  %v69 = vld [vmem:[%s1 + $0xa8] sm:$0xff]
  %v70 = vld [vmem:[%s1 + $0xb0] sm:$0xff]
  %v71 = vld [vmem:[%s1 + $0xb8] sm:$0xff]
  %v72 = vld [vmem:[%s1 + $0xc0] sm:$0xff]
  %v73 = vld [vmem:[%s1 + $0xc8] sm:$0xff]
  %v74 = vld [vmem:[%s1 + $0xd0] sm:$0xff]
  %v75 = vld [vmem:[%s1 + $0xd8] sm:$0xff]
  %v76 = vld [vmem:[%s1 + $0xe0] sm:$0xff]
  %v77 = vld [vmem:[%s1 + $0xe8] sm:$0xff]
  %v78 = vld [vmem:[%s1 + $0xf0] sm:$0xff]
  %v79 = vld [vmem:[%s1 + $0xf8] sm:$0xff]
  %v80 = vld [vmem:[%s2] sm:$0x3]
  %v82 = vlaneseq
  %v83 = vshrl.u32 %v82, 7
  %v84 = vsub.s32 0, %v83
  %v85 = vrot.slane %v80, %v84
  %v86 = vlaneseq
  %v87 = vshrl.u32 %v86, 7
  %v88 = vsub.s32 1, %v87
  %v89 = vrot.slane %v80, %v88
  %92 = vmatprep.subr.mxu0 %v49
  %93 = vmatpush1.msra.mxu0 %v48
  %94 = vmatprep.subr.mxu0 %v51
  %95 = vmatpush1.msra.mxu0 %v50
  %96 = vmatprep.subr.mxu0 %v53
  %97 = vmatpush1.msra.mxu0 %v52
  %98 = vmatprep.subr.mxu0 %v55
  %99 = vmatpush1.msra.mxu0 %v54
  %100 = vmatprep.subr.mxu0 %v57
  %101 = vmatpush1.msra.mxu0 %v56
  %102 = vmatprep.subr.mxu0 %v59
  %103 = vmatpush1.msra.mxu0 %v58
  %104 = vmatprep.subr.mxu0 %v61
  %105 = vmatpush1.msra.mxu0 %v60
  %106 = vmatprep.subr.mxu0 %v63
  %107 = vmatpush1.msra.mxu0 %v62
  %108 = vmatprep.subr.mxu0 %v65
  %109 = vmatpush1.msra.mxu0 %v64
  %110 = vmatprep.subr.mxu0 %v67
  %111 = vmatpush1.msra.mxu0 %v66
  %112 = vmatprep.subr.mxu0 %v69
  %113 = vmatpush1.msra.mxu0 %v68
  %114 = vmatprep.subr.mxu0 %v71
  %115 = vmatpush1.msra.mxu0 %v70
  %116 = vmatprep.subr.mxu0 %v73
  %117 = vmatpush1.msra.mxu0 %v72
  %118 = vmatprep.subr.mxu0 %v75
  %119 = vmatpush1.msra.mxu0 %v74
  %120 = vmatprep.subr.mxu0 %v77
  %121 = vmatpush1.msra.mxu0 %v76
  %122 = vmatprep.subr.mxu0 %v79
  %123 = vmatpush1.msra.mxu0 %v78
  %124 = vmatprep.subr.mxu0 0.0
  %125 = vmatpush1.msra.mxu0 0.0
  %126 = vmatprep.subr.mxu0 0.0
  %127 = vmatpush1.msra.mxu0 0.0
  %128 = vmatprep.subr.mxu0 0.0
  %129 = vmatpush1.msra.mxu0 0.0
  %130 = vmatprep.subr.mxu0 0.0
  %131 = vmatpush1.msra.mxu0 0.0
  %132 = vmatprep.subr.mxu0 0.0
  %133 = vmatpush1.msra.mxu0 0.0
  %134 = vmatprep.subr.mxu0 0.0
  %135 = vmatpush1.msra.mxu0 0.0
  %136 = vmatprep.subr.mxu0 0.0
  %137 = vmatpush1.msra.mxu0 0.0
  %138 = vmatprep.subr.mxu0 0.0
  %139 = vmatpush1.msra.mxu0 0.0
  %140 = vmatprep.subr.mxu0 0.0
  %141 = vmatpush1.msra.mxu0 0.0
  %142 = vmatprep.subr.mxu0 0.0
  %143 = vmatpush1.msra.mxu0 0.0
  %144 = vmatprep.subr.mxu0 0.0
  %145 = vmatpush1.msra.mxu0 0.0
  %146 = vmatprep.subr.mxu0 0.0
  %147 = vmatpush1.msra.mxu0 0.0
  %148 = vmatprep.subr.mxu0 0.0
  %149 = vmatpush1.msra.mxu0 0.0
  %150 = vmatprep.subr.mxu0 0.0
  %151 = vmatpush1.msra.mxu0 0.0
  %152 = vmatprep.subr.mxu0 0.0
  %153 = vmatpush1.msra.mxu0 0.0
  %154 = vmatprep.subr.mxu0 0.0
  %155 = vmatpush1.msra.mxu0 0.0
  %156 = vmatprep.mubr.f32.mxu0 0.0
  %157 = vmatmul.mubr.f32.gmra.mrb[0].mxu0 %v47
  %v158 = vpop.f32.mrb[0].mxu0
  %v159 = vadd.f32 %v85, %v158
  %v160 = vpop.f32.mrb[0].mxu0
  %v161 = vadd.f32 %v89, %v160
  %162 = vdwg.mxu0
  %v163 = vmax.f32 %v159, 0.0
  %v164 = vmax.f32 %v161, 0.0
  %v165 = vld [vmem:[%s3] sm:$0xff]
  %v166 = vld [vmem:[%s3 + $0x8] sm:$0xff]
  %v167 = vld [vmem:[%s3 + $0x10] sm:$0xff]
  %v168 = vld [vmem:[%s3 + $0x18] sm:$0xff]
  %v169 = vld [vmem:[%s3 + $0x20] sm:$0xff]
  %v170 = vld [vmem:[%s3 + $0x28] sm:$0xff]
  %v171 = vld [vmem:[%s3 + $0x30] sm:$0xff]
  %v172 = vld [vmem:[%s3 + $0x38] sm:$0xff]
  %v173 = vld [vmem:[%s3 + $0x40] sm:$0xff]
  %v174 = vld [vmem:[%s3 + $0x48] sm:$0xff]
  %v175 = vld [vmem:[%s3 + $0x50] sm:$0xff]
  %v176 = vld [vmem:[%s3 + $0x58] sm:$0xff]
  %v177 = vld [vmem:[%s3 + $0x60] sm:$0xff]
  %v178 = vld [vmem:[%s3 + $0x68] sm:$0xff]
  %v179 = vld [vmem:[%s3 + $0x70] sm:$0xff]
  %v180 = vld [vmem:[%s3 + $0x78] sm:$0xff]
  %v181 = vld [vmem:[%s3 + $0x80] sm:$0xff]
  %v182 = vld [vmem:[%s3 + $0x88] sm:$0xff]
  %v183 = vld [vmem:[%s3 + $0x90] sm:$0xff]
  %v184 = vld [vmem:[%s3 + $0x98] sm:$0xff]
  %v185 = vld [vmem:[%s3 + $0xa0] sm:$0xff]
  %v186 = vld [vmem:[%s3 + $0xa8] sm:$0xff]
  %v187 = vld [vmem:[%s3 + $0xb0] sm:$0xff]
  %v188 = vld [vmem:[%s3 + $0xb8] sm:$0xff]
  %v189 = vld [vmem:[%s3 + $0xc0] sm:$0xff]
  %v190 = vld [vmem:[%s3 + $0xc8] sm:$0xff]
  %v191 = vld [vmem:[%s3 + $0xd0] sm:$0xff]
  %v192 = vld [vmem:[%s3 + $0xd8] sm:$0xff]
  %v193 = vld [vmem:[%s3 + $0xe0] sm:$0xff]
  %v194 = vld [vmem:[%s3 + $0xe8] sm:$0xff]
  %v195 = vld [vmem:[%s3 + $0xf0] sm:$0xff]
  %v196 = vld [vmem:[%s3 + $0xf8] sm:$0xff]
  %v197 = vld [vmem:[%s4] sm:$0x1]
  %v199 = vlaneseq
  %v200 = vshrl.u32 %v199, 7
  %v201 = vsub.s32 0, %v200
  %v202 = vrot.slane %v197, %v201
  %204 = vmatprep.subr.mxu0 0.0
  %205 = vmatpush1.msra.mxu0 %v165
  %206 = vmatprep.subr.mxu0 0.0
  %207 = vmatpush1.msra.mxu0 %v166
  %208 = vmatprep.subr.mxu0 0.0
  %209 = vmatpush1.msra.mxu0 %v167
  %210 = vmatprep.subr.mxu0 0.0
  %211 = vmatpush1.msra.mxu0 %v168
  %212 = vmatprep.subr.mxu0 0.0
  %213 = vmatpush1.msra.mxu0 %v169
  %214 = vmatprep.subr.mxu0 0.0
  %215 = vmatpush1.msra.mxu0 %v170
  %216 = vmatprep.subr.mxu0 0.0
  %217 = vmatpush1.msra.mxu0 %v171
  %218 = vmatprep.subr.mxu0 0.0
  %219 = vmatpush1.msra.mxu0 %v172
  %220 = vmatprep.subr.mxu0 0.0
  %221 = vmatpush1.msra.mxu0 %v173
  %222 = vmatprep.subr.mxu0 0.0
  %223 = vmatpush1.msra.mxu0 %v174
  %224 = vmatprep.subr.mxu0 0.0
  %225 = vmatpush1.msra.mxu0 %v175
  %226 = vmatprep.subr.mxu0 0.0
  %227 = vmatpush1.msra.mxu0 %v176
  %228 = vmatprep.subr.mxu0 0.0
  %229 = vmatpush1.msra.mxu0 %v177
  %230 = vmatprep.subr.mxu0 0.0
  %231 = vmatpush1.msra.mxu0 %v178
  %232 = vmatprep.subr.mxu0 0.0
  %233 = vmatpush1.msra.mxu0 %v179
  %234 = vmatprep.subr.mxu0 0.0
  %235 = vmatpush1.msra.mxu0 %v180
  %236 = vmatprep.subr.mxu0 0.0
  %237 = vmatpush1.msra.mxu0 %v181
  %238 = vmatprep.subr.mxu0 0.0
  %239 = vmatpush1.msra.mxu0 %v182
  %240 = vmatprep.subr.mxu0 0.0
  %241 = vmatpush1.msra.mxu0 %v183
  %242 = vmatprep.subr.mxu0 0.0
  %243 = vmatpush1.msra.mxu0 %v184
  %244 = vmatprep.subr.mxu0 0.0
  %245 = vmatpush1.msra.mxu0 %v185
  %246 = vmatprep.subr.mxu0 0.0
  %247 = vmatpush1.msra.mxu0 %v186
  %248 = vmatprep.subr.mxu0 0.0
  %249 = vmatpush1.msra.mxu0 %v187
  %250 = vmatprep.subr.mxu0 0.0
  %251 = vmatpush1.msra.mxu0 %v188
  %252 = vmatprep.subr.mxu0 0.0
  %253 = vmatpush1.msra.mxu0 %v189
  %254 = vmatprep.subr.mxu0 0.0
  %255 = vmatpush1.msra.mxu0 %v190
  %256 = vmatprep.subr.mxu0 0.0
  %257 = vmatpush1.msra.mxu0 %v191
  %258 = vmatprep.subr.mxu0 0.0
  %259 = vmatpush1.msra.mxu0 %v192
  %260 = vmatprep.subr.mxu0 0.0
  %261 = vmatpush1.msra.mxu0 %v193
  %262 = vmatprep.subr.mxu0 0.0
  %263 = vmatpush1.msra.mxu0 %v194
  %264 = vmatprep.subr.mxu0 0.0
  %265 = vmatpush1.msra.mxu0 %v195
  %266 = vmatprep.subr.mxu0 0.0
  %267 = vmatpush1.msra.mxu0 %v196
  %268 = vmatprep.mubr.f32.mxu0 %v164
  %269 = vmatmul.mubr.f32.gmra.mrb[0].mxu0 %v163
  %v270 = vpop.f32.mrb[0].mxu0
  %v271 = vadd.f32 %v202, %v270
  %v272 = vpop.f32.mrb[0].mxu0
  %273 = vdwg.mxu0
  %v274 = vmax.f32 %v271, 0.0
  %v275 = vld [vmem:[%s5] sm:$0xff]
  %v276 = vld [vmem:[%s5 + $0x8] sm:$0xff]
  %v277 = vld [vmem:[%s5 + $0x10] sm:$0xff]
  %v278 = vld [vmem:[%s5 + $0x18] sm:$0xff]
  %v279 = vld [vmem:[%s5 + $0x20] sm:$0xff]
  %v280 = vld [vmem:[%s5 + $0x28] sm:$0xff]
  %v281 = vld [vmem:[%s5 + $0x30] sm:$0xff]
  %v282 = vld [vmem:[%s5 + $0x38] sm:$0xff]
  %v283 = vld [vmem:[%s5 + $0x40] sm:$0xff]
  %v284 = vld [vmem:[%s5 + $0x48] sm:$0xff]
  %v285 = vld [vmem:[%s5 + $0x50] sm:$0xff]
  %v286 = vld [vmem:[%s5 + $0x58] sm:$0xff]
  %v287 = vld [vmem:[%s5 + $0x60] sm:$0xff]
  %v288 = vld [vmem:[%s5 + $0x68] sm:$0xff]
  %v289 = vld [vmem:[%s5 + $0x70] sm:$0xff]
  %v290 = vld [vmem:[%s5 + $0x78] sm:$0xff]
  %v291 = vld [vmem:[%s6] sm:$0x1]
  %v293 = vlaneseq
  %v294 = vshrl.u32 %v293, 7
  %v295 = vsub.s32 0, %v294
  %v296 = vrot.slane %v291, %v295
  %298 = vmatprep.subr.mxu0 0.0
  %299 = vmatpush1.msra.mxu0 %v275
  %300 = vmatprep.subr.mxu0 0.0
  %301 = vmatpush1.msra.mxu0 %v276
  %302 = vmatprep.subr.mxu0 0.0
  %303 = vmatpush1.msra.mxu0 %v277
  %304 = vmatprep.subr.mxu0 0.0
  %305 = vmatpush1.msra.mxu0 %v278
  %306 = vmatprep.subr.mxu0 0.0
  %307 = vmatpush1.msra.mxu0 %v279
  %308 = vmatprep.subr.mxu0 0.0
  %309 = vmatpush1.msra.mxu0 %v280
  %310 = vmatprep.subr.mxu0 0.0
  %311 = vmatpush1.msra.mxu0 %v281
  %312 = vmatprep.subr.mxu0 0.0
  %313 = vmatpush1.msra.mxu0 %v282
  %314 = vmatprep.subr.mxu0 0.0
  %315 = vmatpush1.msra.mxu0 %v283
  %316 = vmatprep.subr.mxu0 0.0
  %317 = vmatpush1.msra.mxu0 %v284
  %318 = vmatprep.subr.mxu0 0.0
  %319 = vmatpush1.msra.mxu0 %v285
  %320 = vmatprep.subr.mxu0 0.0
  %321 = vmatpush1.msra.mxu0 %v286
  %322 = vmatprep.subr.mxu0 0.0
  %323 = vmatpush1.msra.mxu0 %v287
  %324 = vmatprep.subr.mxu0 0.0
  %325 = vmatpush1.msra.mxu0 %v288
  %326 = vmatprep.subr.mxu0 0.0
  %327 = vmatpush1.msra.mxu0 %v289
  %328 = vmatprep.subr.mxu0 0.0
  %329 = vmatpush1.msra.mxu0 %v290
  %330 = vmatprep.subr.mxu0 0.0
  %331 = vmatpush1.msra.mxu0 0.0
  %332 = vmatprep.subr.mxu0 0.0
  %333 = vmatpush1.msra.mxu0 0.0
  %334 = vmatprep.subr.mxu0 0.0
  %335 = vmatpush1.msra.mxu0 0.0
  %336 = vmatprep.subr.mxu0 0.0
  %337 = vmatpush1.msra.mxu0 0.0
  %338 = vmatprep.subr.mxu0 0.0
  %339 = vmatpush1.msra.mxu0 0.0
  %340 = vmatprep.subr.mxu0 0.0
  %341 = vmatpush1.msra.mxu0 0.0
  %342 = vmatprep.subr.mxu0 0.0
  %343 = vmatpush1.msra.mxu0 0.0
  %344 = vmatprep.subr.mxu0 0.0
  %345 = vmatpush1.msra.mxu0 0.0
  %346 = vmatprep.subr.mxu0 0.0
  %347 = vmatpush1.msra.mxu0 0.0
  %348 = vmatprep.subr.mxu0 0.0
  %349 = vmatpush1.msra.mxu0 0.0
  %350 = vmatprep.subr.mxu0 0.0
  %351 = vmatpush1.msra.mxu0 0.0
  %352 = vmatprep.subr.mxu0 0.0
  %353 = vmatpush1.msra.mxu0 0.0
  %354 = vmatprep.subr.mxu0 0.0
  %355 = vmatpush1.msra.mxu0 0.0
  %356 = vmatprep.subr.mxu0 0.0
  %357 = vmatpush1.msra.mxu0 0.0
  %358 = vmatprep.subr.mxu0 0.0
  %359 = vmatpush1.msra.mxu0 0.0
  %360 = vmatprep.subr.mxu0 0.0
  %361 = vmatpush1.msra.mxu0 0.0
  %362 = vmatprep.mubr.f32.mxu0 0.0
  %363 = vmatmul.mubr.f32.gmra.mrb[0].mxu0 %v274
  %v364 = vpop.f32.mrb[0].mxu0
  %v365 = vadd.f32 %v296, %v364
  %v366 = vpop.f32.mrb[0].mxu0
  %367 = vdwg.mxu0
  %v368 = vlaneseq
  %v369 = vand.u32 %v368, 127
  %vm370 = vcmp.lt.s32.totalorder %v369, 10
  %v371 = vsel %vm370, %v365, -1e+30
  %372 = vmax.xlane.f32.xlu0 %v371
  %v373 = vpop.xlane.xlu0 %372
  %v374 = vsub.f32 %v371, %v373
  %v375 = vmul.f32 %v374, 1.442695
  %v376 = vpow.pop %v375
  %377 = vadd.xlane.f32.xlu0 %v376
  %v378 = vpop.xlane.xlu0 %377
  %v379 = vrcp.pop %v378
  %v380 = vmul.f32 %v376, %v379
  %381 = vst [vmem:[%s7] sm:$0xff] %v380
  // Predicated region
  $region30: #{attention_birnn_forward.7} parent=0 // pred_check
    _
  $region31: #{attention_birnn_forward.7} parent=0 // pred_check_branch
    %383 = sbr.rel (0) target = $region33
  $region32: #{attention_birnn_forward.7} parent=0 // pred_region
    _
  $region33: #{attention_birnn_forward.7} parent=0 // pred_fallthru
    _
  // Predicated region
  $region34: #{attention_birnn_forward.7} parent=0 // pred_check
    _
  $region35: #{attention_birnn_forward.7} parent=0 // pred_check_branch
    %385 = sbr.rel (0) target = $region37
  $region36: #{attention_birnn_forward.7} parent=0 // pred_region
    _
  $region37: #{attention_birnn_forward.7} parent=0 // pred_fallthru
    _

// kernel: attention_birnn_forward.5
$region0: #{attention_birnn_forward.5}
  #allocation0 [shape = 'u32[]', space=smem, size = 0x4, offset = 0x4, fixed_abs, tag = 'smem constant byte address 0x4 - core index']
  #allocation1 [shape = 'u32[144,128]{1,0:T(1,128)}', space=vmem, size = 0x12000, scoped, tag = 'internal scratch']
  #allocation2 [shape = 'f32[8,8,512]{2,1,0:T(8,128)}', space=vmem, size = 0x20000, scoped, tag = 'scratch operand']
  #allocation3 [shape = 'f32[8,8,64]{2,1,0:T(8,128)}', space=vmem, size = 0x8000, scoped, tag = 'scratch operand']
  %s0 = inlined_call_operand.vmem [shape: f32[8,8,64], index: 0, kind: input, shape index: {}]
  %s1 = inlined_call_operand.hbm [shape: f32[64,512], index: 1, kind: input, shape index: {}]
  %s2 = inlined_call_operand.hbm [shape: f32[64,256], index: 2, kind: input, shape index: {}]
  %s3 = inlined_call_operand.hbm [shape: f32[64,256], index: 3, kind: input, shape index: {}]
  %s4 = inlined_call_operand.hbm [shape: f32[1,512], index: 4, kind: input, shape index: {}]
  %s5 = inlined_call_operand.vmem [shape: f32[8,8,128], index: 5, kind: output, shape index: {}]
  %s6 = sld [smem:[#allocation0]]
  $region46: #{attention_birnn_forward.5} parent=0
    _
  %s8 = ssub.s32 1, %s6
  %s9 = scalar_select 0, %s8, %s6
  $region1: #{attention_birnn_forward.5} parent=0
    #allocation4 [shape = 'u8[131072]{0}', space=vmem, size = 0x20000, scoped, tag = 'input window, operand 1, single buffered']
    #allocation5 [shape = 's32[1]{0}', space=sflag, size = 0x4, scoped, tag = 'scoped memory for attention_birnn_forward.5']
    #allocation6 [shape = 'u8[65536]{0}', space=vmem, size = 0x10000, scoped, tag = 'input window, operand 2, single buffered']
    #allocation7 [shape = 's32[1]{0}', space=sflag, size = 0x4, scoped, tag = 'scoped memory for attention_birnn_forward.5']
    #allocation8 [shape = 'u8[65536]{0}', space=vmem, size = 0x10000, scoped, tag = 'input window, operand 3, single buffered']
    #allocation9 [shape = 'u8[2048]{0}', space=vmem, size = 0x800, scoped, tag = 'input window, operand 4, single buffered']
    #allocation10 [shape = 's32[1]{0}', space=sflag, size = 0x4, scoped, tag = 'scoped memory for attention_birnn_forward.5']
    %10 = vsyncpa [#allocation5], 0
    %11 = vsyncpa [#allocation7], 0
    %12 = vsyncpa [#allocation10], 0
    // Predicated region
    $region2: #{attention_birnn_forward.5} parent=1 // pred_check
      _
    $region3: #{attention_birnn_forward.5} parent=1 // pred_check_branch
      %14 = sbr.rel (0) target = $region5
    $region4: #{attention_birnn_forward.5} parent=1 // pred_region
      _
    $region5: #{attention_birnn_forward.5} parent=1 // pred_fallthru
      _
    // Predicated region
    $region6: #{attention_birnn_forward.5} parent=1 // pred_check
      _
    $region7: #{attention_birnn_forward.5} parent=1 // pred_check_branch
      %16 = sbr.rel (0) target = $region9
    $region8: #{attention_birnn_forward.5} parent=1 // pred_region
      %s18 = ssub.s32 4096, 4096
      %19 = vsyncadd [#allocation5], %s18
      %s20 = sshll.u32 [#allocation4], 4
      %s21 = int_to_ptr.vmem [resolvable:$true] %s20
      %26 = dma.hbm_to_vmem [thread:$0]  %s1, 4096, %s21, [#allocation5], 512, 512, 32
    $region9: #{attention_birnn_forward.5} parent=1 // pred_fallthru
      _
    // Predicated region
    $region10: #{attention_birnn_forward.5} parent=1 // pred_check
      _
    $region11: #{attention_birnn_forward.5} parent=1 // pred_check_branch
      %28 = sbr.rel (0) target = $region13
    $region12: #{attention_birnn_forward.5} parent=1 // pred_region
      %s30 = ssub.s32 2048, 2048
      %31 = vsyncadd [#allocation7], %s30
      %s32 = sshll.u32 [#allocation6], 4
      %s33 = int_to_ptr.vmem [resolvable:$true] %s32
      %38 = dma.hbm_to_vmem [thread:$0]  %s2, 2048, %s33, [#allocation7], 256, 256, 16
    $region13: #{attention_birnn_forward.5} parent=1 // pred_fallthru
      _
    // Predicated region
    $region14: #{attention_birnn_forward.5} parent=1 // pred_check
      _
    $region15: #{attention_birnn_forward.5} parent=1 // pred_check_branch
      %40 = sbr.rel (0) target = $region17
    $region16: #{attention_birnn_forward.5} parent=1 // pred_region
      %s42 = ssub.s32 2048, 2048
      %43 = vsyncadd [#allocation7], %s42
      %s44 = sshll.u32 [#allocation8], 4
      %s45 = int_to_ptr.vmem [resolvable:$true] %s44
      %50 = dma.hbm_to_vmem [thread:$0]  %s3, 2048, %s45, [#allocation7], 256, 256, 16
    $region17: #{attention_birnn_forward.5} parent=1 // pred_fallthru
      _
    // Predicated region
    $region18: #{attention_birnn_forward.5} parent=1 // pred_check
      _
    $region19: #{attention_birnn_forward.5} parent=1 // pred_check_branch
      %52 = sbr.rel (0) target = $region21
    $region20: #{attention_birnn_forward.5} parent=1 // pred_region
      %s54 = ssub.s32 64, 64
      %55 = vsyncadd [#allocation10], %s54
      %s57 = sshll.u32 [#allocation9], 4
      %s58 = int_to_ptr.vmem [resolvable:$true] %s57
      %60 = dma.hbm_to_vmem [thread:$0]  %s4, 64, %s58, [#allocation10]
    $region21: #{attention_birnn_forward.5} parent=1 // pred_fallthru
      _
    // Predicated region
    $region22: #{attention_birnn_forward.5} parent=1 // pred_check
      _
    $region23: #{attention_birnn_forward.5} parent=1 // pred_check_branch
      %62 = sbr.rel (0) target = $region25
    $region24: #{attention_birnn_forward.5} parent=1 // pred_region
      %63 = dma.done [#allocation5], 4096
    $region25: #{attention_birnn_forward.5} parent=1 // pred_fallthru
      _
    // Predicated region
    $region26: #{attention_birnn_forward.5} parent=1 // pred_check
      _
    $region27: #{attention_birnn_forward.5} parent=1 // pred_check_branch
      %65 = sbr.rel (0) target = $region29
    $region28: #{attention_birnn_forward.5} parent=1 // pred_region
      %66 = dma.done [#allocation7], 2048
    $region29: #{attention_birnn_forward.5} parent=1 // pred_fallthru
      _
    // Predicated region
    $region30: #{attention_birnn_forward.5} parent=1 // pred_check
      _
    $region31: #{attention_birnn_forward.5} parent=1 // pred_check_branch
      %68 = sbr.rel (0) target = $region33
    $region32: #{attention_birnn_forward.5} parent=1 // pred_region
      %69 = dma.done [#allocation7], 2048
    $region33: #{attention_birnn_forward.5} parent=1 // pred_fallthru
      _
    // Predicated region
    $region34: #{attention_birnn_forward.5} parent=1 // pred_check
      _
    $region35: #{attention_birnn_forward.5} parent=1 // pred_check_branch
      %71 = sbr.rel (0) target = $region37
    $region36: #{attention_birnn_forward.5} parent=1 // pred_region
      %72 = dma.done [#allocation10], 64
    $region37: #{attention_birnn_forward.5} parent=1 // pred_fallthru
      _
    %v73 = vld [vmem:[%s0] sm:$0xff]
    %v74 = vld [vmem:[%s0 + $0x8] sm:$0xff]
    %v75 = vld [vmem:[%s0 + $0x10] sm:$0xff]
    %v76 = vld [vmem:[%s0 + $0x18] sm:$0xff]
    %v77 = vld [vmem:[%s0 + $0x20] sm:$0xff]
    %v78 = vld [vmem:[%s0 + $0x28] sm:$0xff]
    %v79 = vld [vmem:[%s0 + $0x30] sm:$0xff]
    %v80 = vld [vmem:[%s0 + $0x38] sm:$0xff]
    %v81 = vld [vmem:[#allocation4] sm:$0xff]
    %v82 = vld [vmem:[#allocation4 + $0x8] sm:$0xff]
    %v83 = vld [vmem:[#allocation4 + $0x10] sm:$0xff]
    %v84 = vld [vmem:[#allocation4 + $0x18] sm:$0xff]
    %v85 = vld [vmem:[#allocation4 + $0x20] sm:$0xff]
    %v86 = vld [vmem:[#allocation4 + $0x28] sm:$0xff]
    %v87 = vld [vmem:[#allocation4 + $0x30] sm:$0xff]
    %v88 = vld [vmem:[#allocation4 + $0x38] sm:$0xff]
    %v89 = vld [vmem:[#allocation4 + $0x40] sm:$0xff]
    %v90 = vld [vmem:[#allocation4 + $0x48] sm:$0xff]
    %v91 = vld [vmem:[#allocation4 + $0x50] sm:$0xff]
    %v92 = vld [vmem:[#allocation4 + $0x58] sm:$0xff]
    %v93 = vld [vmem:[#allocation4 + $0x60] sm:$0xff]
    %v94 = vld [vmem:[#allocation4 + $0x68] sm:$0xff]
    %v95 = vld [vmem:[#allocation4 + $0x70] sm:$0xff]
    %v96 = vld [vmem:[#allocation4 + $0x78] sm:$0xff]
    %v97 = vld [vmem:[#allocation4 + $0x80] sm:$0xff]
    %v98 = vld [vmem:[#allocation4 + $0x88] sm:$0xff]
    %v99 = vld [vmem:[#allocation4 + $0x90] sm:$0xff]
    %v100 = vld [vmem:[#allocation4 + $0x98] sm:$0xff]
    %v101 = vld [vmem:[#allocation4 + $0xa0] sm:$0xff]
    %v102 = vld [vmem:[#allocation4 + $0xa8] sm:$0xff]
    %v103 = vld [vmem:[#allocation4 + $0xb0] sm:$0xff]
    %v104 = vld [vmem:[#allocation4 + $0xb8] sm:$0xff]
    %v105 = vld [vmem:[#allocation4 + $0xc0] sm:$0xff]
    %v106 = vld [vmem:[#allocation4 + $0xc8] sm:$0xff]
    %v107 = vld [vmem:[#allocation4 + $0xd0] sm:$0xff]
    %v108 = vld [vmem:[#allocation4 + $0xd8] sm:$0xff]
    %v109 = vld [vmem:[#allocation4 + $0xe0] sm:$0xff]
    %v110 = vld [vmem:[#allocation4 + $0xe8] sm:$0xff]
    %v111 = vld [vmem:[#allocation4 + $0xf0] sm:$0xff]
    %v112 = vld [vmem:[#allocation4 + $0xf8] sm:$0xff]
    %v113 = vld [vmem:[#allocation9] sm:$0xf]
    %v115 = vlaneseq
    %v116 = vshrl.u32 %v115, 7
    %v117 = vsub.s32 0, %v116
    %v118 = vrot.slane %v113, %v117
    %v119 = vlaneseq
    %v120 = vshrl.u32 %v119, 7
    %v121 = vsub.s32 1, %v120
    %v122 = vrot.slane %v113, %v121
    %v123 = vlaneseq
    %v124 = vshrl.u32 %v123, 7
    %v125 = vsub.s32 2, %v124
    %v126 = vrot.slane %v113, %v125
    %v127 = vlaneseq
    %v128 = vshrl.u32 %v127, 7
    %v129 = vsub.s32 3, %v128
    %v130 = vrot.slane %v113, %v129
    %vm135 = vcmask 523264
    %v137 = vsel %vm135, %v73, 0
    %v140 = vsel %vm135, %v74, 0
    %v143 = vsel %vm135, %v75, 0
    %v146 = vsel %vm135, %v76, 0
    %v149 = vsel %vm135, %v77, 0
    %v152 = vsel %vm135, %v78, 0
    %v155 = vsel %vm135, %v79, 0
    %v158 = vsel %vm135, %v80, 0
    %160 = vmatprep.subr.mxu0 %v82
    %161 = vmatpush1.msra.mxu0 %v81
    %162 = vmatprep.subr.mxu0 %v86
    %163 = vmatpush1.msra.mxu0 %v85
    %164 = vmatprep.subr.mxu0 %v90
    %165 = vmatpush1.msra.mxu0 %v89
    %166 = vmatprep.subr.mxu0 %v94
    %167 = vmatpush1.msra.mxu0 %v93
    %168 = vmatprep.subr.mxu0 %v98
    %169 = vmatpush1.msra.mxu0 %v97
    %170 = vmatprep.subr.mxu0 %v102
    %171 = vmatpush1.msra.mxu0 %v101
    %172 = vmatprep.subr.mxu0 %v106
    %173 = vmatpush1.msra.mxu0 %v105
    %174 = vmatprep.subr.mxu0 %v110
    %175 = vmatpush1.msra.mxu0 %v109
    %176 = vmatprep.subr.mxu0 0.0
    %177 = vmatpush1.msra.mxu0 0.0
    %178 = vmatprep.subr.mxu0 0.0
    %179 = vmatpush1.msra.mxu0 0.0
    %180 = vmatprep.subr.mxu0 0.0
    %181 = vmatpush1.msra.mxu0 0.0
    %182 = vmatprep.subr.mxu0 0.0
    %183 = vmatpush1.msra.mxu0 0.0
    %184 = vmatprep.subr.mxu0 0.0
    %185 = vmatpush1.msra.mxu0 0.0
    %186 = vmatprep.subr.mxu0 0.0
    %187 = vmatpush1.msra.mxu0 0.0
    %188 = vmatprep.subr.mxu0 0.0
    %189 = vmatpush1.msra.mxu0 0.0
    %190 = vmatprep.subr.mxu0 0.0
    %191 = vmatpush1.msra.mxu0 0.0
    %192 = vmatprep.subr.mxu0 0.0
    %193 = vmatpush1.msra.mxu0 0.0
    %194 = vmatprep.subr.mxu0 0.0
    %195 = vmatpush1.msra.mxu0 0.0
    %196 = vmatprep.subr.mxu0 0.0
    %197 = vmatpush1.msra.mxu0 0.0
    %198 = vmatprep.subr.mxu0 0.0
    %199 = vmatpush1.msra.mxu0 0.0
    %200 = vmatprep.subr.mxu0 0.0
    %201 = vmatpush1.msra.mxu0 0.0
    %202 = vmatprep.subr.mxu0 0.0
    %203 = vmatpush1.msra.mxu0 0.0
    %204 = vmatprep.subr.mxu0 0.0
    %205 = vmatpush1.msra.mxu0 0.0
    %206 = vmatprep.subr.mxu0 0.0
    %207 = vmatpush1.msra.mxu0 0.0
    %208 = vmatprep.subr.mxu0 0.0
    %209 = vmatpush1.msra.mxu0 0.0
    %210 = vmatprep.subr.mxu0 0.0
    %211 = vmatpush1.msra.mxu0 0.0
    %212 = vmatprep.subr.mxu0 0.0
    %213 = vmatpush1.msra.mxu0 0.0
    %214 = vmatprep.subr.mxu0 0.0
    %215 = vmatpush1.msra.mxu0 0.0
    %216 = vmatprep.subr.mxu0 0.0
    %217 = vmatpush1.msra.mxu0 0.0
    %218 = vmatprep.subr.mxu0 0.0
    %219 = vmatpush1.msra.mxu0 0.0
    %220 = vmatprep.subr.mxu0 0.0
    %221 = vmatpush1.msra.mxu0 0.0
    %222 = vmatprep.subr.mxu0 0.0
    %223 = vmatpush1.msra.mxu0 0.0
    %224 = vmatprep.mubr.f32.mxu0 0.0
    %225 = vmatmul.mubr.f32.gmra.mrb[0].mxu0 %v137
    %v226 = vpop.f32.mrb[0].mxu0
    %v227 = vadd.f32 %v118, %v226
    %v228 = vpop.f32.mrb[0].mxu0
    %v229 = vadd.f32 %v122, %v228
    %230 = vmatprep.mubr.f32.mxu0 0.0
    %231 = vmatmul.mubr.f32.gmra.mrb[0].mxu0 %v140
    %v232 = vpop.f32.mrb[0].mxu0
    %v233 = vadd.f32 %v118, %v232
    %v234 = vpop.f32.mrb[0].mxu0
    %v235 = vadd.f32 %v122, %v234
    %236 = vmatprep.mubr.f32.mxu0 0.0
    %237 = vmatmul.mubr.f32.gmra.mrb[0].mxu0 %v143
    %v238 = vpop.f32.mrb[0].mxu0
    %v239 = vadd.f32 %v118, %v238
    %v240 = vpop.f32.mrb[0].mxu0
    %v241 = vadd.f32 %v122, %v240
    %242 = vmatprep.mubr.f32.mxu0 0.0
    %243 = vmatmul.mubr.f32.gmra.mrb[0].mxu0 %v146
    %v244 = vpop.f32.mrb[0].mxu0
    %v245 = vadd.f32 %v118, %v244
    %v246 = vpop.f32.mrb[0].mxu0
    %v247 = vadd.f32 %v122, %v246
    %248 = vmatprep.mubr.f32.mxu0 0.0
    %249 = vmatmul.mubr.f32.gmra.mrb[0].mxu0 %v149
    %v250 = vpop.f32.mrb[0].mxu0
    %v251 = vadd.f32 %v118, %v250
    %v252 = vpop.f32.mrb[0].mxu0
    %v253 = vadd.f32 %v122, %v252
    %254 = vmatprep.mubr.f32.mxu0 0.0
    %255 = vmatmul.mubr.f32.gmra.mrb[0].mxu0 %v152
    %v256 = vpop.f32.mrb[0].mxu0
    %v257 = vadd.f32 %v118, %v256
    %v258 = vpop.f32.mrb[0].mxu0
    %v259 = vadd.f32 %v122, %v258
    %260 = vmatprep.mubr.f32.mxu0 0.0
    %261 = vmatmul.mubr.f32.gmra.mrb[0].mxu0 %v155
    %v262 = vpop.f32.mrb[0].mxu0
    %v263 = vadd.f32 %v118, %v262
    %v264 = vpop.f32.mrb[0].mxu0
    %v265 = vadd.f32 %v122, %v264
    %266 = vmatprep.mubr.f32.mxu0 0.0
    %267 = vmatmul.mubr.f32.gmra.mrb[0].mxu0 %v158
    %v268 = vpop.f32.mrb[0].mxu0
    %v269 = vadd.f32 %v118, %v268
    %v270 = vpop.f32.mrb[0].mxu0
    %v271 = vadd.f32 %v122, %v270
    %272 = vdwg.mxu0
    %273 = vmatprep.subr.mxu0 %v84
    %274 = vmatpush1.msra.mxu0 %v83
    %275 = vmatprep.subr.mxu0 %v88
    %276 = vmatpush1.msra.mxu0 %v87
    %277 = vmatprep.subr.mxu0 %v92
    %278 = vmatpush1.msra.mxu0 %v91
    %279 = vmatprep.subr.mxu0 %v96
    %280 = vmatpush1.msra.mxu0 %v95
    %281 = vmatprep.subr.mxu0 %v100
    %282 = vmatpush1.msra.mxu0 %v99
    %283 = vmatprep.subr.mxu0 %v104
    %284 = vmatpush1.msra.mxu0 %v103
    %285 = vmatprep.subr.mxu0 %v108
    %286 = vmatpush1.msra.mxu0 %v107
    %287 = vmatprep.subr.mxu0 %v112
    %288 = vmatpush1.msra.mxu0 %v111
    %289 = vmatprep.subr.mxu0 0.0
    %290 = vmatpush1.msra.mxu0 0.0
    %291 = vmatprep.subr.mxu0 0.0
    %292 = vmatpush1.msra.mxu0 0.0
    %293 = vmatprep.subr.mxu0 0.0
    %294 = vmatpush1.msra.mxu0 0.0
    %295 = vmatprep.subr.mxu0 0.0
    %296 = vmatpush1.msra.mxu0 0.0
    %297 = vmatprep.subr.mxu0 0.0
    %298 = vmatpush1.msra.mxu0 0.0
    %299 = vmatprep.subr.mxu0 0.0
    %300 = vmatpush1.msra.mxu0 0.0
    %301 = vmatprep.subr.mxu0 0.0
    %302 = vmatpush1.msra.mxu0 0.0
    %303 = vmatprep.subr.mxu0 0.0
    %304 = vmatpush1.msra.mxu0 0.0
    %305 = vmatprep.subr.mxu0 0.0
    %306 = vmatpush1.msra.mxu0 0.0
    %307 = vmatprep.subr.mxu0 0.0
    %308 = vmatpush1.msra.mxu0 0.0
    %309 = vmatprep.subr.mxu0 0.0
    %310 = vmatpush1.msra.mxu0 0.0
    %311 = vmatprep.subr.mxu0 0.0
    %312 = vmatpush1.msra.mxu0 0.0
    %313 = vmatprep.subr.mxu0 0.0
    %314 = vmatpush1.msra.mxu0 0.0
    %315 = vmatprep.subr.mxu0 0.0
    %316 = vmatpush1.msra.mxu0 0.0
    %317 = vmatprep.subr.mxu0 0.0
    %318 = vmatpush1.msra.mxu0 0.0
    %319 = vmatprep.subr.mxu0 0.0
    %320 = vmatpush1.msra.mxu0 0.0
    %321 = vmatprep.subr.mxu0 0.0
    %322 = vmatpush1.msra.mxu0 0.0
    %323 = vmatprep.subr.mxu0 0.0
    %324 = vmatpush1.msra.mxu0 0.0
    %325 = vmatprep.subr.mxu0 0.0
    %326 = vmatpush1.msra.mxu0 0.0
    %327 = vmatprep.subr.mxu0 0.0
    %328 = vmatpush1.msra.mxu0 0.0
    %329 = vmatprep.subr.mxu0 0.0
    %330 = vmatpush1.msra.mxu0 0.0
    %331 = vmatprep.subr.mxu0 0.0
    %332 = vmatpush1.msra.mxu0 0.0
    %333 = vmatprep.subr.mxu0 0.0
    %334 = vmatpush1.msra.mxu0 0.0
    %335 = vmatprep.subr.mxu0 0.0
    %336 = vmatpush1.msra.mxu0 0.0
    %337 = vmatprep.mubr.f32.mxu0 0.0
    %338 = vmatmul.mubr.f32.gmra.mrb[0].mxu0 %v137
    %v339 = vpop.f32.mrb[0].mxu0
    %v340 = vadd.f32 %v126, %v339
    %v341 = vpop.f32.mrb[0].mxu0
    %v342 = vadd.f32 %v130, %v341
    %343 = vmatprep.mubr.f32.mxu0 0.0
    %344 = vmatmul.mubr.f32.gmra.mrb[0].mxu0 %v140
    %v345 = vpop.f32.mrb[0].mxu0
    %v346 = vadd.f32 %v126, %v345
    %v347 = vpop.f32.mrb[0].mxu0
    %v348 = vadd.f32 %v130, %v347
    %349 = vmatprep.mubr.f32.mxu0 0.0
    %350 = vmatmul.mubr.f32.gmra.mrb[0].mxu0 %v143
    %v351 = vpop.f32.mrb[0].mxu0
    %v352 = vadd.f32 %v126, %v351
    %v353 = vpop.f32.mrb[0].mxu0
    %v354 = vadd.f32 %v130, %v353
    %355 = vmatprep.mubr.f32.mxu0 0.0
    %356 = vmatmul.mubr.f32.gmra.mrb[0].mxu0 %v146
    %v357 = vpop.f32.mrb[0].mxu0
    %v358 = vadd.f32 %v126, %v357
    %v359 = vpop.f32.mrb[0].mxu0
    %v360 = vadd.f32 %v130, %v359
    %361 = vmatprep.mubr.f32.mxu0 0.0
    %362 = vmatmul.mubr.f32.gmra.mrb[0].mxu0 %v149
    %v363 = vpop.f32.mrb[0].mxu0
    %v364 = vadd.f32 %v126, %v363
    %v365 = vpop.f32.mrb[0].mxu0
    %v366 = vadd.f32 %v130, %v365
    %367 = vmatprep.mubr.f32.mxu0 0.0
    %368 = vmatmul.mubr.f32.gmra.mrb[0].mxu0 %v152
    %v369 = vpop.f32.mrb[0].mxu0
    %v370 = vadd.f32 %v126, %v369
    %v371 = vpop.f32.mrb[0].mxu0
    %v372 = vadd.f32 %v130, %v371
    %373 = vmatprep.mubr.f32.mxu0 0.0
    %374 = vmatmul.mubr.f32.gmra.mrb[0].mxu0 %v155
    %v375 = vpop.f32.mrb[0].mxu0
    %v376 = vadd.f32 %v126, %v375
    %v377 = vpop.f32.mrb[0].mxu0
    %v378 = vadd.f32 %v130, %v377
    %379 = vmatprep.mubr.f32.mxu0 0.0
    %380 = vmatmul.mubr.f32.gmra.mrb[0].mxu0 %v158
    %v381 = vpop.f32.mrb[0].mxu0
    %v382 = vadd.f32 %v126, %v381
    %v383 = vpop.f32.mrb[0].mxu0
    %v384 = vadd.f32 %v130, %v383
    %385 = vdwg.mxu0
    %386 = vst [vmem:[#allocation2] sm:$0xff] %v227
    %387 = vst [vmem:[#allocation2 + $0x8] sm:$0xff] %v229
    %388 = vst [vmem:[#allocation2 + $0x10] sm:$0xff] %v340
    %389 = vst [vmem:[#allocation2 + $0x18] sm:$0xff] %v342
    %390 = vst [vmem:[#allocation2 + $0x20] sm:$0xff] %v233
    %391 = vst [vmem:[#allocation2 + $0x28] sm:$0xff] %v235
    %392 = vst [vmem:[#allocation2 + $0x30] sm:$0xff] %v346
    %393 = vst [vmem:[#allocation2 + $0x38] sm:$0xff] %v348
    %394 = vst [vmem:[#allocation2 + $0x40] sm:$0xff] %v239
    %395 = vst [vmem:[#allocation2 + $0x48] sm:$0xff] %v241
    %396 = vst [vmem:[#allocation2 + $0x50] sm:$0xff] %v352
    %397 = vst [vmem:[#allocation2 + $0x58] sm:$0xff] %v354
    %398 = vst [vmem:[#allocation2 + $0x60] sm:$0xff] %v245
    %399 = vst [vmem:[#allocation2 + $0x68] sm:$0xff] %v247
    %400 = vst [vmem:[#allocation2 + $0x70] sm:$0xff] %v358
    %401 = vst [vmem:[#allocation2 + $0x78] sm:$0xff] %v360
    %402 = vst [vmem:[#allocation2 + $0x80] sm:$0xff] %v251
    %403 = vst [vmem:[#allocation2 + $0x88] sm:$0xff] %v253
    %404 = vst [vmem:[#allocation2 + $0x90] sm:$0xff] %v364
    %405 = vst [vmem:[#allocation2 + $0x98] sm:$0xff] %v366
    %406 = vst [vmem:[#allocation2 + $0xa0] sm:$0xff] %v257
    %407 = vst [vmem:[#allocation2 + $0xa8] sm:$0xff] %v259
    %408 = vst [vmem:[#allocation2 + $0xb0] sm:$0xff] %v370
    %409 = vst [vmem:[#allocation2 + $0xb8] sm:$0xff] %v372
    %410 = vst [vmem:[#allocation2 + $0xc0] sm:$0xff] %v263
    %411 = vst [vmem:[#allocation2 + $0xc8] sm:$0xff] %v265
    %412 = vst [vmem:[#allocation2 + $0xd0] sm:$0xff] %v376
    %413 = vst [vmem:[#allocation2 + $0xd8] sm:$0xff] %v378
    %414 = vst [vmem:[#allocation2 + $0xe0] sm:$0xff] %v269
    %415 = vst [vmem:[#allocation2 + $0xe8] sm:$0xff] %v271
    %416 = vst [vmem:[#allocation2 + $0xf0] sm:$0xff] %v382
    %417 = vst [vmem:[#allocation2 + $0xf8] sm:$0xff] %v384
    %v418 = vld [vmem:[#allocation6] sm:$0xff]
    %v419 = vld [vmem:[#allocation6 + $0x8] sm:$0xff]
    %v420 = vld [vmem:[#allocation6 + $0x10] sm:$0xff]
    %v421 = vld [vmem:[#allocation6 + $0x18] sm:$0xff]
    %v422 = vld [vmem:[#allocation6 + $0x20] sm:$0xff]
    %v423 = vld [vmem:[#allocation6 + $0x28] sm:$0xff]
    %v424 = vld [vmem:[#allocation6 + $0x30] sm:$0xff]
    %v425 = vld [vmem:[#allocation6 + $0x38] sm:$0xff]
    %v426 = vld [vmem:[#allocation6 + $0x40] sm:$0xff]
    %v427 = vld [vmem:[#allocation6 + $0x48] sm:$0xff]
    %v428 = vld [vmem:[#allocation6 + $0x50] sm:$0xff]
    %v429 = vld [vmem:[#allocation6 + $0x58] sm:$0xff]
    %v430 = vld [vmem:[#allocation6 + $0x60] sm:$0xff]
    %v431 = vld [vmem:[#allocation6 + $0x68] sm:$0xff]
    %v432 = vld [vmem:[#allocation6 + $0x70] sm:$0xff]
    %v433 = vld [vmem:[#allocation6 + $0x78] sm:$0xff]
    %v434 = vld [vmem:[#allocation8] sm:$0xff]
    %v435 = vld [vmem:[#allocation8 + $0x8] sm:$0xff]
    %v436 = vld [vmem:[#allocation8 + $0x10] sm:$0xff]
    %v437 = vld [vmem:[#allocation8 + $0x18] sm:$0xff]
    %v438 = vld [vmem:[#allocation8 + $0x20] sm:$0xff]
    %v439 = vld [vmem:[#allocation8 + $0x28] sm:$0xff]
    %v440 = vld [vmem:[#allocation8 + $0x30] sm:$0xff]
    %v441 = vld [vmem:[#allocation8 + $0x38] sm:$0xff]
    %v442 = vld [vmem:[#allocation8 + $0x40] sm:$0xff]
    %v443 = vld [vmem:[#allocation8 + $0x48] sm:$0xff]
    %v444 = vld [vmem:[#allocation8 + $0x50] sm:$0xff]
    %v445 = vld [vmem:[#allocation8 + $0x58] sm:$0xff]
    %v446 = vld [vmem:[#allocation8 + $0x60] sm:$0xff]
    %v447 = vld [vmem:[#allocation8 + $0x68] sm:$0xff]
    %v448 = vld [vmem:[#allocation8 + $0x70] sm:$0xff]
    %v449 = vld [vmem:[#allocation8 + $0x78] sm:$0xff]
    %v450 = vld [vmem:[#allocation2] sm:$0xff]
    %v451 = vld [vmem:[#allocation2 + $0x8] sm:$0xff]
    %v453 = vsel %vm135, 0.0, 0
    %455 = vmatprep.subr.mxu0 %v419
    %456 = vmatpush1.msra.mxu0 %v418
    %457 = vmatprep.subr.mxu0 %v421
    %458 = vmatpush1.msra.mxu0 %v420
    %459 = vmatprep.subr.mxu0 %v423
    %460 = vmatpush1.msra.mxu0 %v422
    %461 = vmatprep.subr.mxu0 %v425
    %462 = vmatpush1.msra.mxu0 %v424
    %463 = vmatprep.subr.mxu0 %v427
    %464 = vmatpush1.msra.mxu0 %v426
    %465 = vmatprep.subr.mxu0 %v429
    %466 = vmatpush1.msra.mxu0 %v428
    %467 = vmatprep.subr.mxu0 %v431
    %468 = vmatpush1.msra.mxu0 %v430
    %469 = vmatprep.subr.mxu0 %v433
    %470 = vmatpush1.msra.mxu0 %v432
    %471 = vmatprep.subr.mxu0 0.0
    %472 = vmatpush1.msra.mxu0 0.0
    %473 = vmatprep.subr.mxu0 0.0
    %474 = vmatpush1.msra.mxu0 0.0
    %475 = vmatprep.subr.mxu0 0.0
    %476 = vmatpush1.msra.mxu0 0.0
    %477 = vmatprep.subr.mxu0 0.0
    %478 = vmatpush1.msra.mxu0 0.0
    %479 = vmatprep.subr.mxu0 0.0
    %480 = vmatpush1.msra.mxu0 0.0
    %481 = vmatprep.subr.mxu0 0.0
    %482 = vmatpush1.msra.mxu0 0.0
    %483 = vmatprep.subr.mxu0 0.0
    %484 = vmatpush1.msra.mxu0 0.0
    %485 = vmatprep.subr.mxu0 0.0
    %486 = vmatpush1.msra.mxu0 0.0
    %487 = vmatprep.subr.mxu0 0.0
    %488 = vmatpush1.msra.mxu0 0.0
    %489 = vmatprep.subr.mxu0 0.0
    %490 = vmatpush1.msra.mxu0 0.0
    %491 = vmatprep.subr.mxu0 0.0
    %492 = vmatpush1.msra.mxu0 0.0
    %493 = vmatprep.subr.mxu0 0.0
    %494 = vmatpush1.msra.mxu0 0.0
    %495 = vmatprep.subr.mxu0 0.0
    %496 = vmatpush1.msra.mxu0 0.0
    %497 = vmatprep.subr.mxu0 0.0
    %498 = vmatpush1.msra.mxu0 0.0
    %499 = vmatprep.subr.mxu0 0.0
    %500 = vmatpush1.msra.mxu0 0.0
    %501 = vmatprep.subr.mxu0 0.0
    %502 = vmatpush1.msra.mxu0 0.0
    %503 = vmatprep.subr.mxu0 0.0
    %504 = vmatpush1.msra.mxu0 0.0
    %505 = vmatprep.subr.mxu0 0.0
    %506 = vmatpush1.msra.mxu0 0.0
    %507 = vmatprep.subr.mxu0 0.0
    %508 = vmatpush1.msra.mxu0 0.0
    %509 = vmatprep.subr.mxu0 0.0
    %510 = vmatpush1.msra.mxu0 0.0
    %511 = vmatprep.subr.mxu0 0.0
    %512 = vmatpush1.msra.mxu0 0.0
    %513 = vmatprep.subr.mxu0 0.0
    %514 = vmatpush1.msra.mxu0 0.0
    %515 = vmatprep.subr.mxu0 0.0
    %516 = vmatpush1.msra.mxu0 0.0
    %517 = vmatprep.subr.mxu0 0.0
    %518 = vmatpush1.msra.mxu0 0.0
    %519 = vmatprep.mubr.f32.mxu0 0.0
    %520 = vmatmul.mubr.f32.gmra.mrb[0].mxu0 %v453
    %v521 = vpop.f32.mrb[0].mxu0
    %v522 = vadd.f32 0.0, %v521
    %v523 = vpop.f32.mrb[0].mxu0
    %v524 = vadd.f32 0.0, %v523
    %525 = vdwg.mxu0
    %v526 = vadd.f32 %v450, %v522
    %v527 = vadd.f32 %v451, %v524
    %v528 = vmul.f32 %v526, 0.5
    %v529 = vmul.f32 %v527, 0.5
    %v530 = vtanh.pop %v528
    %v531 = vtanh.pop %v529
    %v532 = vmul.f32 %v530, 0.5
    %v533 = vmul.f32 %v531, 0.5
    %v534 = vadd.f32 %v532, 0.5
    %v535 = vadd.f32 %v533, 0.5
    %v536 = vtanh.pop %v527
    %v537 = vmul.f32 %v534, 0.0
    %539 = vrot.lane.b32.xlu0 %v536, 64
    %v540 = vpop.permute.xlu0 %539
    %v542 = vmul.f32 %v534, %v540
    %544 = vrot.lane.b32.xlu0 %v542, 64
    %v545 = vpop.permute.xlu0 %544
    %v547 = vadd.f32 %v537, %v545
    %v548 = vtanh.pop %v547
    %550 = vrot.lane.b32.xlu0 %v548, 64
    %v551 = vpop.permute.xlu0 %550
    %v553 = vmul.f32 %v535, %v551
    %554 = vst.msk [vmem:[#allocation3] sm:$0xff] %vm135, %v553
    %s555 = scalar_lea.vmem [#allocation2], 32
    %v556 = vld [vmem:[%s555] sm:$0xff]
    %v557 = vld [vmem:[%s555 + $0x8] sm:$0xff]
    %v559 = vsel %vm135, %v553, 0
    %561 = vmatprep.subr.mxu0 %v419
    %562 = vmatpush1.msra.mxu0 %v418
    %563 = vmatprep.subr.mxu0 %v421
    %564 = vmatpush1.msra.mxu0 %v420
    %565 = vmatprep.subr.mxu0 %v423
    %566 = vmatpush1.msra.mxu0 %v422
    %567 = vmatprep.subr.mxu0 %v425
    %568 = vmatpush1.msra.mxu0 %v424
    %569 = vmatprep.subr.mxu0 %v427
    %570 = vmatpush1.msra.mxu0 %v426
    %571 = vmatprep.subr.mxu0 %v429
    %572 = vmatpush1.msra.mxu0 %v428
    %573 = vmatprep.subr.mxu0 %v431
    %574 = vmatpush1.msra.mxu0 %v430
    %575 = vmatprep.subr.mxu0 %v433
    %576 = vmatpush1.msra.mxu0 %v432
    %577 = vmatprep.subr.mxu0 0.0
    %578 = vmatpush1.msra.mxu0 0.0
    %579 = vmatprep.subr.mxu0 0.0
    %580 = vmatpush1.msra.mxu0 0.0
    %581 = vmatprep.subr.mxu0 0.0
    %582 = vmatpush1.msra.mxu0 0.0
    %583 = vmatprep.subr.mxu0 0.0
    %584 = vmatpush1.msra.mxu0 0.0
    %585 = vmatprep.subr.mxu0 0.0
    %586 = vmatpush1.msra.mxu0 0.0
    %587 = vmatprep.subr.mxu0 0.0
    %588 = vmatpush1.msra.mxu0 0.0
    %589 = vmatprep.subr.mxu0 0.0
    %590 = vmatpush1.msra.mxu0 0.0
    %591 = vmatprep.subr.mxu0 0.0
    %592 = vmatpush1.msra.mxu0 0.0
    %593 = vmatprep.subr.mxu0 0.0
    %594 = vmatpush1.msra.mxu0 0.0
    %595 = vmatprep.subr.mxu0 0.0
    %596 = vmatpush1.msra.mxu0 0.0
    %597 = vmatprep.subr.mxu0 0.0
    %598 = vmatpush1.msra.mxu0 0.0
    %599 = vmatprep.subr.mxu0 0.0
    %600 = vmatpush1.msra.mxu0 0.0
    %601 = vmatprep.subr.mxu0 0.0
    %602 = vmatpush1.msra.mxu0 0.0
    %603 = vmatprep.subr.mxu0 0.0
    %604 = vmatpush1.msra.mxu0 0.0
    %605 = vmatprep.subr.mxu0 0.0
    %606 = vmatpush1.msra.mxu0 0.0
    %607 = vmatprep.subr.mxu0 0.0
    %608 = vmatpush1.msra.mxu0 0.0
    %609 = vmatprep.subr.mxu0 0.0
    %610 = vmatpush1.msra.mxu0 0.0
    %611 = vmatprep.subr.mxu0 0.0
    %612 = vmatpush1.msra.mxu0 0.0
    %613 = vmatprep.subr.mxu0 0.0
    %614 = vmatpush1.msra.mxu0 0.0
    %615 = vmatprep.subr.mxu0 0.0
    %616 = vmatpush1.msra.mxu0 0.0
    %617 = vmatprep.subr.mxu0 0.0
    %618 = vmatpush1.msra.mxu0 0.0
    %619 = vmatprep.subr.mxu0 0.0
    %620 = vmatpush1.msra.mxu0 0.0
    %621 = vmatprep.subr.mxu0 0.0
    %622 = vmatpush1.msra.mxu0 0.0
    %623 = vmatprep.subr.mxu0 0.0
    %624 = vmatpush1.msra.mxu0 0.0
    %625 = vmatprep.mubr.f32.mxu0 0.0
    %626 = vmatmul.mubr.f32.gmra.mrb[0].mxu0 %v559
    %v627 = vpop.f32.mrb[0].mxu0
    %v628 = vadd.f32 0.0, %v627
    %v629 = vpop.f32.mrb[0].mxu0
    %v630 = vadd.f32 0.0, %v629
    %631 = vdwg.mxu0
    %v632 = vadd.f32 %v556, %v628
    %v633 = vadd.f32 %v557, %v630
    %v634 = vmul.f32 %v632, 0.5
    %v635 = vmul.f32 %v633, 0.5
    %v636 = vtanh.pop %v634
    %v637 = vtanh.pop %v635
    %v638 = vmul.f32 %v636, 0.5
    %v639 = vmul.f32 %v637, 0.5
    %v640 = vadd.f32 %v638, 0.5
    %v641 = vadd.f32 %v639, 0.5
    %v642 = vtanh.pop %v633
    %v643 = vmul.f32 %v640, %v547
    %645 = vrot.lane.b32.xlu0 %v642, 64
    %v646 = vpop.permute.xlu0 %645
    %v648 = vmul.f32 %v640, %v646
    %650 = vrot.lane.b32.xlu0 %v648, 64
    %v651 = vpop.permute.xlu0 %650
    %v653 = vadd.f32 %v643, %v651
    %v654 = vtanh.pop %v653
    %656 = vrot.lane.b32.xlu0 %v654, 64
    %v657 = vpop.permute.xlu0 %656
    %v659 = vmul.f32 %v641, %v657
    %s660 = scalar_lea.vmem [#allocation3], 8
    %661 = vst.msk [vmem:[%s660] sm:$0xff] %vm135, %v659
    %s662 = scalar_lea.vmem [#allocation2], 64
    %v663 = vld [vmem:[%s662] sm:$0xff]
    %v664 = vld [vmem:[%s662 + $0x8] sm:$0xff]
    %v666 = vsel %vm135, %v659, 0
    %668 = vmatprep.subr.mxu0 %v419
    %669 = vmatpush1.msra.mxu0 %v418
    %670 = vmatprep.subr.mxu0 %v421
    %671 = vmatpush1.msra.mxu0 %v420
    %672 = vmatprep.subr.mxu0 %v423
    %673 = vmatpush1.msra.mxu0 %v422
    %674 = vmatprep.subr.mxu0 %v425
    %675 = vmatpush1.msra.mxu0 %v424
    %676 = vmatprep.subr.mxu0 %v427
    %677 = vmatpush1.msra.mxu0 %v426
    %678 = vmatprep.subr.mxu0 %v429
    %679 = vmatpush1.msra.mxu0 %v428
    %680 = vmatprep.subr.mxu0 %v431
    %681 = vmatpush1.msra.mxu0 %v430
    %682 = vmatprep.subr.mxu0 %v433
    %683 = vmatpush1.msra.mxu0 %v432
    %684 = vmatprep.subr.mxu0 0.0
    %685 = vmatpush1.msra.mxu0 0.0
    %686 = vmatprep.subr.mxu0 0.0
    %687 = vmatpush1.msra.mxu0 0.0
    %688 = vmatprep.subr.mxu0 0.0
    %689 = vmatpush1.msra.mxu0 0.0
    %690 = vmatprep.subr.mxu0 0.0
    %691 = vmatpush1.msra.mxu0 0.0
    %692 = vmatprep.subr.mxu0 0.0
    %693 = vmatpush1.msra.mxu0 0.0
    %694 = vmatprep.subr.mxu0 0.0
    %695 = vmatpush1.msra.mxu0 0.0
    %696 = vmatprep.subr.mxu0 0.0
    %697 = vmatpush1.msra.mxu0 0.0
    %698 = vmatprep.subr.mxu0 0.0
    %699 = vmatpush1.msra.mxu0 0.0
    %700 = vmatprep.subr.mxu0 0.0
    %701 = vmatpush1.msra.mxu0 0.0
    %702 = vmatprep.subr.mxu0 0.0
    %703 = vmatpush1.msra.mxu0 0.0
    %704 = vmatprep.subr.mxu0 0.0
    %705 = vmatpush1.msra.mxu0 0.0
    %706 = vmatprep.subr.mxu0 0.0
    %707 = vmatpush1.msra.mxu0 0.0
    %708 = vmatprep.subr.mxu0 0.0
    %709 = vmatpush1.msra.mxu0 0.0
    %710 = vmatprep.subr.mxu0 0.0
    %711 = vmatpush1.msra.mxu0 0.0
    %712 = vmatprep.subr.mxu0 0.0
    %713 = vmatpush1.msra.mxu0 0.0
    %714 = vmatprep.subr.mxu0 0.0
    %715 = vmatpush1.msra.mxu0 0.0
    %716 = vmatprep.subr.mxu0 0.0
    %717 = vmatpush1.msra.mxu0 0.0
    %718 = vmatprep.subr.mxu0 0.0
    %719 = vmatpush1.msra.mxu0 0.0
    %720 = vmatprep.subr.mxu0 0.0
    %721 = vmatpush1.msra.mxu0 0.0
    %722 = vmatprep.subr.mxu0 0.0
    %723 = vmatpush1.msra.mxu0 0.0
    %724 = vmatprep.subr.mxu0 0.0
    %725 = vmatpush1.msra.mxu0 0.0
    %726 = vmatprep.subr.mxu0 0.0
    %727 = vmatpush1.msra.mxu0 0.0
    %728 = vmatprep.subr.mxu0 0.0
    %729 = vmatpush1.msra.mxu0 0.0
    %730 = vmatprep.subr.mxu0 0.0
    %731 = vmatpush1.msra.mxu0 0.0
    %732 = vmatprep.mubr.f32.mxu0 0.0
    %733 = vmatmul.mubr.f32.gmra.mrb[0].mxu0 %v666
    %v734 = vpop.f32.mrb[0].mxu0
    %v735 = vadd.f32 0.0, %v734
    %v736 = vpop.f32.mrb[0].mxu0
    %v737 = vadd.f32 0.0, %v736
    %738 = vdwg.mxu0
    %v739 = vadd.f32 %v663, %v735
    %v740 = vadd.f32 %v664, %v737
    %v741 = vmul.f32 %v739, 0.5
    %v742 = vmul.f32 %v740, 0.5
    %v743 = vtanh.pop %v741
    %v744 = vtanh.pop %v742
    %v745 = vmul.f32 %v743, 0.5
    %v746 = vmul.f32 %v744, 0.5
    %v747 = vadd.f32 %v745, 0.5
    %v748 = vadd.f32 %v746, 0.5
    %v749 = vtanh.pop %v740
    %v750 = vmul.f32 %v747, %v653
    %752 = vrot.lane.b32.xlu0 %v749, 64
    %v753 = vpop.permute.xlu0 %752
    %v755 = vmul.f32 %v747, %v753
    %757 = vrot.lane.b32.xlu0 %v755, 64
    %v758 = vpop.permute.xlu0 %757
    %v760 = vadd.f32 %v750, %v758
    %v761 = vtanh.pop %v760
    %763 = vrot.lane.b32.xlu0 %v761, 64
    %v764 = vpop.permute.xlu0 %763
    %v766 = vmul.f32 %v748, %v764
    %s767 = scalar_lea.vmem [#allocation3], 16
    %768 = vst.msk [vmem:[%s767] sm:$0xff] %vm135, %v766
    %s769 = scalar_lea.vmem [#allocation2], 96
    %v770 = vld [vmem:[%s769] sm:$0xff]
    %v771 = vld [vmem:[%s769 + $0x8] sm:$0xff]
    %v773 = vsel %vm135, %v766, 0
    %775 = vmatprep.subr.mxu0 %v419
    %776 = vmatpush1.msra.mxu0 %v418
    %777 = vmatprep.subr.mxu0 %v421
    %778 = vmatpush1.msra.mxu0 %v420
    %779 = vmatprep.subr.mxu0 %v423
    %780 = vmatpush1.msra.mxu0 %v422
    %781 = vmatprep.subr.mxu0 %v425
    %782 = vmatpush1.msra.mxu0 %v424
    %783 = vmatprep.subr.mxu0 %v427
    %784 = vmatpush1.msra.mxu0 %v426
    %785 = vmatprep.subr.mxu0 %v429
    %786 = vmatpush1.msra.mxu0 %v428
    %787 = vmatprep.subr.mxu0 %v431
    %788 = vmatpush1.msra.mxu0 %v430
    %789 = vmatprep.subr.mxu0 %v433
    %790 = vmatpush1.msra.mxu0 %v432
    %791 = vmatprep.subr.mxu0 0.0
    %792 = vmatpush1.msra.mxu0 0.0
    %793 = vmatprep.subr.mxu0 0.0
    %794 = vmatpush1.msra.mxu0 0.0
    %795 = vmatprep.subr.mxu0 0.0
    %796 = vmatpush1.msra.mxu0 0.0
    %797 = vmatprep.subr.mxu0 0.0
    %798 = vmatpush1.msra.mxu0 0.0
    %799 = vmatprep.subr.mxu0 0.0
    %800 = vmatpush1.msra.mxu0 0.0
    %801 = vmatprep.subr.mxu0 0.0
    %802 = vmatpush1.msra.mxu0 0.0
    %803 = vmatprep.subr.mxu0 0.0
    %804 = vmatpush1.msra.mxu0 0.0
    %805 = vmatprep.subr.mxu0 0.0
    %806 = vmatpush1.msra.mxu0 0.0
    %807 = vmatprep.subr.mxu0 0.0
    %808 = vmatpush1.msra.mxu0 0.0
    %809 = vmatprep.subr.mxu0 0.0
    %810 = vmatpush1.msra.mxu0 0.0
    %811 = vmatprep.subr.mxu0 0.0
    %812 = vmatpush1.msra.mxu0 0.0
    %813 = vmatprep.subr.mxu0 0.0
    %814 = vmatpush1.msra.mxu0 0.0
    %815 = vmatprep.subr.mxu0 0.0
    %816 = vmatpush1.msra.mxu0 0.0
    %817 = vmatprep.subr.mxu0 0.0
    %818 = vmatpush1.msra.mxu0 0.0
    %819 = vmatprep.subr.mxu0 0.0
    %820 = vmatpush1.msra.mxu0 0.0
    %821 = vmatprep.subr.mxu0 0.0
    %822 = vmatpush1.msra.mxu0 0.0
    %823 = vmatprep.subr.mxu0 0.0
    %824 = vmatpush1.msra.mxu0 0.0
    %825 = vmatprep.subr.mxu0 0.0
    %826 = vmatpush1.msra.mxu0 0.0
    %827 = vmatprep.subr.mxu0 0.0
    %828 = vmatpush1.msra.mxu0 0.0
    %829 = vmatprep.subr.mxu0 0.0
    %830 = vmatpush1.msra.mxu0 0.0
    %831 = vmatprep.subr.mxu0 0.0
    %832 = vmatpush1.msra.mxu0 0.0
    %833 = vmatprep.subr.mxu0 0.0
    %834 = vmatpush1.msra.mxu0 0.0
    %835 = vmatprep.subr.mxu0 0.0
    %836 = vmatpush1.msra.mxu0 0.0
    %837 = vmatprep.subr.mxu0 0.0
    %838 = vmatpush1.msra.mxu0 0.0
    %839 = vmatprep.mubr.f32.mxu0 0.0
    %840 = vmatmul.mubr.f32.gmra.mrb[0].mxu0 %v773
    %v841 = vpop.f32.mrb[0].mxu0
    %v842 = vadd.f32 0.0, %v841
    %v843 = vpop.f32.mrb[0].mxu0
    %v844 = vadd.f32 0.0, %v843
    %845 = vdwg.mxu0
    %v846 = vadd.f32 %v770, %v842
    %v847 = vadd.f32 %v771, %v844
    %v848 = vmul.f32 %v846, 0.5
    %v849 = vmul.f32 %v847, 0.5
    %v850 = vtanh.pop %v848
    %v851 = vtanh.pop %v849
    %v852 = vmul.f32 %v850, 0.5
    %v853 = vmul.f32 %v851, 0.5
    %v854 = vadd.f32 %v852, 0.5
    %v855 = vadd.f32 %v853, 0.5
    %v856 = vtanh.pop %v847
    %v857 = vmul.f32 %v854, %v760
    %859 = vrot.lane.b32.xlu0 %v856, 64
    %v860 = vpop.permute.xlu0 %859
    %v862 = vmul.f32 %v854, %v860
    %864 = vrot.lane.b32.xlu0 %v862, 64
    %v865 = vpop.permute.xlu0 %864
    %v867 = vadd.f32 %v857, %v865
    %v868 = vtanh.pop %v867
    %870 = vrot.lane.b32.xlu0 %v868, 64
    %v871 = vpop.permute.xlu0 %870
    %v873 = vmul.f32 %v855, %v871
    %s874 = scalar_lea.vmem [#allocation3], 24
    %875 = vst.msk [vmem:[%s874] sm:$0xff] %vm135, %v873
    %s876 = scalar_lea.vmem [#allocation2], 128
    %v877 = vld [vmem:[%s876] sm:$0xff]
    %v878 = vld [vmem:[%s876 + $0x8] sm:$0xff]
    %v880 = vsel %vm135, %v873, 0
    %882 = vmatprep.subr.mxu0 %v419
    %883 = vmatpush1.msra.mxu0 %v418
    %884 = vmatprep.subr.mxu0 %v421
    %885 = vmatpush1.msra.mxu0 %v420
    %886 = vmatprep.subr.mxu0 %v423
    %887 = vmatpush1.msra.mxu0 %v422
    %888 = vmatprep.subr.mxu0 %v425
    %889 = vmatpush1.msra.mxu0 %v424
    %890 = vmatprep.subr.mxu0 %v427
    %891 = vmatpush1.msra.mxu0 %v426
    %892 = vmatprep.subr.mxu0 %v429
    %893 = vmatpush1.msra.mxu0 %v428
    %894 = vmatprep.subr.mxu0 %v431
    %895 = vmatpush1.msra.mxu0 %v430
    %896 = vmatprep.subr.mxu0 %v433
    %897 = vmatpush1.msra.mxu0 %v432
    %898 = vmatprep.subr.mxu0 0.0
    %899 = vmatpush1.msra.mxu0 0.0
    %900 = vmatprep.subr.mxu0 0.0
    %901 = vmatpush1.msra.mxu0 0.0
    %902 = vmatprep.subr.mxu0 0.0
    %903 = vmatpush1.msra.mxu0 0.0
    %904 = vmatprep.subr.mxu0 0.0
    %905 = vmatpush1.msra.mxu0 0.0
    %906 = vmatprep.subr.mxu0 0.0
    %907 = vmatpush1.msra.mxu0 0.0
    %908 = vmatprep.subr.mxu0 0.0
    %909 = vmatpush1.msra.mxu0 0.0
    %910 = vmatprep.subr.mxu0 0.0
    %911 = vmatpush1.msra.mxu0 0.0
    %912 = vmatprep.subr.mxu0 0.0
    %913 = vmatpush1.msra.mxu0 0.0
    %914 = vmatprep.subr.mxu0 0.0
    %915 = vmatpush1.msra.mxu0 0.0
    %916 = vmatprep.subr.mxu0 0.0
    %917 = vmatpush1.msra.mxu0 0.0
    %918 = vmatprep.subr.mxu0 0.0
    %919 = vmatpush1.msra.mxu0 0.0
    %920 = vmatprep.subr.mxu0 0.0
    %921 = vmatpush1.msra.mxu0 0.0
    %922 = vmatprep.subr.mxu0 0.0
    %923 = vmatpush1.msra.mxu0 0.0
    %924 = vmatprep.subr.mxu0 0.0
    %925 = vmatpush1.msra.mxu0 0.0
    %926 = vmatprep.subr.mxu0 0.0
    %927 = vmatpush1.msra.mxu0 0.0
    %928 = vmatprep.subr.mxu0 0.0
    %929 = vmatpush1.msra.mxu0 0.0
    %930 = vmatprep.subr.mxu0 0.0
    %931 = vmatpush1.msra.mxu0 0.0
    %932 = vmatprep.subr.mxu0 0.0
    %933 = vmatpush1.msra.mxu0 0.0
    %934 = vmatprep.subr.mxu0 0.0
    %935 = vmatpush1.msra.mxu0 0.0
    %936 = vmatprep.subr.mxu0 0.0
    %937 = vmatpush1.msra.mxu0 0.0
    %938 = vmatprep.subr.mxu0 0.0
    %939 = vmatpush1.msra.mxu0 0.0
    %940 = vmatprep.subr.mxu0 0.0
    %941 = vmatpush1.msra.mxu0 0.0
    %942 = vmatprep.subr.mxu0 0.0
    %943 = vmatpush1.msra.mxu0 0.0
    %944 = vmatprep.subr.mxu0 0.0
    %945 = vmatpush1.msra.mxu0 0.0
    %946 = vmatprep.mubr.f32.mxu0 0.0
    %947 = vmatmul.mubr.f32.gmra.mrb[0].mxu0 %v880
    %v948 = vpop.f32.mrb[0].mxu0
    %v949 = vadd.f32 0.0, %v948
    %v950 = vpop.f32.mrb[0].mxu0
    %v951 = vadd.f32 0.0, %v950
    %952 = vdwg.mxu0
    %v953 = vadd.f32 %v877, %v949
    %v954 = vadd.f32 %v878, %v951
    %v955 = vmul.f32 %v953, 0.5
    %v956 = vmul.f32 %v954, 0.5
    %v957 = vtanh.pop %v955
    %v958 = vtanh.pop %v956
    %v959 = vmul.f32 %v957, 0.5
    %v960 = vmul.f32 %v958, 0.5
    %v961 = vadd.f32 %v959, 0.5
    %v962 = vadd.f32 %v960, 0.5
    %v963 = vtanh.pop %v954
    %v964 = vmul.f32 %v961, %v867
    %966 = vrot.lane.b32.xlu0 %v963, 64
    %v967 = vpop.permute.xlu0 %966
    %v969 = vmul.f32 %v961, %v967
    %971 = vrot.lane.b32.xlu0 %v969, 64
    %v972 = vpop.permute.xlu0 %971
    %v974 = vadd.f32 %v964, %v972
    %v975 = vtanh.pop %v974
    %977 = vrot.lane.b32.xlu0 %v975, 64
    %v978 = vpop.permute.xlu0 %977
    %v980 = vmul.f32 %v962, %v978
    %s981 = scalar_lea.vmem [#allocation3], 32
    %982 = vst.msk [vmem:[%s981] sm:$0xff] %vm135, %v980
    %s983 = scalar_lea.vmem [#allocation2], 160
    %v984 = vld [vmem:[%s983] sm:$0xff]
    %v985 = vld [vmem:[%s983 + $0x8] sm:$0xff]
    %v987 = vsel %vm135, %v980, 0
    %989 = vmatprep.subr.mxu0 %v419
    %990 = vmatpush1.msra.mxu0 %v418
    %991 = vmatprep.subr.mxu0 %v421
    %992 = vmatpush1.msra.mxu0 %v420
    %993 = vmatprep.subr.mxu0 %v423
    %994 = vmatpush1.msra.mxu0 %v422
    %995 = vmatprep.subr.mxu0 %v425
    %996 = vmatpush1.msra.mxu0 %v424
    %997 = vmatprep.subr.mxu0 %v427
    %998 = vmatpush1.msra.mxu0 %v426
    %999 = vmatprep.subr.mxu0 %v429
    %1000 = vmatpush1.msra.mxu0 %v428
    %1001 = vmatprep.subr.mxu0 %v431
    %1002 = vmatpush1.msra.mxu0 %v430
    %1003 = vmatprep.subr.mxu0 %v433
    %1004 = vmatpush1.msra.mxu0 %v432
    %1005 = vmatprep.subr.mxu0 0.0
    %1006 = vmatpush1.msra.mxu0 0.0
    %1007 = vmatprep.subr.mxu0 0.0
    %1008 = vmatpush1.msra.mxu0 0.0
    %1009 = vmatprep.subr.mxu0 0.0
    %1010 = vmatpush1.msra.mxu0 0.0
    %1011 = vmatprep.subr.mxu0 0.0
    %1012 = vmatpush1.msra.mxu0 0.0
    %1013 = vmatprep.subr.mxu0 0.0
    %1014 = vmatpush1.msra.mxu0 0.0
    %1015 = vmatprep.subr.mxu0 0.0
    %1016 = vmatpush1.msra.mxu0 0.0
    %1017 = vmatprep.subr.mxu0 0.0
    %1018 = vmatpush1.msra.mxu0 0.0
    %1019 = vmatprep.subr.mxu0 0.0
    %1020 = vmatpush1.msra.mxu0 0.0
    %1021 = vmatprep.subr.mxu0 0.0
    %1022 = vmatpush1.msra.mxu0 0.0
    %1023 = vmatprep.subr.mxu0 0.0
    %1024 = vmatpush1.msra.mxu0 0.0
    %1025 = vmatprep.subr.mxu0 0.0
    %1026 = vmatpush1.msra.mxu0 0.0
    %1027 = vmatprep.subr.mxu0 0.0
    %1028 = vmatpush1.msra.mxu0 0.0
    %1029 = vmatprep.subr.mxu0 0.0
    %1030 = vmatpush1.msra.mxu0 0.0
    %1031 = vmatprep.subr.mxu0 0.0
    %1032 = vmatpush1.msra.mxu0 0.0
    %1033 = vmatprep.subr.mxu0 0.0
    %1034 = vmatpush1.msra.mxu0 0.0
    %1035 = vmatprep.subr.mxu0 0.0
    %1036 = vmatpush1.msra.mxu0 0.0
    %1037 = vmatprep.subr.mxu0 0.0
    %1038 = vmatpush1.msra.mxu0 0.0
    %1039 = vmatprep.subr.mxu0 0.0
    %1040 = vmatpush1.msra.mxu0 0.0
    %1041 = vmatprep.subr.mxu0 0.0
    %1042 = vmatpush1.msra.mxu0 0.0
    %1043 = vmatprep.subr.mxu0 0.0
    %1044 = vmatpush1.msra.mxu0 0.0
    %1045 = vmatprep.subr.mxu0 0.0
    %1046 = vmatpush1.msra.mxu0 0.0
    %1047 = vmatprep.subr.mxu0 0.0
    %1048 = vmatpush1.msra.mxu0 0.0
    %1049 = vmatprep.subr.mxu0 0.0
    %1050 = vmatpush1.msra.mxu0 0.0
    %1051 = vmatprep.subr.mxu0 0.0
    %1052 = vmatpush1.msra.mxu0 0.0
    %1053 = vmatprep.mubr.f32.mxu0 0.0
    %1054 = vmatmul.mubr.f32.gmra.mrb[0].mxu0 %v987
    %v1055 = vpop.f32.mrb[0].mxu0
    %v1056 = vadd.f32 0.0, %v1055
    %v1057 = vpop.f32.mrb[0].mxu0
    %v1058 = vadd.f32 0.0, %v1057
    %1059 = vdwg.mxu0
    %v1060 = vadd.f32 %v984, %v1056
    %v1061 = vadd.f32 %v985, %v1058
    %v1062 = vmul.f32 %v1060, 0.5
    %v1063 = vmul.f32 %v1061, 0.5
    %v1064 = vtanh.pop %v1062
    %v1065 = vtanh.pop %v1063
    %v1066 = vmul.f32 %v1064, 0.5
    %v1067 = vmul.f32 %v1065, 0.5
    %v1068 = vadd.f32 %v1066, 0.5
    %v1069 = vadd.f32 %v1067, 0.5
    %v1070 = vtanh.pop %v1061
    %v1071 = vmul.f32 %v1068, %v974
    %1073 = vrot.lane.b32.xlu0 %v1070, 64
    %v1074 = vpop.permute.xlu0 %1073
    %v1076 = vmul.f32 %v1068, %v1074
    %1078 = vrot.lane.b32.xlu0 %v1076, 64
    %v1079 = vpop.permute.xlu0 %1078
    %v1081 = vadd.f32 %v1071, %v1079
    %v1082 = vtanh.pop %v1081
    %1084 = vrot.lane.b32.xlu0 %v1082, 64
    %v1085 = vpop.permute.xlu0 %1084
    %v1087 = vmul.f32 %v1069, %v1085
    %s1088 = scalar_lea.vmem [#allocation3], 40
    %1089 = vst.msk [vmem:[%s1088] sm:$0xff] %vm135, %v1087
    %s1090 = scalar_lea.vmem [#allocation2], 192
    %v1091 = vld [vmem:[%s1090] sm:$0xff]
    %v1092 = vld [vmem:[%s1090 + $0x8] sm:$0xff]
    %v1094 = vsel %vm135, %v1087, 0
    %1096 = vmatprep.subr.mxu0 %v419
    %1097 = vmatpush1.msra.mxu0 %v418
    %1098 = vmatprep.subr.mxu0 %v421
    %1099 = vmatpush1.msra.mxu0 %v420
    %1100 = vmatprep.subr.mxu0 %v423
    %1101 = vmatpush1.msra.mxu0 %v422
    %1102 = vmatprep.subr.mxu0 %v425
    %1103 = vmatpush1.msra.mxu0 %v424
    %1104 = vmatprep.subr.mxu0 %v427
    %1105 = vmatpush1.msra.mxu0 %v426
    %1106 = vmatprep.subr.mxu0 %v429
    %1107 = vmatpush1.msra.mxu0 %v428
    %1108 = vmatprep.subr.mxu0 %v431
    %1109 = vmatpush1.msra.mxu0 %v430
    %1110 = vmatprep.subr.mxu0 %v433
    %1111 = vmatpush1.msra.mxu0 %v432
    %1112 = vmatprep.subr.mxu0 0.0
    %1113 = vmatpush1.msra.mxu0 0.0
    %1114 = vmatprep.subr.mxu0 0.0
    %1115 = vmatpush1.msra.mxu0 0.0
    %1116 = vmatprep.subr.mxu0 0.0
    %1117 = vmatpush1.msra.mxu0 0.0
    %1118 = vmatprep.subr.mxu0 0.0
    %1119 = vmatpush1.msra.mxu0 0.0
    %1120 = vmatprep.subr.mxu0 0.0
    %1121 = vmatpush1.msra.mxu0 0.0
    %1122 = vmatprep.subr.mxu0 0.0
    %1123 = vmatpush1.msra.mxu0 0.0
    %1124 = vmatprep.subr.mxu0 0.0
    %1125 = vmatpush1.msra.mxu0 0.0
    %1126 = vmatprep.subr.mxu0 0.0
    %1127 = vmatpush1.msra.mxu0 0.0
    %1128 = vmatprep.subr.mxu0 0.0
    %1129 = vmatpush1.msra.mxu0 0.0
    %1130 = vmatprep.subr.mxu0 0.0
    %1131 = vmatpush1.msra.mxu0 0.0
    %1132 = vmatprep.subr.mxu0 0.0
    %1133 = vmatpush1.msra.mxu0 0.0
    %1134 = vmatprep.subr.mxu0 0.0
    %1135 = vmatpush1.msra.mxu0 0.0
    %1136 = vmatprep.subr.mxu0 0.0
    %1137 = vmatpush1.msra.mxu0 0.0
    %1138 = vmatprep.subr.mxu0 0.0
    %1139 = vmatpush1.msra.mxu0 0.0
    %1140 = vmatprep.subr.mxu0 0.0
    %1141 = vmatpush1.msra.mxu0 0.0
    %1142 = vmatprep.subr.mxu0 0.0
    %1143 = vmatpush1.msra.mxu0 0.0
    %1144 = vmatprep.subr.mxu0 0.0
    %1145 = vmatpush1.msra.mxu0 0.0
    %1146 = vmatprep.subr.mxu0 0.0
    %1147 = vmatpush1.msra.mxu0 0.0
    %1148 = vmatprep.subr.mxu0 0.0
    %1149 = vmatpush1.msra.mxu0 0.0
    %1150 = vmatprep.subr.mxu0 0.0
    %1151 = vmatpush1.msra.mxu0 0.0
    %1152 = vmatprep.subr.mxu0 0.0
    %1153 = vmatpush1.msra.mxu0 0.0
    %1154 = vmatprep.subr.mxu0 0.0
    %1155 = vmatpush1.msra.mxu0 0.0
    %1156 = vmatprep.subr.mxu0 0.0
    %1157 = vmatpush1.msra.mxu0 0.0
    %1158 = vmatprep.subr.mxu0 0.0
    %1159 = vmatpush1.msra.mxu0 0.0
    %1160 = vmatprep.mubr.f32.mxu0 0.0
    %1161 = vmatmul.mubr.f32.gmra.mrb[0].mxu0 %v1094
    %v1162 = vpop.f32.mrb[0].mxu0
    %v1163 = vadd.f32 0.0, %v1162
    %v1164 = vpop.f32.mrb[0].mxu0
    %v1165 = vadd.f32 0.0, %v1164
    %1166 = vdwg.mxu0
    %v1167 = vadd.f32 %v1091, %v1163
    %v1168 = vadd.f32 %v1092, %v1165
    %v1169 = vmul.f32 %v1167, 0.5
    %v1170 = vmul.f32 %v1168, 0.5
    %v1171 = vtanh.pop %v1169
    %v1172 = vtanh.pop %v1170
    %v1173 = vmul.f32 %v1171, 0.5
    %v1174 = vmul.f32 %v1172, 0.5
    %v1175 = vadd.f32 %v1173, 0.5
    %v1176 = vadd.f32 %v1174, 0.5
    %v1177 = vtanh.pop %v1168
    %v1178 = vmul.f32 %v1175, %v1081
    %1180 = vrot.lane.b32.xlu0 %v1177, 64
    %v1181 = vpop.permute.xlu0 %1180
    %v1183 = vmul.f32 %v1175, %v1181
    %1185 = vrot.lane.b32.xlu0 %v1183, 64
    %v1186 = vpop.permute.xlu0 %1185
    %v1188 = vadd.f32 %v1178, %v1186
    %v1189 = vtanh.pop %v1188
    %1191 = vrot.lane.b32.xlu0 %v1189, 64
    %v1192 = vpop.permute.xlu0 %1191
    %v1194 = vmul.f32 %v1176, %v1192
    %s1195 = scalar_lea.vmem [#allocation3], 48
    %1196 = vst.msk [vmem:[%s1195] sm:$0xff] %vm135, %v1194
    %s1197 = scalar_lea.vmem [#allocation2], 224
    %v1198 = vld [vmem:[%s1197] sm:$0xff]
    %v1199 = vld [vmem:[%s1197 + $0x8] sm:$0xff]
    %v1201 = vsel %vm135, %v1194, 0
    %1203 = vmatprep.subr.mxu0 %v419
    %1204 = vmatpush1.msra.mxu0 %v418
    %1205 = vmatprep.subr.mxu0 %v421
    %1206 = vmatpush1.msra.mxu0 %v420
    %1207 = vmatprep.subr.mxu0 %v423
    %1208 = vmatpush1.msra.mxu0 %v422
    %1209 = vmatprep.subr.mxu0 %v425
    %1210 = vmatpush1.msra.mxu0 %v424
    %1211 = vmatprep.subr.mxu0 %v427
    %1212 = vmatpush1.msra.mxu0 %v426
    %1213 = vmatprep.subr.mxu0 %v429
    %1214 = vmatpush1.msra.mxu0 %v428
    %1215 = vmatprep.subr.mxu0 %v431
    %1216 = vmatpush1.msra.mxu0 %v430
    %1217 = vmatprep.subr.mxu0 %v433
    %1218 = vmatpush1.msra.mxu0 %v432
    %1219 = vmatprep.subr.mxu0 0.0
    %1220 = vmatpush1.msra.mxu0 0.0
    %1221 = vmatprep.subr.mxu0 0.0
    %1222 = vmatpush1.msra.mxu0 0.0
    %1223 = vmatprep.subr.mxu0 0.0
    %1224 = vmatpush1.msra.mxu0 0.0
    %1225 = vmatprep.subr.mxu0 0.0
    %1226 = vmatpush1.msra.mxu0 0.0
    %1227 = vmatprep.subr.mxu0 0.0
    %1228 = vmatpush1.msra.mxu0 0.0
    %1229 = vmatprep.subr.mxu0 0.0
    %1230 = vmatpush1.msra.mxu0 0.0
    %1231 = vmatprep.subr.mxu0 0.0
    %1232 = vmatpush1.msra.mxu0 0.0
    %1233 = vmatprep.subr.mxu0 0.0
    %1234 = vmatpush1.msra.mxu0 0.0
    %1235 = vmatprep.subr.mxu0 0.0
    %1236 = vmatpush1.msra.mxu0 0.0
    %1237 = vmatprep.subr.mxu0 0.0
    %1238 = vmatpush1.msra.mxu0 0.0
    %1239 = vmatprep.subr.mxu0 0.0
    %1240 = vmatpush1.msra.mxu0 0.0
    %1241 = vmatprep.subr.mxu0 0.0
    %1242 = vmatpush1.msra.mxu0 0.0
    %1243 = vmatprep.subr.mxu0 0.0
    %1244 = vmatpush1.msra.mxu0 0.0
    %1245 = vmatprep.subr.mxu0 0.0
    %1246 = vmatpush1.msra.mxu0 0.0
    %1247 = vmatprep.subr.mxu0 0.0
    %1248 = vmatpush1.msra.mxu0 0.0
    %1249 = vmatprep.subr.mxu0 0.0
    %1250 = vmatpush1.msra.mxu0 0.0
    %1251 = vmatprep.subr.mxu0 0.0
    %1252 = vmatpush1.msra.mxu0 0.0
    %1253 = vmatprep.subr.mxu0 0.0
    %1254 = vmatpush1.msra.mxu0 0.0
    %1255 = vmatprep.subr.mxu0 0.0
    %1256 = vmatpush1.msra.mxu0 0.0
    %1257 = vmatprep.subr.mxu0 0.0
    %1258 = vmatpush1.msra.mxu0 0.0
    %1259 = vmatprep.subr.mxu0 0.0
    %1260 = vmatpush1.msra.mxu0 0.0
    %1261 = vmatprep.subr.mxu0 0.0
    %1262 = vmatpush1.msra.mxu0 0.0
    %1263 = vmatprep.subr.mxu0 0.0
    %1264 = vmatpush1.msra.mxu0 0.0
    %1265 = vmatprep.subr.mxu0 0.0
    %1266 = vmatpush1.msra.mxu0 0.0
    %1267 = vmatprep.mubr.f32.mxu0 0.0
    %1268 = vmatmul.mubr.f32.gmra.mrb[0].mxu0 %v1201
    %v1269 = vpop.f32.mrb[0].mxu0
    %v1270 = vadd.f32 0.0, %v1269
    %v1271 = vpop.f32.mrb[0].mxu0
    %v1272 = vadd.f32 0.0, %v1271
    %1273 = vdwg.mxu0
    %v1274 = vadd.f32 %v1198, %v1270
    %v1275 = vadd.f32 %v1199, %v1272
    %v1276 = vmul.f32 %v1274, 0.5
    %v1277 = vmul.f32 %v1275, 0.5
    %v1278 = vtanh.pop %v1276
    %v1279 = vtanh.pop %v1277
    %v1280 = vmul.f32 %v1278, 0.5
    %v1281 = vmul.f32 %v1279, 0.5
    %v1282 = vadd.f32 %v1280, 0.5
    %v1283 = vadd.f32 %v1281, 0.5
    %v1284 = vtanh.pop %v1275
    %v1285 = vmul.f32 %v1282, %v1188
    %1287 = vrot.lane.b32.xlu0 %v1284, 64
    %v1288 = vpop.permute.xlu0 %1287
    %v1290 = vmul.f32 %v1282, %v1288
    %1292 = vrot.lane.b32.xlu0 %v1290, 64
    %v1293 = vpop.permute.xlu0 %1292
    %v1295 = vadd.f32 %v1285, %v1293
    %v1296 = vtanh.pop %v1295
    %1298 = vrot.lane.b32.xlu0 %v1296, 64
    %v1299 = vpop.permute.xlu0 %1298
    %v1301 = vmul.f32 %v1283, %v1299
    %s1302 = scalar_lea.vmem [#allocation3], 56
    %1303 = vst.msk [vmem:[%s1302] sm:$0xff] %vm135, %v1301
    %v1304 = vld [vmem:[%s1197 + $0x10] sm:$0xff]
    %v1305 = vld [vmem:[%s1197 + $0x18] sm:$0xff]
    %1306 = vmatprep.subr.mxu0 %v435
    %1307 = vmatpush1.msra.mxu0 %v434
    %1308 = vmatprep.subr.mxu0 %v437
    %1309 = vmatpush1.msra.mxu0 %v436
    %1310 = vmatprep.subr.mxu0 %v439
    %1311 = vmatpush1.msra.mxu0 %v438
    %1312 = vmatprep.subr.mxu0 %v441
    %1313 = vmatpush1.msra.mxu0 %v440
    %1314 = vmatprep.subr.mxu0 %v443
    %1315 = vmatpush1.msra.mxu0 %v442
    %1316 = vmatprep.subr.mxu0 %v445
    %1317 = vmatpush1.msra.mxu0 %v444
    %1318 = vmatprep.subr.mxu0 %v447
    %1319 = vmatpush1.msra.mxu0 %v446
    %1320 = vmatprep.subr.mxu0 %v449
    %1321 = vmatpush1.msra.mxu0 %v448
    %1322 = vmatprep.subr.mxu0 0.0
    %1323 = vmatpush1.msra.mxu0 0.0
    %1324 = vmatprep.subr.mxu0 0.0
    %1325 = vmatpush1.msra.mxu0 0.0
    %1326 = vmatprep.subr.mxu0 0.0
    %1327 = vmatpush1.msra.mxu0 0.0
    %1328 = vmatprep.subr.mxu0 0.0
    %1329 = vmatpush1.msra.mxu0 0.0
    %1330 = vmatprep.subr.mxu0 0.0
    %1331 = vmatpush1.msra.mxu0 0.0
    %1332 = vmatprep.subr.mxu0 0.0
    %1333 = vmatpush1.msra.mxu0 0.0
    %1334 = vmatprep.subr.mxu0 0.0
    %1335 = vmatpush1.msra.mxu0 0.0
    %1336 = vmatprep.subr.mxu0 0.0
    %1337 = vmatpush1.msra.mxu0 0.0
    %1338 = vmatprep.subr.mxu0 0.0
    %1339 = vmatpush1.msra.mxu0 0.0
    %1340 = vmatprep.subr.mxu0 0.0
    %1341 = vmatpush1.msra.mxu0 0.0
    %1342 = vmatprep.subr.mxu0 0.0
    %1343 = vmatpush1.msra.mxu0 0.0
    %1344 = vmatprep.subr.mxu0 0.0
    %1345 = vmatpush1.msra.mxu0 0.0
    %1346 = vmatprep.subr.mxu0 0.0
    %1347 = vmatpush1.msra.mxu0 0.0
    %1348 = vmatprep.subr.mxu0 0.0
    %1349 = vmatpush1.msra.mxu0 0.0
    %1350 = vmatprep.subr.mxu0 0.0
    %1351 = vmatpush1.msra.mxu0 0.0
    %1352 = vmatprep.subr.mxu0 0.0
    %1353 = vmatpush1.msra.mxu0 0.0
    %1354 = vmatprep.subr.mxu0 0.0
    %1355 = vmatpush1.msra.mxu0 0.0
    %1356 = vmatprep.subr.mxu0 0.0
    %1357 = vmatpush1.msra.mxu0 0.0
    %1358 = vmatprep.subr.mxu0 0.0
    %1359 = vmatpush1.msra.mxu0 0.0
    %1360 = vmatprep.subr.mxu0 0.0
    %1361 = vmatpush1.msra.mxu0 0.0
    %1362 = vmatprep.subr.mxu0 0.0
    %1363 = vmatpush1.msra.mxu0 0.0
    %1364 = vmatprep.subr.mxu0 0.0
    %1365 = vmatpush1.msra.mxu0 0.0
    %1366 = vmatprep.subr.mxu0 0.0
    %1367 = vmatpush1.msra.mxu0 0.0
    %1368 = vmatprep.subr.mxu0 0.0
    %1369 = vmatpush1.msra.mxu0 0.0
    %1370 = vmatprep.mubr.f32.mxu0 0.0
    %1371 = vmatmul.mubr.f32.gmra.mrb[0].mxu0 %v453
    %v1372 = vpop.f32.mrb[0].mxu0
    %v1373 = vadd.f32 0.0, %v1372
    %v1374 = vpop.f32.mrb[0].mxu0
    %v1375 = vadd.f32 0.0, %v1374
    %1376 = vdwg.mxu0
    %v1377 = vadd.f32 %v1304, %v1373
    %v1378 = vadd.f32 %v1305, %v1375
    %v1379 = vmul.f32 %v1377, 0.5
    %v1380 = vmul.f32 %v1378, 0.5
    %v1381 = vtanh.pop %v1379
    %v1382 = vtanh.pop %v1380
    %v1383 = vmul.f32 %v1381, 0.5
    %v1384 = vmul.f32 %v1382, 0.5
    %v1385 = vadd.f32 %v1383, 0.5
    %v1386 = vadd.f32 %v1384, 0.5
    %v1387 = vtanh.pop %v1378
    %v1388 = vmul.f32 %v1385, 0.0
    %1390 = vrot.lane.b32.xlu0 %v1387, 64
    %v1391 = vpop.permute.xlu0 %1390
    %v1393 = vmul.f32 %v1385, %v1391
    %1395 = vrot.lane.b32.xlu0 %v1393, 64
    %v1396 = vpop.permute.xlu0 %1395
    %v1398 = vadd.f32 %v1388, %v1396
    %v1399 = vtanh.pop %v1398
    %1401 = vrot.lane.b32.xlu0 %v1399, 64
    %v1402 = vpop.permute.xlu0 %1401
    %v1404 = vmul.f32 %v1386, %v1402
    %v1405 = vld [vmem:[%s1302] sm:$0xff]
    %1407 = vrot.lane.b32.xlu0 %v1404, 64
    %v1408 = vpop.permute.xlu0 %1407
    %v1410 = vsel %vm135, %v1405, %v1408
    %s1411 = scalar_lea.vmem %s5, 56
    %1412 = vst [vmem:[%s1411] sm:$0xff] %v1410
    %v1413 = vld [vmem:[%s1090 + $0x10] sm:$0xff]
    %v1414 = vld [vmem:[%s1090 + $0x18] sm:$0xff]
    %v1415 = vsel %vm135, %v1404, 0
    %1417 = vmatprep.subr.mxu0 %v435
    %1418 = vmatpush1.msra.mxu0 %v434
    %1419 = vmatprep.subr.mxu0 %v437
    %1420 = vmatpush1.msra.mxu0 %v436
    %1421 = vmatprep.subr.mxu0 %v439
    %1422 = vmatpush1.msra.mxu0 %v438
    %1423 = vmatprep.subr.mxu0 %v441
    %1424 = vmatpush1.msra.mxu0 %v440
    %1425 = vmatprep.subr.mxu0 %v443
    %1426 = vmatpush1.msra.mxu0 %v442
    %1427 = vmatprep.subr.mxu0 %v445
    %1428 = vmatpush1.msra.mxu0 %v444
    %1429 = vmatprep.subr.mxu0 %v447
    %1430 = vmatpush1.msra.mxu0 %v446
    %1431 = vmatprep.subr.mxu0 %v449
    %1432 = vmatpush1.msra.mxu0 %v448
    %1433 = vmatprep.subr.mxu0 0.0
    %1434 = vmatpush1.msra.mxu0 0.0
    %1435 = vmatprep.subr.mxu0 0.0
    %1436 = vmatpush1.msra.mxu0 0.0
    %1437 = vmatprep.subr.mxu0 0.0
    %1438 = vmatpush1.msra.mxu0 0.0
    %1439 = vmatprep.subr.mxu0 0.0
    %1440 = vmatpush1.msra.mxu0 0.0
    %1441 = vmatprep.subr.mxu0 0.0
    %1442 = vmatpush1.msra.mxu0 0.0
    %1443 = vmatprep.subr.mxu0 0.0
    %1444 = vmatpush1.msra.mxu0 0.0
    %1445 = vmatprep.subr.mxu0 0.0
    %1446 = vmatpush1.msra.mxu0 0.0
    %1447 = vmatprep.subr.mxu0 0.0
    %1448 = vmatpush1.msra.mxu0 0.0
    %1449 = vmatprep.subr.mxu0 0.0
    %1450 = vmatpush1.msra.mxu0 0.0
    %1451 = vmatprep.subr.mxu0 0.0
    %1452 = vmatpush1.msra.mxu0 0.0
    %1453 = vmatprep.subr.mxu0 0.0
    %1454 = vmatpush1.msra.mxu0 0.0
    %1455 = vmatprep.subr.mxu0 0.0
    %1456 = vmatpush1.msra.mxu0 0.0
    %1457 = vmatprep.subr.mxu0 0.0
    %1458 = vmatpush1.msra.mxu0 0.0
    %1459 = vmatprep.subr.mxu0 0.0
    %1460 = vmatpush1.msra.mxu0 0.0
    %1461 = vmatprep.subr.mxu0 0.0
    %1462 = vmatpush1.msra.mxu0 0.0
    %1463 = vmatprep.subr.mxu0 0.0
    %1464 = vmatpush1.msra.mxu0 0.0
    %1465 = vmatprep.subr.mxu0 0.0
    %1466 = vmatpush1.msra.mxu0 0.0
    %1467 = vmatprep.subr.mxu0 0.0
    %1468 = vmatpush1.msra.mxu0 0.0
    %1469 = vmatprep.subr.mxu0 0.0
    %1470 = vmatpush1.msra.mxu0 0.0
    %1471 = vmatprep.subr.mxu0 0.0
    %1472 = vmatpush1.msra.mxu0 0.0
    %1473 = vmatprep.subr.mxu0 0.0
    %1474 = vmatpush1.msra.mxu0 0.0
    %1475 = vmatprep.subr.mxu0 0.0
    %1476 = vmatpush1.msra.mxu0 0.0
    %1477 = vmatprep.subr.mxu0 0.0
    %1478 = vmatpush1.msra.mxu0 0.0
    %1479 = vmatprep.subr.mxu0 0.0
    %1480 = vmatpush1.msra.mxu0 0.0
    %1481 = vmatprep.mubr.f32.mxu0 0.0
    %1482 = vmatmul.mubr.f32.gmra.mrb[0].mxu0 %v1415
    %v1483 = vpop.f32.mrb[0].mxu0
    %v1484 = vadd.f32 0.0, %v1483
    %v1485 = vpop.f32.mrb[0].mxu0
    %v1486 = vadd.f32 0.0, %v1485
    %1487 = vdwg.mxu0
    %v1488 = vadd.f32 %v1413, %v1484
    %v1489 = vadd.f32 %v1414, %v1486
    %v1490 = vmul.f32 %v1488, 0.5
    %v1491 = vmul.f32 %v1489, 0.5
    %v1492 = vtanh.pop %v1490
    %v1493 = vtanh.pop %v1491
    %v1494 = vmul.f32 %v1492, 0.5
    %v1495 = vmul.f32 %v1493, 0.5
    %v1496 = vadd.f32 %v1494, 0.5
    %v1497 = vadd.f32 %v1495, 0.5
    %v1498 = vtanh.pop %v1489
    %v1499 = vmul.f32 %v1496, %v1398
    %1501 = vrot.lane.b32.xlu0 %v1498, 64
    %v1502 = vpop.permute.xlu0 %1501
    %v1504 = vmul.f32 %v1496, %v1502
    %1506 = vrot.lane.b32.xlu0 %v1504, 64
    %v1507 = vpop.permute.xlu0 %1506
    %v1509 = vadd.f32 %v1499, %v1507
    %v1510 = vtanh.pop %v1509
    %1512 = vrot.lane.b32.xlu0 %v1510, 64
    %v1513 = vpop.permute.xlu0 %1512
    %v1515 = vmul.f32 %v1497, %v1513
    %v1516 = vld [vmem:[%s1195] sm:$0xff]
    %1518 = vrot.lane.b32.xlu0 %v1515, 64
    %v1519 = vpop.permute.xlu0 %1518
    %v1521 = vsel %vm135, %v1516, %v1519
    %s1522 = scalar_lea.vmem %s5, 48
    %1523 = vst [vmem:[%s1522] sm:$0xff] %v1521
    %v1524 = vld [vmem:[%s983 + $0x10] sm:$0xff]
    %v1525 = vld [vmem:[%s983 + $0x18] sm:$0xff]
    %v1526 = vsel %vm135, %v1515, 0
    %1528 = vmatprep.subr.mxu0 %v435
    %1529 = vmatpush1.msra.mxu0 %v434
    %1530 = vmatprep.subr.mxu0 %v437
    %1531 = vmatpush1.msra.mxu0 %v436
    %1532 = vmatprep.subr.mxu0 %v439
    %1533 = vmatpush1.msra.mxu0 %v438
    %1534 = vmatprep.subr.mxu0 %v441
    %1535 = vmatpush1.msra.mxu0 %v440
    %1536 = vmatprep.subr.mxu0 %v443
    %1537 = vmatpush1.msra.mxu0 %v442
    %1538 = vmatprep.subr.mxu0 %v445
    %1539 = vmatpush1.msra.mxu0 %v444
    %1540 = vmatprep.subr.mxu0 %v447
    %1541 = vmatpush1.msra.mxu0 %v446
    %1542 = vmatprep.subr.mxu0 %v449
    %1543 = vmatpush1.msra.mxu0 %v448
    %1544 = vmatprep.subr.mxu0 0.0
    %1545 = vmatpush1.msra.mxu0 0.0
    %1546 = vmatprep.subr.mxu0 0.0
    %1547 = vmatpush1.msra.mxu0 0.0
    %1548 = vmatprep.subr.mxu0 0.0
    %1549 = vmatpush1.msra.mxu0 0.0
    %1550 = vmatprep.subr.mxu0 0.0
    %1551 = vmatpush1.msra.mxu0 0.0
    %1552 = vmatprep.subr.mxu0 0.0
    %1553 = vmatpush1.msra.mxu0 0.0
    %1554 = vmatprep.subr.mxu0 0.0
    %1555 = vmatpush1.msra.mxu0 0.0
    %1556 = vmatprep.subr.mxu0 0.0
    %1557 = vmatpush1.msra.mxu0 0.0
    %1558 = vmatprep.subr.mxu0 0.0
    %1559 = vmatpush1.msra.mxu0 0.0
    %1560 = vmatprep.subr.mxu0 0.0
    %1561 = vmatpush1.msra.mxu0 0.0
    %1562 = vmatprep.subr.mxu0 0.0
    %1563 = vmatpush1.msra.mxu0 0.0
    %1564 = vmatprep.subr.mxu0 0.0
    %1565 = vmatpush1.msra.mxu0 0.0
    %1566 = vmatprep.subr.mxu0 0.0
    %1567 = vmatpush1.msra.mxu0 0.0
    %1568 = vmatprep.subr.mxu0 0.0
    %1569 = vmatpush1.msra.mxu0 0.0
    %1570 = vmatprep.subr.mxu0 0.0
    %1571 = vmatpush1.msra.mxu0 0.0
    %1572 = vmatprep.subr.mxu0 0.0
    %1573 = vmatpush1.msra.mxu0 0.0
    %1574 = vmatprep.subr.mxu0 0.0
    %1575 = vmatpush1.msra.mxu0 0.0
    %1576 = vmatprep.subr.mxu0 0.0
    %1577 = vmatpush1.msra.mxu0 0.0
    %1578 = vmatprep.subr.mxu0 0.0
    %1579 = vmatpush1.msra.mxu0 0.0
    %1580 = vmatprep.subr.mxu0 0.0
    %1581 = vmatpush1.msra.mxu0 0.0
    %1582 = vmatprep.subr.mxu0 0.0
    %1583 = vmatpush1.msra.mxu0 0.0
    %1584 = vmatprep.subr.mxu0 0.0
    %1585 = vmatpush1.msra.mxu0 0.0
    %1586 = vmatprep.subr.mxu0 0.0
    %1587 = vmatpush1.msra.mxu0 0.0
    %1588 = vmatprep.subr.mxu0 0.0
    %1589 = vmatpush1.msra.mxu0 0.0
    %1590 = vmatprep.subr.mxu0 0.0
    %1591 = vmatpush1.msra.mxu0 0.0
    %1592 = vmatprep.mubr.f32.mxu0 0.0
    %1593 = vmatmul.mubr.f32.gmra.mrb[0].mxu0 %v1526
    %v1594 = vpop.f32.mrb[0].mxu0
    %v1595 = vadd.f32 0.0, %v1594
    %v1596 = vpop.f32.mrb[0].mxu0
    %v1597 = vadd.f32 0.0, %v1596
    %1598 = vdwg.mxu0
    %v1599 = vadd.f32 %v1524, %v1595
    %v1600 = vadd.f32 %v1525, %v1597
    %v1601 = vmul.f32 %v1599, 0.5
    %v1602 = vmul.f32 %v1600, 0.5
    %v1603 = vtanh.pop %v1601
    %v1604 = vtanh.pop %v1602
    %v1605 = vmul.f32 %v1603, 0.5
    %v1606 = vmul.f32 %v1604, 0.5
    %v1607 = vadd.f32 %v1605, 0.5
    %v1608 = vadd.f32 %v1606, 0.5
    %v1609 = vtanh.pop %v1600
    %v1610 = vmul.f32 %v1607, %v1509
    %1612 = vrot.lane.b32.xlu0 %v1609, 64
    %v1613 = vpop.permute.xlu0 %1612
    %v1615 = vmul.f32 %v1607, %v1613
    %1617 = vrot.lane.b32.xlu0 %v1615, 64
    %v1618 = vpop.permute.xlu0 %1617
    %v1620 = vadd.f32 %v1610, %v1618
    %v1621 = vtanh.pop %v1620
    %1623 = vrot.lane.b32.xlu0 %v1621, 64
    %v1624 = vpop.permute.xlu0 %1623
    %v1626 = vmul.f32 %v1608, %v1624
    %v1627 = vld [vmem:[%s1088] sm:$0xff]
    %1629 = vrot.lane.b32.xlu0 %v1626, 64
    %v1630 = vpop.permute.xlu0 %1629
    %v1632 = vsel %vm135, %v1627, %v1630
    %s1633 = scalar_lea.vmem %s5, 40
    %1634 = vst [vmem:[%s1633] sm:$0xff] %v1632
    %v1635 = vld [vmem:[%s876 + $0x10] sm:$0xff]
    %v1636 = vld [vmem:[%s876 + $0x18] sm:$0xff]
    %v1637 = vsel %vm135, %v1626, 0
    %1639 = vmatprep.subr.mxu0 %v435
    %1640 = vmatpush1.msra.mxu0 %v434
    %1641 = vmatprep.subr.mxu0 %v437
    %1642 = vmatpush1.msra.mxu0 %v436
    %1643 = vmatprep.subr.mxu0 %v439
    %1644 = vmatpush1.msra.mxu0 %v438
    %1645 = vmatprep.subr.mxu0 %v441
    %1646 = vmatpush1.msra.mxu0 %v440
    %1647 = vmatprep.subr.mxu0 %v443
    %1648 = vmatpush1.msra.mxu0 %v442
    %1649 = vmatprep.subr.mxu0 %v445
    %1650 = vmatpush1.msra.mxu0 %v444
    %1651 = vmatprep.subr.mxu0 %v447
    %1652 = vmatpush1.msra.mxu0 %v446
    %1653 = vmatprep.subr.mxu0 %v449
    %1654 = vmatpush1.msra.mxu0 %v448
    %1655 = vmatprep.subr.mxu0 0.0
    %1656 = vmatpush1.msra.mxu0 0.0
    %1657 = vmatprep.subr.mxu0 0.0
    %1658 = vmatpush1.msra.mxu0 0.0
    %1659 = vmatprep.subr.mxu0 0.0
    %1660 = vmatpush1.msra.mxu0 0.0
    %1661 = vmatprep.subr.mxu0 0.0
    %1662 = vmatpush1.msra.mxu0 0.0
    %1663 = vmatprep.subr.mxu0 0.0
    %1664 = vmatpush1.msra.mxu0 0.0
    %1665 = vmatprep.subr.mxu0 0.0
    %1666 = vmatpush1.msra.mxu0 0.0
    %1667 = vmatprep.subr.mxu0 0.0
    %1668 = vmatpush1.msra.mxu0 0.0
    %1669 = vmatprep.subr.mxu0 0.0
    %1670 = vmatpush1.msra.mxu0 0.0
    %1671 = vmatprep.subr.mxu0 0.0
    %1672 = vmatpush1.msra.mxu0 0.0
    %1673 = vmatprep.subr.mxu0 0.0
    %1674 = vmatpush1.msra.mxu0 0.0
    %1675 = vmatprep.subr.mxu0 0.0
    %1676 = vmatpush1.msra.mxu0 0.0
    %1677 = vmatprep.subr.mxu0 0.0
    %1678 = vmatpush1.msra.mxu0 0.0
    %1679 = vmatprep.subr.mxu0 0.0
    %1680 = vmatpush1.msra.mxu0 0.0
    %1681 = vmatprep.subr.mxu0 0.0
    %1682 = vmatpush1.msra.mxu0 0.0
    %1683 = vmatprep.subr.mxu0 0.0
    %1684 = vmatpush1.msra.mxu0 0.0
    %1685 = vmatprep.subr.mxu0 0.0
    %1686 = vmatpush1.msra.mxu0 0.0
    %1687 = vmatprep.subr.mxu0 0.0
    %1688 = vmatpush1.msra.mxu0 0.0
    %1689 = vmatprep.subr.mxu0 0.0
    %1690 = vmatpush1.msra.mxu0 0.0
    %1691 = vmatprep.subr.mxu0 0.0
    %1692 = vmatpush1.msra.mxu0 0.0
    %1693 = vmatprep.subr.mxu0 0.0
    %1694 = vmatpush1.msra.mxu0 0.0
    %1695 = vmatprep.subr.mxu0 0.0
    %1696 = vmatpush1.msra.mxu0 0.0
    %1697 = vmatprep.subr.mxu0 0.0
    %1698 = vmatpush1.msra.mxu0 0.0
    %1699 = vmatprep.subr.mxu0 0.0
    %1700 = vmatpush1.msra.mxu0 0.0
    %1701 = vmatprep.subr.mxu0 0.0
    %1702 = vmatpush1.msra.mxu0 0.0
    %1703 = vmatprep.mubr.f32.mxu0 0.0
    %1704 = vmatmul.mubr.f32.gmra.mrb[0].mxu0 %v1637
    %v1705 = vpop.f32.mrb[0].mxu0
    %v1706 = vadd.f32 0.0, %v1705
    %v1707 = vpop.f32.mrb[0].mxu0
    %v1708 = vadd.f32 0.0, %v1707
    %1709 = vdwg.mxu0
    %v1710 = vadd.f32 %v1635, %v1706
    %v1711 = vadd.f32 %v1636, %v1708
    %v1712 = vmul.f32 %v1710, 0.5
    %v1713 = vmul.f32 %v1711, 0.5
    %v1714 = vtanh.pop %v1712
    %v1715 = vtanh.pop %v1713
    %v1716 = vmul.f32 %v1714, 0.5
    %v1717 = vmul.f32 %v1715, 0.5
    %v1718 = vadd.f32 %v1716, 0.5
    %v1719 = vadd.f32 %v1717, 0.5
    %v1720 = vtanh.pop %v1711
    %v1721 = vmul.f32 %v1718, %v1620
    %1723 = vrot.lane.b32.xlu0 %v1720, 64
    %v1724 = vpop.permute.xlu0 %1723
    %v1726 = vmul.f32 %v1718, %v1724
    %1728 = vrot.lane.b32.xlu0 %v1726, 64
    %v1729 = vpop.permute.xlu0 %1728
    %v1731 = vadd.f32 %v1721, %v1729
    %v1732 = vtanh.pop %v1731
    %1734 = vrot.lane.b32.xlu0 %v1732, 64
    %v1735 = vpop.permute.xlu0 %1734
    %v1737 = vmul.f32 %v1719, %v1735
    %v1738 = vld [vmem:[%s981] sm:$0xff]
    %1740 = vrot.lane.b32.xlu0 %v1737, 64
    %v1741 = vpop.permute.xlu0 %1740
    %v1743 = vsel %vm135, %v1738, %v1741
    %s1744 = scalar_lea.vmem %s5, 32
    %1745 = vst [vmem:[%s1744] sm:$0xff] %v1743
    %v1746 = vld [vmem:[%s769 + $0x10] sm:$0xff]
    %v1747 = vld [vmem:[%s769 + $0x18] sm:$0xff]
    %v1748 = vsel %vm135, %v1737, 0
    %1750 = vmatprep.subr.mxu0 %v435
    %1751 = vmatpush1.msra.mxu0 %v434
    %1752 = vmatprep.subr.mxu0 %v437
    %1753 = vmatpush1.msra.mxu0 %v436
    %1754 = vmatprep.subr.mxu0 %v439
    %1755 = vmatpush1.msra.mxu0 %v438
    %1756 = vmatprep.subr.mxu0 %v441
    %1757 = vmatpush1.msra.mxu0 %v440
    %1758 = vmatprep.subr.mxu0 %v443
    %1759 = vmatpush1.msra.mxu0 %v442
    %1760 = vmatprep.subr.mxu0 %v445
    %1761 = vmatpush1.msra.mxu0 %v444
    %1762 = vmatprep.subr.mxu0 %v447
    %1763 = vmatpush1.msra.mxu0 %v446
    %1764 = vmatprep.subr.mxu0 %v449
    %1765 = vmatpush1.msra.mxu0 %v448
    %1766 = vmatprep.subr.mxu0 0.0
    %1767 = vmatpush1.msra.mxu0 0.0
    %1768 = vmatprep.subr.mxu0 0.0
    %1769 = vmatpush1.msra.mxu0 0.0
    %1770 = vmatprep.subr.mxu0 0.0
    %1771 = vmatpush1.msra.mxu0 0.0
    %1772 = vmatprep.subr.mxu0 0.0
    %1773 = vmatpush1.msra.mxu0 0.0
    %1774 = vmatprep.subr.mxu0 0.0
    %1775 = vmatpush1.msra.mxu0 0.0
    %1776 = vmatprep.subr.mxu0 0.0
    %1777 = vmatpush1.msra.mxu0 0.0
    %1778 = vmatprep.subr.mxu0 0.0
    %1779 = vmatpush1.msra.mxu0 0.0
    %1780 = vmatprep.subr.mxu0 0.0
    %1781 = vmatpush1.msra.mxu0 0.0
    %1782 = vmatprep.subr.mxu0 0.0
    %1783 = vmatpush1.msra.mxu0 0.0
    %1784 = vmatprep.subr.mxu0 0.0
    %1785 = vmatpush1.msra.mxu0 0.0
    %1786 = vmatprep.subr.mxu0 0.0
    %1787 = vmatpush1.msra.mxu0 0.0
    %1788 = vmatprep.subr.mxu0 0.0
    %1789 = vmatpush1.msra.mxu0 0.0
    %1790 = vmatprep.subr.mxu0 0.0
    %1791 = vmatpush1.msra.mxu0 0.0
    %1792 = vmatprep.subr.mxu0 0.0
    %1793 = vmatpush1.msra.mxu0 0.0
    %1794 = vmatprep.subr.mxu0 0.0
    %1795 = vmatpush1.msra.mxu0 0.0
    %1796 = vmatprep.subr.mxu0 0.0
    %1797 = vmatpush1.msra.mxu0 0.0
    %1798 = vmatprep.subr.mxu0 0.0
    %1799 = vmatpush1.msra.mxu0 0.0
    %1800 = vmatprep.subr.mxu0 0.0
    %1801 = vmatpush1.msra.mxu0 0.0
    %1802 = vmatprep.subr.mxu0 0.0
    %1803 = vmatpush1.msra.mxu0 0.0
    %1804 = vmatprep.subr.mxu0 0.0
    %1805 = vmatpush1.msra.mxu0 0.0
    %1806 = vmatprep.subr.mxu0 0.0
    %1807 = vmatpush1.msra.mxu0 0.0
    %1808 = vmatprep.subr.mxu0 0.0
    %1809 = vmatpush1.msra.mxu0 0.0
    %1810 = vmatprep.subr.mxu0 0.0
    %1811 = vmatpush1.msra.mxu0 0.0
    %1812 = vmatprep.subr.mxu0 0.0
    %1813 = vmatpush1.msra.mxu0 0.0
    %1814 = vmatprep.mubr.f32.mxu0 0.0
    %1815 = vmatmul.mubr.f32.gmra.mrb[0].mxu0 %v1748
    %v1816 = vpop.f32.mrb[0].mxu0
    %v1817 = vadd.f32 0.0, %v1816
    %v1818 = vpop.f32.mrb[0].mxu0
    %v1819 = vadd.f32 0.0, %v1818
    %1820 = vdwg.mxu0
    %v1821 = vadd.f32 %v1746, %v1817
    %v1822 = vadd.f32 %v1747, %v1819
    %v1823 = vmul.f32 %v1821, 0.5
    %v1824 = vmul.f32 %v1822, 0.5
    %v1825 = vtanh.pop %v1823
    %v1826 = vtanh.pop %v1824
    %v1827 = vmul.f32 %v1825, 0.5
    %v1828 = vmul.f32 %v1826, 0.5
    %v1829 = vadd.f32 %v1827, 0.5
    %v1830 = vadd.f32 %v1828, 0.5
    %v1831 = vtanh.pop %v1822
    %v1832 = vmul.f32 %v1829, %v1731
    %1834 = vrot.lane.b32.xlu0 %v1831, 64
    %v1835 = vpop.permute.xlu0 %1834
    %v1837 = vmul.f32 %v1829, %v1835
    %1839 = vrot.lane.b32.xlu0 %v1837, 64
    %v1840 = vpop.permute.xlu0 %1839
    %v1842 = vadd.f32 %v1832, %v1840
    %v1843 = vtanh.pop %v1842
    %1845 = vrot.lane.b32.xlu0 %v1843, 64
    %v1846 = vpop.permute.xlu0 %1845
    %v1848 = vmul.f32 %v1830, %v1846
    %v1849 = vld [vmem:[%s874] sm:$0xff]
    %1851 = vrot.lane.b32.xlu0 %v1848, 64
    %v1852 = vpop.permute.xlu0 %1851
    %v1854 = vsel %vm135, %v1849, %v1852
    %s1855 = scalar_lea.vmem %s5, 24
    %1856 = vst [vmem:[%s1855] sm:$0xff] %v1854
    %v1857 = vld [vmem:[%s662 + $0x10] sm:$0xff]
    %v1858 = vld [vmem:[%s662 + $0x18] sm:$0xff]
    %v1859 = vsel %vm135, %v1848, 0
    %1861 = vmatprep.subr.mxu0 %v435
    %1862 = vmatpush1.msra.mxu0 %v434
    %1863 = vmatprep.subr.mxu0 %v437
    %1864 = vmatpush1.msra.mxu0 %v436
    %1865 = vmatprep.subr.mxu0 %v439
    %1866 = vmatpush1.msra.mxu0 %v438
    %1867 = vmatprep.subr.mxu0 %v441
    %1868 = vmatpush1.msra.mxu0 %v440
    %1869 = vmatprep.subr.mxu0 %v443
    %1870 = vmatpush1.msra.mxu0 %v442
    %1871 = vmatprep.subr.mxu0 %v445
    %1872 = vmatpush1.msra.mxu0 %v444
    %1873 = vmatprep.subr.mxu0 %v447
    %1874 = vmatpush1.msra.mxu0 %v446
    %1875 = vmatprep.subr.mxu0 %v449
    %1876 = vmatpush1.msra.mxu0 %v448
    %1877 = vmatprep.subr.mxu0 0.0
    %1878 = vmatpush1.msra.mxu0 0.0
    %1879 = vmatprep.subr.mxu0 0.0
    %1880 = vmatpush1.msra.mxu0 0.0
    %1881 = vmatprep.subr.mxu0 0.0
    %1882 = vmatpush1.msra.mxu0 0.0
    %1883 = vmatprep.subr.mxu0 0.0
    %1884 = vmatpush1.msra.mxu0 0.0
    %1885 = vmatprep.subr.mxu0 0.0
    %1886 = vmatpush1.msra.mxu0 0.0
    %1887 = vmatprep.subr.mxu0 0.0
    %1888 = vmatpush1.msra.mxu0 0.0
    %1889 = vmatprep.subr.mxu0 0.0
    %1890 = vmatpush1.msra.mxu0 0.0
    %1891 = vmatprep.subr.mxu0 0.0
    %1892 = vmatpush1.msra.mxu0 0.0
    %1893 = vmatprep.subr.mxu0 0.0
    %1894 = vmatpush1.msra.mxu0 0.0
    %1895 = vmatprep.subr.mxu0 0.0
    %1896 = vmatpush1.msra.mxu0 0.0
    %1897 = vmatprep.subr.mxu0 0.0
    %1898 = vmatpush1.msra.mxu0 0.0
    %1899 = vmatprep.subr.mxu0 0.0
    %1900 = vmatpush1.msra.mxu0 0.0
    %1901 = vmatprep.subr.mxu0 0.0
    %1902 = vmatpush1.msra.mxu0 0.0
    %1903 = vmatprep.subr.mxu0 0.0
    %1904 = vmatpush1.msra.mxu0 0.0
    %1905 = vmatprep.subr.mxu0 0.0
    %1906 = vmatpush1.msra.mxu0 0.0
    %1907 = vmatprep.subr.mxu0 0.0
    %1908 = vmatpush1.msra.mxu0 0.0
    %1909 = vmatprep.subr.mxu0 0.0
    %1910 = vmatpush1.msra.mxu0 0.0
    %1911 = vmatprep.subr.mxu0 0.0
    %1912 = vmatpush1.msra.mxu0 0.0
    %1913 = vmatprep.subr.mxu0 0.0
    %1914 = vmatpush1.msra.mxu0 0.0
    %1915 = vmatprep.subr.mxu0 0.0
    %1916 = vmatpush1.msra.mxu0 0.0
    %1917 = vmatprep.subr.mxu0 0.0
    %1918 = vmatpush1.msra.mxu0 0.0
    %1919 = vmatprep.subr.mxu0 0.0
    %1920 = vmatpush1.msra.mxu0 0.0
    %1921 = vmatprep.subr.mxu0 0.0
    %1922 = vmatpush1.msra.mxu0 0.0
    %1923 = vmatprep.subr.mxu0 0.0
    %1924 = vmatpush1.msra.mxu0 0.0
    %1925 = vmatprep.mubr.f32.mxu0 0.0
    %1926 = vmatmul.mubr.f32.gmra.mrb[0].mxu0 %v1859
    %v1927 = vpop.f32.mrb[0].mxu0
    %v1928 = vadd.f32 0.0, %v1927
    %v1929 = vpop.f32.mrb[0].mxu0
    %v1930 = vadd.f32 0.0, %v1929
    %1931 = vdwg.mxu0
    %v1932 = vadd.f32 %v1857, %v1928
    %v1933 = vadd.f32 %v1858, %v1930
    %v1934 = vmul.f32 %v1932, 0.5
    %v1935 = vmul.f32 %v1933, 0.5
    %v1936 = vtanh.pop %v1934
    %v1937 = vtanh.pop %v1935
    %v1938 = vmul.f32 %v1936, 0.5
    %v1939 = vmul.f32 %v1937, 0.5
    %v1940 = vadd.f32 %v1938, 0.5
    %v1941 = vadd.f32 %v1939, 0.5
    %v1942 = vtanh.pop %v1933
    %v1943 = vmul.f32 %v1940, %v1842
    %1945 = vrot.lane.b32.xlu0 %v1942, 64
    %v1946 = vpop.permute.xlu0 %1945
    %v1948 = vmul.f32 %v1940, %v1946
    %1950 = vrot.lane.b32.xlu0 %v1948, 64
    %v1951 = vpop.permute.xlu0 %1950
    %v1953 = vadd.f32 %v1943, %v1951
    %v1954 = vtanh.pop %v1953
    %1956 = vrot.lane.b32.xlu0 %v1954, 64
    %v1957 = vpop.permute.xlu0 %1956
    %v1959 = vmul.f32 %v1941, %v1957
    %v1960 = vld [vmem:[%s767] sm:$0xff]
    %1962 = vrot.lane.b32.xlu0 %v1959, 64
    %v1963 = vpop.permute.xlu0 %1962
    %v1965 = vsel %vm135, %v1960, %v1963
    %s1966 = scalar_lea.vmem %s5, 16
    %1967 = vst [vmem:[%s1966] sm:$0xff] %v1965
    %v1968 = vld [vmem:[%s555 + $0x10] sm:$0xff]
    %v1969 = vld [vmem:[%s555 + $0x18] sm:$0xff]
    %v1970 = vsel %vm135, %v1959, 0
    %1972 = vmatprep.subr.mxu0 %v435
    %1973 = vmatpush1.msra.mxu0 %v434
    %1974 = vmatprep.subr.mxu0 %v437
    %1975 = vmatpush1.msra.mxu0 %v436
    %1976 = vmatprep.subr.mxu0 %v439
    %1977 = vmatpush1.msra.mxu0 %v438
    %1978 = vmatprep.subr.mxu0 %v441
    %1979 = vmatpush1.msra.mxu0 %v440
    %1980 = vmatprep.subr.mxu0 %v443
    %1981 = vmatpush1.msra.mxu0 %v442
    %1982 = vmatprep.subr.mxu0 %v445
    %1983 = vmatpush1.msra.mxu0 %v444
    %1984 = vmatprep.subr.mxu0 %v447
    %1985 = vmatpush1.msra.mxu0 %v446
    %1986 = vmatprep.subr.mxu0 %v449
    %1987 = vmatpush1.msra.mxu0 %v448
    %1988 = vmatprep.subr.mxu0 0.0
    %1989 = vmatpush1.msra.mxu0 0.0
    %1990 = vmatprep.subr.mxu0 0.0
    %1991 = vmatpush1.msra.mxu0 0.0
    %1992 = vmatprep.subr.mxu0 0.0
    %1993 = vmatpush1.msra.mxu0 0.0
    %1994 = vmatprep.subr.mxu0 0.0
    %1995 = vmatpush1.msra.mxu0 0.0
    %1996 = vmatprep.subr.mxu0 0.0
    %1997 = vmatpush1.msra.mxu0 0.0
    %1998 = vmatprep.subr.mxu0 0.0
    %1999 = vmatpush1.msra.mxu0 0.0
    %2000 = vmatprep.subr.mxu0 0.0
    %2001 = vmatpush1.msra.mxu0 0.0
    %2002 = vmatprep.subr.mxu0 0.0
    %2003 = vmatpush1.msra.mxu0 0.0
    %2004 = vmatprep.subr.mxu0 0.0
    %2005 = vmatpush1.msra.mxu0 0.0
    %2006 = vmatprep.subr.mxu0 0.0
    %2007 = vmatpush1.msra.mxu0 0.0
    %2008 = vmatprep.subr.mxu0 0.0
    %2009 = vmatpush1.msra.mxu0 0.0
    %2010 = vmatprep.subr.mxu0 0.0
    %2011 = vmatpush1.msra.mxu0 0.0
    %2012 = vmatprep.subr.mxu0 0.0
    %2013 = vmatpush1.msra.mxu0 0.0
    %2014 = vmatprep.subr.mxu0 0.0
    %2015 = vmatpush1.msra.mxu0 0.0
    %2016 = vmatprep.subr.mxu0 0.0
    %2017 = vmatpush1.msra.mxu0 0.0
    %2018 = vmatprep.subr.mxu0 0.0
    %2019 = vmatpush1.msra.mxu0 0.0
    %2020 = vmatprep.subr.mxu0 0.0
    %2021 = vmatpush1.msra.mxu0 0.0
    %2022 = vmatprep.subr.mxu0 0.0
    %2023 = vmatpush1.msra.mxu0 0.0
    %2024 = vmatprep.subr.mxu0 0.0
    %2025 = vmatpush1.msra.mxu0 0.0
    %2026 = vmatprep.subr.mxu0 0.0
    %2027 = vmatpush1.msra.mxu0 0.0
    %2028 = vmatprep.subr.mxu0 0.0
    %2029 = vmatpush1.msra.mxu0 0.0
    %2030 = vmatprep.subr.mxu0 0.0
    %2031 = vmatpush1.msra.mxu0 0.0
    %2032 = vmatprep.subr.mxu0 0.0
    %2033 = vmatpush1.msra.mxu0 0.0
    %2034 = vmatprep.subr.mxu0 0.0
    %2035 = vmatpush1.msra.mxu0 0.0
    %2036 = vmatprep.mubr.f32.mxu0 0.0
    %2037 = vmatmul.mubr.f32.gmra.mrb[0].mxu0 %v1970
    %v2038 = vpop.f32.mrb[0].mxu0
    %v2039 = vadd.f32 0.0, %v2038
    %v2040 = vpop.f32.mrb[0].mxu0
    %v2041 = vadd.f32 0.0, %v2040
    %2042 = vdwg.mxu0
    %v2043 = vadd.f32 %v1968, %v2039
    %v2044 = vadd.f32 %v1969, %v2041
    %v2045 = vmul.f32 %v2043, 0.5
    %v2046 = vmul.f32 %v2044, 0.5
    %v2047 = vtanh.pop %v2045
    %v2048 = vtanh.pop %v2046
    %v2049 = vmul.f32 %v2047, 0.5
    %v2050 = vmul.f32 %v2048, 0.5
    %v2051 = vadd.f32 %v2049, 0.5
    %v2052 = vadd.f32 %v2050, 0.5
    %v2053 = vtanh.pop %v2044
    %v2054 = vmul.f32 %v2051, %v1953
    %2056 = vrot.lane.b32.xlu0 %v2053, 64
    %v2057 = vpop.permute.xlu0 %2056
    %v2059 = vmul.f32 %v2051, %v2057
    %2061 = vrot.lane.b32.xlu0 %v2059, 64
    %v2062 = vpop.permute.xlu0 %2061
    %v2064 = vadd.f32 %v2054, %v2062
    %v2065 = vtanh.pop %v2064
    %2067 = vrot.lane.b32.xlu0 %v2065, 64
    %v2068 = vpop.permute.xlu0 %2067
    %v2070 = vmul.f32 %v2052, %v2068
    %v2071 = vld [vmem:[%s660] sm:$0xff]
    %2073 = vrot.lane.b32.xlu0 %v2070, 64
    %v2074 = vpop.permute.xlu0 %2073
    %v2076 = vsel %vm135, %v2071, %v2074
    %s2077 = scalar_lea.vmem %s5, 8
    %2078 = vst [vmem:[%s2077] sm:$0xff] %v2076
    %v2079 = vld [vmem:[#allocation2 + $0x10] sm:$0xff]
    %v2080 = vld [vmem:[#allocation2 + $0x18] sm:$0xff]
    %v2081 = vsel %vm135, %v2070, 0
    %2083 = vmatprep.subr.mxu0 %v435
    %2084 = vmatpush1.msra.mxu0 %v434
    %2085 = vmatprep.subr.mxu0 %v437
    %2086 = vmatpush1.msra.mxu0 %v436
    %2087 = vmatprep.subr.mxu0 %v439
    %2088 = vmatpush1.msra.mxu0 %v438
    %2089 = vmatprep.subr.mxu0 %v441
    %2090 = vmatpush1.msra.mxu0 %v440
    %2091 = vmatprep.subr.mxu0 %v443
    %2092 = vmatpush1.msra.mxu0 %v442
    %2093 = vmatprep.subr.mxu0 %v445
    %2094 = vmatpush1.msra.mxu0 %v444
    %2095 = vmatprep.subr.mxu0 %v447
    %2096 = vmatpush1.msra.mxu0 %v446
    %2097 = vmatprep.subr.mxu0 %v449
    %2098 = vmatpush1.msra.mxu0 %v448
    %2099 = vmatprep.subr.mxu0 0.0
    %2100 = vmatpush1.msra.mxu0 0.0
    %2101 = vmatprep.subr.mxu0 0.0
    %2102 = vmatpush1.msra.mxu0 0.0
    %2103 = vmatprep.subr.mxu0 0.0
    %2104 = vmatpush1.msra.mxu0 0.0
    %2105 = vmatprep.subr.mxu0 0.0
    %2106 = vmatpush1.msra.mxu0 0.0
    %2107 = vmatprep.subr.mxu0 0.0
    %2108 = vmatpush1.msra.mxu0 0.0
    %2109 = vmatprep.subr.mxu0 0.0
    %2110 = vmatpush1.msra.mxu0 0.0
    %2111 = vmatprep.subr.mxu0 0.0
    %2112 = vmatpush1.msra.mxu0 0.0
    %2113 = vmatprep.subr.mxu0 0.0
    %2114 = vmatpush1.msra.mxu0 0.0
    %2115 = vmatprep.subr.mxu0 0.0
    %2116 = vmatpush1.msra.mxu0 0.0
    %2117 = vmatprep.subr.mxu0 0.0
    %2118 = vmatpush1.msra.mxu0 0.0
    %2119 = vmatprep.subr.mxu0 0.0
    %2120 = vmatpush1.msra.mxu0 0.0
    %2121 = vmatprep.subr.mxu0 0.0
    %2122 = vmatpush1.msra.mxu0 0.0
    %2123 = vmatprep.subr.mxu0 0.0
    %2124 = vmatpush1.msra.mxu0 0.0
    %2125 = vmatprep.subr.mxu0 0.0
    %2126 = vmatpush1.msra.mxu0 0.0
    %2127 = vmatprep.subr.mxu0 0.0
    %2128 = vmatpush1.msra.mxu0 0.0
    %2129 = vmatprep.subr.mxu0 0.0
    %2130 = vmatpush1.msra.mxu0 0.0
    %2131 = vmatprep.subr.mxu0 0.0
    %2132 = vmatpush1.msra.mxu0 0.0
    %2133 = vmatprep.subr.mxu0 0.0
    %2134 = vmatpush1.msra.mxu0 0.0
    %2135 = vmatprep.subr.mxu0 0.0
    %2136 = vmatpush1.msra.mxu0 0.0
    %2137 = vmatprep.subr.mxu0 0.0
    %2138 = vmatpush1.msra.mxu0 0.0
    %2139 = vmatprep.subr.mxu0 0.0
    %2140 = vmatpush1.msra.mxu0 0.0
    %2141 = vmatprep.subr.mxu0 0.0
    %2142 = vmatpush1.msra.mxu0 0.0
    %2143 = vmatprep.subr.mxu0 0.0
    %2144 = vmatpush1.msra.mxu0 0.0
    %2145 = vmatprep.subr.mxu0 0.0
    %2146 = vmatpush1.msra.mxu0 0.0
    %2147 = vmatprep.mubr.f32.mxu0 0.0
    %2148 = vmatmul.mubr.f32.gmra.mrb[0].mxu0 %v2081
    %v2149 = vpop.f32.mrb[0].mxu0
    %v2150 = vadd.f32 0.0, %v2149
    %v2151 = vpop.f32.mrb[0].mxu0
    %v2152 = vadd.f32 0.0, %v2151
    %2153 = vdwg.mxu0
    %v2154 = vadd.f32 %v2079, %v2150
    %v2155 = vadd.f32 %v2080, %v2152
    %v2156 = vmul.f32 %v2154, 0.5
    %v2157 = vmul.f32 %v2155, 0.5
    %v2158 = vtanh.pop %v2156
    %v2159 = vtanh.pop %v2157
    %v2160 = vmul.f32 %v2158, 0.5
    %v2161 = vmul.f32 %v2159, 0.5
    %v2162 = vadd.f32 %v2160, 0.5
    %v2163 = vadd.f32 %v2161, 0.5
    %v2164 = vtanh.pop %v2155
    %v2165 = vmul.f32 %v2162, %v2064
    %2167 = vrot.lane.b32.xlu0 %v2164, 64
    %v2168 = vpop.permute.xlu0 %2167
    %v2170 = vmul.f32 %v2162, %v2168
    %2172 = vrot.lane.b32.xlu0 %v2170, 64
    %v2173 = vpop.permute.xlu0 %2172
    %v2175 = vadd.f32 %v2165, %v2173
    %v2176 = vtanh.pop %v2175
    %2178 = vrot.lane.b32.xlu0 %v2176, 64
    %v2179 = vpop.permute.xlu0 %2178
    %v2181 = vmul.f32 %v2163, %v2179
    %v2182 = vld [vmem:[#allocation3] sm:$0xff]
    %2184 = vrot.lane.b32.xlu0 %v2181, 64
    %v2185 = vpop.permute.xlu0 %2184
    %v2187 = vsel %vm135, %v2182, %v2185
    %2188 = vst [vmem:[%s5] sm:$0xff] %v2187
    // Predicated region
    $region38: #{attention_birnn_forward.5} parent=1 // pred_check
      _
    $region39: #{attention_birnn_forward.5} parent=1 // pred_check_branch
      %2190 = sbr.rel (0) target = $region41
    $region40: #{attention_birnn_forward.5} parent=1 // pred_region
      _
    $region41: #{attention_birnn_forward.5} parent=1 // pred_fallthru
      _
    // Predicated region
    $region42: #{attention_birnn_forward.5} parent=1 // pred_check
      _
    $region43: #{attention_birnn_forward.5} parent=1 // pred_check_branch
      %2192 = sbr.rel (0) target = $region45
    $region44: #{attention_birnn_forward.5} parent=1 // pred_region
      _
    $region45: #{attention_birnn_forward.5} parent=1 // pred_fallthru
      _
    %2193 = vsyncpa [#allocation5], 1
    %2194 = vsyncpa [#allocation7], 1
    %2195 = vsyncpa [#allocation10], 1

// kernel: attention_birnn_forward.6
$region0: #{attention_birnn_forward.6}
  #allocation0 [shape = 'u32[]', space=smem, size = 0x4, offset = 0x4, fixed_abs, tag = 'smem constant byte address 0x4 - core index']
  #allocation1 [shape = 'u32[144,128]{1,0:T(1,128)}', space=vmem, size = 0x12000, scoped, tag = 'internal scratch']
  #allocation2 [shape = 'f32[8,8,512]{2,1,0:T(8,128)}', space=vmem, size = 0x20000, scoped, tag = 'scratch operand']
  #allocation3 [shape = 'f32[8,8,64]{2,1,0:T(8,128)}', space=vmem, size = 0x8000, scoped, tag = 'scratch operand']
  %s0 = inlined_call_operand.vmem [shape: f32[8,8,128], index: 0, kind: input, shape index: {}]
  %s1 = inlined_call_operand.vmem [shape: f32[128,512], index: 1, kind: input, shape index: {}]
  %s2 = inlined_call_operand.vmem [shape: f32[64,256], index: 2, kind: input, shape index: {}]
  %s3 = inlined_call_operand.vmem [shape: f32[64,256], index: 3, kind: input, shape index: {}]
  %s4 = inlined_call_operand.vmem [shape: f32[1,512], index: 4, kind: input, shape index: {}]
  %s5 = inlined_call_operand.vmem [shape: f32[8,8,128], index: 5, kind: output, shape index: {}]
  %s6 = sld [smem:[#allocation0]]
  $region30: #{attention_birnn_forward.6} parent=0
    _
  %s8 = ssub.s32 1, %s6
  %s9 = scalar_select 0, %s8, %s6
  // Predicated region
  $region2: #{attention_birnn_forward.6} parent=0 // pred_check
    _
  $region3: #{attention_birnn_forward.6} parent=0 // pred_check_branch
    %11 = sbr.rel (0) target = $region5
  $region4: #{attention_birnn_forward.6} parent=0 // pred_region
    _
  $region5: #{attention_birnn_forward.6} parent=0 // pred_fallthru
    _
  // Predicated region
  $region6: #{attention_birnn_forward.6} parent=0 // pred_check
    _
  $region7: #{attention_birnn_forward.6} parent=0 // pred_check_branch
    %13 = sbr.rel (0) target = $region9
  $region8: #{attention_birnn_forward.6} parent=0 // pred_region
    _
  $region9: #{attention_birnn_forward.6} parent=0 // pred_fallthru
    _
  // Predicated region
  $region10: #{attention_birnn_forward.6} parent=0 // pred_check
    _
  $region11: #{attention_birnn_forward.6} parent=0 // pred_check_branch
    %15 = sbr.rel (0) target = $region13
  $region12: #{attention_birnn_forward.6} parent=0 // pred_region
    _
  $region13: #{attention_birnn_forward.6} parent=0 // pred_fallthru
    _
  // Predicated region
  $region14: #{attention_birnn_forward.6} parent=0 // pred_check
    _
  $region15: #{attention_birnn_forward.6} parent=0 // pred_check_branch
    %17 = sbr.rel (0) target = $region17
  $region16: #{attention_birnn_forward.6} parent=0 // pred_region
    _
  $region17: #{attention_birnn_forward.6} parent=0 // pred_fallthru
    _
  // Predicated region
  $region18: #{attention_birnn_forward.6} parent=0 // pred_check
    _
  $region19: #{attention_birnn_forward.6} parent=0 // pred_check_branch
    %19 = sbr.rel (0) target = $region21
  $region20: #{attention_birnn_forward.6} parent=0 // pred_region
    _
  $region21: #{attention_birnn_forward.6} parent=0 // pred_fallthru
    _
  %v20 = vld [vmem:[%s0] sm:$0xff]
  %v21 = vld [vmem:[%s0 + $0x8] sm:$0xff]
  %v22 = vld [vmem:[%s0 + $0x10] sm:$0xff]
  %v23 = vld [vmem:[%s0 + $0x18] sm:$0xff]
  %v24 = vld [vmem:[%s0 + $0x20] sm:$0xff]
  %v25 = vld [vmem:[%s0 + $0x28] sm:$0xff]
  %v26 = vld [vmem:[%s0 + $0x30] sm:$0xff]
  %v27 = vld [vmem:[%s0 + $0x38] sm:$0xff]
  %v28 = vld [vmem:[%s1] sm:$0xff]
  %v29 = vld [vmem:[%s1 + $0x8] sm:$0xff]
  %v30 = vld [vmem:[%s1 + $0x10] sm:$0xff]
  %v31 = vld [vmem:[%s1 + $0x18] sm:$0xff]
  %v32 = vld [vmem:[%s1 + $0x20] sm:$0xff]
  %v33 = vld [vmem:[%s1 + $0x28] sm:$0xff]
  %v34 = vld [vmem:[%s1 + $0x30] sm:$0xff]
  %v35 = vld [vmem:[%s1 + $0x38] sm:$0xff]
  %v36 = vld [vmem:[%s1 + $0x40] sm:$0xff]
  %v37 = vld [vmem:[%s1 + $0x48] sm:$0xff]
  %v38 = vld [vmem:[%s1 + $0x50] sm:$0xff]
  %v39 = vld [vmem:[%s1 + $0x58] sm:$0xff]
  %v40 = vld [vmem:[%s1 + $0x60] sm:$0xff]
  %v41 = vld [vmem:[%s1 + $0x68] sm:$0xff]
  %v42 = vld [vmem:[%s1 + $0x70] sm:$0xff]
  %v43 = vld [vmem:[%s1 + $0x78] sm:$0xff]
  %v44 = vld [vmem:[%s1 + $0x80] sm:$0xff]
  %v45 = vld [vmem:[%s1 + $0x88] sm:$0xff]
  %v46 = vld [vmem:[%s1 + $0x90] sm:$0xff]
  %v47 = vld [vmem:[%s1 + $0x98] sm:$0xff]
  %v48 = vld [vmem:[%s1 + $0xa0] sm:$0xff]
  %v49 = vld [vmem:[%s1 + $0xa8] sm:$0xff]
  %v50 = vld [vmem:[%s1 + $0xb0] sm:$0xff]
  %v51 = vld [vmem:[%s1 + $0xb8] sm:$0xff]
  %v52 = vld [vmem:[%s1 + $0xc0] sm:$0xff]
  %v53 = vld [vmem:[%s1 + $0xc8] sm:$0xff]
  %v54 = vld [vmem:[%s1 + $0xd0] sm:$0xff]
  %v55 = vld [vmem:[%s1 + $0xd8] sm:$0xff]
  %v56 = vld [vmem:[%s1 + $0xe0] sm:$0xff]
  %v57 = vld [vmem:[%s1 + $0xe8] sm:$0xff]
  %v58 = vld [vmem:[%s1 + $0xf0] sm:$0xff]
  %v59 = vld [vmem:[%s1 + $0xf8] sm:$0xff]
  %v60 = vld [vmem:[%s1 + $0x100] sm:$0xff]
  %v61 = vld [vmem:[%s1 + $0x108] sm:$0xff]
  %v62 = vld [vmem:[%s1 + $0x110] sm:$0xff]
  %v63 = vld [vmem:[%s1 + $0x118] sm:$0xff]
  %v64 = vld [vmem:[%s1 + $0x120] sm:$0xff]
  %v65 = vld [vmem:[%s1 + $0x128] sm:$0xff]
  %v66 = vld [vmem:[%s1 + $0x130] sm:$0xff]
  %v67 = vld [vmem:[%s1 + $0x138] sm:$0xff]
  %v68 = vld [vmem:[%s1 + $0x140] sm:$0xff]
  %v69 = vld [vmem:[%s1 + $0x148] sm:$0xff]
  %v70 = vld [vmem:[%s1 + $0x150] sm:$0xff]
  %v71 = vld [vmem:[%s1 + $0x158] sm:$0xff]
  %v72 = vld [vmem:[%s1 + $0x160] sm:$0xff]
  %v73 = vld [vmem:[%s1 + $0x168] sm:$0xff]
  %v74 = vld [vmem:[%s1 + $0x170] sm:$0xff]
  %v75 = vld [vmem:[%s1 + $0x178] sm:$0xff]
  %v76 = vld [vmem:[%s1 + $0x180] sm:$0xff]
  %v77 = vld [vmem:[%s1 + $0x188] sm:$0xff]
  %v78 = vld [vmem:[%s1 + $0x190] sm:$0xff]
  %v79 = vld [vmem:[%s1 + $0x198] sm:$0xff]
  %v80 = vld [vmem:[%s1 + $0x1a0] sm:$0xff]
  %v81 = vld [vmem:[%s1 + $0x1a8] sm:$0xff]
  %v82 = vld [vmem:[%s1 + $0x1b0] sm:$0xff]
  %v83 = vld [vmem:[%s1 + $0x1b8] sm:$0xff]
  %v84 = vld [vmem:[%s1 + $0x1c0] sm:$0xff]
  %v85 = vld [vmem:[%s1 + $0x1c8] sm:$0xff]
  %v86 = vld [vmem:[%s1 + $0x1d0] sm:$0xff]
  %v87 = vld [vmem:[%s1 + $0x1d8] sm:$0xff]
  %v88 = vld [vmem:[%s1 + $0x1e0] sm:$0xff]
  %v89 = vld [vmem:[%s1 + $0x1e8] sm:$0xff]
  %v90 = vld [vmem:[%s1 + $0x1f0] sm:$0xff]
  %v91 = vld [vmem:[%s1 + $0x1f8] sm:$0xff]
  %v92 = vld [vmem:[%s4] sm:$0xf]
  %v94 = vlaneseq
  %v95 = vshrl.u32 %v94, 7
  %v96 = vsub.s32 0, %v95
  %v97 = vrot.slane %v92, %v96
  %v98 = vlaneseq
  %v99 = vshrl.u32 %v98, 7
  %v100 = vsub.s32 1, %v99
  %v101 = vrot.slane %v92, %v100
  %v102 = vlaneseq
  %v103 = vshrl.u32 %v102, 7
  %v104 = vsub.s32 2, %v103
  %v105 = vrot.slane %v92, %v104
  %v106 = vlaneseq
  %v107 = vshrl.u32 %v106, 7
  %v108 = vsub.s32 3, %v107
  %v109 = vrot.slane %v92, %v108
  %114 = vmatprep.subr.mxu0 %v29
  %115 = vmatpush1.msra.mxu0 %v28
  %116 = vmatprep.subr.mxu0 %v33
  %117 = vmatpush1.msra.mxu0 %v32
  %118 = vmatprep.subr.mxu0 %v37
  %119 = vmatpush1.msra.mxu0 %v36
  %120 = vmatprep.subr.mxu0 %v41
  %121 = vmatpush1.msra.mxu0 %v40
  %122 = vmatprep.subr.mxu0 %v45
  %123 = vmatpush1.msra.mxu0 %v44
  %124 = vmatprep.subr.mxu0 %v49
  %125 = vmatpush1.msra.mxu0 %v48
  %126 = vmatprep.subr.mxu0 %v53
  %127 = vmatpush1.msra.mxu0 %v52
  %128 = vmatprep.subr.mxu0 %v57
  %129 = vmatpush1.msra.mxu0 %v56
  %130 = vmatprep.subr.mxu0 %v61
  %131 = vmatpush1.msra.mxu0 %v60
  %132 = vmatprep.subr.mxu0 %v65
  %133 = vmatpush1.msra.mxu0 %v64
  %134 = vmatprep.subr.mxu0 %v69
  %135 = vmatpush1.msra.mxu0 %v68
  %136 = vmatprep.subr.mxu0 %v73
  %137 = vmatpush1.msra.mxu0 %v72
  %138 = vmatprep.subr.mxu0 %v77
  %139 = vmatpush1.msra.mxu0 %v76
  %140 = vmatprep.subr.mxu0 %v81
  %141 = vmatpush1.msra.mxu0 %v80
  %142 = vmatprep.subr.mxu0 %v85
  %143 = vmatpush1.msra.mxu0 %v84
  %144 = vmatprep.subr.mxu0 %v89
  %145 = vmatpush1.msra.mxu0 %v88
  %146 = vmatprep.subr.mxu0 0.0
  %147 = vmatpush1.msra.mxu0 0.0
  %148 = vmatprep.subr.mxu0 0.0
  %149 = vmatpush1.msra.mxu0 0.0
  %150 = vmatprep.subr.mxu0 0.0
  %151 = vmatpush1.msra.mxu0 0.0
  %152 = vmatprep.subr.mxu0 0.0
  %153 = vmatpush1.msra.mxu0 0.0
  %154 = vmatprep.subr.mxu0 0.0
  %155 = vmatpush1.msra.mxu0 0.0
  %156 = vmatprep.subr.mxu0 0.0
  %157 = vmatpush1.msra.mxu0 0.0
  %158 = vmatprep.subr.mxu0 0.0
  %159 = vmatpush1.msra.mxu0 0.0
  %160 = vmatprep.subr.mxu0 0.0
  %161 = vmatpush1.msra.mxu0 0.0
  %162 = vmatprep.subr.mxu0 0.0
  %163 = vmatpush1.msra.mxu0 0.0
  %164 = vmatprep.subr.mxu0 0.0
  %165 = vmatpush1.msra.mxu0 0.0
  %166 = vmatprep.subr.mxu0 0.0
  %167 = vmatpush1.msra.mxu0 0.0
  %168 = vmatprep.subr.mxu0 0.0
  %169 = vmatpush1.msra.mxu0 0.0
  %170 = vmatprep.subr.mxu0 0.0
  %171 = vmatpush1.msra.mxu0 0.0
  %172 = vmatprep.subr.mxu0 0.0
  %173 = vmatpush1.msra.mxu0 0.0
  %174 = vmatprep.subr.mxu0 0.0
  %175 = vmatpush1.msra.mxu0 0.0
  %176 = vmatprep.subr.mxu0 0.0
  %177 = vmatpush1.msra.mxu0 0.0
  %178 = vmatprep.mubr.f32.mxu0 0.0
  %179 = vmatmul.mubr.f32.gmra.mrb[0].mxu0 %v20
  %v180 = vpop.f32.mrb[0].mxu0
  %v181 = vadd.f32 %v97, %v180
  %v182 = vpop.f32.mrb[0].mxu0
  %v183 = vadd.f32 %v101, %v182
  %184 = vmatprep.mubr.f32.mxu0 0.0
  %185 = vmatmul.mubr.f32.gmra.mrb[0].mxu0 %v21
  %v186 = vpop.f32.mrb[0].mxu0
  %v187 = vadd.f32 %v97, %v186
  %v188 = vpop.f32.mrb[0].mxu0
  %v189 = vadd.f32 %v101, %v188
  %190 = vmatprep.mubr.f32.mxu0 0.0
  %191 = vmatmul.mubr.f32.gmra.mrb[0].mxu0 %v22
  %v192 = vpop.f32.mrb[0].mxu0
  %v193 = vadd.f32 %v97, %v192
  %v194 = vpop.f32.mrb[0].mxu0
  %v195 = vadd.f32 %v101, %v194
  %196 = vmatprep.mubr.f32.mxu0 0.0
  %197 = vmatmul.mubr.f32.gmra.mrb[0].mxu0 %v23
  %v198 = vpop.f32.mrb[0].mxu0
  %v199 = vadd.f32 %v97, %v198
  %v200 = vpop.f32.mrb[0].mxu0
  %v201 = vadd.f32 %v101, %v200
  %202 = vmatprep.mubr.f32.mxu0 0.0
  %203 = vmatmul.mubr.f32.gmra.mrb[0].mxu0 %v24
  %v204 = vpop.f32.mrb[0].mxu0
  %v205 = vadd.f32 %v97, %v204
  %v206 = vpop.f32.mrb[0].mxu0
  %v207 = vadd.f32 %v101, %v206
  %208 = vmatprep.mubr.f32.mxu0 0.0
  %209 = vmatmul.mubr.f32.gmra.mrb[0].mxu0 %v25
  %v210 = vpop.f32.mrb[0].mxu0
  %v211 = vadd.f32 %v97, %v210
  %v212 = vpop.f32.mrb[0].mxu0
  %v213 = vadd.f32 %v101, %v212
  %214 = vmatprep.mubr.f32.mxu0 0.0
  %215 = vmatmul.mubr.f32.gmra.mrb[0].mxu0 %v26
  %v216 = vpop.f32.mrb[0].mxu0
  %v217 = vadd.f32 %v97, %v216
  %v218 = vpop.f32.mrb[0].mxu0
  %v219 = vadd.f32 %v101, %v218
  %220 = vmatprep.mubr.f32.mxu0 0.0
  %221 = vmatmul.mubr.f32.gmra.mrb[0].mxu0 %v27
  %v222 = vpop.f32.mrb[0].mxu0
  %v223 = vadd.f32 %v97, %v222
  %v224 = vpop.f32.mrb[0].mxu0
  %v225 = vadd.f32 %v101, %v224
  %226 = vdwg.mxu0
  %227 = vmatprep.subr.mxu0 %v31
  %228 = vmatpush1.msra.mxu0 %v30
  %229 = vmatprep.subr.mxu0 %v35
  %230 = vmatpush1.msra.mxu0 %v34
  %231 = vmatprep.subr.mxu0 %v39
  %232 = vmatpush1.msra.mxu0 %v38
  %233 = vmatprep.subr.mxu0 %v43
  %234 = vmatpush1.msra.mxu0 %v42
  %235 = vmatprep.subr.mxu0 %v47
  %236 = vmatpush1.msra.mxu0 %v46
  %237 = vmatprep.subr.mxu0 %v51
  %238 = vmatpush1.msra.mxu0 %v50
  %239 = vmatprep.subr.mxu0 %v55
  %240 = vmatpush1.msra.mxu0 %v54
  %241 = vmatprep.subr.mxu0 %v59
  %242 = vmatpush1.msra.mxu0 %v58
  %243 = vmatprep.subr.mxu0 %v63
  %244 = vmatpush1.msra.mxu0 %v62
  %245 = vmatprep.subr.mxu0 %v67
  %246 = vmatpush1.msra.mxu0 %v66
  %247 = vmatprep.subr.mxu0 %v71
  %248 = vmatpush1.msra.mxu0 %v70
  %249 = vmatprep.subr.mxu0 %v75
  %250 = vmatpush1.msra.mxu0 %v74
  %251 = vmatprep.subr.mxu0 %v79
  %252 = vmatpush1.msra.mxu0 %v78
  %253 = vmatprep.subr.mxu0 %v83
  %254 = vmatpush1.msra.mxu0 %v82
  %255 = vmatprep.subr.mxu0 %v87
  %256 = vmatpush1.msra.mxu0 %v86
  %257 = vmatprep.subr.mxu0 %v91
  %258 = vmatpush1.msra.mxu0 %v90
  %259 = vmatprep.subr.mxu0 0.0
  %260 = vmatpush1.msra.mxu0 0.0
  %261 = vmatprep.subr.mxu0 0.0
  %262 = vmatpush1.msra.mxu0 0.0
  %263 = vmatprep.subr.mxu0 0.0
  %264 = vmatpush1.msra.mxu0 0.0
  %265 = vmatprep.subr.mxu0 0.0
  %266 = vmatpush1.msra.mxu0 0.0
  %267 = vmatprep.subr.mxu0 0.0
  %268 = vmatpush1.msra.mxu0 0.0
  %269 = vmatprep.subr.mxu0 0.0
  %270 = vmatpush1.msra.mxu0 0.0
  %271 = vmatprep.subr.mxu0 0.0
  %272 = vmatpush1.msra.mxu0 0.0
  %273 = vmatprep.subr.mxu0 0.0
  %274 = vmatpush1.msra.mxu0 0.0
  %275 = vmatprep.subr.mxu0 0.0
  %276 = vmatpush1.msra.mxu0 0.0
  %277 = vmatprep.subr.mxu0 0.0
  %278 = vmatpush1.msra.mxu0 0.0
  %279 = vmatprep.subr.mxu0 0.0
  %280 = vmatpush1.msra.mxu0 0.0
  %281 = vmatprep.subr.mxu0 0.0
  %282 = vmatpush1.msra.mxu0 0.0
  %283 = vmatprep.subr.mxu0 0.0
  %284 = vmatpush1.msra.mxu0 0.0
  %285 = vmatprep.subr.mxu0 0.0
  %286 = vmatpush1.msra.mxu0 0.0
  %287 = vmatprep.subr.mxu0 0.0
  %288 = vmatpush1.msra.mxu0 0.0
  %289 = vmatprep.subr.mxu0 0.0
  %290 = vmatpush1.msra.mxu0 0.0
  %291 = vmatprep.mubr.f32.mxu0 0.0
  %292 = vmatmul.mubr.f32.gmra.mrb[0].mxu0 %v20
  %v293 = vpop.f32.mrb[0].mxu0
  %v294 = vadd.f32 %v105, %v293
  %v295 = vpop.f32.mrb[0].mxu0
  %v296 = vadd.f32 %v109, %v295
  %297 = vmatprep.mubr.f32.mxu0 0.0
  %298 = vmatmul.mubr.f32.gmra.mrb[0].mxu0 %v21
  %v299 = vpop.f32.mrb[0].mxu0
  %v300 = vadd.f32 %v105, %v299
  %v301 = vpop.f32.mrb[0].mxu0
  %v302 = vadd.f32 %v109, %v301
  %303 = vmatprep.mubr.f32.mxu0 0.0
  %304 = vmatmul.mubr.f32.gmra.mrb[0].mxu0 %v22
  %v305 = vpop.f32.mrb[0].mxu0
  %v306 = vadd.f32 %v105, %v305
  %v307 = vpop.f32.mrb[0].mxu0
  %v308 = vadd.f32 %v109, %v307
  %309 = vmatprep.mubr.f32.mxu0 0.0
  %310 = vmatmul.mubr.f32.gmra.mrb[0].mxu0 %v23
  %v311 = vpop.f32.mrb[0].mxu0
  %v312 = vadd.f32 %v105, %v311
  %v313 = vpop.f32.mrb[0].mxu0
  %v314 = vadd.f32 %v109, %v313
  %315 = vmatprep.mubr.f32.mxu0 0.0
  %316 = vmatmul.mubr.f32.gmra.mrb[0].mxu0 %v24
  %v317 = vpop.f32.mrb[0].mxu0
  %v318 = vadd.f32 %v105, %v317
  %v319 = vpop.f32.mrb[0].mxu0
  %v320 = vadd.f32 %v109, %v319
  %321 = vmatprep.mubr.f32.mxu0 0.0
  %322 = vmatmul.mubr.f32.gmra.mrb[0].mxu0 %v25
  %v323 = vpop.f32.mrb[0].mxu0
  %v324 = vadd.f32 %v105, %v323
  %v325 = vpop.f32.mrb[0].mxu0
  %v326 = vadd.f32 %v109, %v325
  %327 = vmatprep.mubr.f32.mxu0 0.0
  %328 = vmatmul.mubr.f32.gmra.mrb[0].mxu0 %v26
  %v329 = vpop.f32.mrb[0].mxu0
  %v330 = vadd.f32 %v105, %v329
  %v331 = vpop.f32.mrb[0].mxu0
  %v332 = vadd.f32 %v109, %v331
  %333 = vmatprep.mubr.f32.mxu0 0.0
  %334 = vmatmul.mubr.f32.gmra.mrb[0].mxu0 %v27
  %v335 = vpop.f32.mrb[0].mxu0
  %v336 = vadd.f32 %v105, %v335
  %v337 = vpop.f32.mrb[0].mxu0
  %v338 = vadd.f32 %v109, %v337
  %339 = vdwg.mxu0
  %340 = vst [vmem:[#allocation2] sm:$0xff] %v181
  %341 = vst [vmem:[#allocation2 + $0x8] sm:$0xff] %v183
  %342 = vst [vmem:[#allocation2 + $0x10] sm:$0xff] %v294
  %343 = vst [vmem:[#allocation2 + $0x18] sm:$0xff] %v296
  %344 = vst [vmem:[#allocation2 + $0x20] sm:$0xff] %v187
  %345 = vst [vmem:[#allocation2 + $0x28] sm:$0xff] %v189
  %346 = vst [vmem:[#allocation2 + $0x30] sm:$0xff] %v300
  %347 = vst [vmem:[#allocation2 + $0x38] sm:$0xff] %v302
  %348 = vst [vmem:[#allocation2 + $0x40] sm:$0xff] %v193
  %349 = vst [vmem:[#allocation2 + $0x48] sm:$0xff] %v195
  %350 = vst [vmem:[#allocation2 + $0x50] sm:$0xff] %v306
  %351 = vst [vmem:[#allocation2 + $0x58] sm:$0xff] %v308
  %352 = vst [vmem:[#allocation2 + $0x60] sm:$0xff] %v199
  %353 = vst [vmem:[#allocation2 + $0x68] sm:$0xff] %v201
  %354 = vst [vmem:[#allocation2 + $0x70] sm:$0xff] %v312
  %355 = vst [vmem:[#allocation2 + $0x78] sm:$0xff] %v314
  %356 = vst [vmem:[#allocation2 + $0x80] sm:$0xff] %v205
  %357 = vst [vmem:[#allocation2 + $0x88] sm:$0xff] %v207
  %358 = vst [vmem:[#allocation2 + $0x90] sm:$0xff] %v318
  %359 = vst [vmem:[#allocation2 + $0x98] sm:$0xff] %v320
  %360 = vst [vmem:[#allocation2 + $0xa0] sm:$0xff] %v211
  %361 = vst [vmem:[#allocation2 + $0xa8] sm:$0xff] %v213
  %362 = vst [vmem:[#allocation2 + $0xb0] sm:$0xff] %v324
  %363 = vst [vmem:[#allocation2 + $0xb8] sm:$0xff] %v326
  %364 = vst [vmem:[#allocation2 + $0xc0] sm:$0xff] %v217
  %365 = vst [vmem:[#allocation2 + $0xc8] sm:$0xff] %v219
  %366 = vst [vmem:[#allocation2 + $0xd0] sm:$0xff] %v330
  %367 = vst [vmem:[#allocation2 + $0xd8] sm:$0xff] %v332
  %368 = vst [vmem:[#allocation2 + $0xe0] sm:$0xff] %v223
  %369 = vst [vmem:[#allocation2 + $0xe8] sm:$0xff] %v225
  %370 = vst [vmem:[#allocation2 + $0xf0] sm:$0xff] %v336
  %371 = vst [vmem:[#allocation2 + $0xf8] sm:$0xff] %v338
  %v372 = vld [vmem:[%s2] sm:$0xff]
  %v373 = vld [vmem:[%s2 + $0x8] sm:$0xff]
  %v374 = vld [vmem:[%s2 + $0x10] sm:$0xff]
  %v375 = vld [vmem:[%s2 + $0x18] sm:$0xff]
  %v376 = vld [vmem:[%s2 + $0x20] sm:$0xff]
  %v377 = vld [vmem:[%s2 + $0x28] sm:$0xff]
  %v378 = vld [vmem:[%s2 + $0x30] sm:$0xff]
  %v379 = vld [vmem:[%s2 + $0x38] sm:$0xff]
  %v380 = vld [vmem:[%s2 + $0x40] sm:$0xff]
  %v381 = vld [vmem:[%s2 + $0x48] sm:$0xff]
  %v382 = vld [vmem:[%s2 + $0x50] sm:$0xff]
  %v383 = vld [vmem:[%s2 + $0x58] sm:$0xff]
  %v384 = vld [vmem:[%s2 + $0x60] sm:$0xff]
  %v385 = vld [vmem:[%s2 + $0x68] sm:$0xff]
  %v386 = vld [vmem:[%s2 + $0x70] sm:$0xff]
  %v387 = vld [vmem:[%s2 + $0x78] sm:$0xff]
  %v388 = vld [vmem:[%s3] sm:$0xff]
  %v389 = vld [vmem:[%s3 + $0x8] sm:$0xff]
  %v390 = vld [vmem:[%s3 + $0x10] sm:$0xff]
  %v391 = vld [vmem:[%s3 + $0x18] sm:$0xff]
  %v392 = vld [vmem:[%s3 + $0x20] sm:$0xff]
  %v393 = vld [vmem:[%s3 + $0x28] sm:$0xff]
  %v394 = vld [vmem:[%s3 + $0x30] sm:$0xff]
  %v395 = vld [vmem:[%s3 + $0x38] sm:$0xff]
  %v396 = vld [vmem:[%s3 + $0x40] sm:$0xff]
  %v397 = vld [vmem:[%s3 + $0x48] sm:$0xff]
  %v398 = vld [vmem:[%s3 + $0x50] sm:$0xff]
  %v399 = vld [vmem:[%s3 + $0x58] sm:$0xff]
  %v400 = vld [vmem:[%s3 + $0x60] sm:$0xff]
  %v401 = vld [vmem:[%s3 + $0x68] sm:$0xff]
  %v402 = vld [vmem:[%s3 + $0x70] sm:$0xff]
  %v403 = vld [vmem:[%s3 + $0x78] sm:$0xff]
  %v404 = vld [vmem:[#allocation2] sm:$0xff]
  %v405 = vld [vmem:[#allocation2 + $0x8] sm:$0xff]
  %vm406 = vcmask 523264
  %v408 = vsel %vm406, 0.0, 0
  %410 = vmatprep.subr.mxu0 %v373
  %411 = vmatpush1.msra.mxu0 %v372
  %412 = vmatprep.subr.mxu0 %v375
  %413 = vmatpush1.msra.mxu0 %v374
  %414 = vmatprep.subr.mxu0 %v377
  %415 = vmatpush1.msra.mxu0 %v376
  %416 = vmatprep.subr.mxu0 %v379
  %417 = vmatpush1.msra.mxu0 %v378
  %418 = vmatprep.subr.mxu0 %v381
  %419 = vmatpush1.msra.mxu0 %v380
  %420 = vmatprep.subr.mxu0 %v383
  %421 = vmatpush1.msra.mxu0 %v382
  %422 = vmatprep.subr.mxu0 %v385
  %423 = vmatpush1.msra.mxu0 %v384
  %424 = vmatprep.subr.mxu0 %v387
  %425 = vmatpush1.msra.mxu0 %v386
  %426 = vmatprep.subr.mxu0 0.0
  %427 = vmatpush1.msra.mxu0 0.0
  %428 = vmatprep.subr.mxu0 0.0
  %429 = vmatpush1.msra.mxu0 0.0
  %430 = vmatprep.subr.mxu0 0.0
  %431 = vmatpush1.msra.mxu0 0.0
  %432 = vmatprep.subr.mxu0 0.0
  %433 = vmatpush1.msra.mxu0 0.0
  %434 = vmatprep.subr.mxu0 0.0
  %435 = vmatpush1.msra.mxu0 0.0
  %436 = vmatprep.subr.mxu0 0.0
  %437 = vmatpush1.msra.mxu0 0.0
  %438 = vmatprep.subr.mxu0 0.0
  %439 = vmatpush1.msra.mxu0 0.0
  %440 = vmatprep.subr.mxu0 0.0
  %441 = vmatpush1.msra.mxu0 0.0
  %442 = vmatprep.subr.mxu0 0.0
  %443 = vmatpush1.msra.mxu0 0.0
  %444 = vmatprep.subr.mxu0 0.0
  %445 = vmatpush1.msra.mxu0 0.0
  %446 = vmatprep.subr.mxu0 0.0
  %447 = vmatpush1.msra.mxu0 0.0
  %448 = vmatprep.subr.mxu0 0.0
  %449 = vmatpush1.msra.mxu0 0.0
  %450 = vmatprep.subr.mxu0 0.0
  %451 = vmatpush1.msra.mxu0 0.0
  %452 = vmatprep.subr.mxu0 0.0
  %453 = vmatpush1.msra.mxu0 0.0
  %454 = vmatprep.subr.mxu0 0.0
  %455 = vmatpush1.msra.mxu0 0.0
  %456 = vmatprep.subr.mxu0 0.0
  %457 = vmatpush1.msra.mxu0 0.0
  %458 = vmatprep.subr.mxu0 0.0
  %459 = vmatpush1.msra.mxu0 0.0
  %460 = vmatprep.subr.mxu0 0.0
  %461 = vmatpush1.msra.mxu0 0.0
  %462 = vmatprep.subr.mxu0 0.0
  %463 = vmatpush1.msra.mxu0 0.0
  %464 = vmatprep.subr.mxu0 0.0
  %465 = vmatpush1.msra.mxu0 0.0
  %466 = vmatprep.subr.mxu0 0.0
  %467 = vmatpush1.msra.mxu0 0.0
  %468 = vmatprep.subr.mxu0 0.0
  %469 = vmatpush1.msra.mxu0 0.0
  %470 = vmatprep.subr.mxu0 0.0
  %471 = vmatpush1.msra.mxu0 0.0
  %472 = vmatprep.subr.mxu0 0.0
  %473 = vmatpush1.msra.mxu0 0.0
  %474 = vmatprep.mubr.f32.mxu0 0.0
  %475 = vmatmul.mubr.f32.gmra.mrb[0].mxu0 %v408
  %v476 = vpop.f32.mrb[0].mxu0
  %v477 = vadd.f32 0.0, %v476
  %v478 = vpop.f32.mrb[0].mxu0
  %v479 = vadd.f32 0.0, %v478
  %480 = vdwg.mxu0
  %v481 = vadd.f32 %v404, %v477
  %v482 = vadd.f32 %v405, %v479
  %v483 = vmul.f32 %v481, 0.5
  %v484 = vmul.f32 %v482, 0.5
  %v485 = vtanh.pop %v483
  %v486 = vtanh.pop %v484
  %v487 = vmul.f32 %v485, 0.5
  %v488 = vmul.f32 %v486, 0.5
  %v489 = vadd.f32 %v487, 0.5
  %v490 = vadd.f32 %v488, 0.5
  %v491 = vtanh.pop %v482
  %v492 = vmul.f32 %v489, 0.0
  %494 = vrot.lane.b32.xlu0 %v491, 64
  %v495 = vpop.permute.xlu0 %494
  %v497 = vmul.f32 %v489, %v495
  %499 = vrot.lane.b32.xlu0 %v497, 64
  %v500 = vpop.permute.xlu0 %499
  %v502 = vadd.f32 %v492, %v500
  %v503 = vtanh.pop %v502
  %505 = vrot.lane.b32.xlu0 %v503, 64
  %v506 = vpop.permute.xlu0 %505
  %v508 = vmul.f32 %v490, %v506
  %509 = vst.msk [vmem:[#allocation3] sm:$0xff] %vm406, %v508
  %s510 = scalar_lea.vmem [#allocation2], 32
  %v511 = vld [vmem:[%s510] sm:$0xff]
  %v512 = vld [vmem:[%s510 + $0x8] sm:$0xff]
  %v514 = vsel %vm406, %v508, 0
  %516 = vmatprep.subr.mxu0 %v373
  %517 = vmatpush1.msra.mxu0 %v372
  %518 = vmatprep.subr.mxu0 %v375
  %519 = vmatpush1.msra.mxu0 %v374
  %520 = vmatprep.subr.mxu0 %v377
  %521 = vmatpush1.msra.mxu0 %v376
  %522 = vmatprep.subr.mxu0 %v379
  %523 = vmatpush1.msra.mxu0 %v378
  %524 = vmatprep.subr.mxu0 %v381
  %525 = vmatpush1.msra.mxu0 %v380
  %526 = vmatprep.subr.mxu0 %v383
  %527 = vmatpush1.msra.mxu0 %v382
  %528 = vmatprep.subr.mxu0 %v385
  %529 = vmatpush1.msra.mxu0 %v384
  %530 = vmatprep.subr.mxu0 %v387
  %531 = vmatpush1.msra.mxu0 %v386
  %532 = vmatprep.subr.mxu0 0.0
  %533 = vmatpush1.msra.mxu0 0.0
  %534 = vmatprep.subr.mxu0 0.0
  %535 = vmatpush1.msra.mxu0 0.0
  %536 = vmatprep.subr.mxu0 0.0
  %537 = vmatpush1.msra.mxu0 0.0
  %538 = vmatprep.subr.mxu0 0.0
  %539 = vmatpush1.msra.mxu0 0.0
  %540 = vmatprep.subr.mxu0 0.0
  %541 = vmatpush1.msra.mxu0 0.0
  %542 = vmatprep.subr.mxu0 0.0
  %543 = vmatpush1.msra.mxu0 0.0
  %544 = vmatprep.subr.mxu0 0.0
  %545 = vmatpush1.msra.mxu0 0.0
  %546 = vmatprep.subr.mxu0 0.0
  %547 = vmatpush1.msra.mxu0 0.0
  %548 = vmatprep.subr.mxu0 0.0
  %549 = vmatpush1.msra.mxu0 0.0
  %550 = vmatprep.subr.mxu0 0.0
  %551 = vmatpush1.msra.mxu0 0.0
  %552 = vmatprep.subr.mxu0 0.0
  %553 = vmatpush1.msra.mxu0 0.0
  %554 = vmatprep.subr.mxu0 0.0
  %555 = vmatpush1.msra.mxu0 0.0
  %556 = vmatprep.subr.mxu0 0.0
  %557 = vmatpush1.msra.mxu0 0.0
  %558 = vmatprep.subr.mxu0 0.0
  %559 = vmatpush1.msra.mxu0 0.0
  %560 = vmatprep.subr.mxu0 0.0
  %561 = vmatpush1.msra.mxu0 0.0
  %562 = vmatprep.subr.mxu0 0.0
  %563 = vmatpush1.msra.mxu0 0.0
  %564 = vmatprep.subr.mxu0 0.0
  %565 = vmatpush1.msra.mxu0 0.0
  %566 = vmatprep.subr.mxu0 0.0
  %567 = vmatpush1.msra.mxu0 0.0
  %568 = vmatprep.subr.mxu0 0.0
  %569 = vmatpush1.msra.mxu0 0.0
  %570 = vmatprep.subr.mxu0 0.0
  %571 = vmatpush1.msra.mxu0 0.0
  %572 = vmatprep.subr.mxu0 0.0
  %573 = vmatpush1.msra.mxu0 0.0
  %574 = vmatprep.subr.mxu0 0.0
  %575 = vmatpush1.msra.mxu0 0.0
  %576 = vmatprep.subr.mxu0 0.0
  %577 = vmatpush1.msra.mxu0 0.0
  %578 = vmatprep.subr.mxu0 0.0
  %579 = vmatpush1.msra.mxu0 0.0
  %580 = vmatprep.mubr.f32.mxu0 0.0
  %581 = vmatmul.mubr.f32.gmra.mrb[0].mxu0 %v514
  %v582 = vpop.f32.mrb[0].mxu0
  %v583 = vadd.f32 0.0, %v582
  %v584 = vpop.f32.mrb[0].mxu0
  %v585 = vadd.f32 0.0, %v584
  %586 = vdwg.mxu0
  %v587 = vadd.f32 %v511, %v583
  %v588 = vadd.f32 %v512, %v585
  %v589 = vmul.f32 %v587, 0.5
  %v590 = vmul.f32 %v588, 0.5
  %v591 = vtanh.pop %v589
  %v592 = vtanh.pop %v590
  %v593 = vmul.f32 %v591, 0.5
  %v594 = vmul.f32 %v592, 0.5
  %v595 = vadd.f32 %v593, 0.5
  %v596 = vadd.f32 %v594, 0.5
  %v597 = vtanh.pop %v588
  %v598 = vmul.f32 %v595, %v502
  %600 = vrot.lane.b32.xlu0 %v597, 64
  %v601 = vpop.permute.xlu0 %600
  %v603 = vmul.f32 %v595, %v601
  %605 = vrot.lane.b32.xlu0 %v603, 64
  %v606 = vpop.permute.xlu0 %605
  %v608 = vadd.f32 %v598, %v606
  %v609 = vtanh.pop %v608
  %611 = vrot.lane.b32.xlu0 %v609, 64
  %v612 = vpop.permute.xlu0 %611
  %v614 = vmul.f32 %v596, %v612
  %s615 = scalar_lea.vmem [#allocation3], 8
  %616 = vst.msk [vmem:[%s615] sm:$0xff] %vm406, %v614
  %s617 = scalar_lea.vmem [#allocation2], 64
  %v618 = vld [vmem:[%s617] sm:$0xff]
  %v619 = vld [vmem:[%s617 + $0x8] sm:$0xff]
  %v621 = vsel %vm406, %v614, 0
  %623 = vmatprep.subr.mxu0 %v373
  %624 = vmatpush1.msra.mxu0 %v372
  %625 = vmatprep.subr.mxu0 %v375
  %626 = vmatpush1.msra.mxu0 %v374
  %627 = vmatprep.subr.mxu0 %v377
  %628 = vmatpush1.msra.mxu0 %v376
  %629 = vmatprep.subr.mxu0 %v379
  %630 = vmatpush1.msra.mxu0 %v378
  %631 = vmatprep.subr.mxu0 %v381
  %632 = vmatpush1.msra.mxu0 %v380
  %633 = vmatprep.subr.mxu0 %v383
  %634 = vmatpush1.msra.mxu0 %v382
  %635 = vmatprep.subr.mxu0 %v385
  %636 = vmatpush1.msra.mxu0 %v384
  %637 = vmatprep.subr.mxu0 %v387
  %638 = vmatpush1.msra.mxu0 %v386
  %639 = vmatprep.subr.mxu0 0.0
  %640 = vmatpush1.msra.mxu0 0.0
  %641 = vmatprep.subr.mxu0 0.0
  %642 = vmatpush1.msra.mxu0 0.0
  %643 = vmatprep.subr.mxu0 0.0
  %644 = vmatpush1.msra.mxu0 0.0
  %645 = vmatprep.subr.mxu0 0.0
  %646 = vmatpush1.msra.mxu0 0.0
  %647 = vmatprep.subr.mxu0 0.0
  %648 = vmatpush1.msra.mxu0 0.0
  %649 = vmatprep.subr.mxu0 0.0
  %650 = vmatpush1.msra.mxu0 0.0
  %651 = vmatprep.subr.mxu0 0.0
  %652 = vmatpush1.msra.mxu0 0.0
  %653 = vmatprep.subr.mxu0 0.0
  %654 = vmatpush1.msra.mxu0 0.0
  %655 = vmatprep.subr.mxu0 0.0
  %656 = vmatpush1.msra.mxu0 0.0
  %657 = vmatprep.subr.mxu0 0.0
  %658 = vmatpush1.msra.mxu0 0.0
  %659 = vmatprep.subr.mxu0 0.0
  %660 = vmatpush1.msra.mxu0 0.0
  %661 = vmatprep.subr.mxu0 0.0
  %662 = vmatpush1.msra.mxu0 0.0
  %663 = vmatprep.subr.mxu0 0.0
  %664 = vmatpush1.msra.mxu0 0.0
  %665 = vmatprep.subr.mxu0 0.0
  %666 = vmatpush1.msra.mxu0 0.0
  %667 = vmatprep.subr.mxu0 0.0
  %668 = vmatpush1.msra.mxu0 0.0
  %669 = vmatprep.subr.mxu0 0.0
  %670 = vmatpush1.msra.mxu0 0.0
  %671 = vmatprep.subr.mxu0 0.0
  %672 = vmatpush1.msra.mxu0 0.0
  %673 = vmatprep.subr.mxu0 0.0
  %674 = vmatpush1.msra.mxu0 0.0
  %675 = vmatprep.subr.mxu0 0.0
  %676 = vmatpush1.msra.mxu0 0.0
  %677 = vmatprep.subr.mxu0 0.0
  %678 = vmatpush1.msra.mxu0 0.0
  %679 = vmatprep.subr.mxu0 0.0
  %680 = vmatpush1.msra.mxu0 0.0
  %681 = vmatprep.subr.mxu0 0.0
  %682 = vmatpush1.msra.mxu0 0.0
  %683 = vmatprep.subr.mxu0 0.0
  %684 = vmatpush1.msra.mxu0 0.0
  %685 = vmatprep.subr.mxu0 0.0
  %686 = vmatpush1.msra.mxu0 0.0
  %687 = vmatprep.mubr.f32.mxu0 0.0
  %688 = vmatmul.mubr.f32.gmra.mrb[0].mxu0 %v621
  %v689 = vpop.f32.mrb[0].mxu0
  %v690 = vadd.f32 0.0, %v689
  %v691 = vpop.f32.mrb[0].mxu0
  %v692 = vadd.f32 0.0, %v691
  %693 = vdwg.mxu0
  %v694 = vadd.f32 %v618, %v690
  %v695 = vadd.f32 %v619, %v692
  %v696 = vmul.f32 %v694, 0.5
  %v697 = vmul.f32 %v695, 0.5
  %v698 = vtanh.pop %v696
  %v699 = vtanh.pop %v697
  %v700 = vmul.f32 %v698, 0.5
  %v701 = vmul.f32 %v699, 0.5
  %v702 = vadd.f32 %v700, 0.5
  %v703 = vadd.f32 %v701, 0.5
  %v704 = vtanh.pop %v695
  %v705 = vmul.f32 %v702, %v608
  %707 = vrot.lane.b32.xlu0 %v704, 64
  %v708 = vpop.permute.xlu0 %707
  %v710 = vmul.f32 %v702, %v708
  %712 = vrot.lane.b32.xlu0 %v710, 64
  %v713 = vpop.permute.xlu0 %712
  %v715 = vadd.f32 %v705, %v713
  %v716 = vtanh.pop %v715
  %718 = vrot.lane.b32.xlu0 %v716, 64
  %v719 = vpop.permute.xlu0 %718
  %v721 = vmul.f32 %v703, %v719
  %s722 = scalar_lea.vmem [#allocation3], 16
  %723 = vst.msk [vmem:[%s722] sm:$0xff] %vm406, %v721
  %s724 = scalar_lea.vmem [#allocation2], 96
  %v725 = vld [vmem:[%s724] sm:$0xff]
  %v726 = vld [vmem:[%s724 + $0x8] sm:$0xff]
  %v728 = vsel %vm406, %v721, 0
  %730 = vmatprep.subr.mxu0 %v373
  %731 = vmatpush1.msra.mxu0 %v372
  %732 = vmatprep.subr.mxu0 %v375
  %733 = vmatpush1.msra.mxu0 %v374
  %734 = vmatprep.subr.mxu0 %v377
  %735 = vmatpush1.msra.mxu0 %v376
  %736 = vmatprep.subr.mxu0 %v379
  %737 = vmatpush1.msra.mxu0 %v378
  %738 = vmatprep.subr.mxu0 %v381
  %739 = vmatpush1.msra.mxu0 %v380
  %740 = vmatprep.subr.mxu0 %v383
  %741 = vmatpush1.msra.mxu0 %v382
  %742 = vmatprep.subr.mxu0 %v385
  %743 = vmatpush1.msra.mxu0 %v384
  %744 = vmatprep.subr.mxu0 %v387
  %745 = vmatpush1.msra.mxu0 %v386
  %746 = vmatprep.subr.mxu0 0.0
  %747 = vmatpush1.msra.mxu0 0.0
  %748 = vmatprep.subr.mxu0 0.0
  %749 = vmatpush1.msra.mxu0 0.0
  %750 = vmatprep.subr.mxu0 0.0
  %751 = vmatpush1.msra.mxu0 0.0
  %752 = vmatprep.subr.mxu0 0.0
  %753 = vmatpush1.msra.mxu0 0.0
  %754 = vmatprep.subr.mxu0 0.0
  %755 = vmatpush1.msra.mxu0 0.0
  %756 = vmatprep.subr.mxu0 0.0
  %757 = vmatpush1.msra.mxu0 0.0
  %758 = vmatprep.subr.mxu0 0.0
  %759 = vmatpush1.msra.mxu0 0.0
  %760 = vmatprep.subr.mxu0 0.0
  %761 = vmatpush1.msra.mxu0 0.0
  %762 = vmatprep.subr.mxu0 0.0
  %763 = vmatpush1.msra.mxu0 0.0
  %764 = vmatprep.subr.mxu0 0.0
  %765 = vmatpush1.msra.mxu0 0.0
  %766 = vmatprep.subr.mxu0 0.0
  %767 = vmatpush1.msra.mxu0 0.0
  %768 = vmatprep.subr.mxu0 0.0
  %769 = vmatpush1.msra.mxu0 0.0
  %770 = vmatprep.subr.mxu0 0.0
  %771 = vmatpush1.msra.mxu0 0.0
  %772 = vmatprep.subr.mxu0 0.0
  %773 = vmatpush1.msra.mxu0 0.0
  %774 = vmatprep.subr.mxu0 0.0
  %775 = vmatpush1.msra.mxu0 0.0
  %776 = vmatprep.subr.mxu0 0.0
  %777 = vmatpush1.msra.mxu0 0.0
  %778 = vmatprep.subr.mxu0 0.0
  %779 = vmatpush1.msra.mxu0 0.0
  %780 = vmatprep.subr.mxu0 0.0
  %781 = vmatpush1.msra.mxu0 0.0
  %782 = vmatprep.subr.mxu0 0.0
  %783 = vmatpush1.msra.mxu0 0.0
  %784 = vmatprep.subr.mxu0 0.0
  %785 = vmatpush1.msra.mxu0 0.0
  %786 = vmatprep.subr.mxu0 0.0
  %787 = vmatpush1.msra.mxu0 0.0
  %788 = vmatprep.subr.mxu0 0.0
  %789 = vmatpush1.msra.mxu0 0.0
  %790 = vmatprep.subr.mxu0 0.0
  %791 = vmatpush1.msra.mxu0 0.0
  %792 = vmatprep.subr.mxu0 0.0
  %793 = vmatpush1.msra.mxu0 0.0
  %794 = vmatprep.mubr.f32.mxu0 0.0
  %795 = vmatmul.mubr.f32.gmra.mrb[0].mxu0 %v728
  %v796 = vpop.f32.mrb[0].mxu0
  %v797 = vadd.f32 0.0, %v796
  %v798 = vpop.f32.mrb[0].mxu0
  %v799 = vadd.f32 0.0, %v798
  %800 = vdwg.mxu0
  %v801 = vadd.f32 %v725, %v797
  %v802 = vadd.f32 %v726, %v799
  %v803 = vmul.f32 %v801, 0.5
  %v804 = vmul.f32 %v802, 0.5
  %v805 = vtanh.pop %v803
  %v806 = vtanh.pop %v804
  %v807 = vmul.f32 %v805, 0.5
  %v808 = vmul.f32 %v806, 0.5
  %v809 = vadd.f32 %v807, 0.5
  %v810 = vadd.f32 %v808, 0.5
  %v811 = vtanh.pop %v802
  %v812 = vmul.f32 %v809, %v715
  %814 = vrot.lane.b32.xlu0 %v811, 64
  %v815 = vpop.permute.xlu0 %814
  %v817 = vmul.f32 %v809, %v815
  %819 = vrot.lane.b32.xlu0 %v817, 64
  %v820 = vpop.permute.xlu0 %819
  %v822 = vadd.f32 %v812, %v820
  %v823 = vtanh.pop %v822
  %825 = vrot.lane.b32.xlu0 %v823, 64
  %v826 = vpop.permute.xlu0 %825
  %v828 = vmul.f32 %v810, %v826
  %s829 = scalar_lea.vmem [#allocation3], 24
  %830 = vst.msk [vmem:[%s829] sm:$0xff] %vm406, %v828
  %s831 = scalar_lea.vmem [#allocation2], 128
  %v832 = vld [vmem:[%s831] sm:$0xff]
  %v833 = vld [vmem:[%s831 + $0x8] sm:$0xff]
  %v835 = vsel %vm406, %v828, 0
  %837 = vmatprep.subr.mxu0 %v373
  %838 = vmatpush1.msra.mxu0 %v372
  %839 = vmatprep.subr.mxu0 %v375
  %840 = vmatpush1.msra.mxu0 %v374
  %841 = vmatprep.subr.mxu0 %v377
  %842 = vmatpush1.msra.mxu0 %v376
  %843 = vmatprep.subr.mxu0 %v379
  %844 = vmatpush1.msra.mxu0 %v378
  %845 = vmatprep.subr.mxu0 %v381
  %846 = vmatpush1.msra.mxu0 %v380
  %847 = vmatprep.subr.mxu0 %v383
  %848 = vmatpush1.msra.mxu0 %v382
  %849 = vmatprep.subr.mxu0 %v385
  %850 = vmatpush1.msra.mxu0 %v384
  %851 = vmatprep.subr.mxu0 %v387
  %852 = vmatpush1.msra.mxu0 %v386
  %853 = vmatprep.subr.mxu0 0.0
  %854 = vmatpush1.msra.mxu0 0.0
  %855 = vmatprep.subr.mxu0 0.0
  %856 = vmatpush1.msra.mxu0 0.0
  %857 = vmatprep.subr.mxu0 0.0
  %858 = vmatpush1.msra.mxu0 0.0
  %859 = vmatprep.subr.mxu0 0.0
  %860 = vmatpush1.msra.mxu0 0.0
  %861 = vmatprep.subr.mxu0 0.0
  %862 = vmatpush1.msra.mxu0 0.0
  %863 = vmatprep.subr.mxu0 0.0
  %864 = vmatpush1.msra.mxu0 0.0
  %865 = vmatprep.subr.mxu0 0.0
  %866 = vmatpush1.msra.mxu0 0.0
  %867 = vmatprep.subr.mxu0 0.0
  %868 = vmatpush1.msra.mxu0 0.0
  %869 = vmatprep.subr.mxu0 0.0
  %870 = vmatpush1.msra.mxu0 0.0
  %871 = vmatprep.subr.mxu0 0.0
  %872 = vmatpush1.msra.mxu0 0.0
  %873 = vmatprep.subr.mxu0 0.0
  %874 = vmatpush1.msra.mxu0 0.0
  %875 = vmatprep.subr.mxu0 0.0
  %876 = vmatpush1.msra.mxu0 0.0
  %877 = vmatprep.subr.mxu0 0.0
  %878 = vmatpush1.msra.mxu0 0.0
  %879 = vmatprep.subr.mxu0 0.0
  %880 = vmatpush1.msra.mxu0 0.0
  %881 = vmatprep.subr.mxu0 0.0
  %882 = vmatpush1.msra.mxu0 0.0
  %883 = vmatprep.subr.mxu0 0.0
  %884 = vmatpush1.msra.mxu0 0.0
  %885 = vmatprep.subr.mxu0 0.0
  %886 = vmatpush1.msra.mxu0 0.0
  %887 = vmatprep.subr.mxu0 0.0
  %888 = vmatpush1.msra.mxu0 0.0
  %889 = vmatprep.subr.mxu0 0.0
  %890 = vmatpush1.msra.mxu0 0.0
  %891 = vmatprep.subr.mxu0 0.0
  %892 = vmatpush1.msra.mxu0 0.0
  %893 = vmatprep.subr.mxu0 0.0
  %894 = vmatpush1.msra.mxu0 0.0
  %895 = vmatprep.subr.mxu0 0.0
  %896 = vmatpush1.msra.mxu0 0.0
  %897 = vmatprep.subr.mxu0 0.0
  %898 = vmatpush1.msra.mxu0 0.0
  %899 = vmatprep.subr.mxu0 0.0
  %900 = vmatpush1.msra.mxu0 0.0
  %901 = vmatprep.mubr.f32.mxu0 0.0
  %902 = vmatmul.mubr.f32.gmra.mrb[0].mxu0 %v835
  %v903 = vpop.f32.mrb[0].mxu0
  %v904 = vadd.f32 0.0, %v903
  %v905 = vpop.f32.mrb[0].mxu0
  %v906 = vadd.f32 0.0, %v905
  %907 = vdwg.mxu0
  %v908 = vadd.f32 %v832, %v904
  %v909 = vadd.f32 %v833, %v906
  %v910 = vmul.f32 %v908, 0.5
  %v911 = vmul.f32 %v909, 0.5
  %v912 = vtanh.pop %v910
  %v913 = vtanh.pop %v911
  %v914 = vmul.f32 %v912, 0.5
  %v915 = vmul.f32 %v913, 0.5
  %v916 = vadd.f32 %v914, 0.5
  %v917 = vadd.f32 %v915, 0.5
  %v918 = vtanh.pop %v909
  %v919 = vmul.f32 %v916, %v822
  %921 = vrot.lane.b32.xlu0 %v918, 64
  %v922 = vpop.permute.xlu0 %921
  %v924 = vmul.f32 %v916, %v922
  %926 = vrot.lane.b32.xlu0 %v924, 64
  %v927 = vpop.permute.xlu0 %926
  %v929 = vadd.f32 %v919, %v927
  %v930 = vtanh.pop %v929
  %932 = vrot.lane.b32.xlu0 %v930, 64
  %v933 = vpop.permute.xlu0 %932
  %v935 = vmul.f32 %v917, %v933
  %s936 = scalar_lea.vmem [#allocation3], 32
  %937 = vst.msk [vmem:[%s936] sm:$0xff] %vm406, %v935
  %s938 = scalar_lea.vmem [#allocation2], 160
  %v939 = vld [vmem:[%s938] sm:$0xff]
  %v940 = vld [vmem:[%s938 + $0x8] sm:$0xff]
  %v942 = vsel %vm406, %v935, 0
  %944 = vmatprep.subr.mxu0 %v373
  %945 = vmatpush1.msra.mxu0 %v372
  %946 = vmatprep.subr.mxu0 %v375
  %947 = vmatpush1.msra.mxu0 %v374
  %948 = vmatprep.subr.mxu0 %v377
  %949 = vmatpush1.msra.mxu0 %v376
  %950 = vmatprep.subr.mxu0 %v379
  %951 = vmatpush1.msra.mxu0 %v378
  %952 = vmatprep.subr.mxu0 %v381
  %953 = vmatpush1.msra.mxu0 %v380
  %954 = vmatprep.subr.mxu0 %v383
  %955 = vmatpush1.msra.mxu0 %v382
  %956 = vmatprep.subr.mxu0 %v385
  %957 = vmatpush1.msra.mxu0 %v384
  %958 = vmatprep.subr.mxu0 %v387
  %959 = vmatpush1.msra.mxu0 %v386
  %960 = vmatprep.subr.mxu0 0.0
  %961 = vmatpush1.msra.mxu0 0.0
  %962 = vmatprep.subr.mxu0 0.0
  %963 = vmatpush1.msra.mxu0 0.0
  %964 = vmatprep.subr.mxu0 0.0
  %965 = vmatpush1.msra.mxu0 0.0
  %966 = vmatprep.subr.mxu0 0.0
  %967 = vmatpush1.msra.mxu0 0.0
  %968 = vmatprep.subr.mxu0 0.0
  %969 = vmatpush1.msra.mxu0 0.0
  %970 = vmatprep.subr.mxu0 0.0
  %971 = vmatpush1.msra.mxu0 0.0
  %972 = vmatprep.subr.mxu0 0.0
  %973 = vmatpush1.msra.mxu0 0.0
  %974 = vmatprep.subr.mxu0 0.0
  %975 = vmatpush1.msra.mxu0 0.0
  %976 = vmatprep.subr.mxu0 0.0
  %977 = vmatpush1.msra.mxu0 0.0
  %978 = vmatprep.subr.mxu0 0.0
  %979 = vmatpush1.msra.mxu0 0.0
  %980 = vmatprep.subr.mxu0 0.0
  %981 = vmatpush1.msra.mxu0 0.0
  %982 = vmatprep.subr.mxu0 0.0
  %983 = vmatpush1.msra.mxu0 0.0
  %984 = vmatprep.subr.mxu0 0.0
  %985 = vmatpush1.msra.mxu0 0.0
  %986 = vmatprep.subr.mxu0 0.0
  %987 = vmatpush1.msra.mxu0 0.0
  %988 = vmatprep.subr.mxu0 0.0
  %989 = vmatpush1.msra.mxu0 0.0
  %990 = vmatprep.subr.mxu0 0.0
  %991 = vmatpush1.msra.mxu0 0.0
  %992 = vmatprep.subr.mxu0 0.0
  %993 = vmatpush1.msra.mxu0 0.0
  %994 = vmatprep.subr.mxu0 0.0
  %995 = vmatpush1.msra.mxu0 0.0
  %996 = vmatprep.subr.mxu0 0.0
  %997 = vmatpush1.msra.mxu0 0.0
  %998 = vmatprep.subr.mxu0 0.0
  %999 = vmatpush1.msra.mxu0 0.0
  %1000 = vmatprep.subr.mxu0 0.0
  %1001 = vmatpush1.msra.mxu0 0.0
  %1002 = vmatprep.subr.mxu0 0.0
  %1003 = vmatpush1.msra.mxu0 0.0
  %1004 = vmatprep.subr.mxu0 0.0
  %1005 = vmatpush1.msra.mxu0 0.0
  %1006 = vmatprep.subr.mxu0 0.0
  %1007 = vmatpush1.msra.mxu0 0.0
  %1008 = vmatprep.mubr.f32.mxu0 0.0
  %1009 = vmatmul.mubr.f32.gmra.mrb[0].mxu0 %v942
  %v1010 = vpop.f32.mrb[0].mxu0
  %v1011 = vadd.f32 0.0, %v1010
  %v1012 = vpop.f32.mrb[0].mxu0
  %v1013 = vadd.f32 0.0, %v1012
  %1014 = vdwg.mxu0
  %v1015 = vadd.f32 %v939, %v1011
  %v1016 = vadd.f32 %v940, %v1013
  %v1017 = vmul.f32 %v1015, 0.5
  %v1018 = vmul.f32 %v1016, 0.5
  %v1019 = vtanh.pop %v1017
  %v1020 = vtanh.pop %v1018
  %v1021 = vmul.f32 %v1019, 0.5
  %v1022 = vmul.f32 %v1020, 0.5
  %v1023 = vadd.f32 %v1021, 0.5
  %v1024 = vadd.f32 %v1022, 0.5
  %v1025 = vtanh.pop %v1016
  %v1026 = vmul.f32 %v1023, %v929
  %1028 = vrot.lane.b32.xlu0 %v1025, 64
  %v1029 = vpop.permute.xlu0 %1028
  %v1031 = vmul.f32 %v1023, %v1029
  %1033 = vrot.lane.b32.xlu0 %v1031, 64
  %v1034 = vpop.permute.xlu0 %1033
  %v1036 = vadd.f32 %v1026, %v1034
  %v1037 = vtanh.pop %v1036
  %1039 = vrot.lane.b32.xlu0 %v1037, 64
  %v1040 = vpop.permute.xlu0 %1039
  %v1042 = vmul.f32 %v1024, %v1040
  %s1043 = scalar_lea.vmem [#allocation3], 40
  %1044 = vst.msk [vmem:[%s1043] sm:$0xff] %vm406, %v1042
  %s1045 = scalar_lea.vmem [#allocation2], 192
  %v1046 = vld [vmem:[%s1045] sm:$0xff]
  %v1047 = vld [vmem:[%s1045 + $0x8] sm:$0xff]
  %v1049 = vsel %vm406, %v1042, 0
  %1051 = vmatprep.subr.mxu0 %v373
  %1052 = vmatpush1.msra.mxu0 %v372
  %1053 = vmatprep.subr.mxu0 %v375
  %1054 = vmatpush1.msra.mxu0 %v374
  %1055 = vmatprep.subr.mxu0 %v377
  %1056 = vmatpush1.msra.mxu0 %v376
  %1057 = vmatprep.subr.mxu0 %v379
  %1058 = vmatpush1.msra.mxu0 %v378
  %1059 = vmatprep.subr.mxu0 %v381
  %1060 = vmatpush1.msra.mxu0 %v380
  %1061 = vmatprep.subr.mxu0 %v383
  %1062 = vmatpush1.msra.mxu0 %v382
  %1063 = vmatprep.subr.mxu0 %v385
  %1064 = vmatpush1.msra.mxu0 %v384
  %1065 = vmatprep.subr.mxu0 %v387
  %1066 = vmatpush1.msra.mxu0 %v386
  %1067 = vmatprep.subr.mxu0 0.0
  %1068 = vmatpush1.msra.mxu0 0.0
  %1069 = vmatprep.subr.mxu0 0.0
  %1070 = vmatpush1.msra.mxu0 0.0
  %1071 = vmatprep.subr.mxu0 0.0
  %1072 = vmatpush1.msra.mxu0 0.0
  %1073 = vmatprep.subr.mxu0 0.0
  %1074 = vmatpush1.msra.mxu0 0.0
  %1075 = vmatprep.subr.mxu0 0.0
  %1076 = vmatpush1.msra.mxu0 0.0
  %1077 = vmatprep.subr.mxu0 0.0
  %1078 = vmatpush1.msra.mxu0 0.0
  %1079 = vmatprep.subr.mxu0 0.0
  %1080 = vmatpush1.msra.mxu0 0.0
  %1081 = vmatprep.subr.mxu0 0.0
  %1082 = vmatpush1.msra.mxu0 0.0
  %1083 = vmatprep.subr.mxu0 0.0
  %1084 = vmatpush1.msra.mxu0 0.0
  %1085 = vmatprep.subr.mxu0 0.0
  %1086 = vmatpush1.msra.mxu0 0.0
  %1087 = vmatprep.subr.mxu0 0.0
  %1088 = vmatpush1.msra.mxu0 0.0
  %1089 = vmatprep.subr.mxu0 0.0
  %1090 = vmatpush1.msra.mxu0 0.0
  %1091 = vmatprep.subr.mxu0 0.0
  %1092 = vmatpush1.msra.mxu0 0.0
  %1093 = vmatprep.subr.mxu0 0.0
  %1094 = vmatpush1.msra.mxu0 0.0
  %1095 = vmatprep.subr.mxu0 0.0
  %1096 = vmatpush1.msra.mxu0 0.0
  %1097 = vmatprep.subr.mxu0 0.0
  %1098 = vmatpush1.msra.mxu0 0.0
  %1099 = vmatprep.subr.mxu0 0.0
  %1100 = vmatpush1.msra.mxu0 0.0
  %1101 = vmatprep.subr.mxu0 0.0
  %1102 = vmatpush1.msra.mxu0 0.0
  %1103 = vmatprep.subr.mxu0 0.0
  %1104 = vmatpush1.msra.mxu0 0.0
  %1105 = vmatprep.subr.mxu0 0.0
  %1106 = vmatpush1.msra.mxu0 0.0
  %1107 = vmatprep.subr.mxu0 0.0
  %1108 = vmatpush1.msra.mxu0 0.0
  %1109 = vmatprep.subr.mxu0 0.0
  %1110 = vmatpush1.msra.mxu0 0.0
  %1111 = vmatprep.subr.mxu0 0.0
  %1112 = vmatpush1.msra.mxu0 0.0
  %1113 = vmatprep.subr.mxu0 0.0
  %1114 = vmatpush1.msra.mxu0 0.0
  %1115 = vmatprep.mubr.f32.mxu0 0.0
  %1116 = vmatmul.mubr.f32.gmra.mrb[0].mxu0 %v1049
  %v1117 = vpop.f32.mrb[0].mxu0
  %v1118 = vadd.f32 0.0, %v1117
  %v1119 = vpop.f32.mrb[0].mxu0
  %v1120 = vadd.f32 0.0, %v1119
  %1121 = vdwg.mxu0
  %v1122 = vadd.f32 %v1046, %v1118
  %v1123 = vadd.f32 %v1047, %v1120
  %v1124 = vmul.f32 %v1122, 0.5
  %v1125 = vmul.f32 %v1123, 0.5
  %v1126 = vtanh.pop %v1124
  %v1127 = vtanh.pop %v1125
  %v1128 = vmul.f32 %v1126, 0.5
  %v1129 = vmul.f32 %v1127, 0.5
  %v1130 = vadd.f32 %v1128, 0.5
  %v1131 = vadd.f32 %v1129, 0.5
  %v1132 = vtanh.pop %v1123
  %v1133 = vmul.f32 %v1130, %v1036
  %1135 = vrot.lane.b32.xlu0 %v1132, 64
  %v1136 = vpop.permute.xlu0 %1135
  %v1138 = vmul.f32 %v1130, %v1136
  %1140 = vrot.lane.b32.xlu0 %v1138, 64
  %v1141 = vpop.permute.xlu0 %1140
  %v1143 = vadd.f32 %v1133, %v1141
  %v1144 = vtanh.pop %v1143
  %1146 = vrot.lane.b32.xlu0 %v1144, 64
  %v1147 = vpop.permute.xlu0 %1146
  %v1149 = vmul.f32 %v1131, %v1147
  %s1150 = scalar_lea.vmem [#allocation3], 48
  %1151 = vst.msk [vmem:[%s1150] sm:$0xff] %vm406, %v1149
  %s1152 = scalar_lea.vmem [#allocation2], 224
  %v1153 = vld [vmem:[%s1152] sm:$0xff]
  %v1154 = vld [vmem:[%s1152 + $0x8] sm:$0xff]
  %v1156 = vsel %vm406, %v1149, 0
  %1158 = vmatprep.subr.mxu0 %v373
  %1159 = vmatpush1.msra.mxu0 %v372
  %1160 = vmatprep.subr.mxu0 %v375
  %1161 = vmatpush1.msra.mxu0 %v374
  %1162 = vmatprep.subr.mxu0 %v377
  %1163 = vmatpush1.msra.mxu0 %v376
  %1164 = vmatprep.subr.mxu0 %v379
  %1165 = vmatpush1.msra.mxu0 %v378
  %1166 = vmatprep.subr.mxu0 %v381
  %1167 = vmatpush1.msra.mxu0 %v380
  %1168 = vmatprep.subr.mxu0 %v383
  %1169 = vmatpush1.msra.mxu0 %v382
  %1170 = vmatprep.subr.mxu0 %v385
  %1171 = vmatpush1.msra.mxu0 %v384
  %1172 = vmatprep.subr.mxu0 %v387
  %1173 = vmatpush1.msra.mxu0 %v386
  %1174 = vmatprep.subr.mxu0 0.0
  %1175 = vmatpush1.msra.mxu0 0.0
  %1176 = vmatprep.subr.mxu0 0.0
  %1177 = vmatpush1.msra.mxu0 0.0
  %1178 = vmatprep.subr.mxu0 0.0
  %1179 = vmatpush1.msra.mxu0 0.0
  %1180 = vmatprep.subr.mxu0 0.0
  %1181 = vmatpush1.msra.mxu0 0.0
  %1182 = vmatprep.subr.mxu0 0.0
  %1183 = vmatpush1.msra.mxu0 0.0
  %1184 = vmatprep.subr.mxu0 0.0
  %1185 = vmatpush1.msra.mxu0 0.0
  %1186 = vmatprep.subr.mxu0 0.0
  %1187 = vmatpush1.msra.mxu0 0.0
  %1188 = vmatprep.subr.mxu0 0.0
  %1189 = vmatpush1.msra.mxu0 0.0
  %1190 = vmatprep.subr.mxu0 0.0
  %1191 = vmatpush1.msra.mxu0 0.0
  %1192 = vmatprep.subr.mxu0 0.0
  %1193 = vmatpush1.msra.mxu0 0.0
  %1194 = vmatprep.subr.mxu0 0.0
  %1195 = vmatpush1.msra.mxu0 0.0
  %1196 = vmatprep.subr.mxu0 0.0
  %1197 = vmatpush1.msra.mxu0 0.0
  %1198 = vmatprep.subr.mxu0 0.0
  %1199 = vmatpush1.msra.mxu0 0.0
  %1200 = vmatprep.subr.mxu0 0.0
  %1201 = vmatpush1.msra.mxu0 0.0
  %1202 = vmatprep.subr.mxu0 0.0
  %1203 = vmatpush1.msra.mxu0 0.0
  %1204 = vmatprep.subr.mxu0 0.0
  %1205 = vmatpush1.msra.mxu0 0.0
  %1206 = vmatprep.subr.mxu0 0.0
  %1207 = vmatpush1.msra.mxu0 0.0
  %1208 = vmatprep.subr.mxu0 0.0
  %1209 = vmatpush1.msra.mxu0 0.0
  %1210 = vmatprep.subr.mxu0 0.0
  %1211 = vmatpush1.msra.mxu0 0.0
  %1212 = vmatprep.subr.mxu0 0.0
  %1213 = vmatpush1.msra.mxu0 0.0
  %1214 = vmatprep.subr.mxu0 0.0
  %1215 = vmatpush1.msra.mxu0 0.0
  %1216 = vmatprep.subr.mxu0 0.0
  %1217 = vmatpush1.msra.mxu0 0.0
  %1218 = vmatprep.subr.mxu0 0.0
  %1219 = vmatpush1.msra.mxu0 0.0
  %1220 = vmatprep.subr.mxu0 0.0
  %1221 = vmatpush1.msra.mxu0 0.0
  %1222 = vmatprep.mubr.f32.mxu0 0.0
  %1223 = vmatmul.mubr.f32.gmra.mrb[0].mxu0 %v1156
  %v1224 = vpop.f32.mrb[0].mxu0
  %v1225 = vadd.f32 0.0, %v1224
  %v1226 = vpop.f32.mrb[0].mxu0
  %v1227 = vadd.f32 0.0, %v1226
  %1228 = vdwg.mxu0
  %v1229 = vadd.f32 %v1153, %v1225
  %v1230 = vadd.f32 %v1154, %v1227
  %v1231 = vmul.f32 %v1229, 0.5
  %v1232 = vmul.f32 %v1230, 0.5
  %v1233 = vtanh.pop %v1231
  %v1234 = vtanh.pop %v1232
  %v1235 = vmul.f32 %v1233, 0.5
  %v1236 = vmul.f32 %v1234, 0.5
  %v1237 = vadd.f32 %v1235, 0.5
  %v1238 = vadd.f32 %v1236, 0.5
  %v1239 = vtanh.pop %v1230
  %v1240 = vmul.f32 %v1237, %v1143
  %1242 = vrot.lane.b32.xlu0 %v1239, 64
  %v1243 = vpop.permute.xlu0 %1242
  %v1245 = vmul.f32 %v1237, %v1243
  %1247 = vrot.lane.b32.xlu0 %v1245, 64
  %v1248 = vpop.permute.xlu0 %1247
  %v1250 = vadd.f32 %v1240, %v1248
  %v1251 = vtanh.pop %v1250
  %1253 = vrot.lane.b32.xlu0 %v1251, 64
  %v1254 = vpop.permute.xlu0 %1253
  %v1256 = vmul.f32 %v1238, %v1254
  %s1257 = scalar_lea.vmem [#allocation3], 56
  %1258 = vst.msk [vmem:[%s1257] sm:$0xff] %vm406, %v1256
  %v1259 = vld [vmem:[%s1152 + $0x10] sm:$0xff]
  %v1260 = vld [vmem:[%s1152 + $0x18] sm:$0xff]
  %1261 = vmatprep.subr.mxu0 %v389
  %1262 = vmatpush1.msra.mxu0 %v388
  %1263 = vmatprep.subr.mxu0 %v391
  %1264 = vmatpush1.msra.mxu0 %v390
  %1265 = vmatprep.subr.mxu0 %v393
  %1266 = vmatpush1.msra.mxu0 %v392
  %1267 = vmatprep.subr.mxu0 %v395
  %1268 = vmatpush1.msra.mxu0 %v394
  %1269 = vmatprep.subr.mxu0 %v397
  %1270 = vmatpush1.msra.mxu0 %v396
  %1271 = vmatprep.subr.mxu0 %v399
  %1272 = vmatpush1.msra.mxu0 %v398
  %1273 = vmatprep.subr.mxu0 %v401
  %1274 = vmatpush1.msra.mxu0 %v400
  %1275 = vmatprep.subr.mxu0 %v403
  %1276 = vmatpush1.msra.mxu0 %v402
  %1277 = vmatprep.subr.mxu0 0.0
  %1278 = vmatpush1.msra.mxu0 0.0
  %1279 = vmatprep.subr.mxu0 0.0
  %1280 = vmatpush1.msra.mxu0 0.0
  %1281 = vmatprep.subr.mxu0 0.0
  %1282 = vmatpush1.msra.mxu0 0.0
  %1283 = vmatprep.subr.mxu0 0.0
  %1284 = vmatpush1.msra.mxu0 0.0
  %1285 = vmatprep.subr.mxu0 0.0
  %1286 = vmatpush1.msra.mxu0 0.0
  %1287 = vmatprep.subr.mxu0 0.0
  %1288 = vmatpush1.msra.mxu0 0.0
  %1289 = vmatprep.subr.mxu0 0.0
  %1290 = vmatpush1.msra.mxu0 0.0
  %1291 = vmatprep.subr.mxu0 0.0
  %1292 = vmatpush1.msra.mxu0 0.0
  %1293 = vmatprep.subr.mxu0 0.0
  %1294 = vmatpush1.msra.mxu0 0.0
  %1295 = vmatprep.subr.mxu0 0.0
  %1296 = vmatpush1.msra.mxu0 0.0
  %1297 = vmatprep.subr.mxu0 0.0
  %1298 = vmatpush1.msra.mxu0 0.0
  %1299 = vmatprep.subr.mxu0 0.0
  %1300 = vmatpush1.msra.mxu0 0.0
  %1301 = vmatprep.subr.mxu0 0.0
  %1302 = vmatpush1.msra.mxu0 0.0
  %1303 = vmatprep.subr.mxu0 0.0
  %1304 = vmatpush1.msra.mxu0 0.0
  %1305 = vmatprep.subr.mxu0 0.0
  %1306 = vmatpush1.msra.mxu0 0.0
  %1307 = vmatprep.subr.mxu0 0.0
  %1308 = vmatpush1.msra.mxu0 0.0
  %1309 = vmatprep.subr.mxu0 0.0
  %1310 = vmatpush1.msra.mxu0 0.0
  %1311 = vmatprep.subr.mxu0 0.0
  %1312 = vmatpush1.msra.mxu0 0.0
  %1313 = vmatprep.subr.mxu0 0.0
  %1314 = vmatpush1.msra.mxu0 0.0
  %1315 = vmatprep.subr.mxu0 0.0
  %1316 = vmatpush1.msra.mxu0 0.0
  %1317 = vmatprep.subr.mxu0 0.0
  %1318 = vmatpush1.msra.mxu0 0.0
  %1319 = vmatprep.subr.mxu0 0.0
  %1320 = vmatpush1.msra.mxu0 0.0
  %1321 = vmatprep.subr.mxu0 0.0
  %1322 = vmatpush1.msra.mxu0 0.0
  %1323 = vmatprep.subr.mxu0 0.0
  %1324 = vmatpush1.msra.mxu0 0.0
  %1325 = vmatprep.mubr.f32.mxu0 0.0
  %1326 = vmatmul.mubr.f32.gmra.mrb[0].mxu0 %v408
  %v1327 = vpop.f32.mrb[0].mxu0
  %v1328 = vadd.f32 0.0, %v1327
  %v1329 = vpop.f32.mrb[0].mxu0
  %v1330 = vadd.f32 0.0, %v1329
  %1331 = vdwg.mxu0
  %v1332 = vadd.f32 %v1259, %v1328
  %v1333 = vadd.f32 %v1260, %v1330
  %v1334 = vmul.f32 %v1332, 0.5
  %v1335 = vmul.f32 %v1333, 0.5
  %v1336 = vtanh.pop %v1334
  %v1337 = vtanh.pop %v1335
  %v1338 = vmul.f32 %v1336, 0.5
  %v1339 = vmul.f32 %v1337, 0.5
  %v1340 = vadd.f32 %v1338, 0.5
  %v1341 = vadd.f32 %v1339, 0.5
  %v1342 = vtanh.pop %v1333
  %v1343 = vmul.f32 %v1340, 0.0
  %1345 = vrot.lane.b32.xlu0 %v1342, 64
  %v1346 = vpop.permute.xlu0 %1345
  %v1348 = vmul.f32 %v1340, %v1346
  %1350 = vrot.lane.b32.xlu0 %v1348, 64
  %v1351 = vpop.permute.xlu0 %1350
  %v1353 = vadd.f32 %v1343, %v1351
  %v1354 = vtanh.pop %v1353
  %1356 = vrot.lane.b32.xlu0 %v1354, 64
  %v1357 = vpop.permute.xlu0 %1356
  %v1359 = vmul.f32 %v1341, %v1357
  %v1360 = vld [vmem:[%s1257] sm:$0xff]
  %1362 = vrot.lane.b32.xlu0 %v1359, 64
  %v1363 = vpop.permute.xlu0 %1362
  %v1365 = vsel %vm406, %v1360, %v1363
  %s1366 = scalar_lea.vmem %s5, 56
  %1367 = vst [vmem:[%s1366] sm:$0xff] %v1365
  %v1368 = vld [vmem:[%s1045 + $0x10] sm:$0xff]
  %v1369 = vld [vmem:[%s1045 + $0x18] sm:$0xff]
  %v1370 = vsel %vm406, %v1359, 0
  %1372 = vmatprep.subr.mxu0 %v389
  %1373 = vmatpush1.msra.mxu0 %v388
  %1374 = vmatprep.subr.mxu0 %v391
  %1375 = vmatpush1.msra.mxu0 %v390
  %1376 = vmatprep.subr.mxu0 %v393
  %1377 = vmatpush1.msra.mxu0 %v392
  %1378 = vmatprep.subr.mxu0 %v395
  %1379 = vmatpush1.msra.mxu0 %v394
  %1380 = vmatprep.subr.mxu0 %v397
  %1381 = vmatpush1.msra.mxu0 %v396
  %1382 = vmatprep.subr.mxu0 %v399
  %1383 = vmatpush1.msra.mxu0 %v398
  %1384 = vmatprep.subr.mxu0 %v401
  %1385 = vmatpush1.msra.mxu0 %v400
  %1386 = vmatprep.subr.mxu0 %v403
  %1387 = vmatpush1.msra.mxu0 %v402
  %1388 = vmatprep.subr.mxu0 0.0
  %1389 = vmatpush1.msra.mxu0 0.0
  %1390 = vmatprep.subr.mxu0 0.0
  %1391 = vmatpush1.msra.mxu0 0.0
  %1392 = vmatprep.subr.mxu0 0.0
  %1393 = vmatpush1.msra.mxu0 0.0
  %1394 = vmatprep.subr.mxu0 0.0
  %1395 = vmatpush1.msra.mxu0 0.0
  %1396 = vmatprep.subr.mxu0 0.0
  %1397 = vmatpush1.msra.mxu0 0.0
  %1398 = vmatprep.subr.mxu0 0.0
  %1399 = vmatpush1.msra.mxu0 0.0
  %1400 = vmatprep.subr.mxu0 0.0
  %1401 = vmatpush1.msra.mxu0 0.0
  %1402 = vmatprep.subr.mxu0 0.0
  %1403 = vmatpush1.msra.mxu0 0.0
  %1404 = vmatprep.subr.mxu0 0.0
  %1405 = vmatpush1.msra.mxu0 0.0
  %1406 = vmatprep.subr.mxu0 0.0
  %1407 = vmatpush1.msra.mxu0 0.0
  %1408 = vmatprep.subr.mxu0 0.0
  %1409 = vmatpush1.msra.mxu0 0.0
  %1410 = vmatprep.subr.mxu0 0.0
  %1411 = vmatpush1.msra.mxu0 0.0
  %1412 = vmatprep.subr.mxu0 0.0
  %1413 = vmatpush1.msra.mxu0 0.0
  %1414 = vmatprep.subr.mxu0 0.0
  %1415 = vmatpush1.msra.mxu0 0.0
  %1416 = vmatprep.subr.mxu0 0.0
  %1417 = vmatpush1.msra.mxu0 0.0
  %1418 = vmatprep.subr.mxu0 0.0
  %1419 = vmatpush1.msra.mxu0 0.0
  %1420 = vmatprep.subr.mxu0 0.0
  %1421 = vmatpush1.msra.mxu0 0.0
  %1422 = vmatprep.subr.mxu0 0.0
  %1423 = vmatpush1.msra.mxu0 0.0
  %1424 = vmatprep.subr.mxu0 0.0
  %1425 = vmatpush1.msra.mxu0 0.0
  %1426 = vmatprep.subr.mxu0 0.0
  %1427 = vmatpush1.msra.mxu0 0.0
  %1428 = vmatprep.subr.mxu0 0.0
  %1429 = vmatpush1.msra.mxu0 0.0
  %1430 = vmatprep.subr.mxu0 0.0
  %1431 = vmatpush1.msra.mxu0 0.0
  %1432 = vmatprep.subr.mxu0 0.0
  %1433 = vmatpush1.msra.mxu0 0.0
  %1434 = vmatprep.subr.mxu0 0.0
  %1435 = vmatpush1.msra.mxu0 0.0
  %1436 = vmatprep.mubr.f32.mxu0 0.0
  %1437 = vmatmul.mubr.f32.gmra.mrb[0].mxu0 %v1370
  %v1438 = vpop.f32.mrb[0].mxu0
  %v1439 = vadd.f32 0.0, %v1438
  %v1440 = vpop.f32.mrb[0].mxu0
  %v1441 = vadd.f32 0.0, %v1440
  %1442 = vdwg.mxu0
  %v1443 = vadd.f32 %v1368, %v1439
  %v1444 = vadd.f32 %v1369, %v1441
  %v1445 = vmul.f32 %v1443, 0.5
  %v1446 = vmul.f32 %v1444, 0.5
  %v1447 = vtanh.pop %v1445
  %v1448 = vtanh.pop %v1446
  %v1449 = vmul.f32 %v1447, 0.5
  %v1450 = vmul.f32 %v1448, 0.5
  %v1451 = vadd.f32 %v1449, 0.5
  %v1452 = vadd.f32 %v1450, 0.5
  %v1453 = vtanh.pop %v1444
  %v1454 = vmul.f32 %v1451, %v1353
  %1456 = vrot.lane.b32.xlu0 %v1453, 64
  %v1457 = vpop.permute.xlu0 %1456
  %v1459 = vmul.f32 %v1451, %v1457
  %1461 = vrot.lane.b32.xlu0 %v1459, 64
  %v1462 = vpop.permute.xlu0 %1461
  %v1464 = vadd.f32 %v1454, %v1462
  %v1465 = vtanh.pop %v1464
  %1467 = vrot.lane.b32.xlu0 %v1465, 64
  %v1468 = vpop.permute.xlu0 %1467
  %v1470 = vmul.f32 %v1452, %v1468
  %v1471 = vld [vmem:[%s1150] sm:$0xff]
  %1473 = vrot.lane.b32.xlu0 %v1470, 64
  %v1474 = vpop.permute.xlu0 %1473
  %v1476 = vsel %vm406, %v1471, %v1474
  %s1477 = scalar_lea.vmem %s5, 48
  %1478 = vst [vmem:[%s1477] sm:$0xff] %v1476
  %v1479 = vld [vmem:[%s938 + $0x10] sm:$0xff]
  %v1480 = vld [vmem:[%s938 + $0x18] sm:$0xff]
  %v1481 = vsel %vm406, %v1470, 0
  %1483 = vmatprep.subr.mxu0 %v389
  %1484 = vmatpush1.msra.mxu0 %v388
  %1485 = vmatprep.subr.mxu0 %v391
  %1486 = vmatpush1.msra.mxu0 %v390
  %1487 = vmatprep.subr.mxu0 %v393
  %1488 = vmatpush1.msra.mxu0 %v392
  %1489 = vmatprep.subr.mxu0 %v395
  %1490 = vmatpush1.msra.mxu0 %v394
  %1491 = vmatprep.subr.mxu0 %v397
  %1492 = vmatpush1.msra.mxu0 %v396
  %1493 = vmatprep.subr.mxu0 %v399
  %1494 = vmatpush1.msra.mxu0 %v398
  %1495 = vmatprep.subr.mxu0 %v401
  %1496 = vmatpush1.msra.mxu0 %v400
  %1497 = vmatprep.subr.mxu0 %v403
  %1498 = vmatpush1.msra.mxu0 %v402
  %1499 = vmatprep.subr.mxu0 0.0
  %1500 = vmatpush1.msra.mxu0 0.0
  %1501 = vmatprep.subr.mxu0 0.0
  %1502 = vmatpush1.msra.mxu0 0.0
  %1503 = vmatprep.subr.mxu0 0.0
  %1504 = vmatpush1.msra.mxu0 0.0
  %1505 = vmatprep.subr.mxu0 0.0
  %1506 = vmatpush1.msra.mxu0 0.0
  %1507 = vmatprep.subr.mxu0 0.0
  %1508 = vmatpush1.msra.mxu0 0.0
  %1509 = vmatprep.subr.mxu0 0.0
  %1510 = vmatpush1.msra.mxu0 0.0
  %1511 = vmatprep.subr.mxu0 0.0
  %1512 = vmatpush1.msra.mxu0 0.0
  %1513 = vmatprep.subr.mxu0 0.0
  %1514 = vmatpush1.msra.mxu0 0.0
  %1515 = vmatprep.subr.mxu0 0.0
  %1516 = vmatpush1.msra.mxu0 0.0
  %1517 = vmatprep.subr.mxu0 0.0
  %1518 = vmatpush1.msra.mxu0 0.0
  %1519 = vmatprep.subr.mxu0 0.0
  %1520 = vmatpush1.msra.mxu0 0.0
  %1521 = vmatprep.subr.mxu0 0.0
  %1522 = vmatpush1.msra.mxu0 0.0
  %1523 = vmatprep.subr.mxu0 0.0
  %1524 = vmatpush1.msra.mxu0 0.0
  %1525 = vmatprep.subr.mxu0 0.0
  %1526 = vmatpush1.msra.mxu0 0.0
  %1527 = vmatprep.subr.mxu0 0.0
  %1528 = vmatpush1.msra.mxu0 0.0
  %1529 = vmatprep.subr.mxu0 0.0
  %1530 = vmatpush1.msra.mxu0 0.0
  %1531 = vmatprep.subr.mxu0 0.0
  %1532 = vmatpush1.msra.mxu0 0.0
  %1533 = vmatprep.subr.mxu0 0.0
  %1534 = vmatpush1.msra.mxu0 0.0
  %1535 = vmatprep.subr.mxu0 0.0
  %1536 = vmatpush1.msra.mxu0 0.0
  %1537 = vmatprep.subr.mxu0 0.0
  %1538 = vmatpush1.msra.mxu0 0.0
  %1539 = vmatprep.subr.mxu0 0.0
  %1540 = vmatpush1.msra.mxu0 0.0
  %1541 = vmatprep.subr.mxu0 0.0
  %1542 = vmatpush1.msra.mxu0 0.0
  %1543 = vmatprep.subr.mxu0 0.0
  %1544 = vmatpush1.msra.mxu0 0.0
  %1545 = vmatprep.subr.mxu0 0.0
  %1546 = vmatpush1.msra.mxu0 0.0
  %1547 = vmatprep.mubr.f32.mxu0 0.0
  %1548 = vmatmul.mubr.f32.gmra.mrb[0].mxu0 %v1481
  %v1549 = vpop.f32.mrb[0].mxu0
  %v1550 = vadd.f32 0.0, %v1549
  %v1551 = vpop.f32.mrb[0].mxu0
  %v1552 = vadd.f32 0.0, %v1551
  %1553 = vdwg.mxu0
  %v1554 = vadd.f32 %v1479, %v1550
  %v1555 = vadd.f32 %v1480, %v1552
  %v1556 = vmul.f32 %v1554, 0.5
  %v1557 = vmul.f32 %v1555, 0.5
  %v1558 = vtanh.pop %v1556
  %v1559 = vtanh.pop %v1557
  %v1560 = vmul.f32 %v1558, 0.5
  %v1561 = vmul.f32 %v1559, 0.5
  %v1562 = vadd.f32 %v1560, 0.5
  %v1563 = vadd.f32 %v1561, 0.5
  %v1564 = vtanh.pop %v1555
  %v1565 = vmul.f32 %v1562, %v1464
  %1567 = vrot.lane.b32.xlu0 %v1564, 64
  %v1568 = vpop.permute.xlu0 %1567
  %v1570 = vmul.f32 %v1562, %v1568
  %1572 = vrot.lane.b32.xlu0 %v1570, 64
  %v1573 = vpop.permute.xlu0 %1572
  %v1575 = vadd.f32 %v1565, %v1573
  %v1576 = vtanh.pop %v1575
  %1578 = vrot.lane.b32.xlu0 %v1576, 64
  %v1579 = vpop.permute.xlu0 %1578
  %v1581 = vmul.f32 %v1563, %v1579
  %v1582 = vld [vmem:[%s1043] sm:$0xff]
  %1584 = vrot.lane.b32.xlu0 %v1581, 64
  %v1585 = vpop.permute.xlu0 %1584
  %v1587 = vsel %vm406, %v1582, %v1585
  %s1588 = scalar_lea.vmem %s5, 40
  %1589 = vst [vmem:[%s1588] sm:$0xff] %v1587
  %v1590 = vld [vmem:[%s831 + $0x10] sm:$0xff]
  %v1591 = vld [vmem:[%s831 + $0x18] sm:$0xff]
  %v1592 = vsel %vm406, %v1581, 0
  %1594 = vmatprep.subr.mxu0 %v389
  %1595 = vmatpush1.msra.mxu0 %v388
  %1596 = vmatprep.subr.mxu0 %v391
  %1597 = vmatpush1.msra.mxu0 %v390
  %1598 = vmatprep.subr.mxu0 %v393
  %1599 = vmatpush1.msra.mxu0 %v392
  %1600 = vmatprep.subr.mxu0 %v395
  %1601 = vmatpush1.msra.mxu0 %v394
  %1602 = vmatprep.subr.mxu0 %v397
  %1603 = vmatpush1.msra.mxu0 %v396
  %1604 = vmatprep.subr.mxu0 %v399
  %1605 = vmatpush1.msra.mxu0 %v398
  %1606 = vmatprep.subr.mxu0 %v401
  %1607 = vmatpush1.msra.mxu0 %v400
  %1608 = vmatprep.subr.mxu0 %v403
  %1609 = vmatpush1.msra.mxu0 %v402
  %1610 = vmatprep.subr.mxu0 0.0
  %1611 = vmatpush1.msra.mxu0 0.0
  %1612 = vmatprep.subr.mxu0 0.0
  %1613 = vmatpush1.msra.mxu0 0.0
  %1614 = vmatprep.subr.mxu0 0.0
  %1615 = vmatpush1.msra.mxu0 0.0
  %1616 = vmatprep.subr.mxu0 0.0
  %1617 = vmatpush1.msra.mxu0 0.0
  %1618 = vmatprep.subr.mxu0 0.0
  %1619 = vmatpush1.msra.mxu0 0.0
  %1620 = vmatprep.subr.mxu0 0.0
  %1621 = vmatpush1.msra.mxu0 0.0
  %1622 = vmatprep.subr.mxu0 0.0
  %1623 = vmatpush1.msra.mxu0 0.0
  %1624 = vmatprep.subr.mxu0 0.0
  %1625 = vmatpush1.msra.mxu0 0.0
  %1626 = vmatprep.subr.mxu0 0.0
  %1627 = vmatpush1.msra.mxu0 0.0
  %1628 = vmatprep.subr.mxu0 0.0
  %1629 = vmatpush1.msra.mxu0 0.0
  %1630 = vmatprep.subr.mxu0 0.0
  %1631 = vmatpush1.msra.mxu0 0.0
  %1632 = vmatprep.subr.mxu0 0.0
  %1633 = vmatpush1.msra.mxu0 0.0
  %1634 = vmatprep.subr.mxu0 0.0
  %1635 = vmatpush1.msra.mxu0 0.0
  %1636 = vmatprep.subr.mxu0 0.0
  %1637 = vmatpush1.msra.mxu0 0.0
  %1638 = vmatprep.subr.mxu0 0.0
  %1639 = vmatpush1.msra.mxu0 0.0
  %1640 = vmatprep.subr.mxu0 0.0
  %1641 = vmatpush1.msra.mxu0 0.0
  %1642 = vmatprep.subr.mxu0 0.0
  %1643 = vmatpush1.msra.mxu0 0.0
  %1644 = vmatprep.subr.mxu0 0.0
  %1645 = vmatpush1.msra.mxu0 0.0
  %1646 = vmatprep.subr.mxu0 0.0
  %1647 = vmatpush1.msra.mxu0 0.0
  %1648 = vmatprep.subr.mxu0 0.0
  %1649 = vmatpush1.msra.mxu0 0.0
  %1650 = vmatprep.subr.mxu0 0.0
  %1651 = vmatpush1.msra.mxu0 0.0
  %1652 = vmatprep.subr.mxu0 0.0
  %1653 = vmatpush1.msra.mxu0 0.0
  %1654 = vmatprep.subr.mxu0 0.0
  %1655 = vmatpush1.msra.mxu0 0.0
  %1656 = vmatprep.subr.mxu0 0.0
  %1657 = vmatpush1.msra.mxu0 0.0
  %1658 = vmatprep.mubr.f32.mxu0 0.0
  %1659 = vmatmul.mubr.f32.gmra.mrb[0].mxu0 %v1592
  %v1660 = vpop.f32.mrb[0].mxu0
  %v1661 = vadd.f32 0.0, %v1660
  %v1662 = vpop.f32.mrb[0].mxu0
  %v1663 = vadd.f32 0.0, %v1662
  %1664 = vdwg.mxu0
  %v1665 = vadd.f32 %v1590, %v1661
  %v1666 = vadd.f32 %v1591, %v1663
  %v1667 = vmul.f32 %v1665, 0.5
  %v1668 = vmul.f32 %v1666, 0.5
  %v1669 = vtanh.pop %v1667
  %v1670 = vtanh.pop %v1668
  %v1671 = vmul.f32 %v1669, 0.5
  %v1672 = vmul.f32 %v1670, 0.5
  %v1673 = vadd.f32 %v1671, 0.5
  %v1674 = vadd.f32 %v1672, 0.5
  %v1675 = vtanh.pop %v1666
  %v1676 = vmul.f32 %v1673, %v1575
  %1678 = vrot.lane.b32.xlu0 %v1675, 64
  %v1679 = vpop.permute.xlu0 %1678
  %v1681 = vmul.f32 %v1673, %v1679
  %1683 = vrot.lane.b32.xlu0 %v1681, 64
  %v1684 = vpop.permute.xlu0 %1683
  %v1686 = vadd.f32 %v1676, %v1684
  %v1687 = vtanh.pop %v1686
  %1689 = vrot.lane.b32.xlu0 %v1687, 64
  %v1690 = vpop.permute.xlu0 %1689
  %v1692 = vmul.f32 %v1674, %v1690
  %v1693 = vld [vmem:[%s936] sm:$0xff]
  %1695 = vrot.lane.b32.xlu0 %v1692, 64
  %v1696 = vpop.permute.xlu0 %1695
  %v1698 = vsel %vm406, %v1693, %v1696
  %s1699 = scalar_lea.vmem %s5, 32
  %1700 = vst [vmem:[%s1699] sm:$0xff] %v1698
  %v1701 = vld [vmem:[%s724 + $0x10] sm:$0xff]
  %v1702 = vld [vmem:[%s724 + $0x18] sm:$0xff]
  %v1703 = vsel %vm406, %v1692, 0
  %1705 = vmatprep.subr.mxu0 %v389
  %1706 = vmatpush1.msra.mxu0 %v388
  %1707 = vmatprep.subr.mxu0 %v391
  %1708 = vmatpush1.msra.mxu0 %v390
  %1709 = vmatprep.subr.mxu0 %v393
  %1710 = vmatpush1.msra.mxu0 %v392
  %1711 = vmatprep.subr.mxu0 %v395
  %1712 = vmatpush1.msra.mxu0 %v394
  %1713 = vmatprep.subr.mxu0 %v397
  %1714 = vmatpush1.msra.mxu0 %v396
  %1715 = vmatprep.subr.mxu0 %v399
  %1716 = vmatpush1.msra.mxu0 %v398
  %1717 = vmatprep.subr.mxu0 %v401
  %1718 = vmatpush1.msra.mxu0 %v400
  %1719 = vmatprep.subr.mxu0 %v403
  %1720 = vmatpush1.msra.mxu0 %v402
  %1721 = vmatprep.subr.mxu0 0.0
  %1722 = vmatpush1.msra.mxu0 0.0
  %1723 = vmatprep.subr.mxu0 0.0
  %1724 = vmatpush1.msra.mxu0 0.0
  %1725 = vmatprep.subr.mxu0 0.0
  %1726 = vmatpush1.msra.mxu0 0.0
  %1727 = vmatprep.subr.mxu0 0.0
  %1728 = vmatpush1.msra.mxu0 0.0
  %1729 = vmatprep.subr.mxu0 0.0
  %1730 = vmatpush1.msra.mxu0 0.0
  %1731 = vmatprep.subr.mxu0 0.0
  %1732 = vmatpush1.msra.mxu0 0.0
  %1733 = vmatprep.subr.mxu0 0.0
  %1734 = vmatpush1.msra.mxu0 0.0
  %1735 = vmatprep.subr.mxu0 0.0
  %1736 = vmatpush1.msra.mxu0 0.0
  %1737 = vmatprep.subr.mxu0 0.0
  %1738 = vmatpush1.msra.mxu0 0.0
  %1739 = vmatprep.subr.mxu0 0.0
  %1740 = vmatpush1.msra.mxu0 0.0
  %1741 = vmatprep.subr.mxu0 0.0
  %1742 = vmatpush1.msra.mxu0 0.0
  %1743 = vmatprep.subr.mxu0 0.0
  %1744 = vmatpush1.msra.mxu0 0.0
  %1745 = vmatprep.subr.mxu0 0.0
  %1746 = vmatpush1.msra.mxu0 0.0
  %1747 = vmatprep.subr.mxu0 0.0
  %1748 = vmatpush1.msra.mxu0 0.0
  %1749 = vmatprep.subr.mxu0 0.0
  %1750 = vmatpush1.msra.mxu0 0.0
  %1751 = vmatprep.subr.mxu0 0.0
  %1752 = vmatpush1.msra.mxu0 0.0
  %1753 = vmatprep.subr.mxu0 0.0
  %1754 = vmatpush1.msra.mxu0 0.0
  %1755 = vmatprep.subr.mxu0 0.0
  %1756 = vmatpush1.msra.mxu0 0.0
  %1757 = vmatprep.subr.mxu0 0.0
  %1758 = vmatpush1.msra.mxu0 0.0
  %1759 = vmatprep.subr.mxu0 0.0
  %1760 = vmatpush1.msra.mxu0 0.0
  %1761 = vmatprep.subr.mxu0 0.0
  %1762 = vmatpush1.msra.mxu0 0.0
  %1763 = vmatprep.subr.mxu0 0.0
  %1764 = vmatpush1.msra.mxu0 0.0
  %1765 = vmatprep.subr.mxu0 0.0
  %1766 = vmatpush1.msra.mxu0 0.0
  %1767 = vmatprep.subr.mxu0 0.0
  %1768 = vmatpush1.msra.mxu0 0.0
  %1769 = vmatprep.mubr.f32.mxu0 0.0
  %1770 = vmatmul.mubr.f32.gmra.mrb[0].mxu0 %v1703
  %v1771 = vpop.f32.mrb[0].mxu0
  %v1772 = vadd.f32 0.0, %v1771
  %v1773 = vpop.f32.mrb[0].mxu0
  %v1774 = vadd.f32 0.0, %v1773
  %1775 = vdwg.mxu0
  %v1776 = vadd.f32 %v1701, %v1772
  %v1777 = vadd.f32 %v1702, %v1774
  %v1778 = vmul.f32 %v1776, 0.5
  %v1779 = vmul.f32 %v1777, 0.5
  %v1780 = vtanh.pop %v1778
  %v1781 = vtanh.pop %v1779
  %v1782 = vmul.f32 %v1780, 0.5
  %v1783 = vmul.f32 %v1781, 0.5
  %v1784 = vadd.f32 %v1782, 0.5
  %v1785 = vadd.f32 %v1783, 0.5
  %v1786 = vtanh.pop %v1777
  %v1787 = vmul.f32 %v1784, %v1686
  %1789 = vrot.lane.b32.xlu0 %v1786, 64
  %v1790 = vpop.permute.xlu0 %1789
  %v1792 = vmul.f32 %v1784, %v1790
  %1794 = vrot.lane.b32.xlu0 %v1792, 64
  %v1795 = vpop.permute.xlu0 %1794
  %v1797 = vadd.f32 %v1787, %v1795
  %v1798 = vtanh.pop %v1797
  %1800 = vrot.lane.b32.xlu0 %v1798, 64
  %v1801 = vpop.permute.xlu0 %1800
  %v1803 = vmul.f32 %v1785, %v1801
  %v1804 = vld [vmem:[%s829] sm:$0xff]
  %1806 = vrot.lane.b32.xlu0 %v1803, 64
  %v1807 = vpop.permute.xlu0 %1806
  %v1809 = vsel %vm406, %v1804, %v1807
  %s1810 = scalar_lea.vmem %s5, 24
  %1811 = vst [vmem:[%s1810] sm:$0xff] %v1809
  %v1812 = vld [vmem:[%s617 + $0x10] sm:$0xff]
  %v1813 = vld [vmem:[%s617 + $0x18] sm:$0xff]
  %v1814 = vsel %vm406, %v1803, 0
  %1816 = vmatprep.subr.mxu0 %v389
  %1817 = vmatpush1.msra.mxu0 %v388
  %1818 = vmatprep.subr.mxu0 %v391
  %1819 = vmatpush1.msra.mxu0 %v390
  %1820 = vmatprep.subr.mxu0 %v393
  %1821 = vmatpush1.msra.mxu0 %v392
  %1822 = vmatprep.subr.mxu0 %v395
  %1823 = vmatpush1.msra.mxu0 %v394
  %1824 = vmatprep.subr.mxu0 %v397
  %1825 = vmatpush1.msra.mxu0 %v396
  %1826 = vmatprep.subr.mxu0 %v399
  %1827 = vmatpush1.msra.mxu0 %v398
  %1828 = vmatprep.subr.mxu0 %v401
  %1829 = vmatpush1.msra.mxu0 %v400
  %1830 = vmatprep.subr.mxu0 %v403
  %1831 = vmatpush1.msra.mxu0 %v402
  %1832 = vmatprep.subr.mxu0 0.0
  %1833 = vmatpush1.msra.mxu0 0.0
  %1834 = vmatprep.subr.mxu0 0.0
  %1835 = vmatpush1.msra.mxu0 0.0
  %1836 = vmatprep.subr.mxu0 0.0
  %1837 = vmatpush1.msra.mxu0 0.0
  %1838 = vmatprep.subr.mxu0 0.0
  %1839 = vmatpush1.msra.mxu0 0.0
  %1840 = vmatprep.subr.mxu0 0.0
  %1841 = vmatpush1.msra.mxu0 0.0
  %1842 = vmatprep.subr.mxu0 0.0
  %1843 = vmatpush1.msra.mxu0 0.0
  %1844 = vmatprep.subr.mxu0 0.0
  %1845 = vmatpush1.msra.mxu0 0.0
  %1846 = vmatprep.subr.mxu0 0.0
  %1847 = vmatpush1.msra.mxu0 0.0
  %1848 = vmatprep.subr.mxu0 0.0
  %1849 = vmatpush1.msra.mxu0 0.0
  %1850 = vmatprep.subr.mxu0 0.0
  %1851 = vmatpush1.msra.mxu0 0.0
  %1852 = vmatprep.subr.mxu0 0.0
  %1853 = vmatpush1.msra.mxu0 0.0
  %1854 = vmatprep.subr.mxu0 0.0
  %1855 = vmatpush1.msra.mxu0 0.0
  %1856 = vmatprep.subr.mxu0 0.0
  %1857 = vmatpush1.msra.mxu0 0.0
  %1858 = vmatprep.subr.mxu0 0.0
  %1859 = vmatpush1.msra.mxu0 0.0
  %1860 = vmatprep.subr.mxu0 0.0
  %1861 = vmatpush1.msra.mxu0 0.0
  %1862 = vmatprep.subr.mxu0 0.0
  %1863 = vmatpush1.msra.mxu0 0.0
  %1864 = vmatprep.subr.mxu0 0.0
  %1865 = vmatpush1.msra.mxu0 0.0
  %1866 = vmatprep.subr.mxu0 0.0
  %1867 = vmatpush1.msra.mxu0 0.0
  %1868 = vmatprep.subr.mxu0 0.0
  %1869 = vmatpush1.msra.mxu0 0.0
  %1870 = vmatprep.subr.mxu0 0.0
  %1871 = vmatpush1.msra.mxu0 0.0
  %1872 = vmatprep.subr.mxu0 0.0
  %1873 = vmatpush1.msra.mxu0 0.0
  %1874 = vmatprep.subr.mxu0 0.0
  %1875 = vmatpush1.msra.mxu0 0.0
  %1876 = vmatprep.subr.mxu0 0.0
  %1877 = vmatpush1.msra.mxu0 0.0
  %1878 = vmatprep.subr.mxu0 0.0
  %1879 = vmatpush1.msra.mxu0 0.0
  %1880 = vmatprep.mubr.f32.mxu0 0.0
  %1881 = vmatmul.mubr.f32.gmra.mrb[0].mxu0 %v1814
  %v1882 = vpop.f32.mrb[0].mxu0
  %v1883 = vadd.f32 0.0, %v1882
  %v1884 = vpop.f32.mrb[0].mxu0
  %v1885 = vadd.f32 0.0, %v1884
  %1886 = vdwg.mxu0
  %v1887 = vadd.f32 %v1812, %v1883
  %v1888 = vadd.f32 %v1813, %v1885
  %v1889 = vmul.f32 %v1887, 0.5
  %v1890 = vmul.f32 %v1888, 0.5
  %v1891 = vtanh.pop %v1889
  %v1892 = vtanh.pop %v1890
  %v1893 = vmul.f32 %v1891, 0.5
  %v1894 = vmul.f32 %v1892, 0.5
  %v1895 = vadd.f32 %v1893, 0.5
  %v1896 = vadd.f32 %v1894, 0.5
  %v1897 = vtanh.pop %v1888
  %v1898 = vmul.f32 %v1895, %v1797
  %1900 = vrot.lane.b32.xlu0 %v1897, 64
  %v1901 = vpop.permute.xlu0 %1900
  %v1903 = vmul.f32 %v1895, %v1901
  %1905 = vrot.lane.b32.xlu0 %v1903, 64
  %v1906 = vpop.permute.xlu0 %1905
  %v1908 = vadd.f32 %v1898, %v1906
  %v1909 = vtanh.pop %v1908
  %1911 = vrot.lane.b32.xlu0 %v1909, 64
  %v1912 = vpop.permute.xlu0 %1911
  %v1914 = vmul.f32 %v1896, %v1912
  %v1915 = vld [vmem:[%s722] sm:$0xff]
  %1917 = vrot.lane.b32.xlu0 %v1914, 64
  %v1918 = vpop.permute.xlu0 %1917
  %v1920 = vsel %vm406, %v1915, %v1918
  %s1921 = scalar_lea.vmem %s5, 16
  %1922 = vst [vmem:[%s1921] sm:$0xff] %v1920
  %v1923 = vld [vmem:[%s510 + $0x10] sm:$0xff]
  %v1924 = vld [vmem:[%s510 + $0x18] sm:$0xff]
  %v1925 = vsel %vm406, %v1914, 0
  %1927 = vmatprep.subr.mxu0 %v389
  %1928 = vmatpush1.msra.mxu0 %v388
  %1929 = vmatprep.subr.mxu0 %v391
  %1930 = vmatpush1.msra.mxu0 %v390
  %1931 = vmatprep.subr.mxu0 %v393
  %1932 = vmatpush1.msra.mxu0 %v392
  %1933 = vmatprep.subr.mxu0 %v395
  %1934 = vmatpush1.msra.mxu0 %v394
  %1935 = vmatprep.subr.mxu0 %v397
  %1936 = vmatpush1.msra.mxu0 %v396
  %1937 = vmatprep.subr.mxu0 %v399
  %1938 = vmatpush1.msra.mxu0 %v398
  %1939 = vmatprep.subr.mxu0 %v401
  %1940 = vmatpush1.msra.mxu0 %v400
  %1941 = vmatprep.subr.mxu0 %v403
  %1942 = vmatpush1.msra.mxu0 %v402
  %1943 = vmatprep.subr.mxu0 0.0
  %1944 = vmatpush1.msra.mxu0 0.0
  %1945 = vmatprep.subr.mxu0 0.0
  %1946 = vmatpush1.msra.mxu0 0.0
  %1947 = vmatprep.subr.mxu0 0.0
  %1948 = vmatpush1.msra.mxu0 0.0
  %1949 = vmatprep.subr.mxu0 0.0
  %1950 = vmatpush1.msra.mxu0 0.0
  %1951 = vmatprep.subr.mxu0 0.0
  %1952 = vmatpush1.msra.mxu0 0.0
  %1953 = vmatprep.subr.mxu0 0.0
  %1954 = vmatpush1.msra.mxu0 0.0
  %1955 = vmatprep.subr.mxu0 0.0
  %1956 = vmatpush1.msra.mxu0 0.0
  %1957 = vmatprep.subr.mxu0 0.0
  %1958 = vmatpush1.msra.mxu0 0.0
  %1959 = vmatprep.subr.mxu0 0.0
  %1960 = vmatpush1.msra.mxu0 0.0
  %1961 = vmatprep.subr.mxu0 0.0
  %1962 = vmatpush1.msra.mxu0 0.0
  %1963 = vmatprep.subr.mxu0 0.0
  %1964 = vmatpush1.msra.mxu0 0.0
  %1965 = vmatprep.subr.mxu0 0.0
  %1966 = vmatpush1.msra.mxu0 0.0
  %1967 = vmatprep.subr.mxu0 0.0
  %1968 = vmatpush1.msra.mxu0 0.0
  %1969 = vmatprep.subr.mxu0 0.0
  %1970 = vmatpush1.msra.mxu0 0.0
  %1971 = vmatprep.subr.mxu0 0.0
  %1972 = vmatpush1.msra.mxu0 0.0
  %1973 = vmatprep.subr.mxu0 0.0
  %1974 = vmatpush1.msra.mxu0 0.0
  %1975 = vmatprep.subr.mxu0 0.0
  %1976 = vmatpush1.msra.mxu0 0.0
  %1977 = vmatprep.subr.mxu0 0.0
  %1978 = vmatpush1.msra.mxu0 0.0
  %1979 = vmatprep.subr.mxu0 0.0
  %1980 = vmatpush1.msra.mxu0 0.0
  %1981 = vmatprep.subr.mxu0 0.0
  %1982 = vmatpush1.msra.mxu0 0.0
  %1983 = vmatprep.subr.mxu0 0.0
  %1984 = vmatpush1.msra.mxu0 0.0
  %1985 = vmatprep.subr.mxu0 0.0
  %1986 = vmatpush1.msra.mxu0 0.0
  %1987 = vmatprep.subr.mxu0 0.0
  %1988 = vmatpush1.msra.mxu0 0.0
  %1989 = vmatprep.subr.mxu0 0.0
  %1990 = vmatpush1.msra.mxu0 0.0
  %1991 = vmatprep.mubr.f32.mxu0 0.0
  %1992 = vmatmul.mubr.f32.gmra.mrb[0].mxu0 %v1925
  %v1993 = vpop.f32.mrb[0].mxu0
  %v1994 = vadd.f32 0.0, %v1993
  %v1995 = vpop.f32.mrb[0].mxu0
  %v1996 = vadd.f32 0.0, %v1995
  %1997 = vdwg.mxu0
  %v1998 = vadd.f32 %v1923, %v1994
  %v1999 = vadd.f32 %v1924, %v1996
  %v2000 = vmul.f32 %v1998, 0.5
  %v2001 = vmul.f32 %v1999, 0.5
  %v2002 = vtanh.pop %v2000
  %v2003 = vtanh.pop %v2001
  %v2004 = vmul.f32 %v2002, 0.5
  %v2005 = vmul.f32 %v2003, 0.5
  %v2006 = vadd.f32 %v2004, 0.5
  %v2007 = vadd.f32 %v2005, 0.5
  %v2008 = vtanh.pop %v1999
  %v2009 = vmul.f32 %v2006, %v1908
  %2011 = vrot.lane.b32.xlu0 %v2008, 64
  %v2012 = vpop.permute.xlu0 %2011
  %v2014 = vmul.f32 %v2006, %v2012
  %2016 = vrot.lane.b32.xlu0 %v2014, 64
  %v2017 = vpop.permute.xlu0 %2016
  %v2019 = vadd.f32 %v2009, %v2017
  %v2020 = vtanh.pop %v2019
  %2022 = vrot.lane.b32.xlu0 %v2020, 64
  %v2023 = vpop.permute.xlu0 %2022
  %v2025 = vmul.f32 %v2007, %v2023
  %v2026 = vld [vmem:[%s615] sm:$0xff]
  %2028 = vrot.lane.b32.xlu0 %v2025, 64
  %v2029 = vpop.permute.xlu0 %2028
  %v2031 = vsel %vm406, %v2026, %v2029
  %s2032 = scalar_lea.vmem %s5, 8
  %2033 = vst [vmem:[%s2032] sm:$0xff] %v2031
  %v2034 = vld [vmem:[#allocation2 + $0x10] sm:$0xff]
  %v2035 = vld [vmem:[#allocation2 + $0x18] sm:$0xff]
  %v2036 = vsel %vm406, %v2025, 0
  %2038 = vmatprep.subr.mxu0 %v389
  %2039 = vmatpush1.msra.mxu0 %v388
  %2040 = vmatprep.subr.mxu0 %v391
  %2041 = vmatpush1.msra.mxu0 %v390
  %2042 = vmatprep.subr.mxu0 %v393
  %2043 = vmatpush1.msra.mxu0 %v392
  %2044 = vmatprep.subr.mxu0 %v395
  %2045 = vmatpush1.msra.mxu0 %v394
  %2046 = vmatprep.subr.mxu0 %v397
  %2047 = vmatpush1.msra.mxu0 %v396
  %2048 = vmatprep.subr.mxu0 %v399
  %2049 = vmatpush1.msra.mxu0 %v398
  %2050 = vmatprep.subr.mxu0 %v401
  %2051 = vmatpush1.msra.mxu0 %v400
  %2052 = vmatprep.subr.mxu0 %v403
  %2053 = vmatpush1.msra.mxu0 %v402
  %2054 = vmatprep.subr.mxu0 0.0
  %2055 = vmatpush1.msra.mxu0 0.0
  %2056 = vmatprep.subr.mxu0 0.0
  %2057 = vmatpush1.msra.mxu0 0.0
  %2058 = vmatprep.subr.mxu0 0.0
  %2059 = vmatpush1.msra.mxu0 0.0
  %2060 = vmatprep.subr.mxu0 0.0
  %2061 = vmatpush1.msra.mxu0 0.0
  %2062 = vmatprep.subr.mxu0 0.0
  %2063 = vmatpush1.msra.mxu0 0.0
  %2064 = vmatprep.subr.mxu0 0.0
  %2065 = vmatpush1.msra.mxu0 0.0
  %2066 = vmatprep.subr.mxu0 0.0
  %2067 = vmatpush1.msra.mxu0 0.0
  %2068 = vmatprep.subr.mxu0 0.0
  %2069 = vmatpush1.msra.mxu0 0.0
  %2070 = vmatprep.subr.mxu0 0.0
  %2071 = vmatpush1.msra.mxu0 0.0
  %2072 = vmatprep.subr.mxu0 0.0
  %2073 = vmatpush1.msra.mxu0 0.0
  %2074 = vmatprep.subr.mxu0 0.0
  %2075 = vmatpush1.msra.mxu0 0.0
  %2076 = vmatprep.subr.mxu0 0.0
  %2077 = vmatpush1.msra.mxu0 0.0
  %2078 = vmatprep.subr.mxu0 0.0
  %2079 = vmatpush1.msra.mxu0 0.0
  %2080 = vmatprep.subr.mxu0 0.0
  %2081 = vmatpush1.msra.mxu0 0.0
  %2082 = vmatprep.subr.mxu0 0.0
  %2083 = vmatpush1.msra.mxu0 0.0
  %2084 = vmatprep.subr.mxu0 0.0
  %2085 = vmatpush1.msra.mxu0 0.0
  %2086 = vmatprep.subr.mxu0 0.0
  %2087 = vmatpush1.msra.mxu0 0.0
  %2088 = vmatprep.subr.mxu0 0.0
  %2089 = vmatpush1.msra.mxu0 0.0
  %2090 = vmatprep.subr.mxu0 0.0
  %2091 = vmatpush1.msra.mxu0 0.0
  %2092 = vmatprep.subr.mxu0 0.0
  %2093 = vmatpush1.msra.mxu0 0.0
  %2094 = vmatprep.subr.mxu0 0.0
  %2095 = vmatpush1.msra.mxu0 0.0
  %2096 = vmatprep.subr.mxu0 0.0
  %2097 = vmatpush1.msra.mxu0 0.0
  %2098 = vmatprep.subr.mxu0 0.0
  %2099 = vmatpush1.msra.mxu0 0.0
  %2100 = vmatprep.subr.mxu0 0.0
  %2101 = vmatpush1.msra.mxu0 0.0
  %2102 = vmatprep.mubr.f32.mxu0 0.0
  %2103 = vmatmul.mubr.f32.gmra.mrb[0].mxu0 %v2036
  %v2104 = vpop.f32.mrb[0].mxu0
  %v2105 = vadd.f32 0.0, %v2104
  %v2106 = vpop.f32.mrb[0].mxu0
  %v2107 = vadd.f32 0.0, %v2106
  %2108 = vdwg.mxu0
  %v2109 = vadd.f32 %v2034, %v2105
  %v2110 = vadd.f32 %v2035, %v2107
  %v2111 = vmul.f32 %v2109, 0.5
  %v2112 = vmul.f32 %v2110, 0.5
  %v2113 = vtanh.pop %v2111
  %v2114 = vtanh.pop %v2112
  %v2115 = vmul.f32 %v2113, 0.5
  %v2116 = vmul.f32 %v2114, 0.5
  %v2117 = vadd.f32 %v2115, 0.5
  %v2118 = vadd.f32 %v2116, 0.5
  %v2119 = vtanh.pop %v2110
  %v2120 = vmul.f32 %v2117, %v2019
  %2122 = vrot.lane.b32.xlu0 %v2119, 64
  %v2123 = vpop.permute.xlu0 %2122
  %v2125 = vmul.f32 %v2117, %v2123
  %2127 = vrot.lane.b32.xlu0 %v2125, 64
  %v2128 = vpop.permute.xlu0 %2127
  %v2130 = vadd.f32 %v2120, %v2128
  %v2131 = vtanh.pop %v2130
  %2133 = vrot.lane.b32.xlu0 %v2131, 64
  %v2134 = vpop.permute.xlu0 %2133
  %v2136 = vmul.f32 %v2118, %v2134
  %v2137 = vld [vmem:[#allocation3] sm:$0xff]
  %2139 = vrot.lane.b32.xlu0 %v2136, 64
  %v2140 = vpop.permute.xlu0 %2139
  %v2142 = vsel %vm406, %v2137, %v2140
  %2143 = vst [vmem:[%s5] sm:$0xff] %v2142
  // Predicated region
  $region22: #{attention_birnn_forward.6} parent=0 // pred_check
    _
  $region23: #{attention_birnn_forward.6} parent=0 // pred_check_branch
    %2145 = sbr.rel (0) target = $region25
  $region24: #{attention_birnn_forward.6} parent=0 // pred_region
    _
  $region25: #{attention_birnn_forward.6} parent=0 // pred_fallthru
    _
  // Predicated region
  $region26: #{attention_birnn_forward.6} parent=0 // pred_check
    _
  $region27: #{attention_birnn_forward.6} parent=0 // pred_check_branch
    %2147 = sbr.rel (0) target = $region29
  $region28: #{attention_birnn_forward.6} parent=0 // pred_region
    _
  $region29: #{attention_birnn_forward.6} parent=0 // pred_fallthru
    _

</llo_original>
